<compile_context>
chip_gen: v6e
topology: v6e:2x2x1
jax: 0.10.0
libtpu: 0.0.40
codegen_flags: <defaults>
</compile_context>

<pallas_src>
import functools

import jax
import jax.numpy as jnp
from jax import lax
from jax.experimental import pallas as pl
from jax.experimental.pallas import tpu as pltpu


def _round_up(x, m):
    return (x + m - 1) // m * m


def _dwsep_kernel(*refs, k, H, W, d_tile, cin):
    # refs = [plane_0 .. plane_{d_tile+k-2}, wc, out, slab_scratch]
    #   plane_j: (1, 1, Hp, Wp, Cin)        padded input plane d = t*d_tile + j
    #   wc:      (k, k*k*Cin, Cout_p)       depthwise folded into pointwise
    #   out:     (1, d_tile, H*W, Cout_p)
    #   slab:    (d_tile+k-1, H*W, k*k*Cin) VMEM im2col scratch
    n_planes = d_tile + k - 1
    plane_refs = refs[:n_planes]
    wc_ref = refs[n_planes]
    o_ref = refs[n_planes + 1]
    slab_ref = refs[n_planes + 2]

    hw = H * W
    k2cin = k * k * cin

    # --- Stage 1: im2col each halo plane exactly once ---------------------
    # A plane feeds up to k output planes (different kd); packing its (kh,kw)
    # taps once cuts the shifted-window relayout copies ~k-fold vs per-tap.
    # Taps are sliced straight from the refs (narrow live values, no hoist).
    for j in range(n_planes):
        taps = [
            plane_refs[j][0, 0, kh:kh + H, kw:kw + W, :].reshape(hw, cin)
            for kh in range(k) for kw in range(k)
        ]
        slab_ref[j] = jnp.concatenate(taps, axis=-1)          # (hw, k2cin)

    # --- Stage 2: k fat matmuls with register/MRB-resident accumulation ---
    # M = d_tile*H*W (output planes stacked into M), K = k*k*Cin, N = Cout_p.
    acc = None
    for kd in range(k):
        lhs = slab_ref[pl.ds(kd, d_tile)].reshape(d_tile * hw, k2cin)
        part = jnp.dot(lhs, wc_ref[kd], preferred_element_type=jnp.float32)
        acc = part if kd == 0 else acc + part

    # Single lane-dense store of the whole output tile (Cout_p multiple of 128).
    cout_p = acc.shape[-1]
    o_ref[0] = acc.reshape(d_tile, hw, cout_p).astype(o_ref.dtype)


def _pick_d_tile(D, H, W, cin, cout_p, k, itemsize, budget_bytes, max_d_tile):
    """Largest d_tile whose estimated VMEM footprint fits the budget."""
    hp, wp = H + k - 1, W + k - 1
    hw = H * W
    best = 1
    for t in range(1, max(1, min(D, max_d_tile)) + 1):
        n_planes = t + k - 1
        footprint = (
            n_planes * 2 * hp * wp * cin * itemsize      # halo planes, double-buffered
            + 2 * k * k * k * cin * cout_p * itemsize    # weight, double-buffered
            + 2 * t * hw * cout_p * itemsize             # output tile, double-buffered
            + n_planes * hw * k * k * cin * itemsize     # im2col scratch
            + t * hw * cout_p * 4                        # f32 accumulator
        )
        if footprint <= budget_bytes:
            best = t
    return best


def dwsep_conv3d(x_ncdhw, w_dw, w_pw, *, k=3, stride=1, pad=None,
                 compute_dtype=None, max_d_tile=8,
                 vmem_budget_bytes=20 * 1024 * 1024):
    """x: (N, Cin, D, H, W); w_dw: (Cin, 1, k, k, k); w_pw: (Cout, Cin, 1, 1, 1)."""
    pad = k // 2 if pad is None else pad
    if stride != 1:
        # TODO(synk): strided depthwise-separable conv not implemented.
        raise NotImplementedError("only stride=1 is implemented")
    if k % 2 != 1 or pad != k // 2:
        raise NotImplementedError("only 'same' conv (odd k, pad=k//2) is implemented")

    N, Cin, D, H, W = x_ncdhw.shape
    Cout = w_pw.shape[0]
    cout_p = _round_up(Cout, 128)                 # lane-dense MXU N dim & stores
    compute_dtype = x_ncdhw.dtype if compute_dtype is None else jnp.dtype(compute_dtype)
    itemsize = jnp.dtype(compute_dtype).itemsize

    d_tile = _pick_d_tile(D, H, W, Cin, cout_p, k, itemsize,
                          vmem_budget_bytes, max_d_tile)
    D_pad = _round_up(D, d_tile)                  # ragged D handled by zero-padding
    n_planes = d_tile + k - 1

    # Layout glue (single fused XLA pass): NCDHW -> NDHWC + zero halo (+ ragged D).
    x = jnp.transpose(x_ncdhw, (0, 2, 3, 4, 1))                           # (N,D,H,W,Cin)
    xp = jnp.pad(x, ((0, 0), (pad, pad + D_pad - D), (pad, pad), (pad, pad), (0, 0)))
    xp = xp.astype(compute_dtype)
    Hp, Wp = H + 2 * pad, W + 2 * pad

    # Fold depthwise into pointwise in f32, cast once; per-kd 2-D-lane-dense layout.
    wdw = jnp.transpose(w_dw[:, 0], (1, 2, 3, 0)).astype(jnp.float32)     # (k,k,k,Cin)
    wpw = jnp.transpose(w_pw[:, :, 0, 0, 0], (1, 0)).astype(jnp.float32)  # (Cin,Cout)
    wc = (wdw[..., None] * wpw[None, None, None]).reshape(k, k * k * Cin, Cout)
    wc = jnp.pad(wc, ((0, 0), (0, 0), (0, cout_p - Cout))).astype(compute_dtype)

    kernel = functools.partial(_dwsep_kernel, k=k, H=H, W=W, d_tile=d_tile, cin=Cin)

    def plane_spec(j):
        # Block size 1 along padded D => block index is the element index
        # t*d_tile + j, giving the overlapping halo reads.
        return pl.BlockSpec((1, 1, Hp, Wp, Cin),
                            lambda n, t, j=j: (n, t * d_tile + j, 0, 0, 0))

    # TODO(synk): single-buffer the constant weight and replace the overlapping
    # halo plane specs with a manual rolling DMA ring (pl.ANY + make_async_copy)
    # to remove the (d_tile+k-1)/d_tile HBM over-read.
    out_p = pl.pallas_call(
        kernel,
        out_shape=jax.ShapeDtypeStruct((N, D_pad, H * W, cout_p), x_ncdhw.dtype),
        grid_spec=pltpu.PrefetchScalarGridSpec(
            num_scalar_prefetch=0,
            grid=(N, D_pad // d_tile),
            in_specs=[plane_spec(j) for j in range(n_planes)]
                     + [pl.BlockSpec((k, k * k * Cin, cout_p),
                                     lambda n, t: (0, 0, 0))],
            out_specs=pl.BlockSpec((1, d_tile, H * W, cout_p),
                                   lambda n, t: (n, t, 0, 0)),
            scratch_shapes=[pltpu.VMEM((n_planes, H * W, k * k * Cin),
                                       compute_dtype)],
        ),
        compiler_params=pltpu.CompilerParams(
            dimension_semantics=("parallel", "parallel"),
            vmem_limit_bytes=32 * 1024 * 1024),
    )(*([xp] * n_planes), wc)

    # Strip D/channel padding, back to PyTorch NCDHW layout.
    out = out_p[:, :D, :, :Cout].reshape(N, D, H, W, Cout)
    return jnp.transpose(out, (0, 4, 1, 2, 3))


def _reference(x, w_dw, w_pw, pad):
    """Pure-JAX reference matching nn.Conv3d(groups=in_ch) + 1x1x1 Conv3d."""
    dn = lax.conv_dimension_numbers(x.shape, w_dw.shape,
                                    ('NCDHW', 'OIDHW', 'NCDHW'))
    y = lax.conv_general_dilated(x, w_dw, (1, 1, 1), [(pad, pad)] * 3,
                                 dimension_numbers=dn,
                                 feature_group_count=x.shape[1])
    dn2 = lax.conv_dimension_numbers(y.shape, w_pw.shape,
                                     ('NCDHW', 'OIDHW', 'NCDHW'))
    return lax.conv_general_dilated(y, w_pw, (1, 1, 1), [(0, 0)] * 3,
                                    dimension_numbers=dn2)


if __name__ == "__main__":
    N, Cin, Cout, D, H, W, K = 2, 4, 8, 8, 8, 8, 3

    key = jax.random.PRNGKey(0)
    kx, kdw, kpw = jax.random.split(key, 3)
    x = jax.random.normal(kx, (N, Cin, D, H, W), jnp.float32)
    w_dw = jax.random.normal(kdw, (Cin, 1, K, K, K), jnp.float32) * 0.1
    w_pw = jax.random.normal(kpw, (Cout, Cin, 1, 1, 1), jnp.float32) * 0.1

    out = jax.block_until_ready(dwsep_conv3d(x, w_dw, w_pw, k=K))
    ref = jax.block_until_ready(_reference(x, w_dw, w_pw, pad=K // 2))

    assert out.shape == (N, Cout, D, H, W), out.shape
    assert jnp.allclose(out, ref, atol=1e-4, rtol=1e-4), float(
        jnp.max(jnp.abs(out - ref)))

    print("KERNEL_OK")
</pallas_src>

<mosaic_0001>
module attributes {stable_mosaic.version = 11 : i64} {
  func.func @_dwsep_kernel(%arg0: i32, %arg1: i32, %arg2: memref<1x1x10x10x4xf32, #tpu.memory_space<vmem>>, %arg3: memref<1x1x10x10x4xf32, #tpu.memory_space<vmem>>, %arg4: memref<1x1x10x10x4xf32, #tpu.memory_space<vmem>>, %arg5: memref<1x1x10x10x4xf32, #tpu.memory_space<vmem>>, %arg6: memref<1x1x10x10x4xf32, #tpu.memory_space<vmem>>, %arg7: memref<1x1x10x10x4xf32, #tpu.memory_space<vmem>>, %arg8: memref<1x1x10x10x4xf32, #tpu.memory_space<vmem>>, %arg9: memref<1x1x10x10x4xf32, #tpu.memory_space<vmem>>, %arg10: memref<1x1x10x10x4xf32, #tpu.memory_space<vmem>>, %arg11: memref<1x1x10x10x4xf32, #tpu.memory_space<vmem>>, %arg12: memref<3x36x128xf32, #tpu.memory_space<vmem>>, %arg13: memref<1x8x64x128xf32, #tpu.memory_space<vmem>>, %arg14: memref<10x64x36xf32, #tpu.memory_space<vmem>>) attributes {dimension_semantics = [#tpu.dimension_semantics<parallel>, #tpu.dimension_semantics<parallel>], iteration_bounds = array<i64: 2, 1>, scalar_prefetch = 0 : i64, scratch_operands = 1 : i64, tpu.core_type = #tpu.core_type<tc>, window_params = [{transform_indices = @transform_0, window_bounds = array<i64: 1, 1, 10, 10, 4>}, {transform_indices = @transform_1, window_bounds = array<i64: 1, 1, 10, 10, 4>}, {transform_indices = @transform_2, window_bounds = array<i64: 1, 1, 10, 10, 4>}, {transform_indices = @transform_3, window_bounds = array<i64: 1, 1, 10, 10, 4>}, {transform_indices = @transform_4, window_bounds = array<i64: 1, 1, 10, 10, 4>}, {transform_indices = @transform_5, window_bounds = array<i64: 1, 1, 10, 10, 4>}, {transform_indices = @transform_6, window_bounds = array<i64: 1, 1, 10, 10, 4>}, {transform_indices = @transform_7, window_bounds = array<i64: 1, 1, 10, 10, 4>}, {transform_indices = @transform_8, window_bounds = array<i64: 1, 1, 10, 10, 4>}, {transform_indices = @transform_9, window_bounds = array<i64: 1, 1, 10, 10, 4>}, {pipeline_mode = #tpu.pipeline_mode<synchronous>, transform_indices = @transform_10, window_bounds = array<i64: 3, 36, 128>}, {transform_indices = @transform_11, window_bounds = array<i64: 1, 8, 64, 128>}]} {
    %c0 = arith.constant 0 : index
    %c0_0 = arith.constant 0 : index
    %c0_1 = arith.constant 0 : index
    %c0_2 = arith.constant 0 : index
    %c0_3 = arith.constant 0 : index
    %0 = vector.load %arg2[%c0, %c0_0, %c0_1, %c0_2, %c0_3] : memref<1x1x10x10x4xf32, #tpu.memory_space<vmem>>, vector<1x1x8x8x4xf32>
    %1 = vector.shape_cast %0 : vector<1x1x8x8x4xf32> to vector<8x8x4xf32>
    %2 = vector.shape_cast %1 : vector<8x8x4xf32> to vector<64x4xf32>
    %c0_4 = arith.constant 0 : index
    %c0_5 = arith.constant 0 : index
    %c0_6 = arith.constant 0 : index
    %c1 = arith.constant 1 : index
    %c0_7 = arith.constant 0 : index
    %3 = vector.load %arg2[%c0_4, %c0_5, %c0_6, %c1, %c0_7] : memref<1x1x10x10x4xf32, #tpu.memory_space<vmem>>, vector<1x1x8x8x4xf32>
    %4 = vector.shape_cast %3 : vector<1x1x8x8x4xf32> to vector<8x8x4xf32>
    %5 = vector.shape_cast %4 : vector<8x8x4xf32> to vector<64x4xf32>
    %c0_8 = arith.constant 0 : index
    %c0_9 = arith.constant 0 : index
    %c0_10 = arith.constant 0 : index
    %c2 = arith.constant 2 : index
    %c0_11 = arith.constant 0 : index
    %6 = vector.load %arg2[%c0_8, %c0_9, %c0_10, %c2, %c0_11] : memref<1x1x10x10x4xf32, #tpu.memory_space<vmem>>, vector<1x1x8x8x4xf32>
    %7 = vector.shape_cast %6 : vector<1x1x8x8x4xf32> to vector<8x8x4xf32>
    %8 = vector.shape_cast %7 : vector<8x8x4xf32> to vector<64x4xf32>
    %c0_12 = arith.constant 0 : index
    %c0_13 = arith.constant 0 : index
    %c1_14 = arith.constant 1 : index
    %c0_15 = arith.constant 0 : index
    %c0_16 = arith.constant 0 : index
    %9 = vector.load %arg2[%c0_12, %c0_13, %c1_14, %c0_15, %c0_16] : memref<1x1x10x10x4xf32, #tpu.memory_space<vmem>>, vector<1x1x8x8x4xf32>
    %10 = vector.shape_cast %9 : vector<1x1x8x8x4xf32> to vector<8x8x4xf32>
    %11 = vector.shape_cast %10 : vector<8x8x4xf32> to vector<64x4xf32>
    %c0_17 = arith.constant 0 : index
    %c0_18 = arith.constant 0 : index
    %c1_19 = arith.constant 1 : index
    %c1_20 = arith.constant 1 : index
    %c0_21 = arith.constant 0 : index
    %12 = vector.load %arg2[%c0_17, %c0_18, %c1_19, %c1_20, %c0_21] : memref<1x1x10x10x4xf32, #tpu.memory_space<vmem>>, vector<1x1x8x8x4xf32>
    %13 = vector.shape_cast %12 : vector<1x1x8x8x4xf32> to vector<8x8x4xf32>
    %14 = vector.shape_cast %13 : vector<8x8x4xf32> to vector<64x4xf32>
    %c0_22 = arith.constant 0 : index
    %c0_23 = arith.constant 0 : index
    %c1_24 = arith.constant 1 : index
    %c2_25 = arith.constant 2 : index
    %c0_26 = arith.constant 0 : index
    %15 = vector.load %arg2[%c0_22, %c0_23, %c1_24, %c2_25, %c0_26] : memref<1x1x10x10x4xf32, #tpu.memory_space<vmem>>, vector<1x1x8x8x4xf32>
    %16 = vector.shape_cast %15 : vector<1x1x8x8x4xf32> to vector<8x8x4xf32>
    %17 = vector.shape_cast %16 : vector<8x8x4xf32> to vector<64x4xf32>
    %c0_27 = arith.constant 0 : index
    %c0_28 = arith.constant 0 : index
    %c2_29 = arith.constant 2 : index
    %c0_30 = arith.constant 0 : index
    %c0_31 = arith.constant 0 : index
    %18 = vector.load %arg2[%c0_27, %c0_28, %c2_29, %c0_30, %c0_31] : memref<1x1x10x10x4xf32, #tpu.memory_space<vmem>>, vector<1x1x8x8x4xf32>
    %19 = vector.shape_cast %18 : vector<1x1x8x8x4xf32> to vector<8x8x4xf32>
    %20 = vector.shape_cast %19 : vector<8x8x4xf32> to vector<64x4xf32>
    %c0_32 = arith.constant 0 : index
    %c0_33 = arith.constant 0 : index
    %c2_34 = arith.constant 2 : index
    %c1_35 = arith.constant 1 : index
    %c0_36 = arith.constant 0 : index
    %21 = vector.load %arg2[%c0_32, %c0_33, %c2_34, %c1_35, %c0_36] : memref<1x1x10x10x4xf32, #tpu.memory_space<vmem>>, vector<1x1x8x8x4xf32>
    %22 = vector.shape_cast %21 : vector<1x1x8x8x4xf32> to vector<8x8x4xf32>
    %23 = vector.shape_cast %22 : vector<8x8x4xf32> to vector<64x4xf32>
    %c0_37 = arith.constant 0 : index
    %c0_38 = arith.constant 0 : index
    %c2_39 = arith.constant 2 : index
    %c2_40 = arith.constant 2 : index
    %c0_41 = arith.constant 0 : index
    %24 = vector.load %arg2[%c0_37, %c0_38, %c2_39, %c2_40, %c0_41] : memref<1x1x10x10x4xf32, #tpu.memory_space<vmem>>, vector<1x1x8x8x4xf32>
    %25 = vector.shape_cast %24 : vector<1x1x8x8x4xf32> to vector<8x8x4xf32>
    %26 = vector.shape_cast %25 : vector<8x8x4xf32> to vector<64x4xf32>
    %27 = tpu.concatenate %2, %5, %8, %11, %14, %17, %20, %23, %26 in 1 : vector<64x4xf32>, vector<64x4xf32>, vector<64x4xf32>, vector<64x4xf32>, vector<64x4xf32>, vector<64x4xf32>, vector<64x4xf32>, vector<64x4xf32>, vector<64x4xf32> -> vector<64x36xf32>
    %c0_42 = arith.constant 0 : index
    %c0_43 = arith.constant 0 : index
    %c0_44 = arith.constant 0 : index
    %28 = vector.load %arg14[%c0_42, %c0_43, %c0_44] : memref<10x64x36xf32, #tpu.memory_space<vmem>>, vector<1x64x36xf32>
    %29 = vector.shape_cast %28 : vector<1x64x36xf32> to vector<64x36xf32>
    %30 = vector.shape_cast %27 : vector<64x36xf32> to vector<1x64x36xf32>
    tpu.vector_store %arg14[%c0_42, %c0_43, %c0_44], %30 {strides = array<i32>} : memref<10x64x36xf32, #tpu.memory_space<vmem>>, vector<1x64x36xf32>,
    %c0_45 = arith.constant 0 : index
    %c0_46 = arith.constant 0 : index
    %c0_47 = arith.constant 0 : index
    %c0_48 = arith.constant 0 : index
    %c0_49 = arith.constant 0 : index
    %31 = vector.load %arg3[%c0_45, %c0_46, %c0_47, %c0_48, %c0_49] : memref<1x1x10x10x4xf32, #tpu.memory_space<vmem>>, vector<1x1x8x8x4xf32>
    %32 = vector.shape_cast %31 : vector<1x1x8x8x4xf32> to vector<8x8x4xf32>
    %33 = vector.shape_cast %32 : vector<8x8x4xf32> to vector<64x4xf32>
    %c0_50 = arith.constant 0 : index
    %c0_51 = arith.constant 0 : index
    %c0_52 = arith.constant 0 : index
    %c1_53 = arith.constant 1 : index
    %c0_54 = arith.constant 0 : index
    %34 = vector.load %arg3[%c0_50, %c0_51, %c0_52, %c1_53, %c0_54] : memref<1x1x10x10x4xf32, #tpu.memory_space<vmem>>, vector<1x1x8x8x4xf32>
    %35 = vector.shape_cast %34 : vector<1x1x8x8x4xf32> to vector<8x8x4xf32>
    %36 = vector.shape_cast %35 : vector<8x8x4xf32> to vector<64x4xf32>
    %c0_55 = arith.constant 0 : index
    %c0_56 = arith.constant 0 : index
    %c0_57 = arith.constant 0 : index
    %c2_58 = arith.constant 2 : index
    %c0_59 = arith.constant 0 : index
    %37 = vector.load %arg3[%c0_55, %c0_56, %c0_57, %c2_58, %c0_59] : memref<1x1x10x10x4xf32, #tpu.memory_space<vmem>>, vector<1x1x8x8x4xf32>
    %38 = vector.shape_cast %37 : vector<1x1x8x8x4xf32> to vector<8x8x4xf32>
    %39 = vector.shape_cast %38 : vector<8x8x4xf32> to vector<64x4xf32>
    %c0_60 = arith.constant 0 : index
    %c0_61 = arith.constant 0 : index
    %c1_62 = arith.constant 1 : index
    %c0_63 = arith.constant 0 : index
    %c0_64 = arith.constant 0 : index
    %40 = vector.load %arg3[%c0_60, %c0_61, %c1_62, %c0_63, %c0_64] : memref<1x1x10x10x4xf32, #tpu.memory_space<vmem>>, vector<1x1x8x8x4xf32>
    %41 = vector.shape_cast %40 : vector<1x1x8x8x4xf32> to vector<8x8x4xf32>
    %42 = vector.shape_cast %41 : vector<8x8x4xf32> to vector<64x4xf32>
    %c0_65 = arith.constant 0 : index
    %c0_66 = arith.constant 0 : index
    %c1_67 = arith.constant 1 : index
    %c1_68 = arith.constant 1 : index
    %c0_69 = arith.constant 0 : index
    %43 = vector.load %arg3[%c0_65, %c0_66, %c1_67, %c1_68, %c0_69] : memref<1x1x10x10x4xf32, #tpu.memory_space<vmem>>, vector<1x1x8x8x4xf32>
    %44 = vector.shape_cast %43 : vector<1x1x8x8x4xf32> to vector<8x8x4xf32>
    %45 = vector.shape_cast %44 : vector<8x8x4xf32> to vector<64x4xf32>
    %c0_70 = arith.constant 0 : index
    %c0_71 = arith.constant 0 : index
    %c1_72 = arith.constant 1 : index
    %c2_73 = arith.constant 2 : index
    %c0_74 = arith.constant 0 : index
    %46 = vector.load %arg3[%c0_70, %c0_71, %c1_72, %c2_73, %c0_74] : memref<1x1x10x10x4xf32, #tpu.memory_space<vmem>>, vector<1x1x8x8x4xf32>
    %47 = vector.shape_cast %46 : vector<1x1x8x8x4xf32> to vector<8x8x4xf32>
    %48 = vector.shape_cast %47 : vector<8x8x4xf32> to vector<64x4xf32>
    %c0_75 = arith.constant 0 : index
    %c0_76 = arith.constant 0 : index
    %c2_77 = arith.constant 2 : index
    %c0_78 = arith.constant 0 : index
    %c0_79 = arith.constant 0 : index
    %49 = vector.load %arg3[%c0_75, %c0_76, %c2_77, %c0_78, %c0_79] : memref<1x1x10x10x4xf32, #tpu.memory_space<vmem>>, vector<1x1x8x8x4xf32>
    %50 = vector.shape_cast %49 : vector<1x1x8x8x4xf32> to vector<8x8x4xf32>
    %51 = vector.shape_cast %50 : vector<8x8x4xf32> to vector<64x4xf32>
    %c0_80 = arith.constant 0 : index
    %c0_81 = arith.constant 0 : index
    %c2_82 = arith.constant 2 : index
    %c1_83 = arith.constant 1 : index
    %c0_84 = arith.constant 0 : index
    %52 = vector.load %arg3[%c0_80, %c0_81, %c2_82, %c1_83, %c0_84] : memref<1x1x10x10x4xf32, #tpu.memory_space<vmem>>, vector<1x1x8x8x4xf32>
    %53 = vector.shape_cast %52 : vector<1x1x8x8x4xf32> to vector<8x8x4xf32>
    %54 = vector.shape_cast %53 : vector<8x8x4xf32> to vector<64x4xf32>
    %c0_85 = arith.constant 0 : index
    %c0_86 = arith.constant 0 : index
    %c2_87 = arith.constant 2 : index
    %c2_88 = arith.constant 2 : index
    %c0_89 = arith.constant 0 : index
    %55 = vector.load %arg3[%c0_85, %c0_86, %c2_87, %c2_88, %c0_89] : memref<1x1x10x10x4xf32, #tpu.memory_space<vmem>>, vector<1x1x8x8x4xf32>
    %56 = vector.shape_cast %55 : vector<1x1x8x8x4xf32> to vector<8x8x4xf32>
    %57 = vector.shape_cast %56 : vector<8x8x4xf32> to vector<64x4xf32>
    %58 = tpu.concatenate %33, %36, %39, %42, %45, %48, %51, %54, %57 in 1 : vector<64x4xf32>, vector<64x4xf32>, vector<64x4xf32>, vector<64x4xf32>, vector<64x4xf32>, vector<64x4xf32>, vector<64x4xf32>, vector<64x4xf32>, vector<64x4xf32> -> vector<64x36xf32>
    %c1_90 = arith.constant 1 : index
    %c0_91 = arith.constant 0 : index
    %c0_92 = arith.constant 0 : index
    %59 = vector.load %arg14[%c1_90, %c0_91, %c0_92] : memref<10x64x36xf32, #tpu.memory_space<vmem>>, vector<1x64x36xf32>
    %60 = vector.shape_cast %59 : vector<1x64x36xf32> to vector<64x36xf32>
    %61 = vector.shape_cast %58 : vector<64x36xf32> to vector<1x64x36xf32>
    tpu.vector_store %arg14[%c1_90, %c0_91, %c0_92], %61 {strides = array<i32>} : memref<10x64x36xf32, #tpu.memory_space<vmem>>, vector<1x64x36xf32>,
    %c0_93 = arith.constant 0 : index
    %c0_94 = arith.constant 0 : index
    %c0_95 = arith.constant 0 : index
    %c0_96 = arith.constant 0 : index
    %c0_97 = arith.constant 0 : index
    %62 = vector.load %arg4[%c0_93, %c0_94, %c0_95, %c0_96, %c0_97] : memref<1x1x10x10x4xf32, #tpu.memory_space<vmem>>, vector<1x1x8x8x4xf32>
    %63 = vector.shape_cast %62 : vector<1x1x8x8x4xf32> to vector<8x8x4xf32>
    %64 = vector.shape_cast %63 : vector<8x8x4xf32> to vector<64x4xf32>
    %c0_98 = arith.constant 0 : index
    %c0_99 = arith.constant 0 : index
    %c0_100 = arith.constant 0 : index
    %c1_101 = arith.constant 1 : index
    %c0_102 = arith.constant 0 : index
    %65 = vector.load %arg4[%c0_98, %c0_99, %c0_100, %c1_101, %c0_102] : memref<1x1x10x10x4xf32, #tpu.memory_space<vmem>>, vector<1x1x8x8x4xf32>
    %66 = vector.shape_cast %65 : vector<1x1x8x8x4xf32> to vector<8x8x4xf32>
    %67 = vector.shape_cast %66 : vector<8x8x4xf32> to vector<64x4xf32>
    %c0_103 = arith.constant 0 : index
    %c0_104 = arith.constant 0 : index
    %c0_105 = arith.constant 0 : index
    %c2_106 = arith.constant 2 : index
    %c0_107 = arith.constant 0 : index
    %68 = vector.load %arg4[%c0_103, %c0_104, %c0_105, %c2_106, %c0_107] : memref<1x1x10x10x4xf32, #tpu.memory_space<vmem>>, vector<1x1x8x8x4xf32>
    %69 = vector.shape_cast %68 : vector<1x1x8x8x4xf32> to vector<8x8x4xf32>
    %70 = vector.shape_cast %69 : vector<8x8x4xf32> to vector<64x4xf32>
    %c0_108 = arith.constant 0 : index
    %c0_109 = arith.constant 0 : index
    %c1_110 = arith.constant 1 : index
    %c0_111 = arith.constant 0 : index
    %c0_112 = arith.constant 0 : index
    %71 = vector.load %arg4[%c0_108, %c0_109, %c1_110, %c0_111, %c0_112] : memref<1x1x10x10x4xf32, #tpu.memory_space<vmem>>, vector<1x1x8x8x4xf32>
    %72 = vector.shape_cast %71 : vector<1x1x8x8x4xf32> to vector<8x8x4xf32>
    %73 = vector.shape_cast %72 : vector<8x8x4xf32> to vector<64x4xf32>
    %c0_113 = arith.constant 0 : index
    %c0_114 = arith.constant 0 : index
    %c1_115 = arith.constant 1 : index
    %c1_116 = arith.constant 1 : index
    %c0_117 = arith.constant 0 : index
    %74 = vector.load %arg4[%c0_113, %c0_114, %c1_115, %c1_116, %c0_117] : memref<1x1x10x10x4xf32, #tpu.memory_space<vmem>>, vector<1x1x8x8x4xf32>
    %75 = vector.shape_cast %74 : vector<1x1x8x8x4xf32> to vector<8x8x4xf32>
    %76 = vector.shape_cast %75 : vector<8x8x4xf32> to vector<64x4xf32>
    %c0_118 = arith.constant 0 : index
    %c0_119 = arith.constant 0 : index
    %c1_120 = arith.constant 1 : index
    %c2_121 = arith.constant 2 : index
    %c0_122 = arith.constant 0 : index
    %77 = vector.load %arg4[%c0_118, %c0_119, %c1_120, %c2_121, %c0_122] : memref<1x1x10x10x4xf32, #tpu.memory_space<vmem>>, vector<1x1x8x8x4xf32>
    %78 = vector.shape_cast %77 : vector<1x1x8x8x4xf32> to vector<8x8x4xf32>
    %79 = vector.shape_cast %78 : vector<8x8x4xf32> to vector<64x4xf32>
    %c0_123 = arith.constant 0 : index
    %c0_124 = arith.constant 0 : index
    %c2_125 = arith.constant 2 : index
    %c0_126 = arith.constant 0 : index
    %c0_127 = arith.constant 0 : index
    %80 = vector.load %arg4[%c0_123, %c0_124, %c2_125, %c0_126, %c0_127] : memref<1x1x10x10x4xf32, #tpu.memory_space<vmem>>, vector<1x1x8x8x4xf32>
    %81 = vector.shape_cast %80 : vector<1x1x8x8x4xf32> to vector<8x8x4xf32>
    %82 = vector.shape_cast %81 : vector<8x8x4xf32> to vector<64x4xf32>
    %c0_128 = arith.constant 0 : index
    %c0_129 = arith.constant 0 : index
    %c2_130 = arith.constant 2 : index
    %c1_131 = arith.constant 1 : index
    %c0_132 = arith.constant 0 : index
    %83 = vector.load %arg4[%c0_128, %c0_129, %c2_130, %c1_131, %c0_132] : memref<1x1x10x10x4xf32, #tpu.memory_space<vmem>>, vector<1x1x8x8x4xf32>
    %84 = vector.shape_cast %83 : vector<1x1x8x8x4xf32> to vector<8x8x4xf32>
    %85 = vector.shape_cast %84 : vector<8x8x4xf32> to vector<64x4xf32>
    %c0_133 = arith.constant 0 : index
    %c0_134 = arith.constant 0 : index
    %c2_135 = arith.constant 2 : index
    %c2_136 = arith.constant 2 : index
    %c0_137 = arith.constant 0 : index
    %86 = vector.load %arg4[%c0_133, %c0_134, %c2_135, %c2_136, %c0_137] : memref<1x1x10x10x4xf32, #tpu.memory_space<vmem>>, vector<1x1x8x8x4xf32>
    %87 = vector.shape_cast %86 : vector<1x1x8x8x4xf32> to vector<8x8x4xf32>
    %88 = vector.shape_cast %87 : vector<8x8x4xf32> to vector<64x4xf32>
    %89 = tpu.concatenate %64, %67, %70, %73, %76, %79, %82, %85, %88 in 1 : vector<64x4xf32>, vector<64x4xf32>, vector<64x4xf32>, vector<64x4xf32>, vector<64x4xf32>, vector<64x4xf32>, vector<64x4xf32>, vector<64x4xf32>, vector<64x4xf32> -> vector<64x36xf32>
    %c2_138 = arith.constant 2 : index
    %c0_139 = arith.constant 0 : index
    %c0_140 = arith.constant 0 : index
    %90 = vector.load %arg14[%c2_138, %c0_139, %c0_140] : memref<10x64x36xf32, #tpu.memory_space<vmem>>, vector<1x64x36xf32>
    %91 = vector.shape_cast %90 : vector<1x64x36xf32> to vector<64x36xf32>
    %92 = vector.shape_cast %89 : vector<64x36xf32> to vector<1x64x36xf32>
    tpu.vector_store %arg14[%c2_138, %c0_139, %c0_140], %92 {strides = array<i32>} : memref<10x64x36xf32, #tpu.memory_space<vmem>>, vector<1x64x36xf32>,
    %c0_141 = arith.constant 0 : index
    %c0_142 = arith.constant 0 : index
    %c0_143 = arith.constant 0 : index
    %c0_144 = arith.constant 0 : index
    %c0_145 = arith.constant 0 : index
    %93 = vector.load %arg5[%c0_141, %c0_142, %c0_143, %c0_144, %c0_145] : memref<1x1x10x10x4xf32, #tpu.memory_space<vmem>>, vector<1x1x8x8x4xf32>
    %94 = vector.shape_cast %93 : vector<1x1x8x8x4xf32> to vector<8x8x4xf32>
    %95 = vector.shape_cast %94 : vector<8x8x4xf32> to vector<64x4xf32>
    %c0_146 = arith.constant 0 : index
    %c0_147 = arith.constant 0 : index
    %c0_148 = arith.constant 0 : index
    %c1_149 = arith.constant 1 : index
    %c0_150 = arith.constant 0 : index
    %96 = vector.load %arg5[%c0_146, %c0_147, %c0_148, %c1_149, %c0_150] : memref<1x1x10x10x4xf32, #tpu.memory_space<vmem>>, vector<1x1x8x8x4xf32>
    %97 = vector.shape_cast %96 : vector<1x1x8x8x4xf32> to vector<8x8x4xf32>
    %98 = vector.shape_cast %97 : vector<8x8x4xf32> to vector<64x4xf32>
    %c0_151 = arith.constant 0 : index
    %c0_152 = arith.constant 0 : index
    %c0_153 = arith.constant 0 : index
    %c2_154 = arith.constant 2 : index
    %c0_155 = arith.constant 0 : index
    %99 = vector.load %arg5[%c0_151, %c0_152, %c0_153, %c2_154, %c0_155] : memref<1x1x10x10x4xf32, #tpu.memory_space<vmem>>, vector<1x1x8x8x4xf32>
    %100 = vector.shape_cast %99 : vector<1x1x8x8x4xf32> to vector<8x8x4xf32>
    %101 = vector.shape_cast %100 : vector<8x8x4xf32> to vector<64x4xf32>
    %c0_156 = arith.constant 0 : index
    %c0_157 = arith.constant 0 : index
    %c1_158 = arith.constant 1 : index
    %c0_159 = arith.constant 0 : index
    %c0_160 = arith.constant 0 : index
    %102 = vector.load %arg5[%c0_156, %c0_157, %c1_158, %c0_159, %c0_160] : memref<1x1x10x10x4xf32, #tpu.memory_space<vmem>>, vector<1x1x8x8x4xf32>
    %103 = vector.shape_cast %102 : vector<1x1x8x8x4xf32> to vector<8x8x4xf32>
    %104 = vector.shape_cast %103 : vector<8x8x4xf32> to vector<64x4xf32>
    %c0_161 = arith.constant 0 : index
    %c0_162 = arith.constant 0 : index
    %c1_163 = arith.constant 1 : index
    %c1_164 = arith.constant 1 : index
    %c0_165 = arith.constant 0 : index
    %105 = vector.load %arg5[%c0_161, %c0_162, %c1_163, %c1_164, %c0_165] : memref<1x1x10x10x4xf32, #tpu.memory_space<vmem>>, vector<1x1x8x8x4xf32>
    %106 = vector.shape_cast %105 : vector<1x1x8x8x4xf32> to vector<8x8x4xf32>
    %107 = vector.shape_cast %106 : vector<8x8x4xf32> to vector<64x4xf32>
    %c0_166 = arith.constant 0 : index
    %c0_167 = arith.constant 0 : index
    %c1_168 = arith.constant 1 : index
    %c2_169 = arith.constant 2 : index
    %c0_170 = arith.constant 0 : index
    %108 = vector.load %arg5[%c0_166, %c0_167, %c1_168, %c2_169, %c0_170] : memref<1x1x10x10x4xf32, #tpu.memory_space<vmem>>, vector<1x1x8x8x4xf32>
    %109 = vector.shape_cast %108 : vector<1x1x8x8x4xf32> to vector<8x8x4xf32>
    %110 = vector.shape_cast %109 : vector<8x8x4xf32> to vector<64x4xf32>
    %c0_171 = arith.constant 0 : index
    %c0_172 = arith.constant 0 : index
    %c2_173 = arith.constant 2 : index
    %c0_174 = arith.constant 0 : index
    %c0_175 = arith.constant 0 : index
    %111 = vector.load %arg5[%c0_171, %c0_172, %c2_173, %c0_174, %c0_175] : memref<1x1x10x10x4xf32, #tpu.memory_space<vmem>>, vector<1x1x8x8x4xf32>
    %112 = vector.shape_cast %111 : vector<1x1x8x8x4xf32> to vector<8x8x4xf32>
    %113 = vector.shape_cast %112 : vector<8x8x4xf32> to vector<64x4xf32>
    %c0_176 = arith.constant 0 : index
    %c0_177 = arith.constant 0 : index
    %c2_178 = arith.constant 2 : index
    %c1_179 = arith.constant 1 : index
    %c0_180 = arith.constant 0 : index
    %114 = vector.load %arg5[%c0_176, %c0_177, %c2_178, %c1_179, %c0_180] : memref<1x1x10x10x4xf32, #tpu.memory_space<vmem>>, vector<1x1x8x8x4xf32>
    %115 = vector.shape_cast %114 : vector<1x1x8x8x4xf32> to vector<8x8x4xf32>
    %116 = vector.shape_cast %115 : vector<8x8x4xf32> to vector<64x4xf32>
    %c0_181 = arith.constant 0 : index
    %c0_182 = arith.constant 0 : index
    %c2_183 = arith.constant 2 : index
    %c2_184 = arith.constant 2 : index
    %c0_185 = arith.constant 0 : index
    %117 = vector.load %arg5[%c0_181, %c0_182, %c2_183, %c2_184, %c0_185] : memref<1x1x10x10x4xf32, #tpu.memory_space<vmem>>, vector<1x1x8x8x4xf32>
    %118 = vector.shape_cast %117 : vector<1x1x8x8x4xf32> to vector<8x8x4xf32>
    %119 = vector.shape_cast %118 : vector<8x8x4xf32> to vector<64x4xf32>
    %120 = tpu.concatenate %95, %98, %101, %104, %107, %110, %113, %116, %119 in 1 : vector<64x4xf32>, vector<64x4xf32>, vector<64x4xf32>, vector<64x4xf32>, vector<64x4xf32>, vector<64x4xf32>, vector<64x4xf32>, vector<64x4xf32>, vector<64x4xf32> -> vector<64x36xf32>
    %c3 = arith.constant 3 : index
    %c0_186 = arith.constant 0 : index
    %c0_187 = arith.constant 0 : index
    %121 = vector.load %arg14[%c3, %c0_186, %c0_187] : memref<10x64x36xf32, #tpu.memory_space<vmem>>, vector<1x64x36xf32>
    %122 = vector.shape_cast %121 : vector<1x64x36xf32> to vector<64x36xf32>
    %123 = vector.shape_cast %120 : vector<64x36xf32> to vector<1x64x36xf32>
    tpu.vector_store %arg14[%c3, %c0_186, %c0_187], %123 {strides = array<i32>} : memref<10x64x36xf32, #tpu.memory_space<vmem>>, vector<1x64x36xf32>,
    %c0_188 = arith.constant 0 : index
    %c0_189 = arith.constant 0 : index
    %c0_190 = arith.constant 0 : index
    %c0_191 = arith.constant 0 : index
    %c0_192 = arith.constant 0 : index
    %124 = vector.load %arg6[%c0_188, %c0_189, %c0_190, %c0_191, %c0_192] : memref<1x1x10x10x4xf32, #tpu.memory_space<vmem>>, vector<1x1x8x8x4xf32>
    %125 = vector.shape_cast %124 : vector<1x1x8x8x4xf32> to vector<8x8x4xf32>
    %126 = vector.shape_cast %125 : vector<8x8x4xf32> to vector<64x4xf32>
    %c0_193 = arith.constant 0 : index
    %c0_194 = arith.constant 0 : index
    %c0_195 = arith.constant 0 : index
    %c1_196 = arith.constant 1 : index
    %c0_197 = arith.constant 0 : index
    %127 = vector.load %arg6[%c0_193, %c0_194, %c0_195, %c1_196, %c0_197] : memref<1x1x10x10x4xf32, #tpu.memory_space<vmem>>, vector<1x1x8x8x4xf32>
    %128 = vector.shape_cast %127 : vector<1x1x8x8x4xf32> to vector<8x8x4xf32>
    %129 = vector.shape_cast %128 : vector<8x8x4xf32> to vector<64x4xf32>
    %c0_198 = arith.constant 0 : index
    %c0_199 = arith.constant 0 : index
    %c0_200 = arith.constant 0 : index
    %c2_201 = arith.constant 2 : index
    %c0_202 = arith.constant 0 : index
    %130 = vector.load %arg6[%c0_198, %c0_199, %c0_200, %c2_201, %c0_202] : memref<1x1x10x10x4xf32, #tpu.memory_space<vmem>>, vector<1x1x8x8x4xf32>
    %131 = vector.shape_cast %130 : vector<1x1x8x8x4xf32> to vector<8x8x4xf32>
    %132 = vector.shape_cast %131 : vector<8x8x4xf32> to vector<64x4xf32>
    %c0_203 = arith.constant 0 : index
    %c0_204 = arith.constant 0 : index
    %c1_205 = arith.constant 1 : index
    %c0_206 = arith.constant 0 : index
    %c0_207 = arith.constant 0 : index
    %133 = vector.load %arg6[%c0_203, %c0_204, %c1_205, %c0_206, %c0_207] : memref<1x1x10x10x4xf32, #tpu.memory_space<vmem>>, vector<1x1x8x8x4xf32>
    %134 = vector.shape_cast %133 : vector<1x1x8x8x4xf32> to vector<8x8x4xf32>
    %135 = vector.shape_cast %134 : vector<8x8x4xf32> to vector<64x4xf32>
    %c0_208 = arith.constant 0 : index
    %c0_209 = arith.constant 0 : index
    %c1_210 = arith.constant 1 : index
    %c1_211 = arith.constant 1 : index
    %c0_212 = arith.constant 0 : index
    %136 = vector.load %arg6[%c0_208, %c0_209, %c1_210, %c1_211, %c0_212] : memref<1x1x10x10x4xf32, #tpu.memory_space<vmem>>, vector<1x1x8x8x4xf32>
    %137 = vector.shape_cast %136 : vector<1x1x8x8x4xf32> to vector<8x8x4xf32>
    %138 = vector.shape_cast %137 : vector<8x8x4xf32> to vector<64x4xf32>
    %c0_213 = arith.constant 0 : index
    %c0_214 = arith.constant 0 : index
    %c1_215 = arith.constant 1 : index
    %c2_216 = arith.constant 2 : index
    %c0_217 = arith.constant 0 : index
    %139 = vector.load %arg6[%c0_213, %c0_214, %c1_215, %c2_216, %c0_217] : memref<1x1x10x10x4xf32, #tpu.memory_space<vmem>>, vector<1x1x8x8x4xf32>
    %140 = vector.shape_cast %139 : vector<1x1x8x8x4xf32> to vector<8x8x4xf32>
    %141 = vector.shape_cast %140 : vector<8x8x4xf32> to vector<64x4xf32>
    %c0_218 = arith.constant 0 : index
    %c0_219 = arith.constant 0 : index
    %c2_220 = arith.constant 2 : index
    %c0_221 = arith.constant 0 : index
    %c0_222 = arith.constant 0 : index
    %142 = vector.load %arg6[%c0_218, %c0_219, %c2_220, %c0_221, %c0_222] : memref<1x1x10x10x4xf32, #tpu.memory_space<vmem>>, vector<1x1x8x8x4xf32>
    %143 = vector.shape_cast %142 : vector<1x1x8x8x4xf32> to vector<8x8x4xf32>
    %144 = vector.shape_cast %143 : vector<8x8x4xf32> to vector<64x4xf32>
    %c0_223 = arith.constant 0 : index
    %c0_224 = arith.constant 0 : index
    %c2_225 = arith.constant 2 : index
    %c1_226 = arith.constant 1 : index
    %c0_227 = arith.constant 0 : index
    %145 = vector.load %arg6[%c0_223, %c0_224, %c2_225, %c1_226, %c0_227] : memref<1x1x10x10x4xf32, #tpu.memory_space<vmem>>, vector<1x1x8x8x4xf32>
    %146 = vector.shape_cast %145 : vector<1x1x8x8x4xf32> to vector<8x8x4xf32>
    %147 = vector.shape_cast %146 : vector<8x8x4xf32> to vector<64x4xf32>
    %c0_228 = arith.constant 0 : index
    %c0_229 = arith.constant 0 : index
    %c2_230 = arith.constant 2 : index
    %c2_231 = arith.constant 2 : index
    %c0_232 = arith.constant 0 : index
    %148 = vector.load %arg6[%c0_228, %c0_229, %c2_230, %c2_231, %c0_232] : memref<1x1x10x10x4xf32, #tpu.memory_space<vmem>>, vector<1x1x8x8x4xf32>
    %149 = vector.shape_cast %148 : vector<1x1x8x8x4xf32> to vector<8x8x4xf32>
    %150 = vector.shape_cast %149 : vector<8x8x4xf32> to vector<64x4xf32>
    %151 = tpu.concatenate %126, %129, %132, %135, %138, %141, %144, %147, %150 in 1 : vector<64x4xf32>, vector<64x4xf32>, vector<64x4xf32>, vector<64x4xf32>, vector<64x4xf32>, vector<64x4xf32>, vector<64x4xf32>, vector<64x4xf32>, vector<64x4xf32> -> vector<64x36xf32>
    %c4 = arith.constant 4 : index
    %c0_233 = arith.constant 0 : index
    %c0_234 = arith.constant 0 : index
    %152 = vector.load %arg14[%c4, %c0_233, %c0_234] : memref<10x64x36xf32, #tpu.memory_space<vmem>>, vector<1x64x36xf32>
    %153 = vector.shape_cast %152 : vector<1x64x36xf32> to vector<64x36xf32>
    %154 = vector.shape_cast %151 : vector<64x36xf32> to vector<1x64x36xf32>
    tpu.vector_store %arg14[%c4, %c0_233, %c0_234], %154 {strides = array<i32>} : memref<10x64x36xf32, #tpu.memory_space<vmem>>, vector<1x64x36xf32>,
    %c0_235 = arith.constant 0 : index
    %c0_236 = arith.constant 0 : index
    %c0_237 = arith.constant 0 : index
    %c0_238 = arith.constant 0 : index
    %c0_239 = arith.constant 0 : index
    %155 = vector.load %arg7[%c0_235, %c0_236, %c0_237, %c0_238, %c0_239] : memref<1x1x10x10x4xf32, #tpu.memory_space<vmem>>, vector<1x1x8x8x4xf32>
    %156 = vector.shape_cast %155 : vector<1x1x8x8x4xf32> to vector<8x8x4xf32>
    %157 = vector.shape_cast %156 : vector<8x8x4xf32> to vector<64x4xf32>
    %c0_240 = arith.constant 0 : index
    %c0_241 = arith.constant 0 : index
    %c0_242 = arith.constant 0 : index
    %c1_243 = arith.constant 1 : index
    %c0_244 = arith.constant 0 : index
    %158 = vector.load %arg7[%c0_240, %c0_241, %c0_242, %c1_243, %c0_244] : memref<1x1x10x10x4xf32, #tpu.memory_space<vmem>>, vector<1x1x8x8x4xf32>
    %159 = vector.shape_cast %158 : vector<1x1x8x8x4xf32> to vector<8x8x4xf32>
    %160 = vector.shape_cast %159 : vector<8x8x4xf32> to vector<64x4xf32>
    %c0_245 = arith.constant 0 : index
    %c0_246 = arith.constant 0 : index
    %c0_247 = arith.constant 0 : index
    %c2_248 = arith.constant 2 : index
    %c0_249 = arith.constant 0 : index
    %161 = vector.load %arg7[%c0_245, %c0_246, %c0_247, %c2_248, %c0_249] : memref<1x1x10x10x4xf32, #tpu.memory_space<vmem>>, vector<1x1x8x8x4xf32>
    %162 = vector.shape_cast %161 : vector<1x1x8x8x4xf32> to vector<8x8x4xf32>
    %163 = vector.shape_cast %162 : vector<8x8x4xf32> to vector<64x4xf32>
    %c0_250 = arith.constant 0 : index
    %c0_251 = arith.constant 0 : index
    %c1_252 = arith.constant 1 : index
    %c0_253 = arith.constant 0 : index
    %c0_254 = arith.constant 0 : index
    %164 = vector.load %arg7[%c0_250, %c0_251, %c1_252, %c0_253, %c0_254] : memref<1x1x10x10x4xf32, #tpu.memory_space<vmem>>, vector<1x1x8x8x4xf32>
    %165 = vector.shape_cast %164 : vector<1x1x8x8x4xf32> to vector<8x8x4xf32>
    %166 = vector.shape_cast %165 : vector<8x8x4xf32> to vector<64x4xf32>
    %c0_255 = arith.constant 0 : index
    %c0_256 = arith.constant 0 : index
    %c1_257 = arith.constant 1 : index
    %c1_258 = arith.constant 1 : index
    %c0_259 = arith.constant 0 : index
    %167 = vector.load %arg7[%c0_255, %c0_256, %c1_257, %c1_258, %c0_259] : memref<1x1x10x10x4xf32, #tpu.memory_space<vmem>>, vector<1x1x8x8x4xf32>
    %168 = vector.shape_cast %167 : vector<1x1x8x8x4xf32> to vector<8x8x4xf32>
    %169 = vector.shape_cast %168 : vector<8x8x4xf32> to vector<64x4xf32>
    %c0_260 = arith.constant 0 : index
    %c0_261 = arith.constant 0 : index
    %c1_262 = arith.constant 1 : index
    %c2_263 = arith.constant 2 : index
    %c0_264 = arith.constant 0 : index
    %170 = vector.load %arg7[%c0_260, %c0_261, %c1_262, %c2_263, %c0_264] : memref<1x1x10x10x4xf32, #tpu.memory_space<vmem>>, vector<1x1x8x8x4xf32>
    %171 = vector.shape_cast %170 : vector<1x1x8x8x4xf32> to vector<8x8x4xf32>
    %172 = vector.shape_cast %171 : vector<8x8x4xf32> to vector<64x4xf32>
    %c0_265 = arith.constant 0 : index
    %c0_266 = arith.constant 0 : index
    %c2_267 = arith.constant 2 : index
    %c0_268 = arith.constant 0 : index
    %c0_269 = arith.constant 0 : index
    %173 = vector.load %arg7[%c0_265, %c0_266, %c2_267, %c0_268, %c0_269] : memref<1x1x10x10x4xf32, #tpu.memory_space<vmem>>, vector<1x1x8x8x4xf32>
    %174 = vector.shape_cast %173 : vector<1x1x8x8x4xf32> to vector<8x8x4xf32>
    %175 = vector.shape_cast %174 : vector<8x8x4xf32> to vector<64x4xf32>
    %c0_270 = arith.constant 0 : index
    %c0_271 = arith.constant 0 : index
    %c2_272 = arith.constant 2 : index
    %c1_273 = arith.constant 1 : index
    %c0_274 = arith.constant 0 : index
    %176 = vector.load %arg7[%c0_270, %c0_271, %c2_272, %c1_273, %c0_274] : memref<1x1x10x10x4xf32, #tpu.memory_space<vmem>>, vector<1x1x8x8x4xf32>
    %177 = vector.shape_cast %176 : vector<1x1x8x8x4xf32> to vector<8x8x4xf32>
    %178 = vector.shape_cast %177 : vector<8x8x4xf32> to vector<64x4xf32>
    %c0_275 = arith.constant 0 : index
    %c0_276 = arith.constant 0 : index
    %c2_277 = arith.constant 2 : index
    %c2_278 = arith.constant 2 : index
    %c0_279 = arith.constant 0 : index
    %179 = vector.load %arg7[%c0_275, %c0_276, %c2_277, %c2_278, %c0_279] : memref<1x1x10x10x4xf32, #tpu.memory_space<vmem>>, vector<1x1x8x8x4xf32>
    %180 = vector.shape_cast %179 : vector<1x1x8x8x4xf32> to vector<8x8x4xf32>
    %181 = vector.shape_cast %180 : vector<8x8x4xf32> to vector<64x4xf32>
    %182 = tpu.concatenate %157, %160, %163, %166, %169, %172, %175, %178, %181 in 1 : vector<64x4xf32>, vector<64x4xf32>, vector<64x4xf32>, vector<64x4xf32>, vector<64x4xf32>, vector<64x4xf32>, vector<64x4xf32>, vector<64x4xf32>, vector<64x4xf32> -> vector<64x36xf32>
    %c5 = arith.constant 5 : index
    %c0_280 = arith.constant 0 : index
    %c0_281 = arith.constant 0 : index
    %183 = vector.load %arg14[%c5, %c0_280, %c0_281] : memref<10x64x36xf32, #tpu.memory_space<vmem>>, vector<1x64x36xf32>
    %184 = vector.shape_cast %183 : vector<1x64x36xf32> to vector<64x36xf32>
    %185 = vector.shape_cast %182 : vector<64x36xf32> to vector<1x64x36xf32>
    tpu.vector_store %arg14[%c5, %c0_280, %c0_281], %185 {strides = array<i32>} : memref<10x64x36xf32, #tpu.memory_space<vmem>>, vector<1x64x36xf32>,
    %c0_282 = arith.constant 0 : index
    %c0_283 = arith.constant 0 : index
    %c0_284 = arith.constant 0 : index
    %c0_285 = arith.constant 0 : index
    %c0_286 = arith.constant 0 : index
    %186 = vector.load %arg8[%c0_282, %c0_283, %c0_284, %c0_285, %c0_286] : memref<1x1x10x10x4xf32, #tpu.memory_space<vmem>>, vector<1x1x8x8x4xf32>
    %187 = vector.shape_cast %186 : vector<1x1x8x8x4xf32> to vector<8x8x4xf32>
    %188 = vector.shape_cast %187 : vector<8x8x4xf32> to vector<64x4xf32>
    %c0_287 = arith.constant 0 : index
    %c0_288 = arith.constant 0 : index
    %c0_289 = arith.constant 0 : index
    %c1_290 = arith.constant 1 : index
    %c0_291 = arith.constant 0 : index
    %189 = vector.load %arg8[%c0_287, %c0_288, %c0_289, %c1_290, %c0_291] : memref<1x1x10x10x4xf32, #tpu.memory_space<vmem>>, vector<1x1x8x8x4xf32>
    %190 = vector.shape_cast %189 : vector<1x1x8x8x4xf32> to vector<8x8x4xf32>
    %191 = vector.shape_cast %190 : vector<8x8x4xf32> to vector<64x4xf32>
    %c0_292 = arith.constant 0 : index
    %c0_293 = arith.constant 0 : index
    %c0_294 = arith.constant 0 : index
    %c2_295 = arith.constant 2 : index
    %c0_296 = arith.constant 0 : index
    %192 = vector.load %arg8[%c0_292, %c0_293, %c0_294, %c2_295, %c0_296] : memref<1x1x10x10x4xf32, #tpu.memory_space<vmem>>, vector<1x1x8x8x4xf32>
    %193 = vector.shape_cast %192 : vector<1x1x8x8x4xf32> to vector<8x8x4xf32>
    %194 = vector.shape_cast %193 : vector<8x8x4xf32> to vector<64x4xf32>
    %c0_297 = arith.constant 0 : index
    %c0_298 = arith.constant 0 : index
    %c1_299 = arith.constant 1 : index
    %c0_300 = arith.constant 0 : index
    %c0_301 = arith.constant 0 : index
    %195 = vector.load %arg8[%c0_297, %c0_298, %c1_299, %c0_300, %c0_301] : memref<1x1x10x10x4xf32, #tpu.memory_space<vmem>>, vector<1x1x8x8x4xf32>
    %196 = vector.shape_cast %195 : vector<1x1x8x8x4xf32> to vector<8x8x4xf32>
    %197 = vector.shape_cast %196 : vector<8x8x4xf32> to vector<64x4xf32>
    %c0_302 = arith.constant 0 : index
    %c0_303 = arith.constant 0 : index
    %c1_304 = arith.constant 1 : index
    %c1_305 = arith.constant 1 : index
    %c0_306 = arith.constant 0 : index
    %198 = vector.load %arg8[%c0_302, %c0_303, %c1_304, %c1_305, %c0_306] : memref<1x1x10x10x4xf32, #tpu.memory_space<vmem>>, vector<1x1x8x8x4xf32>
    %199 = vector.shape_cast %198 : vector<1x1x8x8x4xf32> to vector<8x8x4xf32>
    %200 = vector.shape_cast %199 : vector<8x8x4xf32> to vector<64x4xf32>
    %c0_307 = arith.constant 0 : index
    %c0_308 = arith.constant 0 : index
    %c1_309 = arith.constant 1 : index
    %c2_310 = arith.constant 2 : index
    %c0_311 = arith.constant 0 : index
    %201 = vector.load %arg8[%c0_307, %c0_308, %c1_309, %c2_310, %c0_311] : memref<1x1x10x10x4xf32, #tpu.memory_space<vmem>>, vector<1x1x8x8x4xf32>
    %202 = vector.shape_cast %201 : vector<1x1x8x8x4xf32> to vector<8x8x4xf32>
    %203 = vector.shape_cast %202 : vector<8x8x4xf32> to vector<64x4xf32>
    %c0_312 = arith.constant 0 : index
    %c0_313 = arith.constant 0 : index
    %c2_314 = arith.constant 2 : index
    %c0_315 = arith.constant 0 : index
    %c0_316 = arith.constant 0 : index
    %204 = vector.load %arg8[%c0_312, %c0_313, %c2_314, %c0_315, %c0_316] : memref<1x1x10x10x4xf32, #tpu.memory_space<vmem>>, vector<1x1x8x8x4xf32>
    %205 = vector.shape_cast %204 : vector<1x1x8x8x4xf32> to vector<8x8x4xf32>
    %206 = vector.shape_cast %205 : vector<8x8x4xf32> to vector<64x4xf32>
    %c0_317 = arith.constant 0 : index
    %c0_318 = arith.constant 0 : index
    %c2_319 = arith.constant 2 : index
    %c1_320 = arith.constant 1 : index
    %c0_321 = arith.constant 0 : index
    %207 = vector.load %arg8[%c0_317, %c0_318, %c2_319, %c1_320, %c0_321] : memref<1x1x10x10x4xf32, #tpu.memory_space<vmem>>, vector<1x1x8x8x4xf32>
    %208 = vector.shape_cast %207 : vector<1x1x8x8x4xf32> to vector<8x8x4xf32>
    %209 = vector.shape_cast %208 : vector<8x8x4xf32> to vector<64x4xf32>
    %c0_322 = arith.constant 0 : index
    %c0_323 = arith.constant 0 : index
    %c2_324 = arith.constant 2 : index
    %c2_325 = arith.constant 2 : index
    %c0_326 = arith.constant 0 : index
    %210 = vector.load %arg8[%c0_322, %c0_323, %c2_324, %c2_325, %c0_326] : memref<1x1x10x10x4xf32, #tpu.memory_space<vmem>>, vector<1x1x8x8x4xf32>
    %211 = vector.shape_cast %210 : vector<1x1x8x8x4xf32> to vector<8x8x4xf32>
    %212 = vector.shape_cast %211 : vector<8x8x4xf32> to vector<64x4xf32>
    %213 = tpu.concatenate %188, %191, %194, %197, %200, %203, %206, %209, %212 in 1 : vector<64x4xf32>, vector<64x4xf32>, vector<64x4xf32>, vector<64x4xf32>, vector<64x4xf32>, vector<64x4xf32>, vector<64x4xf32>, vector<64x4xf32>, vector<64x4xf32> -> vector<64x36xf32>
    %c6 = arith.constant 6 : index
    %c0_327 = arith.constant 0 : index
    %c0_328 = arith.constant 0 : index
    %214 = vector.load %arg14[%c6, %c0_327, %c0_328] : memref<10x64x36xf32, #tpu.memory_space<vmem>>, vector<1x64x36xf32>
    %215 = vector.shape_cast %214 : vector<1x64x36xf32> to vector<64x36xf32>
    %216 = vector.shape_cast %213 : vector<64x36xf32> to vector<1x64x36xf32>
    tpu.vector_store %arg14[%c6, %c0_327, %c0_328], %216 {strides = array<i32>} : memref<10x64x36xf32, #tpu.memory_space<vmem>>, vector<1x64x36xf32>,
    %c0_329 = arith.constant 0 : index
    %c0_330 = arith.constant 0 : index
    %c0_331 = arith.constant 0 : index
    %c0_332 = arith.constant 0 : index
    %c0_333 = arith.constant 0 : index
    %217 = vector.load %arg9[%c0_329, %c0_330, %c0_331, %c0_332, %c0_333] : memref<1x1x10x10x4xf32, #tpu.memory_space<vmem>>, vector<1x1x8x8x4xf32>
    %218 = vector.shape_cast %217 : vector<1x1x8x8x4xf32> to vector<8x8x4xf32>
    %219 = vector.shape_cast %218 : vector<8x8x4xf32> to vector<64x4xf32>
    %c0_334 = arith.constant 0 : index
    %c0_335 = arith.constant 0 : index
    %c0_336 = arith.constant 0 : index
    %c1_337 = arith.constant 1 : index
    %c0_338 = arith.constant 0 : index
    %220 = vector.load %arg9[%c0_334, %c0_335, %c0_336, %c1_337, %c0_338] : memref<1x1x10x10x4xf32, #tpu.memory_space<vmem>>, vector<1x1x8x8x4xf32>
    %221 = vector.shape_cast %220 : vector<1x1x8x8x4xf32> to vector<8x8x4xf32>
    %222 = vector.shape_cast %221 : vector<8x8x4xf32> to vector<64x4xf32>
    %c0_339 = arith.constant 0 : index
    %c0_340 = arith.constant 0 : index
    %c0_341 = arith.constant 0 : index
    %c2_342 = arith.constant 2 : index
    %c0_343 = arith.constant 0 : index
    %223 = vector.load %arg9[%c0_339, %c0_340, %c0_341, %c2_342, %c0_343] : memref<1x1x10x10x4xf32, #tpu.memory_space<vmem>>, vector<1x1x8x8x4xf32>
    %224 = vector.shape_cast %223 : vector<1x1x8x8x4xf32> to vector<8x8x4xf32>
    %225 = vector.shape_cast %224 : vector<8x8x4xf32> to vector<64x4xf32>
    %c0_344 = arith.constant 0 : index
    %c0_345 = arith.constant 0 : index
    %c1_346 = arith.constant 1 : index
    %c0_347 = arith.constant 0 : index
    %c0_348 = arith.constant 0 : index
    %226 = vector.load %arg9[%c0_344, %c0_345, %c1_346, %c0_347, %c0_348] : memref<1x1x10x10x4xf32, #tpu.memory_space<vmem>>, vector<1x1x8x8x4xf32>
    %227 = vector.shape_cast %226 : vector<1x1x8x8x4xf32> to vector<8x8x4xf32>
    %228 = vector.shape_cast %227 : vector<8x8x4xf32> to vector<64x4xf32>
    %c0_349 = arith.constant 0 : index
    %c0_350 = arith.constant 0 : index
    %c1_351 = arith.constant 1 : index
    %c1_352 = arith.constant 1 : index
    %c0_353 = arith.constant 0 : index
    %229 = vector.load %arg9[%c0_349, %c0_350, %c1_351, %c1_352, %c0_353] : memref<1x1x10x10x4xf32, #tpu.memory_space<vmem>>, vector<1x1x8x8x4xf32>
    %230 = vector.shape_cast %229 : vector<1x1x8x8x4xf32> to vector<8x8x4xf32>
    %231 = vector.shape_cast %230 : vector<8x8x4xf32> to vector<64x4xf32>
    %c0_354 = arith.constant 0 : index
    %c0_355 = arith.constant 0 : index
    %c1_356 = arith.constant 1 : index
    %c2_357 = arith.constant 2 : index
    %c0_358 = arith.constant 0 : index
    %232 = vector.load %arg9[%c0_354, %c0_355, %c1_356, %c2_357, %c0_358] : memref<1x1x10x10x4xf32, #tpu.memory_space<vmem>>, vector<1x1x8x8x4xf32>
    %233 = vector.shape_cast %232 : vector<1x1x8x8x4xf32> to vector<8x8x4xf32>
    %234 = vector.shape_cast %233 : vector<8x8x4xf32> to vector<64x4xf32>
    %c0_359 = arith.constant 0 : index
    %c0_360 = arith.constant 0 : index
    %c2_361 = arith.constant 2 : index
    %c0_362 = arith.constant 0 : index
    %c0_363 = arith.constant 0 : index
    %235 = vector.load %arg9[%c0_359, %c0_360, %c2_361, %c0_362, %c0_363] : memref<1x1x10x10x4xf32, #tpu.memory_space<vmem>>, vector<1x1x8x8x4xf32>
    %236 = vector.shape_cast %235 : vector<1x1x8x8x4xf32> to vector<8x8x4xf32>
    %237 = vector.shape_cast %236 : vector<8x8x4xf32> to vector<64x4xf32>
    %c0_364 = arith.constant 0 : index
    %c0_365 = arith.constant 0 : index
    %c2_366 = arith.constant 2 : index
    %c1_367 = arith.constant 1 : index
    %c0_368 = arith.constant 0 : index
    %238 = vector.load %arg9[%c0_364, %c0_365, %c2_366, %c1_367, %c0_368] : memref<1x1x10x10x4xf32, #tpu.memory_space<vmem>>, vector<1x1x8x8x4xf32>
    %239 = vector.shape_cast %238 : vector<1x1x8x8x4xf32> to vector<8x8x4xf32>
    %240 = vector.shape_cast %239 : vector<8x8x4xf32> to vector<64x4xf32>
    %c0_369 = arith.constant 0 : index
    %c0_370 = arith.constant 0 : index
    %c2_371 = arith.constant 2 : index
    %c2_372 = arith.constant 2 : index
    %c0_373 = arith.constant 0 : index
    %241 = vector.load %arg9[%c0_369, %c0_370, %c2_371, %c2_372, %c0_373] : memref<1x1x10x10x4xf32, #tpu.memory_space<vmem>>, vector<1x1x8x8x4xf32>
    %242 = vector.shape_cast %241 : vector<1x1x8x8x4xf32> to vector<8x8x4xf32>
    %243 = vector.shape_cast %242 : vector<8x8x4xf32> to vector<64x4xf32>
    %244 = tpu.concatenate %219, %222, %225, %228, %231, %234, %237, %240, %243 in 1 : vector<64x4xf32>, vector<64x4xf32>, vector<64x4xf32>, vector<64x4xf32>, vector<64x4xf32>, vector<64x4xf32>, vector<64x4xf32>, vector<64x4xf32>, vector<64x4xf32> -> vector<64x36xf32>
    %c7 = arith.constant 7 : index
    %c0_374 = arith.constant 0 : index
    %c0_375 = arith.constant 0 : index
    %245 = vector.load %arg14[%c7, %c0_374, %c0_375] : memref<10x64x36xf32, #tpu.memory_space<vmem>>, vector<1x64x36xf32>
    %246 = vector.shape_cast %245 : vector<1x64x36xf32> to vector<64x36xf32>
    %247 = vector.shape_cast %244 : vector<64x36xf32> to vector<1x64x36xf32>
    tpu.vector_store %arg14[%c7, %c0_374, %c0_375], %247 {strides = array<i32>} : memref<10x64x36xf32, #tpu.memory_space<vmem>>, vector<1x64x36xf32>,
    %c0_376 = arith.constant 0 : index
    %c0_377 = arith.constant 0 : index
    %c0_378 = arith.constant 0 : index
    %c0_379 = arith.constant 0 : index
    %c0_380 = arith.constant 0 : index
    %248 = vector.load %arg10[%c0_376, %c0_377, %c0_378, %c0_379, %c0_380] : memref<1x1x10x10x4xf32, #tpu.memory_space<vmem>>, vector<1x1x8x8x4xf32>
    %249 = vector.shape_cast %248 : vector<1x1x8x8x4xf32> to vector<8x8x4xf32>
    %250 = vector.shape_cast %249 : vector<8x8x4xf32> to vector<64x4xf32>
    %c0_381 = arith.constant 0 : index
    %c0_382 = arith.constant 0 : index
    %c0_383 = arith.constant 0 : index
    %c1_384 = arith.constant 1 : index
    %c0_385 = arith.constant 0 : index
    %251 = vector.load %arg10[%c0_381, %c0_382, %c0_383, %c1_384, %c0_385] : memref<1x1x10x10x4xf32, #tpu.memory_space<vmem>>, vector<1x1x8x8x4xf32>
    %252 = vector.shape_cast %251 : vector<1x1x8x8x4xf32> to vector<8x8x4xf32>
    %253 = vector.shape_cast %252 : vector<8x8x4xf32> to vector<64x4xf32>
    %c0_386 = arith.constant 0 : index
    %c0_387 = arith.constant 0 : index
    %c0_388 = arith.constant 0 : index
    %c2_389 = arith.constant 2 : index
    %c0_390 = arith.constant 0 : index
    %254 = vector.load %arg10[%c0_386, %c0_387, %c0_388, %c2_389, %c0_390] : memref<1x1x10x10x4xf32, #tpu.memory_space<vmem>>, vector<1x1x8x8x4xf32>
    %255 = vector.shape_cast %254 : vector<1x1x8x8x4xf32> to vector<8x8x4xf32>
    %256 = vector.shape_cast %255 : vector<8x8x4xf32> to vector<64x4xf32>
    %c0_391 = arith.constant 0 : index
    %c0_392 = arith.constant 0 : index
    %c1_393 = arith.constant 1 : index
    %c0_394 = arith.constant 0 : index
    %c0_395 = arith.constant 0 : index
    %257 = vector.load %arg10[%c0_391, %c0_392, %c1_393, %c0_394, %c0_395] : memref<1x1x10x10x4xf32, #tpu.memory_space<vmem>>, vector<1x1x8x8x4xf32>
    %258 = vector.shape_cast %257 : vector<1x1x8x8x4xf32> to vector<8x8x4xf32>
    %259 = vector.shape_cast %258 : vector<8x8x4xf32> to vector<64x4xf32>
    %c0_396 = arith.constant 0 : index
    %c0_397 = arith.constant 0 : index
    %c1_398 = arith.constant 1 : index
    %c1_399 = arith.constant 1 : index
    %c0_400 = arith.constant 0 : index
    %260 = vector.load %arg10[%c0_396, %c0_397, %c1_398, %c1_399, %c0_400] : memref<1x1x10x10x4xf32, #tpu.memory_space<vmem>>, vector<1x1x8x8x4xf32>
    %261 = vector.shape_cast %260 : vector<1x1x8x8x4xf32> to vector<8x8x4xf32>
    %262 = vector.shape_cast %261 : vector<8x8x4xf32> to vector<64x4xf32>
    %c0_401 = arith.constant 0 : index
    %c0_402 = arith.constant 0 : index
    %c1_403 = arith.constant 1 : index
    %c2_404 = arith.constant 2 : index
    %c0_405 = arith.constant 0 : index
    %263 = vector.load %arg10[%c0_401, %c0_402, %c1_403, %c2_404, %c0_405] : memref<1x1x10x10x4xf32, #tpu.memory_space<vmem>>, vector<1x1x8x8x4xf32>
    %264 = vector.shape_cast %263 : vector<1x1x8x8x4xf32> to vector<8x8x4xf32>
    %265 = vector.shape_cast %264 : vector<8x8x4xf32> to vector<64x4xf32>
    %c0_406 = arith.constant 0 : index
    %c0_407 = arith.constant 0 : index
    %c2_408 = arith.constant 2 : index
    %c0_409 = arith.constant 0 : index
    %c0_410 = arith.constant 0 : index
    %266 = vector.load %arg10[%c0_406, %c0_407, %c2_408, %c0_409, %c0_410] : memref<1x1x10x10x4xf32, #tpu.memory_space<vmem>>, vector<1x1x8x8x4xf32>
    %267 = vector.shape_cast %266 : vector<1x1x8x8x4xf32> to vector<8x8x4xf32>
    %268 = vector.shape_cast %267 : vector<8x8x4xf32> to vector<64x4xf32>
    %c0_411 = arith.constant 0 : index
    %c0_412 = arith.constant 0 : index
    %c2_413 = arith.constant 2 : index
    %c1_414 = arith.constant 1 : index
    %c0_415 = arith.constant 0 : index
    %269 = vector.load %arg10[%c0_411, %c0_412, %c2_413, %c1_414, %c0_415] : memref<1x1x10x10x4xf32, #tpu.memory_space<vmem>>, vector<1x1x8x8x4xf32>
    %270 = vector.shape_cast %269 : vector<1x1x8x8x4xf32> to vector<8x8x4xf32>
    %271 = vector.shape_cast %270 : vector<8x8x4xf32> to vector<64x4xf32>
    %c0_416 = arith.constant 0 : index
    %c0_417 = arith.constant 0 : index
    %c2_418 = arith.constant 2 : index
    %c2_419 = arith.constant 2 : index
    %c0_420 = arith.constant 0 : index
    %272 = vector.load %arg10[%c0_416, %c0_417, %c2_418, %c2_419, %c0_420] : memref<1x1x10x10x4xf32, #tpu.memory_space<vmem>>, vector<1x1x8x8x4xf32>
    %273 = vector.shape_cast %272 : vector<1x1x8x8x4xf32> to vector<8x8x4xf32>
    %274 = vector.shape_cast %273 : vector<8x8x4xf32> to vector<64x4xf32>
    %275 = tpu.concatenate %250, %253, %256, %259, %262, %265, %268, %271, %274 in 1 : vector<64x4xf32>, vector<64x4xf32>, vector<64x4xf32>, vector<64x4xf32>, vector<64x4xf32>, vector<64x4xf32>, vector<64x4xf32>, vector<64x4xf32>, vector<64x4xf32> -> vector<64x36xf32>
    %c8 = arith.constant 8 : index
    %c0_421 = arith.constant 0 : index
    %c0_422 = arith.constant 0 : index
    %276 = vector.load %arg14[%c8, %c0_421, %c0_422] : memref<10x64x36xf32, #tpu.memory_space<vmem>>, vector<1x64x36xf32>
    %277 = vector.shape_cast %276 : vector<1x64x36xf32> to vector<64x36xf32>
    %278 = vector.shape_cast %275 : vector<64x36xf32> to vector<1x64x36xf32>
    tpu.vector_store %arg14[%c8, %c0_421, %c0_422], %278 {strides = array<i32>} : memref<10x64x36xf32, #tpu.memory_space<vmem>>, vector<1x64x36xf32>,
    %c0_423 = arith.constant 0 : index
    %c0_424 = arith.constant 0 : index
    %c0_425 = arith.constant 0 : index
    %c0_426 = arith.constant 0 : index
    %c0_427 = arith.constant 0 : index
    %279 = vector.load %arg11[%c0_423, %c0_424, %c0_425, %c0_426, %c0_427] : memref<1x1x10x10x4xf32, #tpu.memory_space<vmem>>, vector<1x1x8x8x4xf32>
    %280 = vector.shape_cast %279 : vector<1x1x8x8x4xf32> to vector<8x8x4xf32>
    %281 = vector.shape_cast %280 : vector<8x8x4xf32> to vector<64x4xf32>
    %c0_428 = arith.constant 0 : index
    %c0_429 = arith.constant 0 : index
    %c0_430 = arith.constant 0 : index
    %c1_431 = arith.constant 1 : index
    %c0_432 = arith.constant 0 : index
    %282 = vector.load %arg11[%c0_428, %c0_429, %c0_430, %c1_431, %c0_432] : memref<1x1x10x10x4xf32, #tpu.memory_space<vmem>>, vector<1x1x8x8x4xf32>
    %283 = vector.shape_cast %282 : vector<1x1x8x8x4xf32> to vector<8x8x4xf32>
    %284 = vector.shape_cast %283 : vector<8x8x4xf32> to vector<64x4xf32>
    %c0_433 = arith.constant 0 : index
    %c0_434 = arith.constant 0 : index
    %c0_435 = arith.constant 0 : index
    %c2_436 = arith.constant 2 : index
    %c0_437 = arith.constant 0 : index
    %285 = vector.load %arg11[%c0_433, %c0_434, %c0_435, %c2_436, %c0_437] : memref<1x1x10x10x4xf32, #tpu.memory_space<vmem>>, vector<1x1x8x8x4xf32>
    %286 = vector.shape_cast %285 : vector<1x1x8x8x4xf32> to vector<8x8x4xf32>
    %287 = vector.shape_cast %286 : vector<8x8x4xf32> to vector<64x4xf32>
    %c0_438 = arith.constant 0 : index
    %c0_439 = arith.constant 0 : index
    %c1_440 = arith.constant 1 : index
    %c0_441 = arith.constant 0 : index
    %c0_442 = arith.constant 0 : index
    %288 = vector.load %arg11[%c0_438, %c0_439, %c1_440, %c0_441, %c0_442] : memref<1x1x10x10x4xf32, #tpu.memory_space<vmem>>, vector<1x1x8x8x4xf32>
    %289 = vector.shape_cast %288 : vector<1x1x8x8x4xf32> to vector<8x8x4xf32>
    %290 = vector.shape_cast %289 : vector<8x8x4xf32> to vector<64x4xf32>
    %c0_443 = arith.constant 0 : index
    %c0_444 = arith.constant 0 : index
    %c1_445 = arith.constant 1 : index
    %c1_446 = arith.constant 1 : index
    %c0_447 = arith.constant 0 : index
    %291 = vector.load %arg11[%c0_443, %c0_444, %c1_445, %c1_446, %c0_447] : memref<1x1x10x10x4xf32, #tpu.memory_space<vmem>>, vector<1x1x8x8x4xf32>
    %292 = vector.shape_cast %291 : vector<1x1x8x8x4xf32> to vector<8x8x4xf32>
    %293 = vector.shape_cast %292 : vector<8x8x4xf32> to vector<64x4xf32>
    %c0_448 = arith.constant 0 : index
    %c0_449 = arith.constant 0 : index
    %c1_450 = arith.constant 1 : index
    %c2_451 = arith.constant 2 : index
    %c0_452 = arith.constant 0 : index
    %294 = vector.load %arg11[%c0_448, %c0_449, %c1_450, %c2_451, %c0_452] : memref<1x1x10x10x4xf32, #tpu.memory_space<vmem>>, vector<1x1x8x8x4xf32>
    %295 = vector.shape_cast %294 : vector<1x1x8x8x4xf32> to vector<8x8x4xf32>
    %296 = vector.shape_cast %295 : vector<8x8x4xf32> to vector<64x4xf32>
    %c0_453 = arith.constant 0 : index
    %c0_454 = arith.constant 0 : index
    %c2_455 = arith.constant 2 : index
    %c0_456 = arith.constant 0 : index
    %c0_457 = arith.constant 0 : index
    %297 = vector.load %arg11[%c0_453, %c0_454, %c2_455, %c0_456, %c0_457] : memref<1x1x10x10x4xf32, #tpu.memory_space<vmem>>, vector<1x1x8x8x4xf32>
    %298 = vector.shape_cast %297 : vector<1x1x8x8x4xf32> to vector<8x8x4xf32>
    %299 = vector.shape_cast %298 : vector<8x8x4xf32> to vector<64x4xf32>
    %c0_458 = arith.constant 0 : index
    %c0_459 = arith.constant 0 : index
    %c2_460 = arith.constant 2 : index
    %c1_461 = arith.constant 1 : index
    %c0_462 = arith.constant 0 : index
    %300 = vector.load %arg11[%c0_458, %c0_459, %c2_460, %c1_461, %c0_462] : memref<1x1x10x10x4xf32, #tpu.memory_space<vmem>>, vector<1x1x8x8x4xf32>
    %301 = vector.shape_cast %300 : vector<1x1x8x8x4xf32> to vector<8x8x4xf32>
    %302 = vector.shape_cast %301 : vector<8x8x4xf32> to vector<64x4xf32>
    %c0_463 = arith.constant 0 : index
    %c0_464 = arith.constant 0 : index
    %c2_465 = arith.constant 2 : index
    %c2_466 = arith.constant 2 : index
    %c0_467 = arith.constant 0 : index
    %303 = vector.load %arg11[%c0_463, %c0_464, %c2_465, %c2_466, %c0_467] : memref<1x1x10x10x4xf32, #tpu.memory_space<vmem>>, vector<1x1x8x8x4xf32>
    %304 = vector.shape_cast %303 : vector<1x1x8x8x4xf32> to vector<8x8x4xf32>
    %305 = vector.shape_cast %304 : vector<8x8x4xf32> to vector<64x4xf32>
    %306 = tpu.concatenate %281, %284, %287, %290, %293, %296, %299, %302, %305 in 1 : vector<64x4xf32>, vector<64x4xf32>, vector<64x4xf32>, vector<64x4xf32>, vector<64x4xf32>, vector<64x4xf32>, vector<64x4xf32>, vector<64x4xf32>, vector<64x4xf32> -> vector<64x36xf32>
    %c9 = arith.constant 9 : index
    %c0_468 = arith.constant 0 : index
    %c0_469 = arith.constant 0 : index
    %307 = vector.load %arg14[%c9, %c0_468, %c0_469] : memref<10x64x36xf32, #tpu.memory_space<vmem>>, vector<1x64x36xf32>
    %308 = vector.shape_cast %307 : vector<1x64x36xf32> to vector<64x36xf32>
    %309 = vector.shape_cast %306 : vector<64x36xf32> to vector<1x64x36xf32>
    tpu.vector_store %arg14[%c9, %c0_468, %c0_469], %309 {strides = array<i32>} : memref<10x64x36xf32, #tpu.memory_space<vmem>>, vector<1x64x36xf32>,
    %c0_470 = arith.constant 0 : index
    %c0_471 = arith.constant 0 : index
    %c0_472 = arith.constant 0 : index
    %310 = vector.load %arg14[%c0_470, %c0_471, %c0_472] : memref<10x64x36xf32, #tpu.memory_space<vmem>>, vector<8x64x36xf32>
    %311 = vector.shape_cast %310 : vector<8x64x36xf32> to vector<512x36xf32>
    %c0_473 = arith.constant 0 : index
    %c0_474 = arith.constant 0 : index
    %c0_475 = arith.constant 0 : index
    %312 = vector.load %arg12[%c0_473, %c0_474, %c0_475] : memref<3x36x128xf32, #tpu.memory_space<vmem>>, vector<1x36x128xf32>
    %313 = vector.shape_cast %312 : vector<1x36x128xf32> to vector<36x128xf32>
    %cst = arith.constant dense<0.000000e+00> : vector<512x128xf32>
    %314 = tpu.matmul %311, %313, %cst {dimension_numbers = #tpu.dot_dimension_numbers<[1], [0], [0], [1], [0, 0, 1, 1], [], []>} : vector<512x36xf32>, vector<36x128xf32>, vector<512x128xf32> -> vector<512x128xf32>
    %c1_476 = arith.constant 1 : index
    %c0_477 = arith.constant 0 : index
    %c0_478 = arith.constant 0 : index
    %315 = vector.load %arg14[%c1_476, %c0_477, %c0_478] : memref<10x64x36xf32, #tpu.memory_space<vmem>>, vector<8x64x36xf32>
    %316 = vector.shape_cast %315 : vector<8x64x36xf32> to vector<512x36xf32>
    %c1_479 = arith.constant 1 : index
    %c0_480 = arith.constant 0 : index
    %c0_481 = arith.constant 0 : index
    %317 = vector.load %arg12[%c1_479, %c0_480, %c0_481] : memref<3x36x128xf32, #tpu.memory_space<vmem>>, vector<1x36x128xf32>
    %318 = vector.shape_cast %317 : vector<1x36x128xf32> to vector<36x128xf32>
    %cst_482 = arith.constant dense<0.000000e+00> : vector<512x128xf32>
    %319 = tpu.matmul %316, %318, %cst_482 {dimension_numbers = #tpu.dot_dimension_numbers<[1], [0], [0], [1], [0, 0, 1, 1], [], []>} : vector<512x36xf32>, vector<36x128xf32>, vector<512x128xf32> -> vector<512x128xf32>
    %320 = arith.addf %314, %319 : vector<512x128xf32>
    %c2_483 = arith.constant 2 : index
    %c0_484 = arith.constant 0 : index
    %c0_485 = arith.constant 0 : index
    %321 = vector.load %arg14[%c2_483, %c0_484, %c0_485] : memref<10x64x36xf32, #tpu.memory_space<vmem>>, vector<8x64x36xf32>
    %322 = vector.shape_cast %321 : vector<8x64x36xf32> to vector<512x36xf32>
    %c2_486 = arith.constant 2 : index
    %c0_487 = arith.constant 0 : index
    %c0_488 = arith.constant 0 : index
    %323 = vector.load %arg12[%c2_486, %c0_487, %c0_488] : memref<3x36x128xf32, #tpu.memory_space<vmem>>, vector<1x36x128xf32>
    %324 = vector.shape_cast %323 : vector<1x36x128xf32> to vector<36x128xf32>
    %cst_489 = arith.constant dense<0.000000e+00> : vector<512x128xf32>
    %325 = tpu.matmul %322, %324, %cst_489 {dimension_numbers = #tpu.dot_dimension_numbers<[1], [0], [0], [1], [0, 0, 1, 1], [], []>} : vector<512x36xf32>, vector<36x128xf32>, vector<512x128xf32> -> vector<512x128xf32>
    %326 = arith.addf %320, %325 : vector<512x128xf32>
    %327 = vector.shape_cast %326 : vector<512x128xf32> to vector<8x64x128xf32>
    %c0_490 = arith.constant 0 : index
    %c0_491 = arith.constant 0 : index
    %c0_492 = arith.constant 0 : index
    %c0_493 = arith.constant 0 : index
    %328 = vector.load %arg13[%c0_490, %c0_491, %c0_492, %c0_493] : memref<1x8x64x128xf32, #tpu.memory_space<vmem>>, vector<1x8x64x128xf32>
    %329 = vector.shape_cast %328 : vector<1x8x64x128xf32> to vector<8x64x128xf32>
    %330 = vector.shape_cast %327 : vector<8x64x128xf32> to vector<1x8x64x128xf32>
    tpu.vector_store %arg13[%c0_490, %c0_491, %c0_492, %c0_493], %330 {strides = array<i32>} : memref<1x8x64x128xf32, #tpu.memory_space<vmem>>, vector<1x8x64x128xf32>,
    return
  }
  func.func @transform_0(%arg0: i32, %arg1: i32) -> (i32, i32, i32, i32, i32) {
    %c8_i32 = arith.constant 8 : i32
    %0 = arith.muli %arg1, %c8_i32 : i32
    %c0_i32 = arith.constant 0 : i32
    %1 = arith.addi %0, %c0_i32 : i32
    %c0_i32_0 = arith.constant 0 : i32
    %c0_i32_1 = arith.constant 0 : i32
    %c0_i32_2 = arith.constant 0 : i32
    %c0_i32_3 = arith.constant 0 : i32
    return %arg0, %1, %c0_i32_0, %c0_i32_1, %c0_i32_2 : i32, i32, i32, i32, i32
  }
  func.func @transform_1(%arg0: i32, %arg1: i32) -> (i32, i32, i32, i32, i32) {
    %c8_i32 = arith.constant 8 : i32
    %0 = arith.muli %arg1, %c8_i32 : i32
    %c1_i32 = arith.constant 1 : i32
    %1 = arith.addi %0, %c1_i32 : i32
    %c0_i32 = arith.constant 0 : i32
    %c0_i32_0 = arith.constant 0 : i32
    %c0_i32_1 = arith.constant 0 : i32
    %c0_i32_2 = arith.constant 0 : i32
    return %arg0, %1, %c0_i32, %c0_i32_0, %c0_i32_1 : i32, i32, i32, i32, i32
  }
  func.func @transform_2(%arg0: i32, %arg1: i32) -> (i32, i32, i32, i32, i32) {
    %c8_i32 = arith.constant 8 : i32
    %0 = arith.muli %arg1, %c8_i32 : i32
    %c2_i32 = arith.constant 2 : i32
    %1 = arith.addi %0, %c2_i32 : i32
    %c0_i32 = arith.constant 0 : i32
    %c0_i32_0 = arith.constant 0 : i32
    %c0_i32_1 = arith.constant 0 : i32
    %c0_i32_2 = arith.constant 0 : i32
    return %arg0, %1, %c0_i32, %c0_i32_0, %c0_i32_1 : i32, i32, i32, i32, i32
  }
  func.func @transform_3(%arg0: i32, %arg1: i32) -> (i32, i32, i32, i32, i32) {
    %c8_i32 = arith.constant 8 : i32
    %0 = arith.muli %arg1, %c8_i32 : i32
    %c3_i32 = arith.constant 3 : i32
    %1 = arith.addi %0, %c3_i32 : i32
    %c0_i32 = arith.constant 0 : i32
    %c0_i32_0 = arith.constant 0 : i32
    %c0_i32_1 = arith.constant 0 : i32
    %c0_i32_2 = arith.constant 0 : i32
    return %arg0, %1, %c0_i32, %c0_i32_0, %c0_i32_1 : i32, i32, i32, i32, i32
  }
  func.func @transform_4(%arg0: i32, %arg1: i32) -> (i32, i32, i32, i32, i32) {
    %c8_i32 = arith.constant 8 : i32
    %0 = arith.muli %arg1, %c8_i32 : i32
    %c4_i32 = arith.constant 4 : i32
    %1 = arith.addi %0, %c4_i32 : i32
    %c0_i32 = arith.constant 0 : i32
    %c0_i32_0 = arith.constant 0 : i32
    %c0_i32_1 = arith.constant 0 : i32
    %c0_i32_2 = arith.constant 0 : i32
    return %arg0, %1, %c0_i32, %c0_i32_0, %c0_i32_1 : i32, i32, i32, i32, i32
  }
  func.func @transform_5(%arg0: i32, %arg1: i32) -> (i32, i32, i32, i32, i32) {
    %c8_i32 = arith.constant 8 : i32
    %0 = arith.muli %arg1, %c8_i32 : i32
    %c5_i32 = arith.constant 5 : i32
    %1 = arith.addi %0, %c5_i32 : i32
    %c0_i32 = arith.constant 0 : i32
    %c0_i32_0 = arith.constant 0 : i32
    %c0_i32_1 = arith.constant 0 : i32
    %c0_i32_2 = arith.constant 0 : i32
    return %arg0, %1, %c0_i32, %c0_i32_0, %c0_i32_1 : i32, i32, i32, i32, i32
  }
  func.func @transform_6(%arg0: i32, %arg1: i32) -> (i32, i32, i32, i32, i32) {
    %c8_i32 = arith.constant 8 : i32
    %0 = arith.muli %arg1, %c8_i32 : i32
    %c6_i32 = arith.constant 6 : i32
    %1 = arith.addi %0, %c6_i32 : i32
    %c0_i32 = arith.constant 0 : i32
    %c0_i32_0 = arith.constant 0 : i32
    %c0_i32_1 = arith.constant 0 : i32
    %c0_i32_2 = arith.constant 0 : i32
    return %arg0, %1, %c0_i32, %c0_i32_0, %c0_i32_1 : i32, i32, i32, i32, i32
  }
  func.func @transform_7(%arg0: i32, %arg1: i32) -> (i32, i32, i32, i32, i32) {
    %c8_i32 = arith.constant 8 : i32
    %0 = arith.muli %arg1, %c8_i32 : i32
    %c7_i32 = arith.constant 7 : i32
    %1 = arith.addi %0, %c7_i32 : i32
    %c0_i32 = arith.constant 0 : i32
    %c0_i32_0 = arith.constant 0 : i32
    %c0_i32_1 = arith.constant 0 : i32
    %c0_i32_2 = arith.constant 0 : i32
    return %arg0, %1, %c0_i32, %c0_i32_0, %c0_i32_1 : i32, i32, i32, i32, i32
  }
  func.func @transform_8(%arg0: i32, %arg1: i32) -> (i32, i32, i32, i32, i32) {
    %c8_i32 = arith.constant 8 : i32
    %0 = arith.muli %arg1, %c8_i32 : i32
    %c8_i32_0 = arith.constant 8 : i32
    %1 = arith.addi %0, %c8_i32_0 : i32
    %c0_i32 = arith.constant 0 : i32
    %c0_i32_1 = arith.constant 0 : i32
    %c0_i32_2 = arith.constant 0 : i32
    %c0_i32_3 = arith.constant 0 : i32
    return %arg0, %1, %c0_i32, %c0_i32_1, %c0_i32_2 : i32, i32, i32, i32, i32
  }
  func.func @transform_9(%arg0: i32, %arg1: i32) -> (i32, i32, i32, i32, i32) {
    %c8_i32 = arith.constant 8 : i32
    %0 = arith.muli %arg1, %c8_i32 : i32
    %c9_i32 = arith.constant 9 : i32
    %1 = arith.addi %0, %c9_i32 : i32
    %c0_i32 = arith.constant 0 : i32
    %c0_i32_0 = arith.constant 0 : i32
    %c0_i32_1 = arith.constant 0 : i32
    %c0_i32_2 = arith.constant 0 : i32
    return %arg0, %1, %c0_i32, %c0_i32_0, %c0_i32_1 : i32, i32, i32, i32, i32
  }
  func.func @transform_10(%arg0: i32, %arg1: i32) -> (i32, i32, i32) {
    %c0_i32 = arith.constant 0 : i32
    %c0_i32_0 = arith.constant 0 : i32
    %c0_i32_1 = arith.constant 0 : i32
    %c0_i32_2 = arith.constant 0 : i32
    return %c0_i32, %c0_i32_0, %c0_i32_1 : i32, i32, i32
  }
  func.func @transform_11(%arg0: i32, %arg1: i32) -> (i32, i32, i32, i32) {
    %c0_i32 = arith.constant 0 : i32
    %c0_i32_0 = arith.constant 0 : i32
    %c0_i32_1 = arith.constant 0 : i32
    return %arg0, %arg1, %c0_i32, %c0_i32_0 : i32, i32, i32, i32
  }
}

</mosaic_0001>

<llo_original>
// kernel: tpu_custom_call.1
$region0: #{tpu_custom_call.1}
  #allocation0 [shape = 'u32[]', space=smem, size = 0x4, offset = 0x4, fixed_abs, tag = 'smem constant byte address 0x4 - core index']
  #allocation1 [shape = 'u32[144,128]{1,0:T(1,128)}', space=vmem, size = 0x12000, scoped, tag = 'internal scratch']
  #allocation2 [shape = 'f32[10,64,36]{2,1,0:T(8,128)}', space=vmem, size = 0x50000, scoped, tag = 'scratch operand']
  %s0 = inlined_call_operand.vmem [shape: f32[2,10,10,10,4], index: 0, kind: input, shape index: {}]
  %s1 = inlined_call_operand.vmem [shape: f32[2,10,10,10,4], index: 1, kind: input, shape index: {}]
  %s2 = inlined_call_operand.vmem [shape: f32[2,10,10,10,4], index: 2, kind: input, shape index: {}]
  %s3 = inlined_call_operand.vmem [shape: f32[2,10,10,10,4], index: 3, kind: input, shape index: {}]
  %s4 = inlined_call_operand.vmem [shape: f32[2,10,10,10,4], index: 4, kind: input, shape index: {}]
  %s5 = inlined_call_operand.vmem [shape: f32[2,10,10,10,4], index: 5, kind: input, shape index: {}]
  %s6 = inlined_call_operand.vmem [shape: f32[2,10,10,10,4], index: 6, kind: input, shape index: {}]
  %s7 = inlined_call_operand.vmem [shape: f32[2,10,10,10,4], index: 7, kind: input, shape index: {}]
  %s8 = inlined_call_operand.vmem [shape: f32[2,10,10,10,4], index: 8, kind: input, shape index: {}]
  %s9 = inlined_call_operand.vmem [shape: f32[2,10,10,10,4], index: 9, kind: input, shape index: {}]
  %s10 = inlined_call_operand.vmem [shape: f32[3,36,128], index: 10, kind: input, shape index: {}]
  %s11 = inlined_call_operand.hbm [shape: f32[2,8,64,128], index: 11, kind: output, shape index: {}]
  %s12 = sld [smem:[#allocation0]]
  $region77: #{tpu_custom_call.1} parent=0
    _
  %s14 = ssub.s32 1, %s12
  %s15 = scalar_select 0, %s14, %s12
  $region1: #{tpu_custom_call.1} parent=0
    #allocation3 [shape = 'u8[524288]{0}', space=vmem, size = 0x80000, scoped, tag = 'output window, operand 0']
    #allocation4 [shape = 's32[2]{0}', space=sflag, size = 0x8, scoped, tag = 'scoped memory for tpu_custom_call.1']
    %16 = vsyncpa [#allocation4], 0
    %s17 = scalar_lea.sflag [#allocation4], 1
    %18 = vsyncpa %s17, 0
    loop: start=0, step=1, limit=4
    $region2: #{tpu_custom_call.1} parent=1 // loop_pre_header
      _
    $region3: #{tpu_custom_call.1} parent=1 // loop_header
      %s20 = sphi 0, %s24
      %p21 = scmp.ge.s32.totalorder %s20, 4
      %s27 = sphi 0, %s39
      %s28 = sphi 0, %s35
      %s29 = sphi 0, %s27
      %s30 = sphi 0, %s28
      %s31 = sphi 0, %s29
      %s32 = sphi 0, %s30
      %s46 = sphi 0, %s48
      %s49 = sphi 0, %s46
      %s50 = sphi 0, %s49
      %s66 = sphi 0, %s50
      %s78 = sphi 0, %s80
      %s81 = sphi 0, %s78
      %s82 = sphi 0, %s81
      %s98 = sphi 0, %s82
      %s110 = sphi 0, %s112
      %s113 = sphi 0, %s110
      %s114 = sphi 0, %s113
      %s130 = sphi 0, %s114
      %s142 = sphi 0, %s144
      %s145 = sphi 0, %s142
      %s146 = sphi 0, %s145
      %s162 = sphi 0, %s146
      %s174 = sphi 0, %s176
      %s177 = sphi 0, %s174
      %s178 = sphi 0, %s177
      %s194 = sphi 0, %s178
      %s206 = sphi 0, %s208
      %s209 = sphi 0, %s206
      %s210 = sphi 0, %s209
      %s226 = sphi 0, %s210
      %s238 = sphi 0, %s240
      %s241 = sphi 0, %s238
      %s242 = sphi 0, %s241
      %s258 = sphi 0, %s242
      %s270 = sphi 0, %s272
      %s273 = sphi 0, %s270
      %s274 = sphi 0, %s273
      %s290 = sphi 0, %s274
      %s302 = sphi 0, %s304
      %s305 = sphi 0, %s302
      %s306 = sphi 0, %s305
      %s322 = sphi 0, %s306
      %s334 = sphi 0, %s336
      %s337 = sphi 0, %s334
      %s338 = sphi 0, %s337
      %s354 = sphi 0, %s338
      %s358 = sphi 0, %s358
      %s360 = sphi 0, %s358
      %s361 = sphi 0, %s360
      %s375 = sphi 0, %s361
      %s383 = sphi 0, %s385
      %s386 = sphi 0, %s383
      %s387 = sphi 0, %s386
      %s403 = sphi 0, %s387
    $region4: #{tpu_custom_call.1} parent=1 // loop_header_branch
      %23 = sbr.rel (%p21) target = $region8
    $region5: #{tpu_custom_call.1} parent=1 // loop_body
      %s25 = ssub.s32 %s20, 1
      %s26 = ssub.s32 %s20, 2
      %s33 = sadd.s32 1, %s28
      %p34 = scmp.ge.s32.totalorder %s33, 1
      %s35 = scalar_select %p34, 0, %s33
      %s36 = sadd.s32 1, %s27
      %s37 = scalar_select %p34, %s36, %s27
      %p38 = scmp.ge.s32.totalorder %s37, 2
      %s39 = scalar_select %p38, 0, %s37
      %s40 = smul.u32 %s28, 8
      %s41 = smul.u32 %s35, 8
      %s42 = ssub.s32 %s27, %s39
      %s43 = ssub.s32 %s40, %s41
      %s44 = sor.u32 %s42, %s43
      %p45 = scmp.eq.s32.totalorder %s44, 0
      %s47 = sadd.s32 %s46, 1
      %s48 = scalar_select %p45, %s46, %s47
      %p51 = pneg %p45
      %p52 = scmp.eq.s32.totalorder %s20, 1
      %p53 = por %p51, %p52
      %p54 = scmp.ne.s32.totalorder %s46, %s49
      %p55 = scmp.eq.s32.totalorder %s20, 0
      %p56 = por %p54, %p55
      %p57 = scmp.ne.s32.totalorder %s46, %s49
      %p58 = scmp.eq.s32.totalorder %s25, 1
      %p59 = por %p57, %p58
      %p60 = scmp.ne.s32.totalorder %s49, %s50
      %p61 = scmp.eq.s32.totalorder %s25, 0
      %p62 = por %p60, %p61
      %p63 = scmp.ne.s32.totalorder %s49, %s50
      %p64 = scmp.eq.s32.totalorder %s26, 1
      %p65 = por %p63, %p64
      %p67 = scmp.ne.s32.totalorder %s50, %s66
      %p68 = scmp.eq.s32.totalorder %s26, 0
      %p69 = por %p67, %p68
      %s70 = smul.u32 %s28, 8
      %s71 = sadd.s32 %s70, 1
      %s72 = smul.u32 %s35, 8
      %s73 = sadd.s32 %s72, 1
      %s74 = ssub.s32 %s27, %s39
      %s75 = ssub.s32 %s71, %s73
      %s76 = sor.u32 %s74, %s75
      %p77 = scmp.eq.s32.totalorder %s76, 0
      %s79 = sadd.s32 %s78, 1
      %s80 = scalar_select %p77, %s78, %s79
      %p83 = pneg %p77
      %p84 = scmp.eq.s32.totalorder %s20, 1
      %p85 = por %p83, %p84
      %p86 = scmp.ne.s32.totalorder %s78, %s81
      %p87 = scmp.eq.s32.totalorder %s20, 0
      %p88 = por %p86, %p87
      %p89 = scmp.ne.s32.totalorder %s78, %s81
      %p90 = scmp.eq.s32.totalorder %s25, 1
      %p91 = por %p89, %p90
      %p92 = scmp.ne.s32.totalorder %s81, %s82
      %p93 = scmp.eq.s32.totalorder %s25, 0
      %p94 = por %p92, %p93
      %p95 = scmp.ne.s32.totalorder %s81, %s82
      %p96 = scmp.eq.s32.totalorder %s26, 1
      %p97 = por %p95, %p96
      %p99 = scmp.ne.s32.totalorder %s82, %s98
      %p100 = scmp.eq.s32.totalorder %s26, 0
      %p101 = por %p99, %p100
      %s102 = smul.u32 %s28, 8
      %s103 = sadd.s32 %s102, 2
      %s104 = smul.u32 %s35, 8
      %s105 = sadd.s32 %s104, 2
      %s106 = ssub.s32 %s27, %s39
      %s107 = ssub.s32 %s103, %s105
      %s108 = sor.u32 %s106, %s107
      %p109 = scmp.eq.s32.totalorder %s108, 0
      %s111 = sadd.s32 %s110, 1
      %s112 = scalar_select %p109, %s110, %s111
      %p115 = pneg %p109
      %p116 = scmp.eq.s32.totalorder %s20, 1
      %p117 = por %p115, %p116
      %p118 = scmp.ne.s32.totalorder %s110, %s113
      %p119 = scmp.eq.s32.totalorder %s20, 0
      %p120 = por %p118, %p119
      %p121 = scmp.ne.s32.totalorder %s110, %s113
      %p122 = scmp.eq.s32.totalorder %s25, 1
      %p123 = por %p121, %p122
      %p124 = scmp.ne.s32.totalorder %s113, %s114
      %p125 = scmp.eq.s32.totalorder %s25, 0
      %p126 = por %p124, %p125
      %p127 = scmp.ne.s32.totalorder %s113, %s114
      %p128 = scmp.eq.s32.totalorder %s26, 1
      %p129 = por %p127, %p128
      %p131 = scmp.ne.s32.totalorder %s114, %s130
      %p132 = scmp.eq.s32.totalorder %s26, 0
      %p133 = por %p131, %p132
      %s134 = smul.u32 %s28, 8
      %s135 = sadd.s32 %s134, 3
      %s136 = smul.u32 %s35, 8
      %s137 = sadd.s32 %s136, 3
      %s138 = ssub.s32 %s27, %s39
      %s139 = ssub.s32 %s135, %s137
      %s140 = sor.u32 %s138, %s139
      %p141 = scmp.eq.s32.totalorder %s140, 0
      %s143 = sadd.s32 %s142, 1
      %s144 = scalar_select %p141, %s142, %s143
      %p147 = pneg %p141
      %p148 = scmp.eq.s32.totalorder %s20, 1
      %p149 = por %p147, %p148
      %p150 = scmp.ne.s32.totalorder %s142, %s145
      %p151 = scmp.eq.s32.totalorder %s20, 0
      %p152 = por %p150, %p151
      %p153 = scmp.ne.s32.totalorder %s142, %s145
      %p154 = scmp.eq.s32.totalorder %s25, 1
      %p155 = por %p153, %p154
      %p156 = scmp.ne.s32.totalorder %s145, %s146
      %p157 = scmp.eq.s32.totalorder %s25, 0
      %p158 = por %p156, %p157
      %p159 = scmp.ne.s32.totalorder %s145, %s146
      %p160 = scmp.eq.s32.totalorder %s26, 1
      %p161 = por %p159, %p160
      %p163 = scmp.ne.s32.totalorder %s146, %s162
      %p164 = scmp.eq.s32.totalorder %s26, 0
      %p165 = por %p163, %p164
      %s166 = smul.u32 %s28, 8
      %s167 = sadd.s32 %s166, 4
      %s168 = smul.u32 %s35, 8
      %s169 = sadd.s32 %s168, 4
      %s170 = ssub.s32 %s27, %s39
      %s171 = ssub.s32 %s167, %s169
      %s172 = sor.u32 %s170, %s171
      %p173 = scmp.eq.s32.totalorder %s172, 0
      %s175 = sadd.s32 %s174, 1
      %s176 = scalar_select %p173, %s174, %s175
      %p179 = pneg %p173
      %p180 = scmp.eq.s32.totalorder %s20, 1
      %p181 = por %p179, %p180
      %p182 = scmp.ne.s32.totalorder %s174, %s177
      %p183 = scmp.eq.s32.totalorder %s20, 0
      %p184 = por %p182, %p183
      %p185 = scmp.ne.s32.totalorder %s174, %s177
      %p186 = scmp.eq.s32.totalorder %s25, 1
      %p187 = por %p185, %p186
      %p188 = scmp.ne.s32.totalorder %s177, %s178
      %p189 = scmp.eq.s32.totalorder %s25, 0
      %p190 = por %p188, %p189
      %p191 = scmp.ne.s32.totalorder %s177, %s178
      %p192 = scmp.eq.s32.totalorder %s26, 1
      %p193 = por %p191, %p192
      %p195 = scmp.ne.s32.totalorder %s178, %s194
      %p196 = scmp.eq.s32.totalorder %s26, 0
      %p197 = por %p195, %p196
      %s198 = smul.u32 %s28, 8
      %s199 = sadd.s32 %s198, 5
      %s200 = smul.u32 %s35, 8
      %s201 = sadd.s32 %s200, 5
      %s202 = ssub.s32 %s27, %s39
      %s203 = ssub.s32 %s199, %s201
      %s204 = sor.u32 %s202, %s203
      %p205 = scmp.eq.s32.totalorder %s204, 0
      %s207 = sadd.s32 %s206, 1
      %s208 = scalar_select %p205, %s206, %s207
      %p211 = pneg %p205
      %p212 = scmp.eq.s32.totalorder %s20, 1
      %p213 = por %p211, %p212
      %p214 = scmp.ne.s32.totalorder %s206, %s209
      %p215 = scmp.eq.s32.totalorder %s20, 0
      %p216 = por %p214, %p215
      %p217 = scmp.ne.s32.totalorder %s206, %s209
      %p218 = scmp.eq.s32.totalorder %s25, 1
      %p219 = por %p217, %p218
      %p220 = scmp.ne.s32.totalorder %s209, %s210
      %p221 = scmp.eq.s32.totalorder %s25, 0
      %p222 = por %p220, %p221
      %p223 = scmp.ne.s32.totalorder %s209, %s210
      %p224 = scmp.eq.s32.totalorder %s26, 1
      %p225 = por %p223, %p224
      %p227 = scmp.ne.s32.totalorder %s210, %s226
      %p228 = scmp.eq.s32.totalorder %s26, 0
      %p229 = por %p227, %p228
      %s230 = smul.u32 %s28, 8
      %s231 = sadd.s32 %s230, 6
      %s232 = smul.u32 %s35, 8
      %s233 = sadd.s32 %s232, 6
      %s234 = ssub.s32 %s27, %s39
      %s235 = ssub.s32 %s231, %s233
      %s236 = sor.u32 %s234, %s235
      %p237 = scmp.eq.s32.totalorder %s236, 0
      %s239 = sadd.s32 %s238, 1
      %s240 = scalar_select %p237, %s238, %s239
      %p243 = pneg %p237
      %p244 = scmp.eq.s32.totalorder %s20, 1
      %p245 = por %p243, %p244
      %p246 = scmp.ne.s32.totalorder %s238, %s241
      %p247 = scmp.eq.s32.totalorder %s20, 0
      %p248 = por %p246, %p247
      %p249 = scmp.ne.s32.totalorder %s238, %s241
      %p250 = scmp.eq.s32.totalorder %s25, 1
      %p251 = por %p249, %p250
      %p252 = scmp.ne.s32.totalorder %s241, %s242
      %p253 = scmp.eq.s32.totalorder %s25, 0
      %p254 = por %p252, %p253
      %p255 = scmp.ne.s32.totalorder %s241, %s242
      %p256 = scmp.eq.s32.totalorder %s26, 1
      %p257 = por %p255, %p256
      %p259 = scmp.ne.s32.totalorder %s242, %s258
      %p260 = scmp.eq.s32.totalorder %s26, 0
      %p261 = por %p259, %p260
      %s262 = smul.u32 %s28, 8
      %s263 = sadd.s32 %s262, 7
      %s264 = smul.u32 %s35, 8
      %s265 = sadd.s32 %s264, 7
      %s266 = ssub.s32 %s27, %s39
      %s267 = ssub.s32 %s263, %s265
      %s268 = sor.u32 %s266, %s267
      %p269 = scmp.eq.s32.totalorder %s268, 0
      %s271 = sadd.s32 %s270, 1
      %s272 = scalar_select %p269, %s270, %s271
      %p275 = pneg %p269
      %p276 = scmp.eq.s32.totalorder %s20, 1
      %p277 = por %p275, %p276
      %p278 = scmp.ne.s32.totalorder %s270, %s273
      %p279 = scmp.eq.s32.totalorder %s20, 0
      %p280 = por %p278, %p279
      %p281 = scmp.ne.s32.totalorder %s270, %s273
      %p282 = scmp.eq.s32.totalorder %s25, 1
      %p283 = por %p281, %p282
      %p284 = scmp.ne.s32.totalorder %s273, %s274
      %p285 = scmp.eq.s32.totalorder %s25, 0
      %p286 = por %p284, %p285
      %p287 = scmp.ne.s32.totalorder %s273, %s274
      %p288 = scmp.eq.s32.totalorder %s26, 1
      %p289 = por %p287, %p288
      %p291 = scmp.ne.s32.totalorder %s274, %s290
      %p292 = scmp.eq.s32.totalorder %s26, 0
      %p293 = por %p291, %p292
      %s294 = smul.u32 %s28, 8
      %s295 = sadd.s32 %s294, 8
      %s296 = smul.u32 %s35, 8
      %s297 = sadd.s32 %s296, 8
      %s298 = ssub.s32 %s27, %s39
      %s299 = ssub.s32 %s295, %s297
      %s300 = sor.u32 %s298, %s299
      %p301 = scmp.eq.s32.totalorder %s300, 0
      %s303 = sadd.s32 %s302, 1
      %s304 = scalar_select %p301, %s302, %s303
      %p307 = pneg %p301
      %p308 = scmp.eq.s32.totalorder %s20, 1
      %p309 = por %p307, %p308
      %p310 = scmp.ne.s32.totalorder %s302, %s305
      %p311 = scmp.eq.s32.totalorder %s20, 0
      %p312 = por %p310, %p311
      %p313 = scmp.ne.s32.totalorder %s302, %s305
      %p314 = scmp.eq.s32.totalorder %s25, 1
      %p315 = por %p313, %p314
      %p316 = scmp.ne.s32.totalorder %s305, %s306
      %p317 = scmp.eq.s32.totalorder %s25, 0
      %p318 = por %p316, %p317
      %p319 = scmp.ne.s32.totalorder %s305, %s306
      %p320 = scmp.eq.s32.totalorder %s26, 1
      %p321 = por %p319, %p320
      %p323 = scmp.ne.s32.totalorder %s306, %s322
      %p324 = scmp.eq.s32.totalorder %s26, 0
      %p325 = por %p323, %p324
      %s326 = smul.u32 %s28, 8
      %s327 = sadd.s32 %s326, 9
      %s328 = smul.u32 %s35, 8
      %s329 = sadd.s32 %s328, 9
      %s330 = ssub.s32 %s27, %s39
      %s331 = ssub.s32 %s327, %s329
      %s332 = sor.u32 %s330, %s331
      %p333 = scmp.eq.s32.totalorder %s332, 0
      %s335 = sadd.s32 %s334, 1
      %s336 = scalar_select %p333, %s334, %s335
      %p339 = pneg %p333
      %p340 = scmp.eq.s32.totalorder %s20, 1
      %p341 = por %p339, %p340
      %p342 = scmp.ne.s32.totalorder %s334, %s337
      %p343 = scmp.eq.s32.totalorder %s20, 0
      %p344 = por %p342, %p343
      %p345 = scmp.ne.s32.totalorder %s334, %s337
      %p346 = scmp.eq.s32.totalorder %s25, 1
      %p347 = por %p345, %p346
      %p348 = scmp.ne.s32.totalorder %s337, %s338
      %p349 = scmp.eq.s32.totalorder %s25, 0
      %p350 = por %p348, %p349
      %p351 = scmp.ne.s32.totalorder %s337, %s338
      %p352 = scmp.eq.s32.totalorder %s26, 1
      %p353 = por %p351, %p352
      %p355 = scmp.ne.s32.totalorder %s338, %s354
      %p356 = scmp.eq.s32.totalorder %s26, 0
      %p357 = por %p355, %p356
      %s359 = sadd.s32 %s358, 1
      %p362 = scmp.eq.s32.totalorder %s20, 1
      %p363 = scmp.ne.s32.totalorder %s358, %s360
      %p364 = scmp.eq.s32.totalorder %s20, 0
      %p365 = por %p363, %p364
      %p366 = scmp.ne.s32.totalorder %s358, %s360
      %p367 = scmp.eq.s32.totalorder %s25, 1
      %p368 = por %p366, %p367
      %p369 = scmp.ne.s32.totalorder %s360, %s361
      %p370 = scmp.eq.s32.totalorder %s25, 0
      %p371 = por %p369, %p370
      %p372 = scmp.ne.s32.totalorder %s360, %s361
      %p373 = scmp.eq.s32.totalorder %s26, 1
      %p374 = por %p372, %p373
      %p376 = scmp.ne.s32.totalorder %s361, %s375
      %p377 = scmp.eq.s32.totalorder %s26, 0
      %p378 = por %p376, %p377
      %s379 = ssub.s32 %s27, %s39
      %s380 = ssub.s32 %s28, %s35
      %s381 = sor.u32 %s379, %s380
      %p382 = scmp.eq.s32.totalorder %s381, 0
      %s384 = sadd.s32 %s383, 1
      %s385 = scalar_select %p382, %s383, %s384
      %p388 = pneg %p382
      %p389 = scmp.eq.s32.totalorder %s20, 1
      %p390 = por %p388, %p389
      %p391 = scmp.ne.s32.totalorder %s383, %s386
      %p392 = scmp.eq.s32.totalorder %s20, 0
      %p393 = por %p391, %p392
      %p394 = scmp.ne.s32.totalorder %s383, %s386
      %p395 = scmp.eq.s32.totalorder %s25, 1
      %p396 = por %p394, %p395
      %p397 = scmp.ne.s32.totalorder %s386, %s387
      %p398 = scmp.eq.s32.totalorder %s25, 0
      %p399 = por %p397, %p398
      %p400 = scmp.ne.s32.totalorder %s386, %s387
      %p401 = scmp.eq.s32.totalorder %s26, 1
      %p402 = por %p400, %p401
      %p404 = scmp.ne.s32.totalorder %s387, %s403
      %p405 = scmp.eq.s32.totalorder %s26, 0
      %p406 = por %p404, %p405
      %p407 = scmp.le.s32.totalorder 1, %s20
      %p408 = scmp.lt.s32.totalorder %s20, 3
      %p409 = pnand %p407, %p408
      %p410 = pneg %p409
      // Predicated region
      $region9: #{tpu_custom_call.1} parent=5 // pred_check
        _
      $region10: #{tpu_custom_call.1} parent=5 // pred_check_branch
        %412 = sbr.rel (%p409) target = $region12
      $region11: #{tpu_custom_call.1} parent=5 // pred_region
        %s413 = ssub.s32 %s20, 1
        // Predicated region
        $region13: #{tpu_custom_call.1} parent=11 // pred_check
          %p414 = pneg %p371
        $region14: #{tpu_custom_call.1} parent=11 // pred_check_branch
          %416 = sbr.rel (%p414) target = $region16
        $region15: #{tpu_custom_call.1} parent=11 // pred_region
          _
        $region16: #{tpu_custom_call.1} parent=11 // pred_fallthru
          _
      $region12: #{tpu_custom_call.1} parent=5 // pred_fallthru
        _
      %p417 = scmp.lt.s32.totalorder %s20, 2
      // Predicated region
      $region17: #{tpu_custom_call.1} parent=5 // pred_check
        %p418 = pneg %p417
      $region18: #{tpu_custom_call.1} parent=5 // pred_check_branch
        %420 = sbr.rel (%p418) target = $region20
      $region19: #{tpu_custom_call.1} parent=5 // pred_region
        // Predicated region
        $region21: #{tpu_custom_call.1} parent=19 // pred_check
          %p421 = pneg %p56
        $region22: #{tpu_custom_call.1} parent=19 // pred_check_branch
          %423 = sbr.rel (%p421) target = $region24
        $region23: #{tpu_custom_call.1} parent=19 // pred_region
          %s424 = smul.u32 %s28, 8
          %p425 = scmp.lt.s32.totalorder %s27, 1
          %s426 = scalar_select %p425, %s27, 1
          %p427 = scmp.lt.s32.totalorder %s424, 9
          %s428 = scalar_select %p427, %s424, 9
          %s429 = smul.addr %s428, 20
          %s430 = smul.addr %s426, 200
          %s431 = sadd.s32 %s429, %s430
          %s432 = smul.addr %s431, 8
          %s433 = scalar_lea.vmem %s0, %s432
          %s434 = smul.u32 %s28, 8
        $region24: #{tpu_custom_call.1} parent=19 // pred_fallthru
          _
        // Predicated region
        $region25: #{tpu_custom_call.1} parent=19 // pred_check
          %p435 = pneg %p88
        $region26: #{tpu_custom_call.1} parent=19 // pred_check_branch
          %437 = sbr.rel (%p435) target = $region28
        $region27: #{tpu_custom_call.1} parent=19 // pred_region
          %s438 = smul.u32 %s28, 8
          %s439 = sadd.s32 %s438, 1
          %p440 = scmp.lt.s32.totalorder %s27, 1
          %s441 = scalar_select %p440, %s27, 1
          %p442 = scmp.lt.s32.totalorder %s439, 9
          %s443 = scalar_select %p442, %s439, 9
          %s444 = smul.addr %s443, 20
          %s445 = smul.addr %s441, 200
          %s446 = sadd.s32 %s444, %s445
          %s447 = smul.addr %s446, 8
          %s448 = scalar_lea.vmem %s1, %s447
          %s449 = smul.u32 %s28, 8
          %s450 = sadd.s32 %s449, 1
        $region28: #{tpu_custom_call.1} parent=19 // pred_fallthru
          _
        // Predicated region
        $region29: #{tpu_custom_call.1} parent=19 // pred_check
          %p451 = pneg %p120
        $region30: #{tpu_custom_call.1} parent=19 // pred_check_branch
          %453 = sbr.rel (%p451) target = $region32
        $region31: #{tpu_custom_call.1} parent=19 // pred_region
          %s454 = smul.u32 %s28, 8
          %s455 = sadd.s32 %s454, 2
          %p456 = scmp.lt.s32.totalorder %s27, 1
          %s457 = scalar_select %p456, %s27, 1
          %p458 = scmp.lt.s32.totalorder %s455, 9
          %s459 = scalar_select %p458, %s455, 9
          %s460 = smul.addr %s459, 20
          %s461 = smul.addr %s457, 200
          %s462 = sadd.s32 %s460, %s461
          %s463 = smul.addr %s462, 8
          %s464 = scalar_lea.vmem %s2, %s463
          %s465 = smul.u32 %s28, 8
          %s466 = sadd.s32 %s465, 2
        $region32: #{tpu_custom_call.1} parent=19 // pred_fallthru
          _
        // Predicated region
        $region33: #{tpu_custom_call.1} parent=19 // pred_check
          %p467 = pneg %p152
        $region34: #{tpu_custom_call.1} parent=19 // pred_check_branch
          %469 = sbr.rel (%p467) target = $region36
        $region35: #{tpu_custom_call.1} parent=19 // pred_region
          %s470 = smul.u32 %s28, 8
          %s471 = sadd.s32 %s470, 3
          %p472 = scmp.lt.s32.totalorder %s27, 1
          %s473 = scalar_select %p472, %s27, 1
          %p474 = scmp.lt.s32.totalorder %s471, 9
          %s475 = scalar_select %p474, %s471, 9
          %s476 = smul.addr %s475, 20
          %s477 = smul.addr %s473, 200
          %s478 = sadd.s32 %s476, %s477
          %s479 = smul.addr %s478, 8
          %s480 = scalar_lea.vmem %s3, %s479
          %s481 = smul.u32 %s28, 8
          %s482 = sadd.s32 %s481, 3
        $region36: #{tpu_custom_call.1} parent=19 // pred_fallthru
          _
        // Predicated region
        $region37: #{tpu_custom_call.1} parent=19 // pred_check
          %p483 = pneg %p184
        $region38: #{tpu_custom_call.1} parent=19 // pred_check_branch
          %485 = sbr.rel (%p483) target = $region40
        $region39: #{tpu_custom_call.1} parent=19 // pred_region
          %s486 = smul.u32 %s28, 8
          %s487 = sadd.s32 %s486, 4
          %p488 = scmp.lt.s32.totalorder %s27, 1
          %s489 = scalar_select %p488, %s27, 1
          %p490 = scmp.lt.s32.totalorder %s487, 9
          %s491 = scalar_select %p490, %s487, 9
          %s492 = smul.addr %s491, 20
          %s493 = smul.addr %s489, 200
          %s494 = sadd.s32 %s492, %s493
          %s495 = smul.addr %s494, 8
          %s496 = scalar_lea.vmem %s4, %s495
          %s497 = smul.u32 %s28, 8
          %s498 = sadd.s32 %s497, 4
        $region40: #{tpu_custom_call.1} parent=19 // pred_fallthru
          _
        // Predicated region
        $region41: #{tpu_custom_call.1} parent=19 // pred_check
          %p499 = pneg %p216
        $region42: #{tpu_custom_call.1} parent=19 // pred_check_branch
          %501 = sbr.rel (%p499) target = $region44
        $region43: #{tpu_custom_call.1} parent=19 // pred_region
          %s502 = smul.u32 %s28, 8
          %s503 = sadd.s32 %s502, 5
          %p504 = scmp.lt.s32.totalorder %s27, 1
          %s505 = scalar_select %p504, %s27, 1
          %p506 = scmp.lt.s32.totalorder %s503, 9
          %s507 = scalar_select %p506, %s503, 9
          %s508 = smul.addr %s507, 20
          %s509 = smul.addr %s505, 200
          %s510 = sadd.s32 %s508, %s509
          %s511 = smul.addr %s510, 8
          %s512 = scalar_lea.vmem %s5, %s511
          %s513 = smul.u32 %s28, 8
          %s514 = sadd.s32 %s513, 5
        $region44: #{tpu_custom_call.1} parent=19 // pred_fallthru
          _
        // Predicated region
        $region45: #{tpu_custom_call.1} parent=19 // pred_check
          %p515 = pneg %p248
        $region46: #{tpu_custom_call.1} parent=19 // pred_check_branch
          %517 = sbr.rel (%p515) target = $region48
        $region47: #{tpu_custom_call.1} parent=19 // pred_region
          %s518 = smul.u32 %s28, 8
          %s519 = sadd.s32 %s518, 6
          %p520 = scmp.lt.s32.totalorder %s27, 1
          %s521 = scalar_select %p520, %s27, 1
          %p522 = scmp.lt.s32.totalorder %s519, 9
          %s523 = scalar_select %p522, %s519, 9
          %s524 = smul.addr %s523, 20
          %s525 = smul.addr %s521, 200
          %s526 = sadd.s32 %s524, %s525
          %s527 = smul.addr %s526, 8
          %s528 = scalar_lea.vmem %s6, %s527
          %s529 = smul.u32 %s28, 8
          %s530 = sadd.s32 %s529, 6
        $region48: #{tpu_custom_call.1} parent=19 // pred_fallthru
          _
        // Predicated region
        $region49: #{tpu_custom_call.1} parent=19 // pred_check
          %p531 = pneg %p280
        $region50: #{tpu_custom_call.1} parent=19 // pred_check_branch
          %533 = sbr.rel (%p531) target = $region52
        $region51: #{tpu_custom_call.1} parent=19 // pred_region
          %s534 = smul.u32 %s28, 8
          %s535 = sadd.s32 %s534, 7
          %p536 = scmp.lt.s32.totalorder %s27, 1
          %s537 = scalar_select %p536, %s27, 1
          %p538 = scmp.lt.s32.totalorder %s535, 9
          %s539 = scalar_select %p538, %s535, 9
          %s540 = smul.addr %s539, 20
          %s541 = smul.addr %s537, 200
          %s542 = sadd.s32 %s540, %s541
          %s543 = smul.addr %s542, 8
          %s544 = scalar_lea.vmem %s7, %s543
          %s545 = smul.u32 %s28, 8
          %s546 = sadd.s32 %s545, 7
        $region52: #{tpu_custom_call.1} parent=19 // pred_fallthru
          _
        // Predicated region
        $region53: #{tpu_custom_call.1} parent=19 // pred_check
          %p547 = pneg %p312
        $region54: #{tpu_custom_call.1} parent=19 // pred_check_branch
          %549 = sbr.rel (%p547) target = $region56
        $region55: #{tpu_custom_call.1} parent=19 // pred_region
          %s550 = smul.u32 %s28, 8
          %s551 = sadd.s32 %s550, 8
          %p552 = scmp.lt.s32.totalorder %s27, 1
          %s553 = scalar_select %p552, %s27, 1
          %p554 = scmp.lt.s32.totalorder %s551, 9
          %s555 = scalar_select %p554, %s551, 9
          %s556 = smul.addr %s555, 20
          %s557 = smul.addr %s553, 200
          %s558 = sadd.s32 %s556, %s557
          %s559 = smul.addr %s558, 8
          %s560 = scalar_lea.vmem %s8, %s559
          %s561 = smul.u32 %s28, 8
          %s562 = sadd.s32 %s561, 8
        $region56: #{tpu_custom_call.1} parent=19 // pred_fallthru
          _
        // Predicated region
        $region57: #{tpu_custom_call.1} parent=19 // pred_check
          %p563 = pneg %p344
        $region58: #{tpu_custom_call.1} parent=19 // pred_check_branch
          %565 = sbr.rel (%p563) target = $region60
        $region59: #{tpu_custom_call.1} parent=19 // pred_region
          %s566 = smul.u32 %s28, 8
          %s567 = sadd.s32 %s566, 9
          %p568 = scmp.lt.s32.totalorder %s27, 1
          %s569 = scalar_select %p568, %s27, 1
          %p570 = scmp.lt.s32.totalorder %s567, 9
          %s571 = scalar_select %p570, %s567, 9
          %s572 = smul.addr %s571, 20
          %s573 = smul.addr %s569, 200
          %s574 = sadd.s32 %s572, %s573
          %s575 = smul.addr %s574, 8
          %s576 = scalar_lea.vmem %s9, %s575
          %s577 = smul.u32 %s28, 8
          %s578 = sadd.s32 %s577, 9
        $region60: #{tpu_custom_call.1} parent=19 // pred_fallthru
          _
      $region20: #{tpu_custom_call.1} parent=5 // pred_fallthru
        _
      %p579 = scmp.le.s32.totalorder 1, %s20
      %p580 = scmp.lt.s32.totalorder %s20, 3
      %p581 = pnand %p579, %p580
      %p582 = pneg %p581
      // Predicated region
      $region61: #{tpu_custom_call.1} parent=5 // pred_check
        _
      $region62: #{tpu_custom_call.1} parent=5 // pred_check_branch
        %584 = sbr.rel (%p581) target = $region64
      $region63: #{tpu_custom_call.1} parent=5 // pred_region
        %s585 = ssub.s32 %s20, 1
        %s586 = smul.u32 %s30, 8
        %p587 = scmp.lt.s32.totalorder %s29, 1
        %s588 = scalar_select %p587, %s29, 1
        %p589 = scmp.lt.s32.totalorder %s586, 9
        %s590 = scalar_select %p589, %s586, 9
        %s591 = smul.addr %s590, 20
        %s592 = smul.addr %s588, 200
        %s593 = sadd.s32 %s591, %s592
        %s594 = smul.addr %s593, 8
        %s595 = scalar_lea.vmem %s0, %s594
        %p596 = pneg %p62
        %p597 = pneg %p59
        %s598 = smul.u32 %s30, 8
        %s599 = sadd.s32 %s598, 1
        %p600 = scmp.lt.s32.totalorder %s29, 1
        %s601 = scalar_select %p600, %s29, 1
        %p602 = scmp.lt.s32.totalorder %s599, 9
        %s603 = scalar_select %p602, %s599, 9
        %s604 = smul.addr %s603, 20
        %s605 = smul.addr %s601, 200
        %s606 = sadd.s32 %s604, %s605
        %s607 = smul.addr %s606, 8
        %s608 = scalar_lea.vmem %s1, %s607
        %p609 = pneg %p94
        %p610 = pneg %p91
        %s611 = smul.u32 %s30, 8
        %s612 = sadd.s32 %s611, 2
        %p613 = scmp.lt.s32.totalorder %s29, 1
        %s614 = scalar_select %p613, %s29, 1
        %p615 = scmp.lt.s32.totalorder %s612, 9
        %s616 = scalar_select %p615, %s612, 9
        %s617 = smul.addr %s616, 20
        %s618 = smul.addr %s614, 200
        %s619 = sadd.s32 %s617, %s618
        %s620 = smul.addr %s619, 8
        %s621 = scalar_lea.vmem %s2, %s620
        %p622 = pneg %p126
        %p623 = pneg %p123
        %s624 = smul.u32 %s30, 8
        %s625 = sadd.s32 %s624, 3
        %p626 = scmp.lt.s32.totalorder %s29, 1
        %s627 = scalar_select %p626, %s29, 1
        %p628 = scmp.lt.s32.totalorder %s625, 9
        %s629 = scalar_select %p628, %s625, 9
        %s630 = smul.addr %s629, 20
        %s631 = smul.addr %s627, 200
        %s632 = sadd.s32 %s630, %s631
        %s633 = smul.addr %s632, 8
        %s634 = scalar_lea.vmem %s3, %s633
        %p635 = pneg %p158
        %p636 = pneg %p155
        %s637 = smul.u32 %s30, 8
        %s638 = sadd.s32 %s637, 4
        %p639 = scmp.lt.s32.totalorder %s29, 1
        %s640 = scalar_select %p639, %s29, 1
        %p641 = scmp.lt.s32.totalorder %s638, 9
        %s642 = scalar_select %p641, %s638, 9
        %s643 = smul.addr %s642, 20
        %s644 = smul.addr %s640, 200
        %s645 = sadd.s32 %s643, %s644
        %s646 = smul.addr %s645, 8
        %s647 = scalar_lea.vmem %s4, %s646
        %p648 = pneg %p190
        %p649 = pneg %p187
        %s650 = smul.u32 %s30, 8
        %s651 = sadd.s32 %s650, 5
        %p652 = scmp.lt.s32.totalorder %s29, 1
        %s653 = scalar_select %p652, %s29, 1
        %p654 = scmp.lt.s32.totalorder %s651, 9
        %s655 = scalar_select %p654, %s651, 9
        %s656 = smul.addr %s655, 20
        %s657 = smul.addr %s653, 200
        %s658 = sadd.s32 %s656, %s657
        %s659 = smul.addr %s658, 8
        %s660 = scalar_lea.vmem %s5, %s659
        %p661 = pneg %p222
        %p662 = pneg %p219
        %s663 = smul.u32 %s30, 8
        %s664 = sadd.s32 %s663, 6
        %p665 = scmp.lt.s32.totalorder %s29, 1
        %s666 = scalar_select %p665, %s29, 1
        %p667 = scmp.lt.s32.totalorder %s664, 9
        %s668 = scalar_select %p667, %s664, 9
        %s669 = smul.addr %s668, 20
        %s670 = smul.addr %s666, 200
        %s671 = sadd.s32 %s669, %s670
        %s672 = smul.addr %s671, 8
        %s673 = scalar_lea.vmem %s6, %s672
        %p674 = pneg %p254
        %p675 = pneg %p251
        %s676 = smul.u32 %s30, 8
        %s677 = sadd.s32 %s676, 7
        %p678 = scmp.lt.s32.totalorder %s29, 1
        %s679 = scalar_select %p678, %s29, 1
        %p680 = scmp.lt.s32.totalorder %s677, 9
        %s681 = scalar_select %p680, %s677, 9
        %s682 = smul.addr %s681, 20
        %s683 = smul.addr %s679, 200
        %s684 = sadd.s32 %s682, %s683
        %s685 = smul.addr %s684, 8
        %s686 = scalar_lea.vmem %s7, %s685
        %p687 = pneg %p286
        %p688 = pneg %p283
        %s689 = smul.u32 %s30, 8
        %s690 = sadd.s32 %s689, 8
        %p691 = scmp.lt.s32.totalorder %s29, 1
        %s692 = scalar_select %p691, %s29, 1
        %p693 = scmp.lt.s32.totalorder %s690, 9
        %s694 = scalar_select %p693, %s690, 9
        %s695 = smul.addr %s694, 20
        %s696 = smul.addr %s692, 200
        %s697 = sadd.s32 %s695, %s696
        %s698 = smul.addr %s697, 8
        %s699 = scalar_lea.vmem %s8, %s698
        %p700 = pneg %p318
        %p701 = pneg %p315
        %s702 = smul.u32 %s30, 8
        %s703 = sadd.s32 %s702, 9
        %p704 = scmp.lt.s32.totalorder %s29, 1
        %s705 = scalar_select %p704, %s29, 1
        %p706 = scmp.lt.s32.totalorder %s703, 9
        %s707 = scalar_select %p706, %s703, 9
        %s708 = smul.addr %s707, 20
        %s709 = smul.addr %s705, 200
        %s710 = sadd.s32 %s708, %s709
        %s711 = smul.addr %s710, 8
        %s712 = scalar_lea.vmem %s9, %s711
        %p713 = pneg %p350
        %p714 = pneg %p347
        %p715 = pneg %p371
        %p716 = pneg %p368
        %p717 = pneg %p399
        %p718 = pneg %p396
        %s719 = sand.u32 %s386, 1
        %s720 = scalar_lea.sflag [#allocation4], %s719
        %s721 = sand.u32 %s386, 1
        %s722 = smul.addr %s721, 512
        %s723 = scalar_lea.vmem [#allocation3], %s722
        %s724 = smul.u32 %s30, 8
        %p725 = scmp.lt.s32.totalorder %s29, 1
        %s726 = scalar_select %p725, %s29, 1
        %p727 = scmp.lt.s32.totalorder %s724, 9
        %s728 = scalar_select %p727, %s724, 9
        %s729 = smul.addr %s728, 20
        %s730 = smul.addr %s726, 200
        %s731 = sadd.s32 %s729, %s730
        %s732 = smul.addr %s731, 8
        %s733 = scalar_lea.vmem %s0, %s732
        %s734 = smul.u32 %s30, 8
        %s735 = smul.u32 %s30, 8
        %s736 = sadd.s32 %s735, 1
        %p737 = scmp.lt.s32.totalorder %s29, 1
        %s738 = scalar_select %p737, %s29, 1
        %p739 = scmp.lt.s32.totalorder %s736, 9
        %s740 = scalar_select %p739, %s736, 9
        %s741 = smul.addr %s740, 20
        %s742 = smul.addr %s738, 200
        %s743 = sadd.s32 %s741, %s742
        %s744 = smul.addr %s743, 8
        %s745 = scalar_lea.vmem %s1, %s744
        %s746 = smul.u32 %s30, 8
        %s747 = sadd.s32 %s746, 1
        %s748 = smul.u32 %s30, 8
        %s749 = sadd.s32 %s748, 2
        %p750 = scmp.lt.s32.totalorder %s29, 1
        %s751 = scalar_select %p750, %s29, 1
        %p752 = scmp.lt.s32.totalorder %s749, 9
        %s753 = scalar_select %p752, %s749, 9
        %s754 = smul.addr %s753, 20
        %s755 = smul.addr %s751, 200
        %s756 = sadd.s32 %s754, %s755
        %s757 = smul.addr %s756, 8
        %s758 = scalar_lea.vmem %s2, %s757
        %s759 = smul.u32 %s30, 8
        %s760 = sadd.s32 %s759, 2
        %s761 = smul.u32 %s30, 8
        %s762 = sadd.s32 %s761, 3
        %p763 = scmp.lt.s32.totalorder %s29, 1
        %s764 = scalar_select %p763, %s29, 1
        %p765 = scmp.lt.s32.totalorder %s762, 9
        %s766 = scalar_select %p765, %s762, 9
        %s767 = smul.addr %s766, 20
        %s768 = smul.addr %s764, 200
        %s769 = sadd.s32 %s767, %s768
        %s770 = smul.addr %s769, 8
        %s771 = scalar_lea.vmem %s3, %s770
        %s772 = smul.u32 %s30, 8
        %s773 = sadd.s32 %s772, 3
        %s774 = smul.u32 %s30, 8
        %s775 = sadd.s32 %s774, 4
        %p776 = scmp.lt.s32.totalorder %s29, 1
        %s777 = scalar_select %p776, %s29, 1
        %p778 = scmp.lt.s32.totalorder %s775, 9
        %s779 = scalar_select %p778, %s775, 9
        %s780 = smul.addr %s779, 20
        %s781 = smul.addr %s777, 200
        %s782 = sadd.s32 %s780, %s781
        %s783 = smul.addr %s782, 8
        %s784 = scalar_lea.vmem %s4, %s783
        %s785 = smul.u32 %s30, 8
        %s786 = sadd.s32 %s785, 4
        %s787 = smul.u32 %s30, 8
        %s788 = sadd.s32 %s787, 5
        %p789 = scmp.lt.s32.totalorder %s29, 1
        %s790 = scalar_select %p789, %s29, 1
        %p791 = scmp.lt.s32.totalorder %s788, 9
        %s792 = scalar_select %p791, %s788, 9
        %s793 = smul.addr %s792, 20
        %s794 = smul.addr %s790, 200
        %s795 = sadd.s32 %s793, %s794
        %s796 = smul.addr %s795, 8
        %s797 = scalar_lea.vmem %s5, %s796
        %s798 = smul.u32 %s30, 8
        %s799 = sadd.s32 %s798, 5
        %s800 = smul.u32 %s30, 8
        %s801 = sadd.s32 %s800, 6
        %p802 = scmp.lt.s32.totalorder %s29, 1
        %s803 = scalar_select %p802, %s29, 1
        %p804 = scmp.lt.s32.totalorder %s801, 9
        %s805 = scalar_select %p804, %s801, 9
        %s806 = smul.addr %s805, 20
        %s807 = smul.addr %s803, 200
        %s808 = sadd.s32 %s806, %s807
        %s809 = smul.addr %s808, 8
        %s810 = scalar_lea.vmem %s6, %s809
        %s811 = smul.u32 %s30, 8
        %s812 = sadd.s32 %s811, 6
        %s813 = smul.u32 %s30, 8
        %s814 = sadd.s32 %s813, 7
        %p815 = scmp.lt.s32.totalorder %s29, 1
        %s816 = scalar_select %p815, %s29, 1
        %p817 = scmp.lt.s32.totalorder %s814, 9
        %s818 = scalar_select %p817, %s814, 9
        %s819 = smul.addr %s818, 20
        %s820 = smul.addr %s816, 200
        %s821 = sadd.s32 %s819, %s820
        %s822 = smul.addr %s821, 8
        %s823 = scalar_lea.vmem %s7, %s822
        %s824 = smul.u32 %s30, 8
        %s825 = sadd.s32 %s824, 7
        %s826 = smul.u32 %s30, 8
        %s827 = sadd.s32 %s826, 8
        %p828 = scmp.lt.s32.totalorder %s29, 1
        %s829 = scalar_select %p828, %s29, 1
        %p830 = scmp.lt.s32.totalorder %s827, 9
        %s831 = scalar_select %p830, %s827, 9
        %s832 = smul.addr %s831, 20
        %s833 = smul.addr %s829, 200
        %s834 = sadd.s32 %s832, %s833
        %s835 = smul.addr %s834, 8
        %s836 = scalar_lea.vmem %s8, %s835
        %s837 = smul.u32 %s30, 8
        %s838 = sadd.s32 %s837, 8
        %s839 = smul.u32 %s30, 8
        %s840 = sadd.s32 %s839, 9
        %p841 = scmp.lt.s32.totalorder %s29, 1
        %s842 = scalar_select %p841, %s29, 1
        %p843 = scmp.lt.s32.totalorder %s840, 9
        %s844 = scalar_select %p843, %s840, 9
        %s845 = smul.addr %s844, 20
        %s846 = smul.addr %s842, 200
        %s847 = sadd.s32 %s845, %s846
        %s848 = smul.addr %s847, 8
        %s849 = scalar_lea.vmem %s9, %s848
        %s850 = smul.u32 %s30, 8
        %s851 = sadd.s32 %s850, 9
        %s852 = smul.u32 8, %s30
        %v853 = vld [vmem:[%s733] sm:$0xff]
        %v854 = vld [vmem:[%s733 + $0x10] sm:$0xff]
        %v855 = vld [vmem:[%s733 + $0x20] sm:$0xff]
        %v856 = vld [vmem:[%s733 + $0x30] sm:$0xff]
        %v857 = vld [vmem:[%s733 + $0x40] sm:$0xff]
        %v858 = vld [vmem:[%s733 + $0x50] sm:$0xff]
        %v859 = vld [vmem:[%s733 + $0x60] sm:$0xff]
        %v860 = vld [vmem:[%s733 + $0x70] sm:$0xff]
        %v861 = vld [vmem:[%s733 + $0x1] sm:$0xff]
        %v862 = vld [vmem:[%s733 + $0x11] sm:$0xff]
        %v863 = vld [vmem:[%s733 + $0x21] sm:$0xff]
        %v864 = vld [vmem:[%s733 + $0x31] sm:$0xff]
        %v865 = vld [vmem:[%s733 + $0x41] sm:$0xff]
        %v866 = vld [vmem:[%s733 + $0x51] sm:$0xff]
        %v867 = vld [vmem:[%s733 + $0x61] sm:$0xff]
        %v868 = vld [vmem:[%s733 + $0x71] sm:$0xff]
        %v869 = vld [vmem:[%s733 + $0x2] sm:$0xff]
        %v870 = vld [vmem:[%s733 + $0x12] sm:$0xff]
        %v871 = vld [vmem:[%s733 + $0x22] sm:$0xff]
        %v872 = vld [vmem:[%s733 + $0x32] sm:$0xff]
        %v873 = vld [vmem:[%s733 + $0x42] sm:$0xff]
        %v874 = vld [vmem:[%s733 + $0x52] sm:$0xff]
        %v875 = vld [vmem:[%s733 + $0x62] sm:$0xff]
        %v876 = vld [vmem:[%s733 + $0x72] sm:$0xff]
        %s877 = scalar_lea.vmem %s733, 16
        %v878 = vld [vmem:[%s877] sm:$0xff]
        %v879 = vld [vmem:[%s877 + $0x10] sm:$0xff]
        %v880 = vld [vmem:[%s877 + $0x20] sm:$0xff]
        %v881 = vld [vmem:[%s877 + $0x30] sm:$0xff]
        %v882 = vld [vmem:[%s877 + $0x40] sm:$0xff]
        %v883 = vld [vmem:[%s877 + $0x50] sm:$0xff]
        %v884 = vld [vmem:[%s877 + $0x60] sm:$0xff]
        %v885 = vld [vmem:[%s877 + $0x70] sm:$0xff]
        %v886 = vld [vmem:[%s877 + $0x1] sm:$0xff]
        %v887 = vld [vmem:[%s877 + $0x11] sm:$0xff]
        %v888 = vld [vmem:[%s877 + $0x21] sm:$0xff]
        %v889 = vld [vmem:[%s877 + $0x31] sm:$0xff]
        %v890 = vld [vmem:[%s877 + $0x41] sm:$0xff]
        %v891 = vld [vmem:[%s877 + $0x51] sm:$0xff]
        %v892 = vld [vmem:[%s877 + $0x61] sm:$0xff]
        %v893 = vld [vmem:[%s877 + $0x71] sm:$0xff]
        %v894 = vld [vmem:[%s877 + $0x2] sm:$0xff]
        %v895 = vld [vmem:[%s877 + $0x12] sm:$0xff]
        %v896 = vld [vmem:[%s877 + $0x22] sm:$0xff]
        %v897 = vld [vmem:[%s877 + $0x32] sm:$0xff]
        %v898 = vld [vmem:[%s877 + $0x42] sm:$0xff]
        %v899 = vld [vmem:[%s877 + $0x52] sm:$0xff]
        %v900 = vld [vmem:[%s877 + $0x62] sm:$0xff]
        %v901 = vld [vmem:[%s877 + $0x72] sm:$0xff]
        %s902 = scalar_lea.vmem %s733, 32
        %v903 = vld [vmem:[%s902] sm:$0xff]
        %v904 = vld [vmem:[%s902 + $0x10] sm:$0xff]
        %v905 = vld [vmem:[%s902 + $0x20] sm:$0xff]
        %v906 = vld [vmem:[%s902 + $0x30] sm:$0xff]
        %v907 = vld [vmem:[%s902 + $0x40] sm:$0xff]
        %v908 = vld [vmem:[%s902 + $0x50] sm:$0xff]
        %v909 = vld [vmem:[%s902 + $0x60] sm:$0xff]
        %v910 = vld [vmem:[%s902 + $0x70] sm:$0xff]
        %v911 = vld [vmem:[%s902 + $0x1] sm:$0xff]
        %v912 = vld [vmem:[%s902 + $0x11] sm:$0xff]
        %v913 = vld [vmem:[%s902 + $0x21] sm:$0xff]
        %v914 = vld [vmem:[%s902 + $0x31] sm:$0xff]
        %v915 = vld [vmem:[%s902 + $0x41] sm:$0xff]
        %v916 = vld [vmem:[%s902 + $0x51] sm:$0xff]
        %v917 = vld [vmem:[%s902 + $0x61] sm:$0xff]
        %v918 = vld [vmem:[%s902 + $0x71] sm:$0xff]
        %v919 = vld [vmem:[%s902 + $0x2] sm:$0xff]
        %v920 = vld [vmem:[%s902 + $0x12] sm:$0xff]
        %v921 = vld [vmem:[%s902 + $0x22] sm:$0xff]
        %v922 = vld [vmem:[%s902 + $0x32] sm:$0xff]
        %v923 = vld [vmem:[%s902 + $0x42] sm:$0xff]
        %v924 = vld [vmem:[%s902 + $0x52] sm:$0xff]
        %v925 = vld [vmem:[%s902 + $0x62] sm:$0xff]
        %v926 = vld [vmem:[%s902 + $0x72] sm:$0xff]
        %935 = vrot.lane.b32.xlu0 %v861, 4
        %v936 = vpop.permute.xlu0 %935
        %937 = vrot.lane.b32.xlu0 %v862, 4
        %v938 = vpop.permute.xlu0 %937
        %939 = vrot.lane.b32.xlu0 %v863, 4
        %v940 = vpop.permute.xlu0 %939
        %941 = vrot.lane.b32.xlu0 %v864, 4
        %v942 = vpop.permute.xlu0 %941
        %943 = vrot.lane.b32.xlu0 %v865, 4
        %v944 = vpop.permute.xlu0 %943
        %945 = vrot.lane.b32.xlu0 %v866, 4
        %v946 = vpop.permute.xlu0 %945
        %947 = vrot.lane.b32.xlu0 %v867, 4
        %v948 = vpop.permute.xlu0 %947
        %949 = vrot.lane.b32.xlu0 %v868, 4
        %v950 = vpop.permute.xlu0 %949
        %967 = vrot.lane.b32.xlu0 %v869, 8
        %v968 = vpop.permute.xlu0 %967
        %969 = vrot.lane.b32.xlu0 %v870, 8
        %v970 = vpop.permute.xlu0 %969
        %971 = vrot.lane.b32.xlu0 %v871, 8
        %v972 = vpop.permute.xlu0 %971
        %973 = vrot.lane.b32.xlu0 %v872, 8
        %v974 = vpop.permute.xlu0 %973
        %975 = vrot.lane.b32.xlu0 %v873, 8
        %v976 = vpop.permute.xlu0 %975
        %977 = vrot.lane.b32.xlu0 %v874, 8
        %v978 = vpop.permute.xlu0 %977
        %979 = vrot.lane.b32.xlu0 %v875, 8
        %v980 = vpop.permute.xlu0 %979
        %981 = vrot.lane.b32.xlu0 %v876, 8
        %v982 = vpop.permute.xlu0 %981
        %999 = vrot.lane.b32.xlu0 %v878, 12
        %v1000 = vpop.permute.xlu0 %999
        %1001 = vrot.lane.b32.xlu0 %v879, 12
        %v1002 = vpop.permute.xlu0 %1001
        %1003 = vrot.lane.b32.xlu0 %v880, 12
        %v1004 = vpop.permute.xlu0 %1003
        %1005 = vrot.lane.b32.xlu0 %v881, 12
        %v1006 = vpop.permute.xlu0 %1005
        %1007 = vrot.lane.b32.xlu0 %v882, 12
        %v1008 = vpop.permute.xlu0 %1007
        %1009 = vrot.lane.b32.xlu0 %v883, 12
        %v1010 = vpop.permute.xlu0 %1009
        %1011 = vrot.lane.b32.xlu0 %v884, 12
        %v1012 = vpop.permute.xlu0 %1011
        %1013 = vrot.lane.b32.xlu0 %v885, 12
        %v1014 = vpop.permute.xlu0 %1013
        %1031 = vrot.lane.b32.xlu0 %v886, 16
        %v1032 = vpop.permute.xlu0 %1031
        %1033 = vrot.lane.b32.xlu0 %v887, 16
        %v1034 = vpop.permute.xlu0 %1033
        %1035 = vrot.lane.b32.xlu0 %v888, 16
        %v1036 = vpop.permute.xlu0 %1035
        %1037 = vrot.lane.b32.xlu0 %v889, 16
        %v1038 = vpop.permute.xlu0 %1037
        %1039 = vrot.lane.b32.xlu0 %v890, 16
        %v1040 = vpop.permute.xlu0 %1039
        %1041 = vrot.lane.b32.xlu0 %v891, 16
        %v1042 = vpop.permute.xlu0 %1041
        %1043 = vrot.lane.b32.xlu0 %v892, 16
        %v1044 = vpop.permute.xlu0 %1043
        %1045 = vrot.lane.b32.xlu0 %v893, 16
        %v1046 = vpop.permute.xlu0 %1045
        %1063 = vrot.lane.b32.xlu0 %v894, 20
        %v1064 = vpop.permute.xlu0 %1063
        %1065 = vrot.lane.b32.xlu0 %v895, 20
        %v1066 = vpop.permute.xlu0 %1065
        %1067 = vrot.lane.b32.xlu0 %v896, 20
        %v1068 = vpop.permute.xlu0 %1067
        %1069 = vrot.lane.b32.xlu0 %v897, 20
        %v1070 = vpop.permute.xlu0 %1069
        %1071 = vrot.lane.b32.xlu0 %v898, 20
        %v1072 = vpop.permute.xlu0 %1071
        %1073 = vrot.lane.b32.xlu0 %v899, 20
        %v1074 = vpop.permute.xlu0 %1073
        %1075 = vrot.lane.b32.xlu0 %v900, 20
        %v1076 = vpop.permute.xlu0 %1075
        %1077 = vrot.lane.b32.xlu0 %v901, 20
        %v1078 = vpop.permute.xlu0 %1077
        %1095 = vrot.lane.b32.xlu0 %v903, 24
        %v1096 = vpop.permute.xlu0 %1095
        %1097 = vrot.lane.b32.xlu0 %v904, 24
        %v1098 = vpop.permute.xlu0 %1097
        %1099 = vrot.lane.b32.xlu0 %v905, 24
        %v1100 = vpop.permute.xlu0 %1099
        %1101 = vrot.lane.b32.xlu0 %v906, 24
        %v1102 = vpop.permute.xlu0 %1101
        %1103 = vrot.lane.b32.xlu0 %v907, 24
        %v1104 = vpop.permute.xlu0 %1103
        %1105 = vrot.lane.b32.xlu0 %v908, 24
        %v1106 = vpop.permute.xlu0 %1105
        %1107 = vrot.lane.b32.xlu0 %v909, 24
        %v1108 = vpop.permute.xlu0 %1107
        %1109 = vrot.lane.b32.xlu0 %v910, 24
        %v1110 = vpop.permute.xlu0 %1109
        %1127 = vrot.lane.b32.xlu0 %v911, 28
        %v1128 = vpop.permute.xlu0 %1127
        %1129 = vrot.lane.b32.xlu0 %v912, 28
        %v1130 = vpop.permute.xlu0 %1129
        %1131 = vrot.lane.b32.xlu0 %v913, 28
        %v1132 = vpop.permute.xlu0 %1131
        %1133 = vrot.lane.b32.xlu0 %v914, 28
        %v1134 = vpop.permute.xlu0 %1133
        %1135 = vrot.lane.b32.xlu0 %v915, 28
        %v1136 = vpop.permute.xlu0 %1135
        %1137 = vrot.lane.b32.xlu0 %v916, 28
        %v1138 = vpop.permute.xlu0 %1137
        %1139 = vrot.lane.b32.xlu0 %v917, 28
        %v1140 = vpop.permute.xlu0 %1139
        %1141 = vrot.lane.b32.xlu0 %v918, 28
        %v1142 = vpop.permute.xlu0 %1141
        %1159 = vrot.lane.b32.xlu0 %v919, 32
        %v1160 = vpop.permute.xlu0 %1159
        %1161 = vrot.lane.b32.xlu0 %v920, 32
        %v1162 = vpop.permute.xlu0 %1161
        %1163 = vrot.lane.b32.xlu0 %v921, 32
        %v1164 = vpop.permute.xlu0 %1163
        %1165 = vrot.lane.b32.xlu0 %v922, 32
        %v1166 = vpop.permute.xlu0 %1165
        %1167 = vrot.lane.b32.xlu0 %v923, 32
        %v1168 = vpop.permute.xlu0 %1167
        %1169 = vrot.lane.b32.xlu0 %v924, 32
        %v1170 = vpop.permute.xlu0 %1169
        %1171 = vrot.lane.b32.xlu0 %v925, 32
        %v1172 = vpop.permute.xlu0 %1171
        %1173 = vrot.lane.b32.xlu0 %v926, 32
        %v1174 = vpop.permute.xlu0 %1173
        %vm1183 = vcmask 31744
        %v1184 = vsel %vm1183, %v853, %v936
        %v1185 = vsel %vm1183, %v854, %v938
        %v1186 = vsel %vm1183, %v855, %v940
        %v1187 = vsel %vm1183, %v856, %v942
        %v1188 = vsel %vm1183, %v857, %v944
        %v1189 = vsel %vm1183, %v858, %v946
        %v1190 = vsel %vm1183, %v859, %v948
        %v1191 = vsel %vm1183, %v860, %v950
        %vm1192 = vcmask 64512
        %v1193 = vsel %vm1192, %v1184, %v968
        %v1194 = vsel %vm1192, %v1185, %v970
        %v1195 = vsel %vm1192, %v1186, %v972
        %v1196 = vsel %vm1192, %v1187, %v974
        %v1197 = vsel %vm1192, %v1188, %v976
        %v1198 = vsel %vm1192, %v1189, %v978
        %v1199 = vsel %vm1192, %v1190, %v980
        %v1200 = vsel %vm1192, %v1191, %v982
        %vm1201 = vcmask 97280
        %v1202 = vsel %vm1201, %v1193, %v1000
        %v1203 = vsel %vm1201, %v1194, %v1002
        %v1204 = vsel %vm1201, %v1195, %v1004
        %v1205 = vsel %vm1201, %v1196, %v1006
        %v1206 = vsel %vm1201, %v1197, %v1008
        %v1207 = vsel %vm1201, %v1198, %v1010
        %v1208 = vsel %vm1201, %v1199, %v1012
        %v1209 = vsel %vm1201, %v1200, %v1014
        %vm1210 = vcmask 130048
        %v1211 = vsel %vm1210, %v1202, %v1032
        %v1212 = vsel %vm1210, %v1203, %v1034
        %v1213 = vsel %vm1210, %v1204, %v1036
        %v1214 = vsel %vm1210, %v1205, %v1038
        %v1215 = vsel %vm1210, %v1206, %v1040
        %v1216 = vsel %vm1210, %v1207, %v1042
        %v1217 = vsel %vm1210, %v1208, %v1044
        %v1218 = vsel %vm1210, %v1209, %v1046
        %vm1219 = vcmask 162816
        %v1220 = vsel %vm1219, %v1211, %v1064
        %v1221 = vsel %vm1219, %v1212, %v1066
        %v1222 = vsel %vm1219, %v1213, %v1068
        %v1223 = vsel %vm1219, %v1214, %v1070
        %v1224 = vsel %vm1219, %v1215, %v1072
        %v1225 = vsel %vm1219, %v1216, %v1074
        %v1226 = vsel %vm1219, %v1217, %v1076
        %v1227 = vsel %vm1219, %v1218, %v1078
        %vm1228 = vcmask 195584
        %v1229 = vsel %vm1228, %v1220, %v1096
        %v1230 = vsel %vm1228, %v1221, %v1098
        %v1231 = vsel %vm1228, %v1222, %v1100
        %v1232 = vsel %vm1228, %v1223, %v1102
        %v1233 = vsel %vm1228, %v1224, %v1104
        %v1234 = vsel %vm1228, %v1225, %v1106
        %v1235 = vsel %vm1228, %v1226, %v1108
        %v1236 = vsel %vm1228, %v1227, %v1110
        %vm1237 = vcmask 228352
        %v1238 = vsel %vm1237, %v1229, %v1128
        %v1239 = vsel %vm1237, %v1230, %v1130
        %v1240 = vsel %vm1237, %v1231, %v1132
        %v1241 = vsel %vm1237, %v1232, %v1134
        %v1242 = vsel %vm1237, %v1233, %v1136
        %v1243 = vsel %vm1237, %v1234, %v1138
        %v1244 = vsel %vm1237, %v1235, %v1140
        %v1245 = vsel %vm1237, %v1236, %v1142
        %vm1246 = vcmask 261120
        %v1247 = vsel %vm1246, %v1238, %v1160
        %v1248 = vsel %vm1246, %v1239, %v1162
        %v1249 = vsel %vm1246, %v1240, %v1164
        %v1250 = vsel %vm1246, %v1241, %v1166
        %v1251 = vsel %vm1246, %v1242, %v1168
        %v1252 = vsel %vm1246, %v1243, %v1170
        %v1253 = vsel %vm1246, %v1244, %v1172
        %v1254 = vsel %vm1246, %v1245, %v1174
        %vm1255 = vcmask 293888
        %1256 = vst.msk [vmem:[#allocation2] sm:$0xff] %vm1255, %v1247
        %1257 = vst.msk [vmem:[#allocation2 + $0x8] sm:$0xff] %vm1255, %v1248
        %1258 = vst.msk [vmem:[#allocation2 + $0x10] sm:$0xff] %vm1255, %v1249
        %1259 = vst.msk [vmem:[#allocation2 + $0x18] sm:$0xff] %vm1255, %v1250
        %1260 = vst.msk [vmem:[#allocation2 + $0x20] sm:$0xff] %vm1255, %v1251
        %1261 = vst.msk [vmem:[#allocation2 + $0x28] sm:$0xff] %vm1255, %v1252
        %1262 = vst.msk [vmem:[#allocation2 + $0x30] sm:$0xff] %vm1255, %v1253
        %1263 = vst.msk [vmem:[#allocation2 + $0x38] sm:$0xff] %vm1255, %v1254
        %v1264 = vld [vmem:[%s745] sm:$0xff]
        %v1265 = vld [vmem:[%s745 + $0x10] sm:$0xff]
        %v1266 = vld [vmem:[%s745 + $0x20] sm:$0xff]
        %v1267 = vld [vmem:[%s745 + $0x30] sm:$0xff]
        %v1268 = vld [vmem:[%s745 + $0x40] sm:$0xff]
        %v1269 = vld [vmem:[%s745 + $0x50] sm:$0xff]
        %v1270 = vld [vmem:[%s745 + $0x60] sm:$0xff]
        %v1271 = vld [vmem:[%s745 + $0x70] sm:$0xff]
        %v1272 = vld [vmem:[%s745 + $0x1] sm:$0xff]
        %v1273 = vld [vmem:[%s745 + $0x11] sm:$0xff]
        %v1274 = vld [vmem:[%s745 + $0x21] sm:$0xff]
        %v1275 = vld [vmem:[%s745 + $0x31] sm:$0xff]
        %v1276 = vld [vmem:[%s745 + $0x41] sm:$0xff]
        %v1277 = vld [vmem:[%s745 + $0x51] sm:$0xff]
        %v1278 = vld [vmem:[%s745 + $0x61] sm:$0xff]
        %v1279 = vld [vmem:[%s745 + $0x71] sm:$0xff]
        %v1280 = vld [vmem:[%s745 + $0x2] sm:$0xff]
        %v1281 = vld [vmem:[%s745 + $0x12] sm:$0xff]
        %v1282 = vld [vmem:[%s745 + $0x22] sm:$0xff]
        %v1283 = vld [vmem:[%s745 + $0x32] sm:$0xff]
        %v1284 = vld [vmem:[%s745 + $0x42] sm:$0xff]
        %v1285 = vld [vmem:[%s745 + $0x52] sm:$0xff]
        %v1286 = vld [vmem:[%s745 + $0x62] sm:$0xff]
        %v1287 = vld [vmem:[%s745 + $0x72] sm:$0xff]
        %s1288 = scalar_lea.vmem %s745, 16
        %v1289 = vld [vmem:[%s1288] sm:$0xff]
        %v1290 = vld [vmem:[%s1288 + $0x10] sm:$0xff]
        %v1291 = vld [vmem:[%s1288 + $0x20] sm:$0xff]
        %v1292 = vld [vmem:[%s1288 + $0x30] sm:$0xff]
        %v1293 = vld [vmem:[%s1288 + $0x40] sm:$0xff]
        %v1294 = vld [vmem:[%s1288 + $0x50] sm:$0xff]
        %v1295 = vld [vmem:[%s1288 + $0x60] sm:$0xff]
        %v1296 = vld [vmem:[%s1288 + $0x70] sm:$0xff]
        %v1297 = vld [vmem:[%s1288 + $0x1] sm:$0xff]
        %v1298 = vld [vmem:[%s1288 + $0x11] sm:$0xff]
        %v1299 = vld [vmem:[%s1288 + $0x21] sm:$0xff]
        %v1300 = vld [vmem:[%s1288 + $0x31] sm:$0xff]
        %v1301 = vld [vmem:[%s1288 + $0x41] sm:$0xff]
        %v1302 = vld [vmem:[%s1288 + $0x51] sm:$0xff]
        %v1303 = vld [vmem:[%s1288 + $0x61] sm:$0xff]
        %v1304 = vld [vmem:[%s1288 + $0x71] sm:$0xff]
        %v1305 = vld [vmem:[%s1288 + $0x2] sm:$0xff]
        %v1306 = vld [vmem:[%s1288 + $0x12] sm:$0xff]
        %v1307 = vld [vmem:[%s1288 + $0x22] sm:$0xff]
        %v1308 = vld [vmem:[%s1288 + $0x32] sm:$0xff]
        %v1309 = vld [vmem:[%s1288 + $0x42] sm:$0xff]
        %v1310 = vld [vmem:[%s1288 + $0x52] sm:$0xff]
        %v1311 = vld [vmem:[%s1288 + $0x62] sm:$0xff]
        %v1312 = vld [vmem:[%s1288 + $0x72] sm:$0xff]
        %s1313 = scalar_lea.vmem %s745, 32
        %v1314 = vld [vmem:[%s1313] sm:$0xff]
        %v1315 = vld [vmem:[%s1313 + $0x10] sm:$0xff]
        %v1316 = vld [vmem:[%s1313 + $0x20] sm:$0xff]
        %v1317 = vld [vmem:[%s1313 + $0x30] sm:$0xff]
        %v1318 = vld [vmem:[%s1313 + $0x40] sm:$0xff]
        %v1319 = vld [vmem:[%s1313 + $0x50] sm:$0xff]
        %v1320 = vld [vmem:[%s1313 + $0x60] sm:$0xff]
        %v1321 = vld [vmem:[%s1313 + $0x70] sm:$0xff]
        %v1322 = vld [vmem:[%s1313 + $0x1] sm:$0xff]
        %v1323 = vld [vmem:[%s1313 + $0x11] sm:$0xff]
        %v1324 = vld [vmem:[%s1313 + $0x21] sm:$0xff]
        %v1325 = vld [vmem:[%s1313 + $0x31] sm:$0xff]
        %v1326 = vld [vmem:[%s1313 + $0x41] sm:$0xff]
        %v1327 = vld [vmem:[%s1313 + $0x51] sm:$0xff]
        %v1328 = vld [vmem:[%s1313 + $0x61] sm:$0xff]
        %v1329 = vld [vmem:[%s1313 + $0x71] sm:$0xff]
        %v1330 = vld [vmem:[%s1313 + $0x2] sm:$0xff]
        %v1331 = vld [vmem:[%s1313 + $0x12] sm:$0xff]
        %v1332 = vld [vmem:[%s1313 + $0x22] sm:$0xff]
        %v1333 = vld [vmem:[%s1313 + $0x32] sm:$0xff]
        %v1334 = vld [vmem:[%s1313 + $0x42] sm:$0xff]
        %v1335 = vld [vmem:[%s1313 + $0x52] sm:$0xff]
        %v1336 = vld [vmem:[%s1313 + $0x62] sm:$0xff]
        %v1337 = vld [vmem:[%s1313 + $0x72] sm:$0xff]
        %1346 = vrot.lane.b32.xlu0 %v1272, 4
        %v1347 = vpop.permute.xlu0 %1346
        %1348 = vrot.lane.b32.xlu0 %v1273, 4
        %v1349 = vpop.permute.xlu0 %1348
        %1350 = vrot.lane.b32.xlu0 %v1274, 4
        %v1351 = vpop.permute.xlu0 %1350
        %1352 = vrot.lane.b32.xlu0 %v1275, 4
        %v1353 = vpop.permute.xlu0 %1352
        %1354 = vrot.lane.b32.xlu0 %v1276, 4
        %v1355 = vpop.permute.xlu0 %1354
        %1356 = vrot.lane.b32.xlu0 %v1277, 4
        %v1357 = vpop.permute.xlu0 %1356
        %1358 = vrot.lane.b32.xlu0 %v1278, 4
        %v1359 = vpop.permute.xlu0 %1358
        %1360 = vrot.lane.b32.xlu0 %v1279, 4
        %v1361 = vpop.permute.xlu0 %1360
        %1378 = vrot.lane.b32.xlu0 %v1280, 8
        %v1379 = vpop.permute.xlu0 %1378
        %1380 = vrot.lane.b32.xlu0 %v1281, 8
        %v1381 = vpop.permute.xlu0 %1380
        %1382 = vrot.lane.b32.xlu0 %v1282, 8
        %v1383 = vpop.permute.xlu0 %1382
        %1384 = vrot.lane.b32.xlu0 %v1283, 8
        %v1385 = vpop.permute.xlu0 %1384
        %1386 = vrot.lane.b32.xlu0 %v1284, 8
        %v1387 = vpop.permute.xlu0 %1386
        %1388 = vrot.lane.b32.xlu0 %v1285, 8
        %v1389 = vpop.permute.xlu0 %1388
        %1390 = vrot.lane.b32.xlu0 %v1286, 8
        %v1391 = vpop.permute.xlu0 %1390
        %1392 = vrot.lane.b32.xlu0 %v1287, 8
        %v1393 = vpop.permute.xlu0 %1392
        %1410 = vrot.lane.b32.xlu0 %v1289, 12
        %v1411 = vpop.permute.xlu0 %1410
        %1412 = vrot.lane.b32.xlu0 %v1290, 12
        %v1413 = vpop.permute.xlu0 %1412
        %1414 = vrot.lane.b32.xlu0 %v1291, 12
        %v1415 = vpop.permute.xlu0 %1414
        %1416 = vrot.lane.b32.xlu0 %v1292, 12
        %v1417 = vpop.permute.xlu0 %1416
        %1418 = vrot.lane.b32.xlu0 %v1293, 12
        %v1419 = vpop.permute.xlu0 %1418
        %1420 = vrot.lane.b32.xlu0 %v1294, 12
        %v1421 = vpop.permute.xlu0 %1420
        %1422 = vrot.lane.b32.xlu0 %v1295, 12
        %v1423 = vpop.permute.xlu0 %1422
        %1424 = vrot.lane.b32.xlu0 %v1296, 12
        %v1425 = vpop.permute.xlu0 %1424
        %1442 = vrot.lane.b32.xlu0 %v1297, 16
        %v1443 = vpop.permute.xlu0 %1442
        %1444 = vrot.lane.b32.xlu0 %v1298, 16
        %v1445 = vpop.permute.xlu0 %1444
        %1446 = vrot.lane.b32.xlu0 %v1299, 16
        %v1447 = vpop.permute.xlu0 %1446
        %1448 = vrot.lane.b32.xlu0 %v1300, 16
        %v1449 = vpop.permute.xlu0 %1448
        %1450 = vrot.lane.b32.xlu0 %v1301, 16
        %v1451 = vpop.permute.xlu0 %1450
        %1452 = vrot.lane.b32.xlu0 %v1302, 16
        %v1453 = vpop.permute.xlu0 %1452
        %1454 = vrot.lane.b32.xlu0 %v1303, 16
        %v1455 = vpop.permute.xlu0 %1454
        %1456 = vrot.lane.b32.xlu0 %v1304, 16
        %v1457 = vpop.permute.xlu0 %1456
        %1474 = vrot.lane.b32.xlu0 %v1305, 20
        %v1475 = vpop.permute.xlu0 %1474
        %1476 = vrot.lane.b32.xlu0 %v1306, 20
        %v1477 = vpop.permute.xlu0 %1476
        %1478 = vrot.lane.b32.xlu0 %v1307, 20
        %v1479 = vpop.permute.xlu0 %1478
        %1480 = vrot.lane.b32.xlu0 %v1308, 20
        %v1481 = vpop.permute.xlu0 %1480
        %1482 = vrot.lane.b32.xlu0 %v1309, 20
        %v1483 = vpop.permute.xlu0 %1482
        %1484 = vrot.lane.b32.xlu0 %v1310, 20
        %v1485 = vpop.permute.xlu0 %1484
        %1486 = vrot.lane.b32.xlu0 %v1311, 20
        %v1487 = vpop.permute.xlu0 %1486
        %1488 = vrot.lane.b32.xlu0 %v1312, 20
        %v1489 = vpop.permute.xlu0 %1488
        %1506 = vrot.lane.b32.xlu0 %v1314, 24
        %v1507 = vpop.permute.xlu0 %1506
        %1508 = vrot.lane.b32.xlu0 %v1315, 24
        %v1509 = vpop.permute.xlu0 %1508
        %1510 = vrot.lane.b32.xlu0 %v1316, 24
        %v1511 = vpop.permute.xlu0 %1510
        %1512 = vrot.lane.b32.xlu0 %v1317, 24
        %v1513 = vpop.permute.xlu0 %1512
        %1514 = vrot.lane.b32.xlu0 %v1318, 24
        %v1515 = vpop.permute.xlu0 %1514
        %1516 = vrot.lane.b32.xlu0 %v1319, 24
        %v1517 = vpop.permute.xlu0 %1516
        %1518 = vrot.lane.b32.xlu0 %v1320, 24
        %v1519 = vpop.permute.xlu0 %1518
        %1520 = vrot.lane.b32.xlu0 %v1321, 24
        %v1521 = vpop.permute.xlu0 %1520
        %1538 = vrot.lane.b32.xlu0 %v1322, 28
        %v1539 = vpop.permute.xlu0 %1538
        %1540 = vrot.lane.b32.xlu0 %v1323, 28
        %v1541 = vpop.permute.xlu0 %1540
        %1542 = vrot.lane.b32.xlu0 %v1324, 28
        %v1543 = vpop.permute.xlu0 %1542
        %1544 = vrot.lane.b32.xlu0 %v1325, 28
        %v1545 = vpop.permute.xlu0 %1544
        %1546 = vrot.lane.b32.xlu0 %v1326, 28
        %v1547 = vpop.permute.xlu0 %1546
        %1548 = vrot.lane.b32.xlu0 %v1327, 28
        %v1549 = vpop.permute.xlu0 %1548
        %1550 = vrot.lane.b32.xlu0 %v1328, 28
        %v1551 = vpop.permute.xlu0 %1550
        %1552 = vrot.lane.b32.xlu0 %v1329, 28
        %v1553 = vpop.permute.xlu0 %1552
        %1570 = vrot.lane.b32.xlu0 %v1330, 32
        %v1571 = vpop.permute.xlu0 %1570
        %1572 = vrot.lane.b32.xlu0 %v1331, 32
        %v1573 = vpop.permute.xlu0 %1572
        %1574 = vrot.lane.b32.xlu0 %v1332, 32
        %v1575 = vpop.permute.xlu0 %1574
        %1576 = vrot.lane.b32.xlu0 %v1333, 32
        %v1577 = vpop.permute.xlu0 %1576
        %1578 = vrot.lane.b32.xlu0 %v1334, 32
        %v1579 = vpop.permute.xlu0 %1578
        %1580 = vrot.lane.b32.xlu0 %v1335, 32
        %v1581 = vpop.permute.xlu0 %1580
        %1582 = vrot.lane.b32.xlu0 %v1336, 32
        %v1583 = vpop.permute.xlu0 %1582
        %1584 = vrot.lane.b32.xlu0 %v1337, 32
        %v1585 = vpop.permute.xlu0 %1584
        %v1594 = vsel %vm1183, %v1264, %v1347
        %v1595 = vsel %vm1183, %v1265, %v1349
        %v1596 = vsel %vm1183, %v1266, %v1351
        %v1597 = vsel %vm1183, %v1267, %v1353
        %v1598 = vsel %vm1183, %v1268, %v1355
        %v1599 = vsel %vm1183, %v1269, %v1357
        %v1600 = vsel %vm1183, %v1270, %v1359
        %v1601 = vsel %vm1183, %v1271, %v1361
        %v1602 = vsel %vm1192, %v1594, %v1379
        %v1603 = vsel %vm1192, %v1595, %v1381
        %v1604 = vsel %vm1192, %v1596, %v1383
        %v1605 = vsel %vm1192, %v1597, %v1385
        %v1606 = vsel %vm1192, %v1598, %v1387
        %v1607 = vsel %vm1192, %v1599, %v1389
        %v1608 = vsel %vm1192, %v1600, %v1391
        %v1609 = vsel %vm1192, %v1601, %v1393
        %v1610 = vsel %vm1201, %v1602, %v1411
        %v1611 = vsel %vm1201, %v1603, %v1413
        %v1612 = vsel %vm1201, %v1604, %v1415
        %v1613 = vsel %vm1201, %v1605, %v1417
        %v1614 = vsel %vm1201, %v1606, %v1419
        %v1615 = vsel %vm1201, %v1607, %v1421
        %v1616 = vsel %vm1201, %v1608, %v1423
        %v1617 = vsel %vm1201, %v1609, %v1425
        %v1618 = vsel %vm1210, %v1610, %v1443
        %v1619 = vsel %vm1210, %v1611, %v1445
        %v1620 = vsel %vm1210, %v1612, %v1447
        %v1621 = vsel %vm1210, %v1613, %v1449
        %v1622 = vsel %vm1210, %v1614, %v1451
        %v1623 = vsel %vm1210, %v1615, %v1453
        %v1624 = vsel %vm1210, %v1616, %v1455
        %v1625 = vsel %vm1210, %v1617, %v1457
        %v1626 = vsel %vm1219, %v1618, %v1475
        %v1627 = vsel %vm1219, %v1619, %v1477
        %v1628 = vsel %vm1219, %v1620, %v1479
        %v1629 = vsel %vm1219, %v1621, %v1481
        %v1630 = vsel %vm1219, %v1622, %v1483
        %v1631 = vsel %vm1219, %v1623, %v1485
        %v1632 = vsel %vm1219, %v1624, %v1487
        %v1633 = vsel %vm1219, %v1625, %v1489
        %v1634 = vsel %vm1228, %v1626, %v1507
        %v1635 = vsel %vm1228, %v1627, %v1509
        %v1636 = vsel %vm1228, %v1628, %v1511
        %v1637 = vsel %vm1228, %v1629, %v1513
        %v1638 = vsel %vm1228, %v1630, %v1515
        %v1639 = vsel %vm1228, %v1631, %v1517
        %v1640 = vsel %vm1228, %v1632, %v1519
        %v1641 = vsel %vm1228, %v1633, %v1521
        %v1642 = vsel %vm1237, %v1634, %v1539
        %v1643 = vsel %vm1237, %v1635, %v1541
        %v1644 = vsel %vm1237, %v1636, %v1543
        %v1645 = vsel %vm1237, %v1637, %v1545
        %v1646 = vsel %vm1237, %v1638, %v1547
        %v1647 = vsel %vm1237, %v1639, %v1549
        %v1648 = vsel %vm1237, %v1640, %v1551
        %v1649 = vsel %vm1237, %v1641, %v1553
        %v1650 = vsel %vm1246, %v1642, %v1571
        %v1651 = vsel %vm1246, %v1643, %v1573
        %v1652 = vsel %vm1246, %v1644, %v1575
        %v1653 = vsel %vm1246, %v1645, %v1577
        %v1654 = vsel %vm1246, %v1646, %v1579
        %v1655 = vsel %vm1246, %v1647, %v1581
        %v1656 = vsel %vm1246, %v1648, %v1583
        %v1657 = vsel %vm1246, %v1649, %v1585
        %s1658 = scalar_lea.vmem [#allocation2], 64
        %1659 = vst.msk [vmem:[%s1658] sm:$0xff] %vm1255, %v1650
        %1660 = vst.msk [vmem:[%s1658 + $0x8] sm:$0xff] %vm1255, %v1651
        %1661 = vst.msk [vmem:[%s1658 + $0x10] sm:$0xff] %vm1255, %v1652
        %1662 = vst.msk [vmem:[%s1658 + $0x18] sm:$0xff] %vm1255, %v1653
        %1663 = vst.msk [vmem:[%s1658 + $0x20] sm:$0xff] %vm1255, %v1654
        %1664 = vst.msk [vmem:[%s1658 + $0x28] sm:$0xff] %vm1255, %v1655
        %1665 = vst.msk [vmem:[%s1658 + $0x30] sm:$0xff] %vm1255, %v1656
        %1666 = vst.msk [vmem:[%s1658 + $0x38] sm:$0xff] %vm1255, %v1657
        %v1667 = vld [vmem:[%s758] sm:$0xff]
        %v1668 = vld [vmem:[%s758 + $0x10] sm:$0xff]
        %v1669 = vld [vmem:[%s758 + $0x20] sm:$0xff]
        %v1670 = vld [vmem:[%s758 + $0x30] sm:$0xff]
        %v1671 = vld [vmem:[%s758 + $0x40] sm:$0xff]
        %v1672 = vld [vmem:[%s758 + $0x50] sm:$0xff]
        %v1673 = vld [vmem:[%s758 + $0x60] sm:$0xff]
        %v1674 = vld [vmem:[%s758 + $0x70] sm:$0xff]
        %v1675 = vld [vmem:[%s758 + $0x1] sm:$0xff]
        %v1676 = vld [vmem:[%s758 + $0x11] sm:$0xff]
        %v1677 = vld [vmem:[%s758 + $0x21] sm:$0xff]
        %v1678 = vld [vmem:[%s758 + $0x31] sm:$0xff]
        %v1679 = vld [vmem:[%s758 + $0x41] sm:$0xff]
        %v1680 = vld [vmem:[%s758 + $0x51] sm:$0xff]
        %v1681 = vld [vmem:[%s758 + $0x61] sm:$0xff]
        %v1682 = vld [vmem:[%s758 + $0x71] sm:$0xff]
        %v1683 = vld [vmem:[%s758 + $0x2] sm:$0xff]
        %v1684 = vld [vmem:[%s758 + $0x12] sm:$0xff]
        %v1685 = vld [vmem:[%s758 + $0x22] sm:$0xff]
        %v1686 = vld [vmem:[%s758 + $0x32] sm:$0xff]
        %v1687 = vld [vmem:[%s758 + $0x42] sm:$0xff]
        %v1688 = vld [vmem:[%s758 + $0x52] sm:$0xff]
        %v1689 = vld [vmem:[%s758 + $0x62] sm:$0xff]
        %v1690 = vld [vmem:[%s758 + $0x72] sm:$0xff]
        %s1691 = scalar_lea.vmem %s758, 16
        %v1692 = vld [vmem:[%s1691] sm:$0xff]
        %v1693 = vld [vmem:[%s1691 + $0x10] sm:$0xff]
        %v1694 = vld [vmem:[%s1691 + $0x20] sm:$0xff]
        %v1695 = vld [vmem:[%s1691 + $0x30] sm:$0xff]
        %v1696 = vld [vmem:[%s1691 + $0x40] sm:$0xff]
        %v1697 = vld [vmem:[%s1691 + $0x50] sm:$0xff]
        %v1698 = vld [vmem:[%s1691 + $0x60] sm:$0xff]
        %v1699 = vld [vmem:[%s1691 + $0x70] sm:$0xff]
        %v1700 = vld [vmem:[%s1691 + $0x1] sm:$0xff]
        %v1701 = vld [vmem:[%s1691 + $0x11] sm:$0xff]
        %v1702 = vld [vmem:[%s1691 + $0x21] sm:$0xff]
        %v1703 = vld [vmem:[%s1691 + $0x31] sm:$0xff]
        %v1704 = vld [vmem:[%s1691 + $0x41] sm:$0xff]
        %v1705 = vld [vmem:[%s1691 + $0x51] sm:$0xff]
        %v1706 = vld [vmem:[%s1691 + $0x61] sm:$0xff]
        %v1707 = vld [vmem:[%s1691 + $0x71] sm:$0xff]
        %v1708 = vld [vmem:[%s1691 + $0x2] sm:$0xff]
        %v1709 = vld [vmem:[%s1691 + $0x12] sm:$0xff]
        %v1710 = vld [vmem:[%s1691 + $0x22] sm:$0xff]
        %v1711 = vld [vmem:[%s1691 + $0x32] sm:$0xff]
        %v1712 = vld [vmem:[%s1691 + $0x42] sm:$0xff]
        %v1713 = vld [vmem:[%s1691 + $0x52] sm:$0xff]
        %v1714 = vld [vmem:[%s1691 + $0x62] sm:$0xff]
        %v1715 = vld [vmem:[%s1691 + $0x72] sm:$0xff]
        %s1716 = scalar_lea.vmem %s758, 32
        %v1717 = vld [vmem:[%s1716] sm:$0xff]
        %v1718 = vld [vmem:[%s1716 + $0x10] sm:$0xff]
        %v1719 = vld [vmem:[%s1716 + $0x20] sm:$0xff]
        %v1720 = vld [vmem:[%s1716 + $0x30] sm:$0xff]
        %v1721 = vld [vmem:[%s1716 + $0x40] sm:$0xff]
        %v1722 = vld [vmem:[%s1716 + $0x50] sm:$0xff]
        %v1723 = vld [vmem:[%s1716 + $0x60] sm:$0xff]
        %v1724 = vld [vmem:[%s1716 + $0x70] sm:$0xff]
        %v1725 = vld [vmem:[%s1716 + $0x1] sm:$0xff]
        %v1726 = vld [vmem:[%s1716 + $0x11] sm:$0xff]
        %v1727 = vld [vmem:[%s1716 + $0x21] sm:$0xff]
        %v1728 = vld [vmem:[%s1716 + $0x31] sm:$0xff]
        %v1729 = vld [vmem:[%s1716 + $0x41] sm:$0xff]
        %v1730 = vld [vmem:[%s1716 + $0x51] sm:$0xff]
        %v1731 = vld [vmem:[%s1716 + $0x61] sm:$0xff]
        %v1732 = vld [vmem:[%s1716 + $0x71] sm:$0xff]
        %v1733 = vld [vmem:[%s1716 + $0x2] sm:$0xff]
        %v1734 = vld [vmem:[%s1716 + $0x12] sm:$0xff]
        %v1735 = vld [vmem:[%s1716 + $0x22] sm:$0xff]
        %v1736 = vld [vmem:[%s1716 + $0x32] sm:$0xff]
        %v1737 = vld [vmem:[%s1716 + $0x42] sm:$0xff]
        %v1738 = vld [vmem:[%s1716 + $0x52] sm:$0xff]
        %v1739 = vld [vmem:[%s1716 + $0x62] sm:$0xff]
        %v1740 = vld [vmem:[%s1716 + $0x72] sm:$0xff]
        %1749 = vrot.lane.b32.xlu0 %v1675, 4
        %v1750 = vpop.permute.xlu0 %1749
        %1751 = vrot.lane.b32.xlu0 %v1676, 4
        %v1752 = vpop.permute.xlu0 %1751
        %1753 = vrot.lane.b32.xlu0 %v1677, 4
        %v1754 = vpop.permute.xlu0 %1753
        %1755 = vrot.lane.b32.xlu0 %v1678, 4
        %v1756 = vpop.permute.xlu0 %1755
        %1757 = vrot.lane.b32.xlu0 %v1679, 4
        %v1758 = vpop.permute.xlu0 %1757
        %1759 = vrot.lane.b32.xlu0 %v1680, 4
        %v1760 = vpop.permute.xlu0 %1759
        %1761 = vrot.lane.b32.xlu0 %v1681, 4
        %v1762 = vpop.permute.xlu0 %1761
        %1763 = vrot.lane.b32.xlu0 %v1682, 4
        %v1764 = vpop.permute.xlu0 %1763
        %1781 = vrot.lane.b32.xlu0 %v1683, 8
        %v1782 = vpop.permute.xlu0 %1781
        %1783 = vrot.lane.b32.xlu0 %v1684, 8
        %v1784 = vpop.permute.xlu0 %1783
        %1785 = vrot.lane.b32.xlu0 %v1685, 8
        %v1786 = vpop.permute.xlu0 %1785
        %1787 = vrot.lane.b32.xlu0 %v1686, 8
        %v1788 = vpop.permute.xlu0 %1787
        %1789 = vrot.lane.b32.xlu0 %v1687, 8
        %v1790 = vpop.permute.xlu0 %1789
        %1791 = vrot.lane.b32.xlu0 %v1688, 8
        %v1792 = vpop.permute.xlu0 %1791
        %1793 = vrot.lane.b32.xlu0 %v1689, 8
        %v1794 = vpop.permute.xlu0 %1793
        %1795 = vrot.lane.b32.xlu0 %v1690, 8
        %v1796 = vpop.permute.xlu0 %1795
        %1813 = vrot.lane.b32.xlu0 %v1692, 12
        %v1814 = vpop.permute.xlu0 %1813
        %1815 = vrot.lane.b32.xlu0 %v1693, 12
        %v1816 = vpop.permute.xlu0 %1815
        %1817 = vrot.lane.b32.xlu0 %v1694, 12
        %v1818 = vpop.permute.xlu0 %1817
        %1819 = vrot.lane.b32.xlu0 %v1695, 12
        %v1820 = vpop.permute.xlu0 %1819
        %1821 = vrot.lane.b32.xlu0 %v1696, 12
        %v1822 = vpop.permute.xlu0 %1821
        %1823 = vrot.lane.b32.xlu0 %v1697, 12
        %v1824 = vpop.permute.xlu0 %1823
        %1825 = vrot.lane.b32.xlu0 %v1698, 12
        %v1826 = vpop.permute.xlu0 %1825
        %1827 = vrot.lane.b32.xlu0 %v1699, 12
        %v1828 = vpop.permute.xlu0 %1827
        %1845 = vrot.lane.b32.xlu0 %v1700, 16
        %v1846 = vpop.permute.xlu0 %1845
        %1847 = vrot.lane.b32.xlu0 %v1701, 16
        %v1848 = vpop.permute.xlu0 %1847
        %1849 = vrot.lane.b32.xlu0 %v1702, 16
        %v1850 = vpop.permute.xlu0 %1849
        %1851 = vrot.lane.b32.xlu0 %v1703, 16
        %v1852 = vpop.permute.xlu0 %1851
        %1853 = vrot.lane.b32.xlu0 %v1704, 16
        %v1854 = vpop.permute.xlu0 %1853
        %1855 = vrot.lane.b32.xlu0 %v1705, 16
        %v1856 = vpop.permute.xlu0 %1855
        %1857 = vrot.lane.b32.xlu0 %v1706, 16
        %v1858 = vpop.permute.xlu0 %1857
        %1859 = vrot.lane.b32.xlu0 %v1707, 16
        %v1860 = vpop.permute.xlu0 %1859
        %1877 = vrot.lane.b32.xlu0 %v1708, 20
        %v1878 = vpop.permute.xlu0 %1877
        %1879 = vrot.lane.b32.xlu0 %v1709, 20
        %v1880 = vpop.permute.xlu0 %1879
        %1881 = vrot.lane.b32.xlu0 %v1710, 20
        %v1882 = vpop.permute.xlu0 %1881
        %1883 = vrot.lane.b32.xlu0 %v1711, 20
        %v1884 = vpop.permute.xlu0 %1883
        %1885 = vrot.lane.b32.xlu0 %v1712, 20
        %v1886 = vpop.permute.xlu0 %1885
        %1887 = vrot.lane.b32.xlu0 %v1713, 20
        %v1888 = vpop.permute.xlu0 %1887
        %1889 = vrot.lane.b32.xlu0 %v1714, 20
        %v1890 = vpop.permute.xlu0 %1889
        %1891 = vrot.lane.b32.xlu0 %v1715, 20
        %v1892 = vpop.permute.xlu0 %1891
        %1909 = vrot.lane.b32.xlu0 %v1717, 24
        %v1910 = vpop.permute.xlu0 %1909
        %1911 = vrot.lane.b32.xlu0 %v1718, 24
        %v1912 = vpop.permute.xlu0 %1911
        %1913 = vrot.lane.b32.xlu0 %v1719, 24
        %v1914 = vpop.permute.xlu0 %1913
        %1915 = vrot.lane.b32.xlu0 %v1720, 24
        %v1916 = vpop.permute.xlu0 %1915
        %1917 = vrot.lane.b32.xlu0 %v1721, 24
        %v1918 = vpop.permute.xlu0 %1917
        %1919 = vrot.lane.b32.xlu0 %v1722, 24
        %v1920 = vpop.permute.xlu0 %1919
        %1921 = vrot.lane.b32.xlu0 %v1723, 24
        %v1922 = vpop.permute.xlu0 %1921
        %1923 = vrot.lane.b32.xlu0 %v1724, 24
        %v1924 = vpop.permute.xlu0 %1923
        %1941 = vrot.lane.b32.xlu0 %v1725, 28
        %v1942 = vpop.permute.xlu0 %1941
        %1943 = vrot.lane.b32.xlu0 %v1726, 28
        %v1944 = vpop.permute.xlu0 %1943
        %1945 = vrot.lane.b32.xlu0 %v1727, 28
        %v1946 = vpop.permute.xlu0 %1945
        %1947 = vrot.lane.b32.xlu0 %v1728, 28
        %v1948 = vpop.permute.xlu0 %1947
        %1949 = vrot.lane.b32.xlu0 %v1729, 28
        %v1950 = vpop.permute.xlu0 %1949
        %1951 = vrot.lane.b32.xlu0 %v1730, 28
        %v1952 = vpop.permute.xlu0 %1951
        %1953 = vrot.lane.b32.xlu0 %v1731, 28
        %v1954 = vpop.permute.xlu0 %1953
        %1955 = vrot.lane.b32.xlu0 %v1732, 28
        %v1956 = vpop.permute.xlu0 %1955
        %1973 = vrot.lane.b32.xlu0 %v1733, 32
        %v1974 = vpop.permute.xlu0 %1973
        %1975 = vrot.lane.b32.xlu0 %v1734, 32
        %v1976 = vpop.permute.xlu0 %1975
        %1977 = vrot.lane.b32.xlu0 %v1735, 32
        %v1978 = vpop.permute.xlu0 %1977
        %1979 = vrot.lane.b32.xlu0 %v1736, 32
        %v1980 = vpop.permute.xlu0 %1979
        %1981 = vrot.lane.b32.xlu0 %v1737, 32
        %v1982 = vpop.permute.xlu0 %1981
        %1983 = vrot.lane.b32.xlu0 %v1738, 32
        %v1984 = vpop.permute.xlu0 %1983
        %1985 = vrot.lane.b32.xlu0 %v1739, 32
        %v1986 = vpop.permute.xlu0 %1985
        %1987 = vrot.lane.b32.xlu0 %v1740, 32
        %v1988 = vpop.permute.xlu0 %1987
        %v1997 = vsel %vm1183, %v1667, %v1750
        %v1998 = vsel %vm1183, %v1668, %v1752
        %v1999 = vsel %vm1183, %v1669, %v1754
        %v2000 = vsel %vm1183, %v1670, %v1756
        %v2001 = vsel %vm1183, %v1671, %v1758
        %v2002 = vsel %vm1183, %v1672, %v1760
        %v2003 = vsel %vm1183, %v1673, %v1762
        %v2004 = vsel %vm1183, %v1674, %v1764
        %v2005 = vsel %vm1192, %v1997, %v1782
        %v2006 = vsel %vm1192, %v1998, %v1784
        %v2007 = vsel %vm1192, %v1999, %v1786
        %v2008 = vsel %vm1192, %v2000, %v1788
        %v2009 = vsel %vm1192, %v2001, %v1790
        %v2010 = vsel %vm1192, %v2002, %v1792
        %v2011 = vsel %vm1192, %v2003, %v1794
        %v2012 = vsel %vm1192, %v2004, %v1796
        %v2013 = vsel %vm1201, %v2005, %v1814
        %v2014 = vsel %vm1201, %v2006, %v1816
        %v2015 = vsel %vm1201, %v2007, %v1818
        %v2016 = vsel %vm1201, %v2008, %v1820
        %v2017 = vsel %vm1201, %v2009, %v1822
        %v2018 = vsel %vm1201, %v2010, %v1824
        %v2019 = vsel %vm1201, %v2011, %v1826
        %v2020 = vsel %vm1201, %v2012, %v1828
        %v2021 = vsel %vm1210, %v2013, %v1846
        %v2022 = vsel %vm1210, %v2014, %v1848
        %v2023 = vsel %vm1210, %v2015, %v1850
        %v2024 = vsel %vm1210, %v2016, %v1852
        %v2025 = vsel %vm1210, %v2017, %v1854
        %v2026 = vsel %vm1210, %v2018, %v1856
        %v2027 = vsel %vm1210, %v2019, %v1858
        %v2028 = vsel %vm1210, %v2020, %v1860
        %v2029 = vsel %vm1219, %v2021, %v1878
        %v2030 = vsel %vm1219, %v2022, %v1880
        %v2031 = vsel %vm1219, %v2023, %v1882
        %v2032 = vsel %vm1219, %v2024, %v1884
        %v2033 = vsel %vm1219, %v2025, %v1886
        %v2034 = vsel %vm1219, %v2026, %v1888
        %v2035 = vsel %vm1219, %v2027, %v1890
        %v2036 = vsel %vm1219, %v2028, %v1892
        %v2037 = vsel %vm1228, %v2029, %v1910
        %v2038 = vsel %vm1228, %v2030, %v1912
        %v2039 = vsel %vm1228, %v2031, %v1914
        %v2040 = vsel %vm1228, %v2032, %v1916
        %v2041 = vsel %vm1228, %v2033, %v1918
        %v2042 = vsel %vm1228, %v2034, %v1920
        %v2043 = vsel %vm1228, %v2035, %v1922
        %v2044 = vsel %vm1228, %v2036, %v1924
        %v2045 = vsel %vm1237, %v2037, %v1942
        %v2046 = vsel %vm1237, %v2038, %v1944
        %v2047 = vsel %vm1237, %v2039, %v1946
        %v2048 = vsel %vm1237, %v2040, %v1948
        %v2049 = vsel %vm1237, %v2041, %v1950
        %v2050 = vsel %vm1237, %v2042, %v1952
        %v2051 = vsel %vm1237, %v2043, %v1954
        %v2052 = vsel %vm1237, %v2044, %v1956
        %v2053 = vsel %vm1246, %v2045, %v1974
        %v2054 = vsel %vm1246, %v2046, %v1976
        %v2055 = vsel %vm1246, %v2047, %v1978
        %v2056 = vsel %vm1246, %v2048, %v1980
        %v2057 = vsel %vm1246, %v2049, %v1982
        %v2058 = vsel %vm1246, %v2050, %v1984
        %v2059 = vsel %vm1246, %v2051, %v1986
        %v2060 = vsel %vm1246, %v2052, %v1988
        %s2061 = scalar_lea.vmem [#allocation2], 128
        %2062 = vst.msk [vmem:[%s2061] sm:$0xff] %vm1255, %v2053
        %2063 = vst.msk [vmem:[%s2061 + $0x8] sm:$0xff] %vm1255, %v2054
        %2064 = vst.msk [vmem:[%s2061 + $0x10] sm:$0xff] %vm1255, %v2055
        %2065 = vst.msk [vmem:[%s2061 + $0x18] sm:$0xff] %vm1255, %v2056
        %2066 = vst.msk [vmem:[%s2061 + $0x20] sm:$0xff] %vm1255, %v2057
        %2067 = vst.msk [vmem:[%s2061 + $0x28] sm:$0xff] %vm1255, %v2058
        %2068 = vst.msk [vmem:[%s2061 + $0x30] sm:$0xff] %vm1255, %v2059
        %2069 = vst.msk [vmem:[%s2061 + $0x38] sm:$0xff] %vm1255, %v2060
        %v2070 = vld [vmem:[%s771] sm:$0xff]
        %v2071 = vld [vmem:[%s771 + $0x10] sm:$0xff]
        %v2072 = vld [vmem:[%s771 + $0x20] sm:$0xff]
        %v2073 = vld [vmem:[%s771 + $0x30] sm:$0xff]
        %v2074 = vld [vmem:[%s771 + $0x40] sm:$0xff]
        %v2075 = vld [vmem:[%s771 + $0x50] sm:$0xff]
        %v2076 = vld [vmem:[%s771 + $0x60] sm:$0xff]
        %v2077 = vld [vmem:[%s771 + $0x70] sm:$0xff]
        %v2078 = vld [vmem:[%s771 + $0x1] sm:$0xff]
        %v2079 = vld [vmem:[%s771 + $0x11] sm:$0xff]
        %v2080 = vld [vmem:[%s771 + $0x21] sm:$0xff]
        %v2081 = vld [vmem:[%s771 + $0x31] sm:$0xff]
        %v2082 = vld [vmem:[%s771 + $0x41] sm:$0xff]
        %v2083 = vld [vmem:[%s771 + $0x51] sm:$0xff]
        %v2084 = vld [vmem:[%s771 + $0x61] sm:$0xff]
        %v2085 = vld [vmem:[%s771 + $0x71] sm:$0xff]
        %v2086 = vld [vmem:[%s771 + $0x2] sm:$0xff]
        %v2087 = vld [vmem:[%s771 + $0x12] sm:$0xff]
        %v2088 = vld [vmem:[%s771 + $0x22] sm:$0xff]
        %v2089 = vld [vmem:[%s771 + $0x32] sm:$0xff]
        %v2090 = vld [vmem:[%s771 + $0x42] sm:$0xff]
        %v2091 = vld [vmem:[%s771 + $0x52] sm:$0xff]
        %v2092 = vld [vmem:[%s771 + $0x62] sm:$0xff]
        %v2093 = vld [vmem:[%s771 + $0x72] sm:$0xff]
        %s2094 = scalar_lea.vmem %s771, 16
        %v2095 = vld [vmem:[%s2094] sm:$0xff]
        %v2096 = vld [vmem:[%s2094 + $0x10] sm:$0xff]
        %v2097 = vld [vmem:[%s2094 + $0x20] sm:$0xff]
        %v2098 = vld [vmem:[%s2094 + $0x30] sm:$0xff]
        %v2099 = vld [vmem:[%s2094 + $0x40] sm:$0xff]
        %v2100 = vld [vmem:[%s2094 + $0x50] sm:$0xff]
        %v2101 = vld [vmem:[%s2094 + $0x60] sm:$0xff]
        %v2102 = vld [vmem:[%s2094 + $0x70] sm:$0xff]
        %v2103 = vld [vmem:[%s2094 + $0x1] sm:$0xff]
        %v2104 = vld [vmem:[%s2094 + $0x11] sm:$0xff]
        %v2105 = vld [vmem:[%s2094 + $0x21] sm:$0xff]
        %v2106 = vld [vmem:[%s2094 + $0x31] sm:$0xff]
        %v2107 = vld [vmem:[%s2094 + $0x41] sm:$0xff]
        %v2108 = vld [vmem:[%s2094 + $0x51] sm:$0xff]
        %v2109 = vld [vmem:[%s2094 + $0x61] sm:$0xff]
        %v2110 = vld [vmem:[%s2094 + $0x71] sm:$0xff]
        %v2111 = vld [vmem:[%s2094 + $0x2] sm:$0xff]
        %v2112 = vld [vmem:[%s2094 + $0x12] sm:$0xff]
        %v2113 = vld [vmem:[%s2094 + $0x22] sm:$0xff]
        %v2114 = vld [vmem:[%s2094 + $0x32] sm:$0xff]
        %v2115 = vld [vmem:[%s2094 + $0x42] sm:$0xff]
        %v2116 = vld [vmem:[%s2094 + $0x52] sm:$0xff]
        %v2117 = vld [vmem:[%s2094 + $0x62] sm:$0xff]
        %v2118 = vld [vmem:[%s2094 + $0x72] sm:$0xff]
        %s2119 = scalar_lea.vmem %s771, 32
        %v2120 = vld [vmem:[%s2119] sm:$0xff]
        %v2121 = vld [vmem:[%s2119 + $0x10] sm:$0xff]
        %v2122 = vld [vmem:[%s2119 + $0x20] sm:$0xff]
        %v2123 = vld [vmem:[%s2119 + $0x30] sm:$0xff]
        %v2124 = vld [vmem:[%s2119 + $0x40] sm:$0xff]
        %v2125 = vld [vmem:[%s2119 + $0x50] sm:$0xff]
        %v2126 = vld [vmem:[%s2119 + $0x60] sm:$0xff]
        %v2127 = vld [vmem:[%s2119 + $0x70] sm:$0xff]
        %v2128 = vld [vmem:[%s2119 + $0x1] sm:$0xff]
        %v2129 = vld [vmem:[%s2119 + $0x11] sm:$0xff]
        %v2130 = vld [vmem:[%s2119 + $0x21] sm:$0xff]
        %v2131 = vld [vmem:[%s2119 + $0x31] sm:$0xff]
        %v2132 = vld [vmem:[%s2119 + $0x41] sm:$0xff]
        %v2133 = vld [vmem:[%s2119 + $0x51] sm:$0xff]
        %v2134 = vld [vmem:[%s2119 + $0x61] sm:$0xff]
        %v2135 = vld [vmem:[%s2119 + $0x71] sm:$0xff]
        %v2136 = vld [vmem:[%s2119 + $0x2] sm:$0xff]
        %v2137 = vld [vmem:[%s2119 + $0x12] sm:$0xff]
        %v2138 = vld [vmem:[%s2119 + $0x22] sm:$0xff]
        %v2139 = vld [vmem:[%s2119 + $0x32] sm:$0xff]
        %v2140 = vld [vmem:[%s2119 + $0x42] sm:$0xff]
        %v2141 = vld [vmem:[%s2119 + $0x52] sm:$0xff]
        %v2142 = vld [vmem:[%s2119 + $0x62] sm:$0xff]
        %v2143 = vld [vmem:[%s2119 + $0x72] sm:$0xff]
        %2152 = vrot.lane.b32.xlu0 %v2078, 4
        %v2153 = vpop.permute.xlu0 %2152
        %2154 = vrot.lane.b32.xlu0 %v2079, 4
        %v2155 = vpop.permute.xlu0 %2154
        %2156 = vrot.lane.b32.xlu0 %v2080, 4
        %v2157 = vpop.permute.xlu0 %2156
        %2158 = vrot.lane.b32.xlu0 %v2081, 4
        %v2159 = vpop.permute.xlu0 %2158
        %2160 = vrot.lane.b32.xlu0 %v2082, 4
        %v2161 = vpop.permute.xlu0 %2160
        %2162 = vrot.lane.b32.xlu0 %v2083, 4
        %v2163 = vpop.permute.xlu0 %2162
        %2164 = vrot.lane.b32.xlu0 %v2084, 4
        %v2165 = vpop.permute.xlu0 %2164
        %2166 = vrot.lane.b32.xlu0 %v2085, 4
        %v2167 = vpop.permute.xlu0 %2166
        %2184 = vrot.lane.b32.xlu0 %v2086, 8
        %v2185 = vpop.permute.xlu0 %2184
        %2186 = vrot.lane.b32.xlu0 %v2087, 8
        %v2187 = vpop.permute.xlu0 %2186
        %2188 = vrot.lane.b32.xlu0 %v2088, 8
        %v2189 = vpop.permute.xlu0 %2188
        %2190 = vrot.lane.b32.xlu0 %v2089, 8
        %v2191 = vpop.permute.xlu0 %2190
        %2192 = vrot.lane.b32.xlu0 %v2090, 8
        %v2193 = vpop.permute.xlu0 %2192
        %2194 = vrot.lane.b32.xlu0 %v2091, 8
        %v2195 = vpop.permute.xlu0 %2194
        %2196 = vrot.lane.b32.xlu0 %v2092, 8
        %v2197 = vpop.permute.xlu0 %2196
        %2198 = vrot.lane.b32.xlu0 %v2093, 8
        %v2199 = vpop.permute.xlu0 %2198
        %2216 = vrot.lane.b32.xlu0 %v2095, 12
        %v2217 = vpop.permute.xlu0 %2216
        %2218 = vrot.lane.b32.xlu0 %v2096, 12
        %v2219 = vpop.permute.xlu0 %2218
        %2220 = vrot.lane.b32.xlu0 %v2097, 12
        %v2221 = vpop.permute.xlu0 %2220
        %2222 = vrot.lane.b32.xlu0 %v2098, 12
        %v2223 = vpop.permute.xlu0 %2222
        %2224 = vrot.lane.b32.xlu0 %v2099, 12
        %v2225 = vpop.permute.xlu0 %2224
        %2226 = vrot.lane.b32.xlu0 %v2100, 12
        %v2227 = vpop.permute.xlu0 %2226
        %2228 = vrot.lane.b32.xlu0 %v2101, 12
        %v2229 = vpop.permute.xlu0 %2228
        %2230 = vrot.lane.b32.xlu0 %v2102, 12
        %v2231 = vpop.permute.xlu0 %2230
        %2248 = vrot.lane.b32.xlu0 %v2103, 16
        %v2249 = vpop.permute.xlu0 %2248
        %2250 = vrot.lane.b32.xlu0 %v2104, 16
        %v2251 = vpop.permute.xlu0 %2250
        %2252 = vrot.lane.b32.xlu0 %v2105, 16
        %v2253 = vpop.permute.xlu0 %2252
        %2254 = vrot.lane.b32.xlu0 %v2106, 16
        %v2255 = vpop.permute.xlu0 %2254
        %2256 = vrot.lane.b32.xlu0 %v2107, 16
        %v2257 = vpop.permute.xlu0 %2256
        %2258 = vrot.lane.b32.xlu0 %v2108, 16
        %v2259 = vpop.permute.xlu0 %2258
        %2260 = vrot.lane.b32.xlu0 %v2109, 16
        %v2261 = vpop.permute.xlu0 %2260
        %2262 = vrot.lane.b32.xlu0 %v2110, 16
        %v2263 = vpop.permute.xlu0 %2262
        %2280 = vrot.lane.b32.xlu0 %v2111, 20
        %v2281 = vpop.permute.xlu0 %2280
        %2282 = vrot.lane.b32.xlu0 %v2112, 20
        %v2283 = vpop.permute.xlu0 %2282
        %2284 = vrot.lane.b32.xlu0 %v2113, 20
        %v2285 = vpop.permute.xlu0 %2284
        %2286 = vrot.lane.b32.xlu0 %v2114, 20
        %v2287 = vpop.permute.xlu0 %2286
        %2288 = vrot.lane.b32.xlu0 %v2115, 20
        %v2289 = vpop.permute.xlu0 %2288
        %2290 = vrot.lane.b32.xlu0 %v2116, 20
        %v2291 = vpop.permute.xlu0 %2290
        %2292 = vrot.lane.b32.xlu0 %v2117, 20
        %v2293 = vpop.permute.xlu0 %2292
        %2294 = vrot.lane.b32.xlu0 %v2118, 20
        %v2295 = vpop.permute.xlu0 %2294
        %2312 = vrot.lane.b32.xlu0 %v2120, 24
        %v2313 = vpop.permute.xlu0 %2312
        %2314 = vrot.lane.b32.xlu0 %v2121, 24
        %v2315 = vpop.permute.xlu0 %2314
        %2316 = vrot.lane.b32.xlu0 %v2122, 24
        %v2317 = vpop.permute.xlu0 %2316
        %2318 = vrot.lane.b32.xlu0 %v2123, 24
        %v2319 = vpop.permute.xlu0 %2318
        %2320 = vrot.lane.b32.xlu0 %v2124, 24
        %v2321 = vpop.permute.xlu0 %2320
        %2322 = vrot.lane.b32.xlu0 %v2125, 24
        %v2323 = vpop.permute.xlu0 %2322
        %2324 = vrot.lane.b32.xlu0 %v2126, 24
        %v2325 = vpop.permute.xlu0 %2324
        %2326 = vrot.lane.b32.xlu0 %v2127, 24
        %v2327 = vpop.permute.xlu0 %2326
        %2344 = vrot.lane.b32.xlu0 %v2128, 28
        %v2345 = vpop.permute.xlu0 %2344
        %2346 = vrot.lane.b32.xlu0 %v2129, 28
        %v2347 = vpop.permute.xlu0 %2346
        %2348 = vrot.lane.b32.xlu0 %v2130, 28
        %v2349 = vpop.permute.xlu0 %2348
        %2350 = vrot.lane.b32.xlu0 %v2131, 28
        %v2351 = vpop.permute.xlu0 %2350
        %2352 = vrot.lane.b32.xlu0 %v2132, 28
        %v2353 = vpop.permute.xlu0 %2352
        %2354 = vrot.lane.b32.xlu0 %v2133, 28
        %v2355 = vpop.permute.xlu0 %2354
        %2356 = vrot.lane.b32.xlu0 %v2134, 28
        %v2357 = vpop.permute.xlu0 %2356
        %2358 = vrot.lane.b32.xlu0 %v2135, 28
        %v2359 = vpop.permute.xlu0 %2358
        %2376 = vrot.lane.b32.xlu0 %v2136, 32
        %v2377 = vpop.permute.xlu0 %2376
        %2378 = vrot.lane.b32.xlu0 %v2137, 32
        %v2379 = vpop.permute.xlu0 %2378
        %2380 = vrot.lane.b32.xlu0 %v2138, 32
        %v2381 = vpop.permute.xlu0 %2380
        %2382 = vrot.lane.b32.xlu0 %v2139, 32
        %v2383 = vpop.permute.xlu0 %2382
        %2384 = vrot.lane.b32.xlu0 %v2140, 32
        %v2385 = vpop.permute.xlu0 %2384
        %2386 = vrot.lane.b32.xlu0 %v2141, 32
        %v2387 = vpop.permute.xlu0 %2386
        %2388 = vrot.lane.b32.xlu0 %v2142, 32
        %v2389 = vpop.permute.xlu0 %2388
        %2390 = vrot.lane.b32.xlu0 %v2143, 32
        %v2391 = vpop.permute.xlu0 %2390
        %v2400 = vsel %vm1183, %v2070, %v2153
        %v2401 = vsel %vm1183, %v2071, %v2155
        %v2402 = vsel %vm1183, %v2072, %v2157
        %v2403 = vsel %vm1183, %v2073, %v2159
        %v2404 = vsel %vm1183, %v2074, %v2161
        %v2405 = vsel %vm1183, %v2075, %v2163
        %v2406 = vsel %vm1183, %v2076, %v2165
        %v2407 = vsel %vm1183, %v2077, %v2167
        %v2408 = vsel %vm1192, %v2400, %v2185
        %v2409 = vsel %vm1192, %v2401, %v2187
        %v2410 = vsel %vm1192, %v2402, %v2189
        %v2411 = vsel %vm1192, %v2403, %v2191
        %v2412 = vsel %vm1192, %v2404, %v2193
        %v2413 = vsel %vm1192, %v2405, %v2195
        %v2414 = vsel %vm1192, %v2406, %v2197
        %v2415 = vsel %vm1192, %v2407, %v2199
        %v2416 = vsel %vm1201, %v2408, %v2217
        %v2417 = vsel %vm1201, %v2409, %v2219
        %v2418 = vsel %vm1201, %v2410, %v2221
        %v2419 = vsel %vm1201, %v2411, %v2223
        %v2420 = vsel %vm1201, %v2412, %v2225
        %v2421 = vsel %vm1201, %v2413, %v2227
        %v2422 = vsel %vm1201, %v2414, %v2229
        %v2423 = vsel %vm1201, %v2415, %v2231
        %v2424 = vsel %vm1210, %v2416, %v2249
        %v2425 = vsel %vm1210, %v2417, %v2251
        %v2426 = vsel %vm1210, %v2418, %v2253
        %v2427 = vsel %vm1210, %v2419, %v2255
        %v2428 = vsel %vm1210, %v2420, %v2257
        %v2429 = vsel %vm1210, %v2421, %v2259
        %v2430 = vsel %vm1210, %v2422, %v2261
        %v2431 = vsel %vm1210, %v2423, %v2263
        %v2432 = vsel %vm1219, %v2424, %v2281
        %v2433 = vsel %vm1219, %v2425, %v2283
        %v2434 = vsel %vm1219, %v2426, %v2285
        %v2435 = vsel %vm1219, %v2427, %v2287
        %v2436 = vsel %vm1219, %v2428, %v2289
        %v2437 = vsel %vm1219, %v2429, %v2291
        %v2438 = vsel %vm1219, %v2430, %v2293
        %v2439 = vsel %vm1219, %v2431, %v2295
        %v2440 = vsel %vm1228, %v2432, %v2313
        %v2441 = vsel %vm1228, %v2433, %v2315
        %v2442 = vsel %vm1228, %v2434, %v2317
        %v2443 = vsel %vm1228, %v2435, %v2319
        %v2444 = vsel %vm1228, %v2436, %v2321
        %v2445 = vsel %vm1228, %v2437, %v2323
        %v2446 = vsel %vm1228, %v2438, %v2325
        %v2447 = vsel %vm1228, %v2439, %v2327
        %v2448 = vsel %vm1237, %v2440, %v2345
        %v2449 = vsel %vm1237, %v2441, %v2347
        %v2450 = vsel %vm1237, %v2442, %v2349
        %v2451 = vsel %vm1237, %v2443, %v2351
        %v2452 = vsel %vm1237, %v2444, %v2353
        %v2453 = vsel %vm1237, %v2445, %v2355
        %v2454 = vsel %vm1237, %v2446, %v2357
        %v2455 = vsel %vm1237, %v2447, %v2359
        %v2456 = vsel %vm1246, %v2448, %v2377
        %v2457 = vsel %vm1246, %v2449, %v2379
        %v2458 = vsel %vm1246, %v2450, %v2381
        %v2459 = vsel %vm1246, %v2451, %v2383
        %v2460 = vsel %vm1246, %v2452, %v2385
        %v2461 = vsel %vm1246, %v2453, %v2387
        %v2462 = vsel %vm1246, %v2454, %v2389
        %v2463 = vsel %vm1246, %v2455, %v2391
        %s2464 = scalar_lea.vmem [#allocation2], 192
        %2465 = vst.msk [vmem:[%s2464] sm:$0xff] %vm1255, %v2456
        %2466 = vst.msk [vmem:[%s2464 + $0x8] sm:$0xff] %vm1255, %v2457
        %2467 = vst.msk [vmem:[%s2464 + $0x10] sm:$0xff] %vm1255, %v2458
        %2468 = vst.msk [vmem:[%s2464 + $0x18] sm:$0xff] %vm1255, %v2459
        %2469 = vst.msk [vmem:[%s2464 + $0x20] sm:$0xff] %vm1255, %v2460
        %2470 = vst.msk [vmem:[%s2464 + $0x28] sm:$0xff] %vm1255, %v2461
        %2471 = vst.msk [vmem:[%s2464 + $0x30] sm:$0xff] %vm1255, %v2462
        %2472 = vst.msk [vmem:[%s2464 + $0x38] sm:$0xff] %vm1255, %v2463
        %v2473 = vld [vmem:[%s784] sm:$0xff]
        %v2474 = vld [vmem:[%s784 + $0x10] sm:$0xff]
        %v2475 = vld [vmem:[%s784 + $0x20] sm:$0xff]
        %v2476 = vld [vmem:[%s784 + $0x30] sm:$0xff]
        %v2477 = vld [vmem:[%s784 + $0x40] sm:$0xff]
        %v2478 = vld [vmem:[%s784 + $0x50] sm:$0xff]
        %v2479 = vld [vmem:[%s784 + $0x60] sm:$0xff]
        %v2480 = vld [vmem:[%s784 + $0x70] sm:$0xff]
        %v2481 = vld [vmem:[%s784 + $0x1] sm:$0xff]
        %v2482 = vld [vmem:[%s784 + $0x11] sm:$0xff]
        %v2483 = vld [vmem:[%s784 + $0x21] sm:$0xff]
        %v2484 = vld [vmem:[%s784 + $0x31] sm:$0xff]
        %v2485 = vld [vmem:[%s784 + $0x41] sm:$0xff]
        %v2486 = vld [vmem:[%s784 + $0x51] sm:$0xff]
        %v2487 = vld [vmem:[%s784 + $0x61] sm:$0xff]
        %v2488 = vld [vmem:[%s784 + $0x71] sm:$0xff]
        %v2489 = vld [vmem:[%s784 + $0x2] sm:$0xff]
        %v2490 = vld [vmem:[%s784 + $0x12] sm:$0xff]
        %v2491 = vld [vmem:[%s784 + $0x22] sm:$0xff]
        %v2492 = vld [vmem:[%s784 + $0x32] sm:$0xff]
        %v2493 = vld [vmem:[%s784 + $0x42] sm:$0xff]
        %v2494 = vld [vmem:[%s784 + $0x52] sm:$0xff]
        %v2495 = vld [vmem:[%s784 + $0x62] sm:$0xff]
        %v2496 = vld [vmem:[%s784 + $0x72] sm:$0xff]
        %s2497 = scalar_lea.vmem %s784, 16
        %v2498 = vld [vmem:[%s2497] sm:$0xff]
        %v2499 = vld [vmem:[%s2497 + $0x10] sm:$0xff]
        %v2500 = vld [vmem:[%s2497 + $0x20] sm:$0xff]
        %v2501 = vld [vmem:[%s2497 + $0x30] sm:$0xff]
        %v2502 = vld [vmem:[%s2497 + $0x40] sm:$0xff]
        %v2503 = vld [vmem:[%s2497 + $0x50] sm:$0xff]
        %v2504 = vld [vmem:[%s2497 + $0x60] sm:$0xff]
        %v2505 = vld [vmem:[%s2497 + $0x70] sm:$0xff]
        %v2506 = vld [vmem:[%s2497 + $0x1] sm:$0xff]
        %v2507 = vld [vmem:[%s2497 + $0x11] sm:$0xff]
        %v2508 = vld [vmem:[%s2497 + $0x21] sm:$0xff]
        %v2509 = vld [vmem:[%s2497 + $0x31] sm:$0xff]
        %v2510 = vld [vmem:[%s2497 + $0x41] sm:$0xff]
        %v2511 = vld [vmem:[%s2497 + $0x51] sm:$0xff]
        %v2512 = vld [vmem:[%s2497 + $0x61] sm:$0xff]
        %v2513 = vld [vmem:[%s2497 + $0x71] sm:$0xff]
        %v2514 = vld [vmem:[%s2497 + $0x2] sm:$0xff]
        %v2515 = vld [vmem:[%s2497 + $0x12] sm:$0xff]
        %v2516 = vld [vmem:[%s2497 + $0x22] sm:$0xff]
        %v2517 = vld [vmem:[%s2497 + $0x32] sm:$0xff]
        %v2518 = vld [vmem:[%s2497 + $0x42] sm:$0xff]
        %v2519 = vld [vmem:[%s2497 + $0x52] sm:$0xff]
        %v2520 = vld [vmem:[%s2497 + $0x62] sm:$0xff]
        %v2521 = vld [vmem:[%s2497 + $0x72] sm:$0xff]
        %s2522 = scalar_lea.vmem %s784, 32
        %v2523 = vld [vmem:[%s2522] sm:$0xff]
        %v2524 = vld [vmem:[%s2522 + $0x10] sm:$0xff]
        %v2525 = vld [vmem:[%s2522 + $0x20] sm:$0xff]
        %v2526 = vld [vmem:[%s2522 + $0x30] sm:$0xff]
        %v2527 = vld [vmem:[%s2522 + $0x40] sm:$0xff]
        %v2528 = vld [vmem:[%s2522 + $0x50] sm:$0xff]
        %v2529 = vld [vmem:[%s2522 + $0x60] sm:$0xff]
        %v2530 = vld [vmem:[%s2522 + $0x70] sm:$0xff]
        %v2531 = vld [vmem:[%s2522 + $0x1] sm:$0xff]
        %v2532 = vld [vmem:[%s2522 + $0x11] sm:$0xff]
        %v2533 = vld [vmem:[%s2522 + $0x21] sm:$0xff]
        %v2534 = vld [vmem:[%s2522 + $0x31] sm:$0xff]
        %v2535 = vld [vmem:[%s2522 + $0x41] sm:$0xff]
        %v2536 = vld [vmem:[%s2522 + $0x51] sm:$0xff]
        %v2537 = vld [vmem:[%s2522 + $0x61] sm:$0xff]
        %v2538 = vld [vmem:[%s2522 + $0x71] sm:$0xff]
        %v2539 = vld [vmem:[%s2522 + $0x2] sm:$0xff]
        %v2540 = vld [vmem:[%s2522 + $0x12] sm:$0xff]
        %v2541 = vld [vmem:[%s2522 + $0x22] sm:$0xff]
        %v2542 = vld [vmem:[%s2522 + $0x32] sm:$0xff]
        %v2543 = vld [vmem:[%s2522 + $0x42] sm:$0xff]
        %v2544 = vld [vmem:[%s2522 + $0x52] sm:$0xff]
        %v2545 = vld [vmem:[%s2522 + $0x62] sm:$0xff]
        %v2546 = vld [vmem:[%s2522 + $0x72] sm:$0xff]
        %2555 = vrot.lane.b32.xlu0 %v2481, 4
        %v2556 = vpop.permute.xlu0 %2555
        %2557 = vrot.lane.b32.xlu0 %v2482, 4
        %v2558 = vpop.permute.xlu0 %2557
        %2559 = vrot.lane.b32.xlu0 %v2483, 4
        %v2560 = vpop.permute.xlu0 %2559
        %2561 = vrot.lane.b32.xlu0 %v2484, 4
        %v2562 = vpop.permute.xlu0 %2561
        %2563 = vrot.lane.b32.xlu0 %v2485, 4
        %v2564 = vpop.permute.xlu0 %2563
        %2565 = vrot.lane.b32.xlu0 %v2486, 4
        %v2566 = vpop.permute.xlu0 %2565
        %2567 = vrot.lane.b32.xlu0 %v2487, 4
        %v2568 = vpop.permute.xlu0 %2567
        %2569 = vrot.lane.b32.xlu0 %v2488, 4
        %v2570 = vpop.permute.xlu0 %2569
        %2587 = vrot.lane.b32.xlu0 %v2489, 8
        %v2588 = vpop.permute.xlu0 %2587
        %2589 = vrot.lane.b32.xlu0 %v2490, 8
        %v2590 = vpop.permute.xlu0 %2589
        %2591 = vrot.lane.b32.xlu0 %v2491, 8
        %v2592 = vpop.permute.xlu0 %2591
        %2593 = vrot.lane.b32.xlu0 %v2492, 8
        %v2594 = vpop.permute.xlu0 %2593
        %2595 = vrot.lane.b32.xlu0 %v2493, 8
        %v2596 = vpop.permute.xlu0 %2595
        %2597 = vrot.lane.b32.xlu0 %v2494, 8
        %v2598 = vpop.permute.xlu0 %2597
        %2599 = vrot.lane.b32.xlu0 %v2495, 8
        %v2600 = vpop.permute.xlu0 %2599
        %2601 = vrot.lane.b32.xlu0 %v2496, 8
        %v2602 = vpop.permute.xlu0 %2601
        %2619 = vrot.lane.b32.xlu0 %v2498, 12
        %v2620 = vpop.permute.xlu0 %2619
        %2621 = vrot.lane.b32.xlu0 %v2499, 12
        %v2622 = vpop.permute.xlu0 %2621
        %2623 = vrot.lane.b32.xlu0 %v2500, 12
        %v2624 = vpop.permute.xlu0 %2623
        %2625 = vrot.lane.b32.xlu0 %v2501, 12
        %v2626 = vpop.permute.xlu0 %2625
        %2627 = vrot.lane.b32.xlu0 %v2502, 12
        %v2628 = vpop.permute.xlu0 %2627
        %2629 = vrot.lane.b32.xlu0 %v2503, 12
        %v2630 = vpop.permute.xlu0 %2629
        %2631 = vrot.lane.b32.xlu0 %v2504, 12
        %v2632 = vpop.permute.xlu0 %2631
        %2633 = vrot.lane.b32.xlu0 %v2505, 12
        %v2634 = vpop.permute.xlu0 %2633
        %2651 = vrot.lane.b32.xlu0 %v2506, 16
        %v2652 = vpop.permute.xlu0 %2651
        %2653 = vrot.lane.b32.xlu0 %v2507, 16
        %v2654 = vpop.permute.xlu0 %2653
        %2655 = vrot.lane.b32.xlu0 %v2508, 16
        %v2656 = vpop.permute.xlu0 %2655
        %2657 = vrot.lane.b32.xlu0 %v2509, 16
        %v2658 = vpop.permute.xlu0 %2657
        %2659 = vrot.lane.b32.xlu0 %v2510, 16
        %v2660 = vpop.permute.xlu0 %2659
        %2661 = vrot.lane.b32.xlu0 %v2511, 16
        %v2662 = vpop.permute.xlu0 %2661
        %2663 = vrot.lane.b32.xlu0 %v2512, 16
        %v2664 = vpop.permute.xlu0 %2663
        %2665 = vrot.lane.b32.xlu0 %v2513, 16
        %v2666 = vpop.permute.xlu0 %2665
        %2683 = vrot.lane.b32.xlu0 %v2514, 20
        %v2684 = vpop.permute.xlu0 %2683
        %2685 = vrot.lane.b32.xlu0 %v2515, 20
        %v2686 = vpop.permute.xlu0 %2685
        %2687 = vrot.lane.b32.xlu0 %v2516, 20
        %v2688 = vpop.permute.xlu0 %2687
        %2689 = vrot.lane.b32.xlu0 %v2517, 20
        %v2690 = vpop.permute.xlu0 %2689
        %2691 = vrot.lane.b32.xlu0 %v2518, 20
        %v2692 = vpop.permute.xlu0 %2691
        %2693 = vrot.lane.b32.xlu0 %v2519, 20
        %v2694 = vpop.permute.xlu0 %2693
        %2695 = vrot.lane.b32.xlu0 %v2520, 20
        %v2696 = vpop.permute.xlu0 %2695
        %2697 = vrot.lane.b32.xlu0 %v2521, 20
        %v2698 = vpop.permute.xlu0 %2697
        %2715 = vrot.lane.b32.xlu0 %v2523, 24
        %v2716 = vpop.permute.xlu0 %2715
        %2717 = vrot.lane.b32.xlu0 %v2524, 24
        %v2718 = vpop.permute.xlu0 %2717
        %2719 = vrot.lane.b32.xlu0 %v2525, 24
        %v2720 = vpop.permute.xlu0 %2719
        %2721 = vrot.lane.b32.xlu0 %v2526, 24
        %v2722 = vpop.permute.xlu0 %2721
        %2723 = vrot.lane.b32.xlu0 %v2527, 24
        %v2724 = vpop.permute.xlu0 %2723
        %2725 = vrot.lane.b32.xlu0 %v2528, 24
        %v2726 = vpop.permute.xlu0 %2725
        %2727 = vrot.lane.b32.xlu0 %v2529, 24
        %v2728 = vpop.permute.xlu0 %2727
        %2729 = vrot.lane.b32.xlu0 %v2530, 24
        %v2730 = vpop.permute.xlu0 %2729
        %2747 = vrot.lane.b32.xlu0 %v2531, 28
        %v2748 = vpop.permute.xlu0 %2747
        %2749 = vrot.lane.b32.xlu0 %v2532, 28
        %v2750 = vpop.permute.xlu0 %2749
        %2751 = vrot.lane.b32.xlu0 %v2533, 28
        %v2752 = vpop.permute.xlu0 %2751
        %2753 = vrot.lane.b32.xlu0 %v2534, 28
        %v2754 = vpop.permute.xlu0 %2753
        %2755 = vrot.lane.b32.xlu0 %v2535, 28
        %v2756 = vpop.permute.xlu0 %2755
        %2757 = vrot.lane.b32.xlu0 %v2536, 28
        %v2758 = vpop.permute.xlu0 %2757
        %2759 = vrot.lane.b32.xlu0 %v2537, 28
        %v2760 = vpop.permute.xlu0 %2759
        %2761 = vrot.lane.b32.xlu0 %v2538, 28
        %v2762 = vpop.permute.xlu0 %2761
        %2779 = vrot.lane.b32.xlu0 %v2539, 32
        %v2780 = vpop.permute.xlu0 %2779
        %2781 = vrot.lane.b32.xlu0 %v2540, 32
        %v2782 = vpop.permute.xlu0 %2781
        %2783 = vrot.lane.b32.xlu0 %v2541, 32
        %v2784 = vpop.permute.xlu0 %2783
        %2785 = vrot.lane.b32.xlu0 %v2542, 32
        %v2786 = vpop.permute.xlu0 %2785
        %2787 = vrot.lane.b32.xlu0 %v2543, 32
        %v2788 = vpop.permute.xlu0 %2787
        %2789 = vrot.lane.b32.xlu0 %v2544, 32
        %v2790 = vpop.permute.xlu0 %2789
        %2791 = vrot.lane.b32.xlu0 %v2545, 32
        %v2792 = vpop.permute.xlu0 %2791
        %2793 = vrot.lane.b32.xlu0 %v2546, 32
        %v2794 = vpop.permute.xlu0 %2793
        %v2803 = vsel %vm1183, %v2473, %v2556
        %v2804 = vsel %vm1183, %v2474, %v2558
        %v2805 = vsel %vm1183, %v2475, %v2560
        %v2806 = vsel %vm1183, %v2476, %v2562
        %v2807 = vsel %vm1183, %v2477, %v2564
        %v2808 = vsel %vm1183, %v2478, %v2566
        %v2809 = vsel %vm1183, %v2479, %v2568
        %v2810 = vsel %vm1183, %v2480, %v2570
        %v2811 = vsel %vm1192, %v2803, %v2588
        %v2812 = vsel %vm1192, %v2804, %v2590
        %v2813 = vsel %vm1192, %v2805, %v2592
        %v2814 = vsel %vm1192, %v2806, %v2594
        %v2815 = vsel %vm1192, %v2807, %v2596
        %v2816 = vsel %vm1192, %v2808, %v2598
        %v2817 = vsel %vm1192, %v2809, %v2600
        %v2818 = vsel %vm1192, %v2810, %v2602
        %v2819 = vsel %vm1201, %v2811, %v2620
        %v2820 = vsel %vm1201, %v2812, %v2622
        %v2821 = vsel %vm1201, %v2813, %v2624
        %v2822 = vsel %vm1201, %v2814, %v2626
        %v2823 = vsel %vm1201, %v2815, %v2628
        %v2824 = vsel %vm1201, %v2816, %v2630
        %v2825 = vsel %vm1201, %v2817, %v2632
        %v2826 = vsel %vm1201, %v2818, %v2634
        %v2827 = vsel %vm1210, %v2819, %v2652
        %v2828 = vsel %vm1210, %v2820, %v2654
        %v2829 = vsel %vm1210, %v2821, %v2656
        %v2830 = vsel %vm1210, %v2822, %v2658
        %v2831 = vsel %vm1210, %v2823, %v2660
        %v2832 = vsel %vm1210, %v2824, %v2662
        %v2833 = vsel %vm1210, %v2825, %v2664
        %v2834 = vsel %vm1210, %v2826, %v2666
        %v2835 = vsel %vm1219, %v2827, %v2684
        %v2836 = vsel %vm1219, %v2828, %v2686
        %v2837 = vsel %vm1219, %v2829, %v2688
        %v2838 = vsel %vm1219, %v2830, %v2690
        %v2839 = vsel %vm1219, %v2831, %v2692
        %v2840 = vsel %vm1219, %v2832, %v2694
        %v2841 = vsel %vm1219, %v2833, %v2696
        %v2842 = vsel %vm1219, %v2834, %v2698
        %v2843 = vsel %vm1228, %v2835, %v2716
        %v2844 = vsel %vm1228, %v2836, %v2718
        %v2845 = vsel %vm1228, %v2837, %v2720
        %v2846 = vsel %vm1228, %v2838, %v2722
        %v2847 = vsel %vm1228, %v2839, %v2724
        %v2848 = vsel %vm1228, %v2840, %v2726
        %v2849 = vsel %vm1228, %v2841, %v2728
        %v2850 = vsel %vm1228, %v2842, %v2730
        %v2851 = vsel %vm1237, %v2843, %v2748
        %v2852 = vsel %vm1237, %v2844, %v2750
        %v2853 = vsel %vm1237, %v2845, %v2752
        %v2854 = vsel %vm1237, %v2846, %v2754
        %v2855 = vsel %vm1237, %v2847, %v2756
        %v2856 = vsel %vm1237, %v2848, %v2758
        %v2857 = vsel %vm1237, %v2849, %v2760
        %v2858 = vsel %vm1237, %v2850, %v2762
        %v2859 = vsel %vm1246, %v2851, %v2780
        %v2860 = vsel %vm1246, %v2852, %v2782
        %v2861 = vsel %vm1246, %v2853, %v2784
        %v2862 = vsel %vm1246, %v2854, %v2786
        %v2863 = vsel %vm1246, %v2855, %v2788
        %v2864 = vsel %vm1246, %v2856, %v2790
        %v2865 = vsel %vm1246, %v2857, %v2792
        %v2866 = vsel %vm1246, %v2858, %v2794
        %s2867 = scalar_lea.vmem [#allocation2], 256
        %2868 = vst.msk [vmem:[%s2867] sm:$0xff] %vm1255, %v2859
        %2869 = vst.msk [vmem:[%s2867 + $0x8] sm:$0xff] %vm1255, %v2860
        %2870 = vst.msk [vmem:[%s2867 + $0x10] sm:$0xff] %vm1255, %v2861
        %2871 = vst.msk [vmem:[%s2867 + $0x18] sm:$0xff] %vm1255, %v2862
        %2872 = vst.msk [vmem:[%s2867 + $0x20] sm:$0xff] %vm1255, %v2863
        %2873 = vst.msk [vmem:[%s2867 + $0x28] sm:$0xff] %vm1255, %v2864
        %2874 = vst.msk [vmem:[%s2867 + $0x30] sm:$0xff] %vm1255, %v2865
        %2875 = vst.msk [vmem:[%s2867 + $0x38] sm:$0xff] %vm1255, %v2866
        %v2876 = vld [vmem:[%s797] sm:$0xff]
        %v2877 = vld [vmem:[%s797 + $0x10] sm:$0xff]
        %v2878 = vld [vmem:[%s797 + $0x20] sm:$0xff]
        %v2879 = vld [vmem:[%s797 + $0x30] sm:$0xff]
        %v2880 = vld [vmem:[%s797 + $0x40] sm:$0xff]
        %v2881 = vld [vmem:[%s797 + $0x50] sm:$0xff]
        %v2882 = vld [vmem:[%s797 + $0x60] sm:$0xff]
        %v2883 = vld [vmem:[%s797 + $0x70] sm:$0xff]
        %v2884 = vld [vmem:[%s797 + $0x1] sm:$0xff]
        %v2885 = vld [vmem:[%s797 + $0x11] sm:$0xff]
        %v2886 = vld [vmem:[%s797 + $0x21] sm:$0xff]
        %v2887 = vld [vmem:[%s797 + $0x31] sm:$0xff]
        %v2888 = vld [vmem:[%s797 + $0x41] sm:$0xff]
        %v2889 = vld [vmem:[%s797 + $0x51] sm:$0xff]
        %v2890 = vld [vmem:[%s797 + $0x61] sm:$0xff]
        %v2891 = vld [vmem:[%s797 + $0x71] sm:$0xff]
        %v2892 = vld [vmem:[%s797 + $0x2] sm:$0xff]
        %v2893 = vld [vmem:[%s797 + $0x12] sm:$0xff]
        %v2894 = vld [vmem:[%s797 + $0x22] sm:$0xff]
        %v2895 = vld [vmem:[%s797 + $0x32] sm:$0xff]
        %v2896 = vld [vmem:[%s797 + $0x42] sm:$0xff]
        %v2897 = vld [vmem:[%s797 + $0x52] sm:$0xff]
        %v2898 = vld [vmem:[%s797 + $0x62] sm:$0xff]
        %v2899 = vld [vmem:[%s797 + $0x72] sm:$0xff]
        %s2900 = scalar_lea.vmem %s797, 16
        %v2901 = vld [vmem:[%s2900] sm:$0xff]
        %v2902 = vld [vmem:[%s2900 + $0x10] sm:$0xff]
        %v2903 = vld [vmem:[%s2900 + $0x20] sm:$0xff]
        %v2904 = vld [vmem:[%s2900 + $0x30] sm:$0xff]
        %v2905 = vld [vmem:[%s2900 + $0x40] sm:$0xff]
        %v2906 = vld [vmem:[%s2900 + $0x50] sm:$0xff]
        %v2907 = vld [vmem:[%s2900 + $0x60] sm:$0xff]
        %v2908 = vld [vmem:[%s2900 + $0x70] sm:$0xff]
        %v2909 = vld [vmem:[%s2900 + $0x1] sm:$0xff]
        %v2910 = vld [vmem:[%s2900 + $0x11] sm:$0xff]
        %v2911 = vld [vmem:[%s2900 + $0x21] sm:$0xff]
        %v2912 = vld [vmem:[%s2900 + $0x31] sm:$0xff]
        %v2913 = vld [vmem:[%s2900 + $0x41] sm:$0xff]
        %v2914 = vld [vmem:[%s2900 + $0x51] sm:$0xff]
        %v2915 = vld [vmem:[%s2900 + $0x61] sm:$0xff]
        %v2916 = vld [vmem:[%s2900 + $0x71] sm:$0xff]
        %v2917 = vld [vmem:[%s2900 + $0x2] sm:$0xff]
        %v2918 = vld [vmem:[%s2900 + $0x12] sm:$0xff]
        %v2919 = vld [vmem:[%s2900 + $0x22] sm:$0xff]
        %v2920 = vld [vmem:[%s2900 + $0x32] sm:$0xff]
        %v2921 = vld [vmem:[%s2900 + $0x42] sm:$0xff]
        %v2922 = vld [vmem:[%s2900 + $0x52] sm:$0xff]
        %v2923 = vld [vmem:[%s2900 + $0x62] sm:$0xff]
        %v2924 = vld [vmem:[%s2900 + $0x72] sm:$0xff]
        %s2925 = scalar_lea.vmem %s797, 32
        %v2926 = vld [vmem:[%s2925] sm:$0xff]
        %v2927 = vld [vmem:[%s2925 + $0x10] sm:$0xff]
        %v2928 = vld [vmem:[%s2925 + $0x20] sm:$0xff]
        %v2929 = vld [vmem:[%s2925 + $0x30] sm:$0xff]
        %v2930 = vld [vmem:[%s2925 + $0x40] sm:$0xff]
        %v2931 = vld [vmem:[%s2925 + $0x50] sm:$0xff]
        %v2932 = vld [vmem:[%s2925 + $0x60] sm:$0xff]
        %v2933 = vld [vmem:[%s2925 + $0x70] sm:$0xff]
        %v2934 = vld [vmem:[%s2925 + $0x1] sm:$0xff]
        %v2935 = vld [vmem:[%s2925 + $0x11] sm:$0xff]
        %v2936 = vld [vmem:[%s2925 + $0x21] sm:$0xff]
        %v2937 = vld [vmem:[%s2925 + $0x31] sm:$0xff]
        %v2938 = vld [vmem:[%s2925 + $0x41] sm:$0xff]
        %v2939 = vld [vmem:[%s2925 + $0x51] sm:$0xff]
        %v2940 = vld [vmem:[%s2925 + $0x61] sm:$0xff]
        %v2941 = vld [vmem:[%s2925 + $0x71] sm:$0xff]
        %v2942 = vld [vmem:[%s2925 + $0x2] sm:$0xff]
        %v2943 = vld [vmem:[%s2925 + $0x12] sm:$0xff]
        %v2944 = vld [vmem:[%s2925 + $0x22] sm:$0xff]
        %v2945 = vld [vmem:[%s2925 + $0x32] sm:$0xff]
        %v2946 = vld [vmem:[%s2925 + $0x42] sm:$0xff]
        %v2947 = vld [vmem:[%s2925 + $0x52] sm:$0xff]
        %v2948 = vld [vmem:[%s2925 + $0x62] sm:$0xff]
        %v2949 = vld [vmem:[%s2925 + $0x72] sm:$0xff]
        %2958 = vrot.lane.b32.xlu0 %v2884, 4
        %v2959 = vpop.permute.xlu0 %2958
        %2960 = vrot.lane.b32.xlu0 %v2885, 4
        %v2961 = vpop.permute.xlu0 %2960
        %2962 = vrot.lane.b32.xlu0 %v2886, 4
        %v2963 = vpop.permute.xlu0 %2962
        %2964 = vrot.lane.b32.xlu0 %v2887, 4
        %v2965 = vpop.permute.xlu0 %2964
        %2966 = vrot.lane.b32.xlu0 %v2888, 4
        %v2967 = vpop.permute.xlu0 %2966
        %2968 = vrot.lane.b32.xlu0 %v2889, 4
        %v2969 = vpop.permute.xlu0 %2968
        %2970 = vrot.lane.b32.xlu0 %v2890, 4
        %v2971 = vpop.permute.xlu0 %2970
        %2972 = vrot.lane.b32.xlu0 %v2891, 4
        %v2973 = vpop.permute.xlu0 %2972
        %2990 = vrot.lane.b32.xlu0 %v2892, 8
        %v2991 = vpop.permute.xlu0 %2990
        %2992 = vrot.lane.b32.xlu0 %v2893, 8
        %v2993 = vpop.permute.xlu0 %2992
        %2994 = vrot.lane.b32.xlu0 %v2894, 8
        %v2995 = vpop.permute.xlu0 %2994
        %2996 = vrot.lane.b32.xlu0 %v2895, 8
        %v2997 = vpop.permute.xlu0 %2996
        %2998 = vrot.lane.b32.xlu0 %v2896, 8
        %v2999 = vpop.permute.xlu0 %2998
        %3000 = vrot.lane.b32.xlu0 %v2897, 8
        %v3001 = vpop.permute.xlu0 %3000
        %3002 = vrot.lane.b32.xlu0 %v2898, 8
        %v3003 = vpop.permute.xlu0 %3002
        %3004 = vrot.lane.b32.xlu0 %v2899, 8
        %v3005 = vpop.permute.xlu0 %3004
        %3022 = vrot.lane.b32.xlu0 %v2901, 12
        %v3023 = vpop.permute.xlu0 %3022
        %3024 = vrot.lane.b32.xlu0 %v2902, 12
        %v3025 = vpop.permute.xlu0 %3024
        %3026 = vrot.lane.b32.xlu0 %v2903, 12
        %v3027 = vpop.permute.xlu0 %3026
        %3028 = vrot.lane.b32.xlu0 %v2904, 12
        %v3029 = vpop.permute.xlu0 %3028
        %3030 = vrot.lane.b32.xlu0 %v2905, 12
        %v3031 = vpop.permute.xlu0 %3030
        %3032 = vrot.lane.b32.xlu0 %v2906, 12
        %v3033 = vpop.permute.xlu0 %3032
        %3034 = vrot.lane.b32.xlu0 %v2907, 12
        %v3035 = vpop.permute.xlu0 %3034
        %3036 = vrot.lane.b32.xlu0 %v2908, 12
        %v3037 = vpop.permute.xlu0 %3036
        %3054 = vrot.lane.b32.xlu0 %v2909, 16
        %v3055 = vpop.permute.xlu0 %3054
        %3056 = vrot.lane.b32.xlu0 %v2910, 16
        %v3057 = vpop.permute.xlu0 %3056
        %3058 = vrot.lane.b32.xlu0 %v2911, 16
        %v3059 = vpop.permute.xlu0 %3058
        %3060 = vrot.lane.b32.xlu0 %v2912, 16
        %v3061 = vpop.permute.xlu0 %3060
        %3062 = vrot.lane.b32.xlu0 %v2913, 16
        %v3063 = vpop.permute.xlu0 %3062
        %3064 = vrot.lane.b32.xlu0 %v2914, 16
        %v3065 = vpop.permute.xlu0 %3064
        %3066 = vrot.lane.b32.xlu0 %v2915, 16
        %v3067 = vpop.permute.xlu0 %3066
        %3068 = vrot.lane.b32.xlu0 %v2916, 16
        %v3069 = vpop.permute.xlu0 %3068
        %3086 = vrot.lane.b32.xlu0 %v2917, 20
        %v3087 = vpop.permute.xlu0 %3086
        %3088 = vrot.lane.b32.xlu0 %v2918, 20
        %v3089 = vpop.permute.xlu0 %3088
        %3090 = vrot.lane.b32.xlu0 %v2919, 20
        %v3091 = vpop.permute.xlu0 %3090
        %3092 = vrot.lane.b32.xlu0 %v2920, 20
        %v3093 = vpop.permute.xlu0 %3092
        %3094 = vrot.lane.b32.xlu0 %v2921, 20
        %v3095 = vpop.permute.xlu0 %3094
        %3096 = vrot.lane.b32.xlu0 %v2922, 20
        %v3097 = vpop.permute.xlu0 %3096
        %3098 = vrot.lane.b32.xlu0 %v2923, 20
        %v3099 = vpop.permute.xlu0 %3098
        %3100 = vrot.lane.b32.xlu0 %v2924, 20
        %v3101 = vpop.permute.xlu0 %3100
        %3118 = vrot.lane.b32.xlu0 %v2926, 24
        %v3119 = vpop.permute.xlu0 %3118
        %3120 = vrot.lane.b32.xlu0 %v2927, 24
        %v3121 = vpop.permute.xlu0 %3120
        %3122 = vrot.lane.b32.xlu0 %v2928, 24
        %v3123 = vpop.permute.xlu0 %3122
        %3124 = vrot.lane.b32.xlu0 %v2929, 24
        %v3125 = vpop.permute.xlu0 %3124
        %3126 = vrot.lane.b32.xlu0 %v2930, 24
        %v3127 = vpop.permute.xlu0 %3126
        %3128 = vrot.lane.b32.xlu0 %v2931, 24
        %v3129 = vpop.permute.xlu0 %3128
        %3130 = vrot.lane.b32.xlu0 %v2932, 24
        %v3131 = vpop.permute.xlu0 %3130
        %3132 = vrot.lane.b32.xlu0 %v2933, 24
        %v3133 = vpop.permute.xlu0 %3132
        %3150 = vrot.lane.b32.xlu0 %v2934, 28
        %v3151 = vpop.permute.xlu0 %3150
        %3152 = vrot.lane.b32.xlu0 %v2935, 28
        %v3153 = vpop.permute.xlu0 %3152
        %3154 = vrot.lane.b32.xlu0 %v2936, 28
        %v3155 = vpop.permute.xlu0 %3154
        %3156 = vrot.lane.b32.xlu0 %v2937, 28
        %v3157 = vpop.permute.xlu0 %3156
        %3158 = vrot.lane.b32.xlu0 %v2938, 28
        %v3159 = vpop.permute.xlu0 %3158
        %3160 = vrot.lane.b32.xlu0 %v2939, 28
        %v3161 = vpop.permute.xlu0 %3160
        %3162 = vrot.lane.b32.xlu0 %v2940, 28
        %v3163 = vpop.permute.xlu0 %3162
        %3164 = vrot.lane.b32.xlu0 %v2941, 28
        %v3165 = vpop.permute.xlu0 %3164
        %3182 = vrot.lane.b32.xlu0 %v2942, 32
        %v3183 = vpop.permute.xlu0 %3182
        %3184 = vrot.lane.b32.xlu0 %v2943, 32
        %v3185 = vpop.permute.xlu0 %3184
        %3186 = vrot.lane.b32.xlu0 %v2944, 32
        %v3187 = vpop.permute.xlu0 %3186
        %3188 = vrot.lane.b32.xlu0 %v2945, 32
        %v3189 = vpop.permute.xlu0 %3188
        %3190 = vrot.lane.b32.xlu0 %v2946, 32
        %v3191 = vpop.permute.xlu0 %3190
        %3192 = vrot.lane.b32.xlu0 %v2947, 32
        %v3193 = vpop.permute.xlu0 %3192
        %3194 = vrot.lane.b32.xlu0 %v2948, 32
        %v3195 = vpop.permute.xlu0 %3194
        %3196 = vrot.lane.b32.xlu0 %v2949, 32
        %v3197 = vpop.permute.xlu0 %3196
        %v3206 = vsel %vm1183, %v2876, %v2959
        %v3207 = vsel %vm1183, %v2877, %v2961
        %v3208 = vsel %vm1183, %v2878, %v2963
        %v3209 = vsel %vm1183, %v2879, %v2965
        %v3210 = vsel %vm1183, %v2880, %v2967
        %v3211 = vsel %vm1183, %v2881, %v2969
        %v3212 = vsel %vm1183, %v2882, %v2971
        %v3213 = vsel %vm1183, %v2883, %v2973
        %v3214 = vsel %vm1192, %v3206, %v2991
        %v3215 = vsel %vm1192, %v3207, %v2993
        %v3216 = vsel %vm1192, %v3208, %v2995
        %v3217 = vsel %vm1192, %v3209, %v2997
        %v3218 = vsel %vm1192, %v3210, %v2999
        %v3219 = vsel %vm1192, %v3211, %v3001
        %v3220 = vsel %vm1192, %v3212, %v3003
        %v3221 = vsel %vm1192, %v3213, %v3005
        %v3222 = vsel %vm1201, %v3214, %v3023
        %v3223 = vsel %vm1201, %v3215, %v3025
        %v3224 = vsel %vm1201, %v3216, %v3027
        %v3225 = vsel %vm1201, %v3217, %v3029
        %v3226 = vsel %vm1201, %v3218, %v3031
        %v3227 = vsel %vm1201, %v3219, %v3033
        %v3228 = vsel %vm1201, %v3220, %v3035
        %v3229 = vsel %vm1201, %v3221, %v3037
        %v3230 = vsel %vm1210, %v3222, %v3055
        %v3231 = vsel %vm1210, %v3223, %v3057
        %v3232 = vsel %vm1210, %v3224, %v3059
        %v3233 = vsel %vm1210, %v3225, %v3061
        %v3234 = vsel %vm1210, %v3226, %v3063
        %v3235 = vsel %vm1210, %v3227, %v3065
        %v3236 = vsel %vm1210, %v3228, %v3067
        %v3237 = vsel %vm1210, %v3229, %v3069
        %v3238 = vsel %vm1219, %v3230, %v3087
        %v3239 = vsel %vm1219, %v3231, %v3089
        %v3240 = vsel %vm1219, %v3232, %v3091
        %v3241 = vsel %vm1219, %v3233, %v3093
        %v3242 = vsel %vm1219, %v3234, %v3095
        %v3243 = vsel %vm1219, %v3235, %v3097
        %v3244 = vsel %vm1219, %v3236, %v3099
        %v3245 = vsel %vm1219, %v3237, %v3101
        %v3246 = vsel %vm1228, %v3238, %v3119
        %v3247 = vsel %vm1228, %v3239, %v3121
        %v3248 = vsel %vm1228, %v3240, %v3123
        %v3249 = vsel %vm1228, %v3241, %v3125
        %v3250 = vsel %vm1228, %v3242, %v3127
        %v3251 = vsel %vm1228, %v3243, %v3129
        %v3252 = vsel %vm1228, %v3244, %v3131
        %v3253 = vsel %vm1228, %v3245, %v3133
        %v3254 = vsel %vm1237, %v3246, %v3151
        %v3255 = vsel %vm1237, %v3247, %v3153
        %v3256 = vsel %vm1237, %v3248, %v3155
        %v3257 = vsel %vm1237, %v3249, %v3157
        %v3258 = vsel %vm1237, %v3250, %v3159
        %v3259 = vsel %vm1237, %v3251, %v3161
        %v3260 = vsel %vm1237, %v3252, %v3163
        %v3261 = vsel %vm1237, %v3253, %v3165
        %v3262 = vsel %vm1246, %v3254, %v3183
        %v3263 = vsel %vm1246, %v3255, %v3185
        %v3264 = vsel %vm1246, %v3256, %v3187
        %v3265 = vsel %vm1246, %v3257, %v3189
        %v3266 = vsel %vm1246, %v3258, %v3191
        %v3267 = vsel %vm1246, %v3259, %v3193
        %v3268 = vsel %vm1246, %v3260, %v3195
        %v3269 = vsel %vm1246, %v3261, %v3197
        %s3270 = scalar_lea.vmem [#allocation2], 320
        %3271 = vst.msk [vmem:[%s3270] sm:$0xff] %vm1255, %v3262
        %3272 = vst.msk [vmem:[%s3270 + $0x8] sm:$0xff] %vm1255, %v3263
        %3273 = vst.msk [vmem:[%s3270 + $0x10] sm:$0xff] %vm1255, %v3264
        %3274 = vst.msk [vmem:[%s3270 + $0x18] sm:$0xff] %vm1255, %v3265
        %3275 = vst.msk [vmem:[%s3270 + $0x20] sm:$0xff] %vm1255, %v3266
        %3276 = vst.msk [vmem:[%s3270 + $0x28] sm:$0xff] %vm1255, %v3267
        %3277 = vst.msk [vmem:[%s3270 + $0x30] sm:$0xff] %vm1255, %v3268
        %3278 = vst.msk [vmem:[%s3270 + $0x38] sm:$0xff] %vm1255, %v3269
        %v3279 = vld [vmem:[%s810] sm:$0xff]
        %v3280 = vld [vmem:[%s810 + $0x10] sm:$0xff]
        %v3281 = vld [vmem:[%s810 + $0x20] sm:$0xff]
        %v3282 = vld [vmem:[%s810 + $0x30] sm:$0xff]
        %v3283 = vld [vmem:[%s810 + $0x40] sm:$0xff]
        %v3284 = vld [vmem:[%s810 + $0x50] sm:$0xff]
        %v3285 = vld [vmem:[%s810 + $0x60] sm:$0xff]
        %v3286 = vld [vmem:[%s810 + $0x70] sm:$0xff]
        %v3287 = vld [vmem:[%s810 + $0x1] sm:$0xff]
        %v3288 = vld [vmem:[%s810 + $0x11] sm:$0xff]
        %v3289 = vld [vmem:[%s810 + $0x21] sm:$0xff]
        %v3290 = vld [vmem:[%s810 + $0x31] sm:$0xff]
        %v3291 = vld [vmem:[%s810 + $0x41] sm:$0xff]
        %v3292 = vld [vmem:[%s810 + $0x51] sm:$0xff]
        %v3293 = vld [vmem:[%s810 + $0x61] sm:$0xff]
        %v3294 = vld [vmem:[%s810 + $0x71] sm:$0xff]
        %v3295 = vld [vmem:[%s810 + $0x2] sm:$0xff]
        %v3296 = vld [vmem:[%s810 + $0x12] sm:$0xff]
        %v3297 = vld [vmem:[%s810 + $0x22] sm:$0xff]
        %v3298 = vld [vmem:[%s810 + $0x32] sm:$0xff]
        %v3299 = vld [vmem:[%s810 + $0x42] sm:$0xff]
        %v3300 = vld [vmem:[%s810 + $0x52] sm:$0xff]
        %v3301 = vld [vmem:[%s810 + $0x62] sm:$0xff]
        %v3302 = vld [vmem:[%s810 + $0x72] sm:$0xff]
        %s3303 = scalar_lea.vmem %s810, 16
        %v3304 = vld [vmem:[%s3303] sm:$0xff]
        %v3305 = vld [vmem:[%s3303 + $0x10] sm:$0xff]
        %v3306 = vld [vmem:[%s3303 + $0x20] sm:$0xff]
        %v3307 = vld [vmem:[%s3303 + $0x30] sm:$0xff]
        %v3308 = vld [vmem:[%s3303 + $0x40] sm:$0xff]
        %v3309 = vld [vmem:[%s3303 + $0x50] sm:$0xff]
        %v3310 = vld [vmem:[%s3303 + $0x60] sm:$0xff]
        %v3311 = vld [vmem:[%s3303 + $0x70] sm:$0xff]
        %v3312 = vld [vmem:[%s3303 + $0x1] sm:$0xff]
        %v3313 = vld [vmem:[%s3303 + $0x11] sm:$0xff]
        %v3314 = vld [vmem:[%s3303 + $0x21] sm:$0xff]
        %v3315 = vld [vmem:[%s3303 + $0x31] sm:$0xff]
        %v3316 = vld [vmem:[%s3303 + $0x41] sm:$0xff]
        %v3317 = vld [vmem:[%s3303 + $0x51] sm:$0xff]
        %v3318 = vld [vmem:[%s3303 + $0x61] sm:$0xff]
        %v3319 = vld [vmem:[%s3303 + $0x71] sm:$0xff]
        %v3320 = vld [vmem:[%s3303 + $0x2] sm:$0xff]
        %v3321 = vld [vmem:[%s3303 + $0x12] sm:$0xff]
        %v3322 = vld [vmem:[%s3303 + $0x22] sm:$0xff]
        %v3323 = vld [vmem:[%s3303 + $0x32] sm:$0xff]
        %v3324 = vld [vmem:[%s3303 + $0x42] sm:$0xff]
        %v3325 = vld [vmem:[%s3303 + $0x52] sm:$0xff]
        %v3326 = vld [vmem:[%s3303 + $0x62] sm:$0xff]
        %v3327 = vld [vmem:[%s3303 + $0x72] sm:$0xff]
        %s3328 = scalar_lea.vmem %s810, 32
        %v3329 = vld [vmem:[%s3328] sm:$0xff]
        %v3330 = vld [vmem:[%s3328 + $0x10] sm:$0xff]
        %v3331 = vld [vmem:[%s3328 + $0x20] sm:$0xff]
        %v3332 = vld [vmem:[%s3328 + $0x30] sm:$0xff]
        %v3333 = vld [vmem:[%s3328 + $0x40] sm:$0xff]
        %v3334 = vld [vmem:[%s3328 + $0x50] sm:$0xff]
        %v3335 = vld [vmem:[%s3328 + $0x60] sm:$0xff]
        %v3336 = vld [vmem:[%s3328 + $0x70] sm:$0xff]
        %v3337 = vld [vmem:[%s3328 + $0x1] sm:$0xff]
        %v3338 = vld [vmem:[%s3328 + $0x11] sm:$0xff]
        %v3339 = vld [vmem:[%s3328 + $0x21] sm:$0xff]
        %v3340 = vld [vmem:[%s3328 + $0x31] sm:$0xff]
        %v3341 = vld [vmem:[%s3328 + $0x41] sm:$0xff]
        %v3342 = vld [vmem:[%s3328 + $0x51] sm:$0xff]
        %v3343 = vld [vmem:[%s3328 + $0x61] sm:$0xff]
        %v3344 = vld [vmem:[%s3328 + $0x71] sm:$0xff]
        %v3345 = vld [vmem:[%s3328 + $0x2] sm:$0xff]
        %v3346 = vld [vmem:[%s3328 + $0x12] sm:$0xff]
        %v3347 = vld [vmem:[%s3328 + $0x22] sm:$0xff]
        %v3348 = vld [vmem:[%s3328 + $0x32] sm:$0xff]
        %v3349 = vld [vmem:[%s3328 + $0x42] sm:$0xff]
        %v3350 = vld [vmem:[%s3328 + $0x52] sm:$0xff]
        %v3351 = vld [vmem:[%s3328 + $0x62] sm:$0xff]
        %v3352 = vld [vmem:[%s3328 + $0x72] sm:$0xff]
        %3361 = vrot.lane.b32.xlu0 %v3287, 4
        %v3362 = vpop.permute.xlu0 %3361
        %3363 = vrot.lane.b32.xlu0 %v3288, 4
        %v3364 = vpop.permute.xlu0 %3363
        %3365 = vrot.lane.b32.xlu0 %v3289, 4
        %v3366 = vpop.permute.xlu0 %3365
        %3367 = vrot.lane.b32.xlu0 %v3290, 4
        %v3368 = vpop.permute.xlu0 %3367
        %3369 = vrot.lane.b32.xlu0 %v3291, 4
        %v3370 = vpop.permute.xlu0 %3369
        %3371 = vrot.lane.b32.xlu0 %v3292, 4
        %v3372 = vpop.permute.xlu0 %3371
        %3373 = vrot.lane.b32.xlu0 %v3293, 4
        %v3374 = vpop.permute.xlu0 %3373
        %3375 = vrot.lane.b32.xlu0 %v3294, 4
        %v3376 = vpop.permute.xlu0 %3375
        %3393 = vrot.lane.b32.xlu0 %v3295, 8
        %v3394 = vpop.permute.xlu0 %3393
        %3395 = vrot.lane.b32.xlu0 %v3296, 8
        %v3396 = vpop.permute.xlu0 %3395
        %3397 = vrot.lane.b32.xlu0 %v3297, 8
        %v3398 = vpop.permute.xlu0 %3397
        %3399 = vrot.lane.b32.xlu0 %v3298, 8
        %v3400 = vpop.permute.xlu0 %3399
        %3401 = vrot.lane.b32.xlu0 %v3299, 8
        %v3402 = vpop.permute.xlu0 %3401
        %3403 = vrot.lane.b32.xlu0 %v3300, 8
        %v3404 = vpop.permute.xlu0 %3403
        %3405 = vrot.lane.b32.xlu0 %v3301, 8
        %v3406 = vpop.permute.xlu0 %3405
        %3407 = vrot.lane.b32.xlu0 %v3302, 8
        %v3408 = vpop.permute.xlu0 %3407
        %3425 = vrot.lane.b32.xlu0 %v3304, 12
        %v3426 = vpop.permute.xlu0 %3425
        %3427 = vrot.lane.b32.xlu0 %v3305, 12
        %v3428 = vpop.permute.xlu0 %3427
        %3429 = vrot.lane.b32.xlu0 %v3306, 12
        %v3430 = vpop.permute.xlu0 %3429
        %3431 = vrot.lane.b32.xlu0 %v3307, 12
        %v3432 = vpop.permute.xlu0 %3431
        %3433 = vrot.lane.b32.xlu0 %v3308, 12
        %v3434 = vpop.permute.xlu0 %3433
        %3435 = vrot.lane.b32.xlu0 %v3309, 12
        %v3436 = vpop.permute.xlu0 %3435
        %3437 = vrot.lane.b32.xlu0 %v3310, 12
        %v3438 = vpop.permute.xlu0 %3437
        %3439 = vrot.lane.b32.xlu0 %v3311, 12
        %v3440 = vpop.permute.xlu0 %3439
        %3457 = vrot.lane.b32.xlu0 %v3312, 16
        %v3458 = vpop.permute.xlu0 %3457
        %3459 = vrot.lane.b32.xlu0 %v3313, 16
        %v3460 = vpop.permute.xlu0 %3459
        %3461 = vrot.lane.b32.xlu0 %v3314, 16
        %v3462 = vpop.permute.xlu0 %3461
        %3463 = vrot.lane.b32.xlu0 %v3315, 16
        %v3464 = vpop.permute.xlu0 %3463
        %3465 = vrot.lane.b32.xlu0 %v3316, 16
        %v3466 = vpop.permute.xlu0 %3465
        %3467 = vrot.lane.b32.xlu0 %v3317, 16
        %v3468 = vpop.permute.xlu0 %3467
        %3469 = vrot.lane.b32.xlu0 %v3318, 16
        %v3470 = vpop.permute.xlu0 %3469
        %3471 = vrot.lane.b32.xlu0 %v3319, 16
        %v3472 = vpop.permute.xlu0 %3471
        %3489 = vrot.lane.b32.xlu0 %v3320, 20
        %v3490 = vpop.permute.xlu0 %3489
        %3491 = vrot.lane.b32.xlu0 %v3321, 20
        %v3492 = vpop.permute.xlu0 %3491
        %3493 = vrot.lane.b32.xlu0 %v3322, 20
        %v3494 = vpop.permute.xlu0 %3493
        %3495 = vrot.lane.b32.xlu0 %v3323, 20
        %v3496 = vpop.permute.xlu0 %3495
        %3497 = vrot.lane.b32.xlu0 %v3324, 20
        %v3498 = vpop.permute.xlu0 %3497
        %3499 = vrot.lane.b32.xlu0 %v3325, 20
        %v3500 = vpop.permute.xlu0 %3499
        %3501 = vrot.lane.b32.xlu0 %v3326, 20
        %v3502 = vpop.permute.xlu0 %3501
        %3503 = vrot.lane.b32.xlu0 %v3327, 20
        %v3504 = vpop.permute.xlu0 %3503
        %3521 = vrot.lane.b32.xlu0 %v3329, 24
        %v3522 = vpop.permute.xlu0 %3521
        %3523 = vrot.lane.b32.xlu0 %v3330, 24
        %v3524 = vpop.permute.xlu0 %3523
        %3525 = vrot.lane.b32.xlu0 %v3331, 24
        %v3526 = vpop.permute.xlu0 %3525
        %3527 = vrot.lane.b32.xlu0 %v3332, 24
        %v3528 = vpop.permute.xlu0 %3527
        %3529 = vrot.lane.b32.xlu0 %v3333, 24
        %v3530 = vpop.permute.xlu0 %3529
        %3531 = vrot.lane.b32.xlu0 %v3334, 24
        %v3532 = vpop.permute.xlu0 %3531
        %3533 = vrot.lane.b32.xlu0 %v3335, 24
        %v3534 = vpop.permute.xlu0 %3533
        %3535 = vrot.lane.b32.xlu0 %v3336, 24
        %v3536 = vpop.permute.xlu0 %3535
        %3553 = vrot.lane.b32.xlu0 %v3337, 28
        %v3554 = vpop.permute.xlu0 %3553
        %3555 = vrot.lane.b32.xlu0 %v3338, 28
        %v3556 = vpop.permute.xlu0 %3555
        %3557 = vrot.lane.b32.xlu0 %v3339, 28
        %v3558 = vpop.permute.xlu0 %3557
        %3559 = vrot.lane.b32.xlu0 %v3340, 28
        %v3560 = vpop.permute.xlu0 %3559
        %3561 = vrot.lane.b32.xlu0 %v3341, 28
        %v3562 = vpop.permute.xlu0 %3561
        %3563 = vrot.lane.b32.xlu0 %v3342, 28
        %v3564 = vpop.permute.xlu0 %3563
        %3565 = vrot.lane.b32.xlu0 %v3343, 28
        %v3566 = vpop.permute.xlu0 %3565
        %3567 = vrot.lane.b32.xlu0 %v3344, 28
        %v3568 = vpop.permute.xlu0 %3567
        %3585 = vrot.lane.b32.xlu0 %v3345, 32
        %v3586 = vpop.permute.xlu0 %3585
        %3587 = vrot.lane.b32.xlu0 %v3346, 32
        %v3588 = vpop.permute.xlu0 %3587
        %3589 = vrot.lane.b32.xlu0 %v3347, 32
        %v3590 = vpop.permute.xlu0 %3589
        %3591 = vrot.lane.b32.xlu0 %v3348, 32
        %v3592 = vpop.permute.xlu0 %3591
        %3593 = vrot.lane.b32.xlu0 %v3349, 32
        %v3594 = vpop.permute.xlu0 %3593
        %3595 = vrot.lane.b32.xlu0 %v3350, 32
        %v3596 = vpop.permute.xlu0 %3595
        %3597 = vrot.lane.b32.xlu0 %v3351, 32
        %v3598 = vpop.permute.xlu0 %3597
        %3599 = vrot.lane.b32.xlu0 %v3352, 32
        %v3600 = vpop.permute.xlu0 %3599
        %v3609 = vsel %vm1183, %v3279, %v3362
        %v3610 = vsel %vm1183, %v3280, %v3364
        %v3611 = vsel %vm1183, %v3281, %v3366
        %v3612 = vsel %vm1183, %v3282, %v3368
        %v3613 = vsel %vm1183, %v3283, %v3370
        %v3614 = vsel %vm1183, %v3284, %v3372
        %v3615 = vsel %vm1183, %v3285, %v3374
        %v3616 = vsel %vm1183, %v3286, %v3376
        %v3617 = vsel %vm1192, %v3609, %v3394
        %v3618 = vsel %vm1192, %v3610, %v3396
        %v3619 = vsel %vm1192, %v3611, %v3398
        %v3620 = vsel %vm1192, %v3612, %v3400
        %v3621 = vsel %vm1192, %v3613, %v3402
        %v3622 = vsel %vm1192, %v3614, %v3404
        %v3623 = vsel %vm1192, %v3615, %v3406
        %v3624 = vsel %vm1192, %v3616, %v3408
        %v3625 = vsel %vm1201, %v3617, %v3426
        %v3626 = vsel %vm1201, %v3618, %v3428
        %v3627 = vsel %vm1201, %v3619, %v3430
        %v3628 = vsel %vm1201, %v3620, %v3432
        %v3629 = vsel %vm1201, %v3621, %v3434
        %v3630 = vsel %vm1201, %v3622, %v3436
        %v3631 = vsel %vm1201, %v3623, %v3438
        %v3632 = vsel %vm1201, %v3624, %v3440
        %v3633 = vsel %vm1210, %v3625, %v3458
        %v3634 = vsel %vm1210, %v3626, %v3460
        %v3635 = vsel %vm1210, %v3627, %v3462
        %v3636 = vsel %vm1210, %v3628, %v3464
        %v3637 = vsel %vm1210, %v3629, %v3466
        %v3638 = vsel %vm1210, %v3630, %v3468
        %v3639 = vsel %vm1210, %v3631, %v3470
        %v3640 = vsel %vm1210, %v3632, %v3472
        %v3641 = vsel %vm1219, %v3633, %v3490
        %v3642 = vsel %vm1219, %v3634, %v3492
        %v3643 = vsel %vm1219, %v3635, %v3494
        %v3644 = vsel %vm1219, %v3636, %v3496
        %v3645 = vsel %vm1219, %v3637, %v3498
        %v3646 = vsel %vm1219, %v3638, %v3500
        %v3647 = vsel %vm1219, %v3639, %v3502
        %v3648 = vsel %vm1219, %v3640, %v3504
        %v3649 = vsel %vm1228, %v3641, %v3522
        %v3650 = vsel %vm1228, %v3642, %v3524
        %v3651 = vsel %vm1228, %v3643, %v3526
        %v3652 = vsel %vm1228, %v3644, %v3528
        %v3653 = vsel %vm1228, %v3645, %v3530
        %v3654 = vsel %vm1228, %v3646, %v3532
        %v3655 = vsel %vm1228, %v3647, %v3534
        %v3656 = vsel %vm1228, %v3648, %v3536
        %v3657 = vsel %vm1237, %v3649, %v3554
        %v3658 = vsel %vm1237, %v3650, %v3556
        %v3659 = vsel %vm1237, %v3651, %v3558
        %v3660 = vsel %vm1237, %v3652, %v3560
        %v3661 = vsel %vm1237, %v3653, %v3562
        %v3662 = vsel %vm1237, %v3654, %v3564
        %v3663 = vsel %vm1237, %v3655, %v3566
        %v3664 = vsel %vm1237, %v3656, %v3568
        %v3665 = vsel %vm1246, %v3657, %v3586
        %v3666 = vsel %vm1246, %v3658, %v3588
        %v3667 = vsel %vm1246, %v3659, %v3590
        %v3668 = vsel %vm1246, %v3660, %v3592
        %v3669 = vsel %vm1246, %v3661, %v3594
        %v3670 = vsel %vm1246, %v3662, %v3596
        %v3671 = vsel %vm1246, %v3663, %v3598
        %v3672 = vsel %vm1246, %v3664, %v3600
        %s3673 = scalar_lea.vmem [#allocation2], 384
        %3674 = vst.msk [vmem:[%s3673] sm:$0xff] %vm1255, %v3665
        %3675 = vst.msk [vmem:[%s3673 + $0x8] sm:$0xff] %vm1255, %v3666
        %3676 = vst.msk [vmem:[%s3673 + $0x10] sm:$0xff] %vm1255, %v3667
        %3677 = vst.msk [vmem:[%s3673 + $0x18] sm:$0xff] %vm1255, %v3668
        %3678 = vst.msk [vmem:[%s3673 + $0x20] sm:$0xff] %vm1255, %v3669
        %3679 = vst.msk [vmem:[%s3673 + $0x28] sm:$0xff] %vm1255, %v3670
        %3680 = vst.msk [vmem:[%s3673 + $0x30] sm:$0xff] %vm1255, %v3671
        %3681 = vst.msk [vmem:[%s3673 + $0x38] sm:$0xff] %vm1255, %v3672
        %v3682 = vld [vmem:[%s823] sm:$0xff]
        %v3683 = vld [vmem:[%s823 + $0x10] sm:$0xff]
        %v3684 = vld [vmem:[%s823 + $0x20] sm:$0xff]
        %v3685 = vld [vmem:[%s823 + $0x30] sm:$0xff]
        %v3686 = vld [vmem:[%s823 + $0x40] sm:$0xff]
        %v3687 = vld [vmem:[%s823 + $0x50] sm:$0xff]
        %v3688 = vld [vmem:[%s823 + $0x60] sm:$0xff]
        %v3689 = vld [vmem:[%s823 + $0x70] sm:$0xff]
        %v3690 = vld [vmem:[%s823 + $0x1] sm:$0xff]
        %v3691 = vld [vmem:[%s823 + $0x11] sm:$0xff]
        %v3692 = vld [vmem:[%s823 + $0x21] sm:$0xff]
        %v3693 = vld [vmem:[%s823 + $0x31] sm:$0xff]
        %v3694 = vld [vmem:[%s823 + $0x41] sm:$0xff]
        %v3695 = vld [vmem:[%s823 + $0x51] sm:$0xff]
        %v3696 = vld [vmem:[%s823 + $0x61] sm:$0xff]
        %v3697 = vld [vmem:[%s823 + $0x71] sm:$0xff]
        %v3698 = vld [vmem:[%s823 + $0x2] sm:$0xff]
        %v3699 = vld [vmem:[%s823 + $0x12] sm:$0xff]
        %v3700 = vld [vmem:[%s823 + $0x22] sm:$0xff]
        %v3701 = vld [vmem:[%s823 + $0x32] sm:$0xff]
        %v3702 = vld [vmem:[%s823 + $0x42] sm:$0xff]
        %v3703 = vld [vmem:[%s823 + $0x52] sm:$0xff]
        %v3704 = vld [vmem:[%s823 + $0x62] sm:$0xff]
        %v3705 = vld [vmem:[%s823 + $0x72] sm:$0xff]
        %s3706 = scalar_lea.vmem %s823, 16
        %v3707 = vld [vmem:[%s3706] sm:$0xff]
        %v3708 = vld [vmem:[%s3706 + $0x10] sm:$0xff]
        %v3709 = vld [vmem:[%s3706 + $0x20] sm:$0xff]
        %v3710 = vld [vmem:[%s3706 + $0x30] sm:$0xff]
        %v3711 = vld [vmem:[%s3706 + $0x40] sm:$0xff]
        %v3712 = vld [vmem:[%s3706 + $0x50] sm:$0xff]
        %v3713 = vld [vmem:[%s3706 + $0x60] sm:$0xff]
        %v3714 = vld [vmem:[%s3706 + $0x70] sm:$0xff]
        %v3715 = vld [vmem:[%s3706 + $0x1] sm:$0xff]
        %v3716 = vld [vmem:[%s3706 + $0x11] sm:$0xff]
        %v3717 = vld [vmem:[%s3706 + $0x21] sm:$0xff]
        %v3718 = vld [vmem:[%s3706 + $0x31] sm:$0xff]
        %v3719 = vld [vmem:[%s3706 + $0x41] sm:$0xff]
        %v3720 = vld [vmem:[%s3706 + $0x51] sm:$0xff]
        %v3721 = vld [vmem:[%s3706 + $0x61] sm:$0xff]
        %v3722 = vld [vmem:[%s3706 + $0x71] sm:$0xff]
        %v3723 = vld [vmem:[%s3706 + $0x2] sm:$0xff]
        %v3724 = vld [vmem:[%s3706 + $0x12] sm:$0xff]
        %v3725 = vld [vmem:[%s3706 + $0x22] sm:$0xff]
        %v3726 = vld [vmem:[%s3706 + $0x32] sm:$0xff]
        %v3727 = vld [vmem:[%s3706 + $0x42] sm:$0xff]
        %v3728 = vld [vmem:[%s3706 + $0x52] sm:$0xff]
        %v3729 = vld [vmem:[%s3706 + $0x62] sm:$0xff]
        %v3730 = vld [vmem:[%s3706 + $0x72] sm:$0xff]
        %s3731 = scalar_lea.vmem %s823, 32
        %v3732 = vld [vmem:[%s3731] sm:$0xff]
        %v3733 = vld [vmem:[%s3731 + $0x10] sm:$0xff]
        %v3734 = vld [vmem:[%s3731 + $0x20] sm:$0xff]
        %v3735 = vld [vmem:[%s3731 + $0x30] sm:$0xff]
        %v3736 = vld [vmem:[%s3731 + $0x40] sm:$0xff]
        %v3737 = vld [vmem:[%s3731 + $0x50] sm:$0xff]
        %v3738 = vld [vmem:[%s3731 + $0x60] sm:$0xff]
        %v3739 = vld [vmem:[%s3731 + $0x70] sm:$0xff]
        %v3740 = vld [vmem:[%s3731 + $0x1] sm:$0xff]
        %v3741 = vld [vmem:[%s3731 + $0x11] sm:$0xff]
        %v3742 = vld [vmem:[%s3731 + $0x21] sm:$0xff]
        %v3743 = vld [vmem:[%s3731 + $0x31] sm:$0xff]
        %v3744 = vld [vmem:[%s3731 + $0x41] sm:$0xff]
        %v3745 = vld [vmem:[%s3731 + $0x51] sm:$0xff]
        %v3746 = vld [vmem:[%s3731 + $0x61] sm:$0xff]
        %v3747 = vld [vmem:[%s3731 + $0x71] sm:$0xff]
        %v3748 = vld [vmem:[%s3731 + $0x2] sm:$0xff]
        %v3749 = vld [vmem:[%s3731 + $0x12] sm:$0xff]
        %v3750 = vld [vmem:[%s3731 + $0x22] sm:$0xff]
        %v3751 = vld [vmem:[%s3731 + $0x32] sm:$0xff]
        %v3752 = vld [vmem:[%s3731 + $0x42] sm:$0xff]
        %v3753 = vld [vmem:[%s3731 + $0x52] sm:$0xff]
        %v3754 = vld [vmem:[%s3731 + $0x62] sm:$0xff]
        %v3755 = vld [vmem:[%s3731 + $0x72] sm:$0xff]
        %3764 = vrot.lane.b32.xlu0 %v3690, 4
        %v3765 = vpop.permute.xlu0 %3764
        %3766 = vrot.lane.b32.xlu0 %v3691, 4
        %v3767 = vpop.permute.xlu0 %3766
        %3768 = vrot.lane.b32.xlu0 %v3692, 4
        %v3769 = vpop.permute.xlu0 %3768
        %3770 = vrot.lane.b32.xlu0 %v3693, 4
        %v3771 = vpop.permute.xlu0 %3770
        %3772 = vrot.lane.b32.xlu0 %v3694, 4
        %v3773 = vpop.permute.xlu0 %3772
        %3774 = vrot.lane.b32.xlu0 %v3695, 4
        %v3775 = vpop.permute.xlu0 %3774
        %3776 = vrot.lane.b32.xlu0 %v3696, 4
        %v3777 = vpop.permute.xlu0 %3776
        %3778 = vrot.lane.b32.xlu0 %v3697, 4
        %v3779 = vpop.permute.xlu0 %3778
        %3796 = vrot.lane.b32.xlu0 %v3698, 8
        %v3797 = vpop.permute.xlu0 %3796
        %3798 = vrot.lane.b32.xlu0 %v3699, 8
        %v3799 = vpop.permute.xlu0 %3798
        %3800 = vrot.lane.b32.xlu0 %v3700, 8
        %v3801 = vpop.permute.xlu0 %3800
        %3802 = vrot.lane.b32.xlu0 %v3701, 8
        %v3803 = vpop.permute.xlu0 %3802
        %3804 = vrot.lane.b32.xlu0 %v3702, 8
        %v3805 = vpop.permute.xlu0 %3804
        %3806 = vrot.lane.b32.xlu0 %v3703, 8
        %v3807 = vpop.permute.xlu0 %3806
        %3808 = vrot.lane.b32.xlu0 %v3704, 8
        %v3809 = vpop.permute.xlu0 %3808
        %3810 = vrot.lane.b32.xlu0 %v3705, 8
        %v3811 = vpop.permute.xlu0 %3810
        %3828 = vrot.lane.b32.xlu0 %v3707, 12
        %v3829 = vpop.permute.xlu0 %3828
        %3830 = vrot.lane.b32.xlu0 %v3708, 12
        %v3831 = vpop.permute.xlu0 %3830
        %3832 = vrot.lane.b32.xlu0 %v3709, 12
        %v3833 = vpop.permute.xlu0 %3832
        %3834 = vrot.lane.b32.xlu0 %v3710, 12
        %v3835 = vpop.permute.xlu0 %3834
        %3836 = vrot.lane.b32.xlu0 %v3711, 12
        %v3837 = vpop.permute.xlu0 %3836
        %3838 = vrot.lane.b32.xlu0 %v3712, 12
        %v3839 = vpop.permute.xlu0 %3838
        %3840 = vrot.lane.b32.xlu0 %v3713, 12
        %v3841 = vpop.permute.xlu0 %3840
        %3842 = vrot.lane.b32.xlu0 %v3714, 12
        %v3843 = vpop.permute.xlu0 %3842
        %3860 = vrot.lane.b32.xlu0 %v3715, 16
        %v3861 = vpop.permute.xlu0 %3860
        %3862 = vrot.lane.b32.xlu0 %v3716, 16
        %v3863 = vpop.permute.xlu0 %3862
        %3864 = vrot.lane.b32.xlu0 %v3717, 16
        %v3865 = vpop.permute.xlu0 %3864
        %3866 = vrot.lane.b32.xlu0 %v3718, 16
        %v3867 = vpop.permute.xlu0 %3866
        %3868 = vrot.lane.b32.xlu0 %v3719, 16
        %v3869 = vpop.permute.xlu0 %3868
        %3870 = vrot.lane.b32.xlu0 %v3720, 16
        %v3871 = vpop.permute.xlu0 %3870
        %3872 = vrot.lane.b32.xlu0 %v3721, 16
        %v3873 = vpop.permute.xlu0 %3872
        %3874 = vrot.lane.b32.xlu0 %v3722, 16
        %v3875 = vpop.permute.xlu0 %3874
        %3892 = vrot.lane.b32.xlu0 %v3723, 20
        %v3893 = vpop.permute.xlu0 %3892
        %3894 = vrot.lane.b32.xlu0 %v3724, 20
        %v3895 = vpop.permute.xlu0 %3894
        %3896 = vrot.lane.b32.xlu0 %v3725, 20
        %v3897 = vpop.permute.xlu0 %3896
        %3898 = vrot.lane.b32.xlu0 %v3726, 20
        %v3899 = vpop.permute.xlu0 %3898
        %3900 = vrot.lane.b32.xlu0 %v3727, 20
        %v3901 = vpop.permute.xlu0 %3900
        %3902 = vrot.lane.b32.xlu0 %v3728, 20
        %v3903 = vpop.permute.xlu0 %3902
        %3904 = vrot.lane.b32.xlu0 %v3729, 20
        %v3905 = vpop.permute.xlu0 %3904
        %3906 = vrot.lane.b32.xlu0 %v3730, 20
        %v3907 = vpop.permute.xlu0 %3906
        %3924 = vrot.lane.b32.xlu0 %v3732, 24
        %v3925 = vpop.permute.xlu0 %3924
        %3926 = vrot.lane.b32.xlu0 %v3733, 24
        %v3927 = vpop.permute.xlu0 %3926
        %3928 = vrot.lane.b32.xlu0 %v3734, 24
        %v3929 = vpop.permute.xlu0 %3928
        %3930 = vrot.lane.b32.xlu0 %v3735, 24
        %v3931 = vpop.permute.xlu0 %3930
        %3932 = vrot.lane.b32.xlu0 %v3736, 24
        %v3933 = vpop.permute.xlu0 %3932
        %3934 = vrot.lane.b32.xlu0 %v3737, 24
        %v3935 = vpop.permute.xlu0 %3934
        %3936 = vrot.lane.b32.xlu0 %v3738, 24
        %v3937 = vpop.permute.xlu0 %3936
        %3938 = vrot.lane.b32.xlu0 %v3739, 24
        %v3939 = vpop.permute.xlu0 %3938
        %3956 = vrot.lane.b32.xlu0 %v3740, 28
        %v3957 = vpop.permute.xlu0 %3956
        %3958 = vrot.lane.b32.xlu0 %v3741, 28
        %v3959 = vpop.permute.xlu0 %3958
        %3960 = vrot.lane.b32.xlu0 %v3742, 28
        %v3961 = vpop.permute.xlu0 %3960
        %3962 = vrot.lane.b32.xlu0 %v3743, 28
        %v3963 = vpop.permute.xlu0 %3962
        %3964 = vrot.lane.b32.xlu0 %v3744, 28
        %v3965 = vpop.permute.xlu0 %3964
        %3966 = vrot.lane.b32.xlu0 %v3745, 28
        %v3967 = vpop.permute.xlu0 %3966
        %3968 = vrot.lane.b32.xlu0 %v3746, 28
        %v3969 = vpop.permute.xlu0 %3968
        %3970 = vrot.lane.b32.xlu0 %v3747, 28
        %v3971 = vpop.permute.xlu0 %3970
        %3988 = vrot.lane.b32.xlu0 %v3748, 32
        %v3989 = vpop.permute.xlu0 %3988
        %3990 = vrot.lane.b32.xlu0 %v3749, 32
        %v3991 = vpop.permute.xlu0 %3990
        %3992 = vrot.lane.b32.xlu0 %v3750, 32
        %v3993 = vpop.permute.xlu0 %3992
        %3994 = vrot.lane.b32.xlu0 %v3751, 32
        %v3995 = vpop.permute.xlu0 %3994
        %3996 = vrot.lane.b32.xlu0 %v3752, 32
        %v3997 = vpop.permute.xlu0 %3996
        %3998 = vrot.lane.b32.xlu0 %v3753, 32
        %v3999 = vpop.permute.xlu0 %3998
        %4000 = vrot.lane.b32.xlu0 %v3754, 32
        %v4001 = vpop.permute.xlu0 %4000
        %4002 = vrot.lane.b32.xlu0 %v3755, 32
        %v4003 = vpop.permute.xlu0 %4002
        %v4012 = vsel %vm1183, %v3682, %v3765
        %v4013 = vsel %vm1183, %v3683, %v3767
        %v4014 = vsel %vm1183, %v3684, %v3769
        %v4015 = vsel %vm1183, %v3685, %v3771
        %v4016 = vsel %vm1183, %v3686, %v3773
        %v4017 = vsel %vm1183, %v3687, %v3775
        %v4018 = vsel %vm1183, %v3688, %v3777
        %v4019 = vsel %vm1183, %v3689, %v3779
        %v4020 = vsel %vm1192, %v4012, %v3797
        %v4021 = vsel %vm1192, %v4013, %v3799
        %v4022 = vsel %vm1192, %v4014, %v3801
        %v4023 = vsel %vm1192, %v4015, %v3803
        %v4024 = vsel %vm1192, %v4016, %v3805
        %v4025 = vsel %vm1192, %v4017, %v3807
        %v4026 = vsel %vm1192, %v4018, %v3809
        %v4027 = vsel %vm1192, %v4019, %v3811
        %v4028 = vsel %vm1201, %v4020, %v3829
        %v4029 = vsel %vm1201, %v4021, %v3831
        %v4030 = vsel %vm1201, %v4022, %v3833
        %v4031 = vsel %vm1201, %v4023, %v3835
        %v4032 = vsel %vm1201, %v4024, %v3837
        %v4033 = vsel %vm1201, %v4025, %v3839
        %v4034 = vsel %vm1201, %v4026, %v3841
        %v4035 = vsel %vm1201, %v4027, %v3843
        %v4036 = vsel %vm1210, %v4028, %v3861
        %v4037 = vsel %vm1210, %v4029, %v3863
        %v4038 = vsel %vm1210, %v4030, %v3865
        %v4039 = vsel %vm1210, %v4031, %v3867
        %v4040 = vsel %vm1210, %v4032, %v3869
        %v4041 = vsel %vm1210, %v4033, %v3871
        %v4042 = vsel %vm1210, %v4034, %v3873
        %v4043 = vsel %vm1210, %v4035, %v3875
        %v4044 = vsel %vm1219, %v4036, %v3893
        %v4045 = vsel %vm1219, %v4037, %v3895
        %v4046 = vsel %vm1219, %v4038, %v3897
        %v4047 = vsel %vm1219, %v4039, %v3899
        %v4048 = vsel %vm1219, %v4040, %v3901
        %v4049 = vsel %vm1219, %v4041, %v3903
        %v4050 = vsel %vm1219, %v4042, %v3905
        %v4051 = vsel %vm1219, %v4043, %v3907
        %v4052 = vsel %vm1228, %v4044, %v3925
        %v4053 = vsel %vm1228, %v4045, %v3927
        %v4054 = vsel %vm1228, %v4046, %v3929
        %v4055 = vsel %vm1228, %v4047, %v3931
        %v4056 = vsel %vm1228, %v4048, %v3933
        %v4057 = vsel %vm1228, %v4049, %v3935
        %v4058 = vsel %vm1228, %v4050, %v3937
        %v4059 = vsel %vm1228, %v4051, %v3939
        %v4060 = vsel %vm1237, %v4052, %v3957
        %v4061 = vsel %vm1237, %v4053, %v3959
        %v4062 = vsel %vm1237, %v4054, %v3961
        %v4063 = vsel %vm1237, %v4055, %v3963
        %v4064 = vsel %vm1237, %v4056, %v3965
        %v4065 = vsel %vm1237, %v4057, %v3967
        %v4066 = vsel %vm1237, %v4058, %v3969
        %v4067 = vsel %vm1237, %v4059, %v3971
        %v4068 = vsel %vm1246, %v4060, %v3989
        %v4069 = vsel %vm1246, %v4061, %v3991
        %v4070 = vsel %vm1246, %v4062, %v3993
        %v4071 = vsel %vm1246, %v4063, %v3995
        %v4072 = vsel %vm1246, %v4064, %v3997
        %v4073 = vsel %vm1246, %v4065, %v3999
        %v4074 = vsel %vm1246, %v4066, %v4001
        %v4075 = vsel %vm1246, %v4067, %v4003
        %s4076 = scalar_lea.vmem [#allocation2], 448
        %4077 = vst.msk [vmem:[%s4076] sm:$0xff] %vm1255, %v4068
        %4078 = vst.msk [vmem:[%s4076 + $0x8] sm:$0xff] %vm1255, %v4069
        %4079 = vst.msk [vmem:[%s4076 + $0x10] sm:$0xff] %vm1255, %v4070
        %4080 = vst.msk [vmem:[%s4076 + $0x18] sm:$0xff] %vm1255, %v4071
        %4081 = vst.msk [vmem:[%s4076 + $0x20] sm:$0xff] %vm1255, %v4072
        %4082 = vst.msk [vmem:[%s4076 + $0x28] sm:$0xff] %vm1255, %v4073
        %4083 = vst.msk [vmem:[%s4076 + $0x30] sm:$0xff] %vm1255, %v4074
        %4084 = vst.msk [vmem:[%s4076 + $0x38] sm:$0xff] %vm1255, %v4075
        %v4085 = vld [vmem:[%s836] sm:$0xff]
        %v4086 = vld [vmem:[%s836 + $0x10] sm:$0xff]
        %v4087 = vld [vmem:[%s836 + $0x20] sm:$0xff]
        %v4088 = vld [vmem:[%s836 + $0x30] sm:$0xff]
        %v4089 = vld [vmem:[%s836 + $0x40] sm:$0xff]
        %v4090 = vld [vmem:[%s836 + $0x50] sm:$0xff]
        %v4091 = vld [vmem:[%s836 + $0x60] sm:$0xff]
        %v4092 = vld [vmem:[%s836 + $0x70] sm:$0xff]
        %v4093 = vld [vmem:[%s836 + $0x1] sm:$0xff]
        %v4094 = vld [vmem:[%s836 + $0x11] sm:$0xff]
        %v4095 = vld [vmem:[%s836 + $0x21] sm:$0xff]
        %v4096 = vld [vmem:[%s836 + $0x31] sm:$0xff]
        %v4097 = vld [vmem:[%s836 + $0x41] sm:$0xff]
        %v4098 = vld [vmem:[%s836 + $0x51] sm:$0xff]
        %v4099 = vld [vmem:[%s836 + $0x61] sm:$0xff]
        %v4100 = vld [vmem:[%s836 + $0x71] sm:$0xff]
        %v4101 = vld [vmem:[%s836 + $0x2] sm:$0xff]
        %v4102 = vld [vmem:[%s836 + $0x12] sm:$0xff]
        %v4103 = vld [vmem:[%s836 + $0x22] sm:$0xff]
        %v4104 = vld [vmem:[%s836 + $0x32] sm:$0xff]
        %v4105 = vld [vmem:[%s836 + $0x42] sm:$0xff]
        %v4106 = vld [vmem:[%s836 + $0x52] sm:$0xff]
        %v4107 = vld [vmem:[%s836 + $0x62] sm:$0xff]
        %v4108 = vld [vmem:[%s836 + $0x72] sm:$0xff]
        %s4109 = scalar_lea.vmem %s836, 16
        %v4110 = vld [vmem:[%s4109] sm:$0xff]
        %v4111 = vld [vmem:[%s4109 + $0x10] sm:$0xff]
        %v4112 = vld [vmem:[%s4109 + $0x20] sm:$0xff]
        %v4113 = vld [vmem:[%s4109 + $0x30] sm:$0xff]
        %v4114 = vld [vmem:[%s4109 + $0x40] sm:$0xff]
        %v4115 = vld [vmem:[%s4109 + $0x50] sm:$0xff]
        %v4116 = vld [vmem:[%s4109 + $0x60] sm:$0xff]
        %v4117 = vld [vmem:[%s4109 + $0x70] sm:$0xff]
        %v4118 = vld [vmem:[%s4109 + $0x1] sm:$0xff]
        %v4119 = vld [vmem:[%s4109 + $0x11] sm:$0xff]
        %v4120 = vld [vmem:[%s4109 + $0x21] sm:$0xff]
        %v4121 = vld [vmem:[%s4109 + $0x31] sm:$0xff]
        %v4122 = vld [vmem:[%s4109 + $0x41] sm:$0xff]
        %v4123 = vld [vmem:[%s4109 + $0x51] sm:$0xff]
        %v4124 = vld [vmem:[%s4109 + $0x61] sm:$0xff]
        %v4125 = vld [vmem:[%s4109 + $0x71] sm:$0xff]
        %v4126 = vld [vmem:[%s4109 + $0x2] sm:$0xff]
        %v4127 = vld [vmem:[%s4109 + $0x12] sm:$0xff]
        %v4128 = vld [vmem:[%s4109 + $0x22] sm:$0xff]
        %v4129 = vld [vmem:[%s4109 + $0x32] sm:$0xff]
        %v4130 = vld [vmem:[%s4109 + $0x42] sm:$0xff]
        %v4131 = vld [vmem:[%s4109 + $0x52] sm:$0xff]
        %v4132 = vld [vmem:[%s4109 + $0x62] sm:$0xff]
        %v4133 = vld [vmem:[%s4109 + $0x72] sm:$0xff]
        %s4134 = scalar_lea.vmem %s836, 32
        %v4135 = vld [vmem:[%s4134] sm:$0xff]
        %v4136 = vld [vmem:[%s4134 + $0x10] sm:$0xff]
        %v4137 = vld [vmem:[%s4134 + $0x20] sm:$0xff]
        %v4138 = vld [vmem:[%s4134 + $0x30] sm:$0xff]
        %v4139 = vld [vmem:[%s4134 + $0x40] sm:$0xff]
        %v4140 = vld [vmem:[%s4134 + $0x50] sm:$0xff]
        %v4141 = vld [vmem:[%s4134 + $0x60] sm:$0xff]
        %v4142 = vld [vmem:[%s4134 + $0x70] sm:$0xff]
        %v4143 = vld [vmem:[%s4134 + $0x1] sm:$0xff]
        %v4144 = vld [vmem:[%s4134 + $0x11] sm:$0xff]
        %v4145 = vld [vmem:[%s4134 + $0x21] sm:$0xff]
        %v4146 = vld [vmem:[%s4134 + $0x31] sm:$0xff]
        %v4147 = vld [vmem:[%s4134 + $0x41] sm:$0xff]
        %v4148 = vld [vmem:[%s4134 + $0x51] sm:$0xff]
        %v4149 = vld [vmem:[%s4134 + $0x61] sm:$0xff]
        %v4150 = vld [vmem:[%s4134 + $0x71] sm:$0xff]
        %v4151 = vld [vmem:[%s4134 + $0x2] sm:$0xff]
        %v4152 = vld [vmem:[%s4134 + $0x12] sm:$0xff]
        %v4153 = vld [vmem:[%s4134 + $0x22] sm:$0xff]
        %v4154 = vld [vmem:[%s4134 + $0x32] sm:$0xff]
        %v4155 = vld [vmem:[%s4134 + $0x42] sm:$0xff]
        %v4156 = vld [vmem:[%s4134 + $0x52] sm:$0xff]
        %v4157 = vld [vmem:[%s4134 + $0x62] sm:$0xff]
        %v4158 = vld [vmem:[%s4134 + $0x72] sm:$0xff]
        %4167 = vrot.lane.b32.xlu0 %v4093, 4
        %v4168 = vpop.permute.xlu0 %4167
        %4169 = vrot.lane.b32.xlu0 %v4094, 4
        %v4170 = vpop.permute.xlu0 %4169
        %4171 = vrot.lane.b32.xlu0 %v4095, 4
        %v4172 = vpop.permute.xlu0 %4171
        %4173 = vrot.lane.b32.xlu0 %v4096, 4
        %v4174 = vpop.permute.xlu0 %4173
        %4175 = vrot.lane.b32.xlu0 %v4097, 4
        %v4176 = vpop.permute.xlu0 %4175
        %4177 = vrot.lane.b32.xlu0 %v4098, 4
        %v4178 = vpop.permute.xlu0 %4177
        %4179 = vrot.lane.b32.xlu0 %v4099, 4
        %v4180 = vpop.permute.xlu0 %4179
        %4181 = vrot.lane.b32.xlu0 %v4100, 4
        %v4182 = vpop.permute.xlu0 %4181
        %4199 = vrot.lane.b32.xlu0 %v4101, 8
        %v4200 = vpop.permute.xlu0 %4199
        %4201 = vrot.lane.b32.xlu0 %v4102, 8
        %v4202 = vpop.permute.xlu0 %4201
        %4203 = vrot.lane.b32.xlu0 %v4103, 8
        %v4204 = vpop.permute.xlu0 %4203
        %4205 = vrot.lane.b32.xlu0 %v4104, 8
        %v4206 = vpop.permute.xlu0 %4205
        %4207 = vrot.lane.b32.xlu0 %v4105, 8
        %v4208 = vpop.permute.xlu0 %4207
        %4209 = vrot.lane.b32.xlu0 %v4106, 8
        %v4210 = vpop.permute.xlu0 %4209
        %4211 = vrot.lane.b32.xlu0 %v4107, 8
        %v4212 = vpop.permute.xlu0 %4211
        %4213 = vrot.lane.b32.xlu0 %v4108, 8
        %v4214 = vpop.permute.xlu0 %4213
        %4231 = vrot.lane.b32.xlu0 %v4110, 12
        %v4232 = vpop.permute.xlu0 %4231
        %4233 = vrot.lane.b32.xlu0 %v4111, 12
        %v4234 = vpop.permute.xlu0 %4233
        %4235 = vrot.lane.b32.xlu0 %v4112, 12
        %v4236 = vpop.permute.xlu0 %4235
        %4237 = vrot.lane.b32.xlu0 %v4113, 12
        %v4238 = vpop.permute.xlu0 %4237
        %4239 = vrot.lane.b32.xlu0 %v4114, 12
        %v4240 = vpop.permute.xlu0 %4239
        %4241 = vrot.lane.b32.xlu0 %v4115, 12
        %v4242 = vpop.permute.xlu0 %4241
        %4243 = vrot.lane.b32.xlu0 %v4116, 12
        %v4244 = vpop.permute.xlu0 %4243
        %4245 = vrot.lane.b32.xlu0 %v4117, 12
        %v4246 = vpop.permute.xlu0 %4245
        %4263 = vrot.lane.b32.xlu0 %v4118, 16
        %v4264 = vpop.permute.xlu0 %4263
        %4265 = vrot.lane.b32.xlu0 %v4119, 16
        %v4266 = vpop.permute.xlu0 %4265
        %4267 = vrot.lane.b32.xlu0 %v4120, 16
        %v4268 = vpop.permute.xlu0 %4267
        %4269 = vrot.lane.b32.xlu0 %v4121, 16
        %v4270 = vpop.permute.xlu0 %4269
        %4271 = vrot.lane.b32.xlu0 %v4122, 16
        %v4272 = vpop.permute.xlu0 %4271
        %4273 = vrot.lane.b32.xlu0 %v4123, 16
        %v4274 = vpop.permute.xlu0 %4273
        %4275 = vrot.lane.b32.xlu0 %v4124, 16
        %v4276 = vpop.permute.xlu0 %4275
        %4277 = vrot.lane.b32.xlu0 %v4125, 16
        %v4278 = vpop.permute.xlu0 %4277
        %4295 = vrot.lane.b32.xlu0 %v4126, 20
        %v4296 = vpop.permute.xlu0 %4295
        %4297 = vrot.lane.b32.xlu0 %v4127, 20
        %v4298 = vpop.permute.xlu0 %4297
        %4299 = vrot.lane.b32.xlu0 %v4128, 20
        %v4300 = vpop.permute.xlu0 %4299
        %4301 = vrot.lane.b32.xlu0 %v4129, 20
        %v4302 = vpop.permute.xlu0 %4301
        %4303 = vrot.lane.b32.xlu0 %v4130, 20
        %v4304 = vpop.permute.xlu0 %4303
        %4305 = vrot.lane.b32.xlu0 %v4131, 20
        %v4306 = vpop.permute.xlu0 %4305
        %4307 = vrot.lane.b32.xlu0 %v4132, 20
        %v4308 = vpop.permute.xlu0 %4307
        %4309 = vrot.lane.b32.xlu0 %v4133, 20
        %v4310 = vpop.permute.xlu0 %4309
        %4327 = vrot.lane.b32.xlu0 %v4135, 24
        %v4328 = vpop.permute.xlu0 %4327
        %4329 = vrot.lane.b32.xlu0 %v4136, 24
        %v4330 = vpop.permute.xlu0 %4329
        %4331 = vrot.lane.b32.xlu0 %v4137, 24
        %v4332 = vpop.permute.xlu0 %4331
        %4333 = vrot.lane.b32.xlu0 %v4138, 24
        %v4334 = vpop.permute.xlu0 %4333
        %4335 = vrot.lane.b32.xlu0 %v4139, 24
        %v4336 = vpop.permute.xlu0 %4335
        %4337 = vrot.lane.b32.xlu0 %v4140, 24
        %v4338 = vpop.permute.xlu0 %4337
        %4339 = vrot.lane.b32.xlu0 %v4141, 24
        %v4340 = vpop.permute.xlu0 %4339
        %4341 = vrot.lane.b32.xlu0 %v4142, 24
        %v4342 = vpop.permute.xlu0 %4341
        %4359 = vrot.lane.b32.xlu0 %v4143, 28
        %v4360 = vpop.permute.xlu0 %4359
        %4361 = vrot.lane.b32.xlu0 %v4144, 28
        %v4362 = vpop.permute.xlu0 %4361
        %4363 = vrot.lane.b32.xlu0 %v4145, 28
        %v4364 = vpop.permute.xlu0 %4363
        %4365 = vrot.lane.b32.xlu0 %v4146, 28
        %v4366 = vpop.permute.xlu0 %4365
        %4367 = vrot.lane.b32.xlu0 %v4147, 28
        %v4368 = vpop.permute.xlu0 %4367
        %4369 = vrot.lane.b32.xlu0 %v4148, 28
        %v4370 = vpop.permute.xlu0 %4369
        %4371 = vrot.lane.b32.xlu0 %v4149, 28
        %v4372 = vpop.permute.xlu0 %4371
        %4373 = vrot.lane.b32.xlu0 %v4150, 28
        %v4374 = vpop.permute.xlu0 %4373
        %4391 = vrot.lane.b32.xlu0 %v4151, 32
        %v4392 = vpop.permute.xlu0 %4391
        %4393 = vrot.lane.b32.xlu0 %v4152, 32
        %v4394 = vpop.permute.xlu0 %4393
        %4395 = vrot.lane.b32.xlu0 %v4153, 32
        %v4396 = vpop.permute.xlu0 %4395
        %4397 = vrot.lane.b32.xlu0 %v4154, 32
        %v4398 = vpop.permute.xlu0 %4397
        %4399 = vrot.lane.b32.xlu0 %v4155, 32
        %v4400 = vpop.permute.xlu0 %4399
        %4401 = vrot.lane.b32.xlu0 %v4156, 32
        %v4402 = vpop.permute.xlu0 %4401
        %4403 = vrot.lane.b32.xlu0 %v4157, 32
        %v4404 = vpop.permute.xlu0 %4403
        %4405 = vrot.lane.b32.xlu0 %v4158, 32
        %v4406 = vpop.permute.xlu0 %4405
        %v4415 = vsel %vm1183, %v4085, %v4168
        %v4416 = vsel %vm1183, %v4086, %v4170
        %v4417 = vsel %vm1183, %v4087, %v4172
        %v4418 = vsel %vm1183, %v4088, %v4174
        %v4419 = vsel %vm1183, %v4089, %v4176
        %v4420 = vsel %vm1183, %v4090, %v4178
        %v4421 = vsel %vm1183, %v4091, %v4180
        %v4422 = vsel %vm1183, %v4092, %v4182
        %v4423 = vsel %vm1192, %v4415, %v4200
        %v4424 = vsel %vm1192, %v4416, %v4202
        %v4425 = vsel %vm1192, %v4417, %v4204
        %v4426 = vsel %vm1192, %v4418, %v4206
        %v4427 = vsel %vm1192, %v4419, %v4208
        %v4428 = vsel %vm1192, %v4420, %v4210
        %v4429 = vsel %vm1192, %v4421, %v4212
        %v4430 = vsel %vm1192, %v4422, %v4214
        %v4431 = vsel %vm1201, %v4423, %v4232
        %v4432 = vsel %vm1201, %v4424, %v4234
        %v4433 = vsel %vm1201, %v4425, %v4236
        %v4434 = vsel %vm1201, %v4426, %v4238
        %v4435 = vsel %vm1201, %v4427, %v4240
        %v4436 = vsel %vm1201, %v4428, %v4242
        %v4437 = vsel %vm1201, %v4429, %v4244
        %v4438 = vsel %vm1201, %v4430, %v4246
        %v4439 = vsel %vm1210, %v4431, %v4264
        %v4440 = vsel %vm1210, %v4432, %v4266
        %v4441 = vsel %vm1210, %v4433, %v4268
        %v4442 = vsel %vm1210, %v4434, %v4270
        %v4443 = vsel %vm1210, %v4435, %v4272
        %v4444 = vsel %vm1210, %v4436, %v4274
        %v4445 = vsel %vm1210, %v4437, %v4276
        %v4446 = vsel %vm1210, %v4438, %v4278
        %v4447 = vsel %vm1219, %v4439, %v4296
        %v4448 = vsel %vm1219, %v4440, %v4298
        %v4449 = vsel %vm1219, %v4441, %v4300
        %v4450 = vsel %vm1219, %v4442, %v4302
        %v4451 = vsel %vm1219, %v4443, %v4304
        %v4452 = vsel %vm1219, %v4444, %v4306
        %v4453 = vsel %vm1219, %v4445, %v4308
        %v4454 = vsel %vm1219, %v4446, %v4310
        %v4455 = vsel %vm1228, %v4447, %v4328
        %v4456 = vsel %vm1228, %v4448, %v4330
        %v4457 = vsel %vm1228, %v4449, %v4332
        %v4458 = vsel %vm1228, %v4450, %v4334
        %v4459 = vsel %vm1228, %v4451, %v4336
        %v4460 = vsel %vm1228, %v4452, %v4338
        %v4461 = vsel %vm1228, %v4453, %v4340
        %v4462 = vsel %vm1228, %v4454, %v4342
        %v4463 = vsel %vm1237, %v4455, %v4360
        %v4464 = vsel %vm1237, %v4456, %v4362
        %v4465 = vsel %vm1237, %v4457, %v4364
        %v4466 = vsel %vm1237, %v4458, %v4366
        %v4467 = vsel %vm1237, %v4459, %v4368
        %v4468 = vsel %vm1237, %v4460, %v4370
        %v4469 = vsel %vm1237, %v4461, %v4372
        %v4470 = vsel %vm1237, %v4462, %v4374
        %v4471 = vsel %vm1246, %v4463, %v4392
        %v4472 = vsel %vm1246, %v4464, %v4394
        %v4473 = vsel %vm1246, %v4465, %v4396
        %v4474 = vsel %vm1246, %v4466, %v4398
        %v4475 = vsel %vm1246, %v4467, %v4400
        %v4476 = vsel %vm1246, %v4468, %v4402
        %v4477 = vsel %vm1246, %v4469, %v4404
        %v4478 = vsel %vm1246, %v4470, %v4406
        %s4479 = scalar_lea.vmem [#allocation2], 512
        %4480 = vst.msk [vmem:[%s4479] sm:$0xff] %vm1255, %v4471
        %4481 = vst.msk [vmem:[%s4479 + $0x8] sm:$0xff] %vm1255, %v4472
        %4482 = vst.msk [vmem:[%s4479 + $0x10] sm:$0xff] %vm1255, %v4473
        %4483 = vst.msk [vmem:[%s4479 + $0x18] sm:$0xff] %vm1255, %v4474
        %4484 = vst.msk [vmem:[%s4479 + $0x20] sm:$0xff] %vm1255, %v4475
        %4485 = vst.msk [vmem:[%s4479 + $0x28] sm:$0xff] %vm1255, %v4476
        %4486 = vst.msk [vmem:[%s4479 + $0x30] sm:$0xff] %vm1255, %v4477
        %4487 = vst.msk [vmem:[%s4479 + $0x38] sm:$0xff] %vm1255, %v4478
        %v4488 = vld [vmem:[%s849] sm:$0xff]
        %v4489 = vld [vmem:[%s849 + $0x10] sm:$0xff]
        %v4490 = vld [vmem:[%s849 + $0x20] sm:$0xff]
        %v4491 = vld [vmem:[%s849 + $0x30] sm:$0xff]
        %v4492 = vld [vmem:[%s849 + $0x40] sm:$0xff]
        %v4493 = vld [vmem:[%s849 + $0x50] sm:$0xff]
        %v4494 = vld [vmem:[%s849 + $0x60] sm:$0xff]
        %v4495 = vld [vmem:[%s849 + $0x70] sm:$0xff]
        %v4496 = vld [vmem:[%s849 + $0x1] sm:$0xff]
        %v4497 = vld [vmem:[%s849 + $0x11] sm:$0xff]
        %v4498 = vld [vmem:[%s849 + $0x21] sm:$0xff]
        %v4499 = vld [vmem:[%s849 + $0x31] sm:$0xff]
        %v4500 = vld [vmem:[%s849 + $0x41] sm:$0xff]
        %v4501 = vld [vmem:[%s849 + $0x51] sm:$0xff]
        %v4502 = vld [vmem:[%s849 + $0x61] sm:$0xff]
        %v4503 = vld [vmem:[%s849 + $0x71] sm:$0xff]
        %v4504 = vld [vmem:[%s849 + $0x2] sm:$0xff]
        %v4505 = vld [vmem:[%s849 + $0x12] sm:$0xff]
        %v4506 = vld [vmem:[%s849 + $0x22] sm:$0xff]
        %v4507 = vld [vmem:[%s849 + $0x32] sm:$0xff]
        %v4508 = vld [vmem:[%s849 + $0x42] sm:$0xff]
        %v4509 = vld [vmem:[%s849 + $0x52] sm:$0xff]
        %v4510 = vld [vmem:[%s849 + $0x62] sm:$0xff]
        %v4511 = vld [vmem:[%s849 + $0x72] sm:$0xff]
        %s4512 = scalar_lea.vmem %s849, 16
        %v4513 = vld [vmem:[%s4512] sm:$0xff]
        %v4514 = vld [vmem:[%s4512 + $0x10] sm:$0xff]
        %v4515 = vld [vmem:[%s4512 + $0x20] sm:$0xff]
        %v4516 = vld [vmem:[%s4512 + $0x30] sm:$0xff]
        %v4517 = vld [vmem:[%s4512 + $0x40] sm:$0xff]
        %v4518 = vld [vmem:[%s4512 + $0x50] sm:$0xff]
        %v4519 = vld [vmem:[%s4512 + $0x60] sm:$0xff]
        %v4520 = vld [vmem:[%s4512 + $0x70] sm:$0xff]
        %v4521 = vld [vmem:[%s4512 + $0x1] sm:$0xff]
        %v4522 = vld [vmem:[%s4512 + $0x11] sm:$0xff]
        %v4523 = vld [vmem:[%s4512 + $0x21] sm:$0xff]
        %v4524 = vld [vmem:[%s4512 + $0x31] sm:$0xff]
        %v4525 = vld [vmem:[%s4512 + $0x41] sm:$0xff]
        %v4526 = vld [vmem:[%s4512 + $0x51] sm:$0xff]
        %v4527 = vld [vmem:[%s4512 + $0x61] sm:$0xff]
        %v4528 = vld [vmem:[%s4512 + $0x71] sm:$0xff]
        %v4529 = vld [vmem:[%s4512 + $0x2] sm:$0xff]
        %v4530 = vld [vmem:[%s4512 + $0x12] sm:$0xff]
        %v4531 = vld [vmem:[%s4512 + $0x22] sm:$0xff]
        %v4532 = vld [vmem:[%s4512 + $0x32] sm:$0xff]
        %v4533 = vld [vmem:[%s4512 + $0x42] sm:$0xff]
        %v4534 = vld [vmem:[%s4512 + $0x52] sm:$0xff]
        %v4535 = vld [vmem:[%s4512 + $0x62] sm:$0xff]
        %v4536 = vld [vmem:[%s4512 + $0x72] sm:$0xff]
        %s4537 = scalar_lea.vmem %s849, 32
        %v4538 = vld [vmem:[%s4537] sm:$0xff]
        %v4539 = vld [vmem:[%s4537 + $0x10] sm:$0xff]
        %v4540 = vld [vmem:[%s4537 + $0x20] sm:$0xff]
        %v4541 = vld [vmem:[%s4537 + $0x30] sm:$0xff]
        %v4542 = vld [vmem:[%s4537 + $0x40] sm:$0xff]
        %v4543 = vld [vmem:[%s4537 + $0x50] sm:$0xff]
        %v4544 = vld [vmem:[%s4537 + $0x60] sm:$0xff]
        %v4545 = vld [vmem:[%s4537 + $0x70] sm:$0xff]
        %v4546 = vld [vmem:[%s4537 + $0x1] sm:$0xff]
        %v4547 = vld [vmem:[%s4537 + $0x11] sm:$0xff]
        %v4548 = vld [vmem:[%s4537 + $0x21] sm:$0xff]
        %v4549 = vld [vmem:[%s4537 + $0x31] sm:$0xff]
        %v4550 = vld [vmem:[%s4537 + $0x41] sm:$0xff]
        %v4551 = vld [vmem:[%s4537 + $0x51] sm:$0xff]
        %v4552 = vld [vmem:[%s4537 + $0x61] sm:$0xff]
        %v4553 = vld [vmem:[%s4537 + $0x71] sm:$0xff]
        %v4554 = vld [vmem:[%s4537 + $0x2] sm:$0xff]
        %v4555 = vld [vmem:[%s4537 + $0x12] sm:$0xff]
        %v4556 = vld [vmem:[%s4537 + $0x22] sm:$0xff]
        %v4557 = vld [vmem:[%s4537 + $0x32] sm:$0xff]
        %v4558 = vld [vmem:[%s4537 + $0x42] sm:$0xff]
        %v4559 = vld [vmem:[%s4537 + $0x52] sm:$0xff]
        %v4560 = vld [vmem:[%s4537 + $0x62] sm:$0xff]
        %v4561 = vld [vmem:[%s4537 + $0x72] sm:$0xff]
        %4570 = vrot.lane.b32.xlu0 %v4496, 4
        %v4571 = vpop.permute.xlu0 %4570
        %4572 = vrot.lane.b32.xlu0 %v4497, 4
        %v4573 = vpop.permute.xlu0 %4572
        %4574 = vrot.lane.b32.xlu0 %v4498, 4
        %v4575 = vpop.permute.xlu0 %4574
        %4576 = vrot.lane.b32.xlu0 %v4499, 4
        %v4577 = vpop.permute.xlu0 %4576
        %4578 = vrot.lane.b32.xlu0 %v4500, 4
        %v4579 = vpop.permute.xlu0 %4578
        %4580 = vrot.lane.b32.xlu0 %v4501, 4
        %v4581 = vpop.permute.xlu0 %4580
        %4582 = vrot.lane.b32.xlu0 %v4502, 4
        %v4583 = vpop.permute.xlu0 %4582
        %4584 = vrot.lane.b32.xlu0 %v4503, 4
        %v4585 = vpop.permute.xlu0 %4584
        %4602 = vrot.lane.b32.xlu0 %v4504, 8
        %v4603 = vpop.permute.xlu0 %4602
        %4604 = vrot.lane.b32.xlu0 %v4505, 8
        %v4605 = vpop.permute.xlu0 %4604
        %4606 = vrot.lane.b32.xlu0 %v4506, 8
        %v4607 = vpop.permute.xlu0 %4606
        %4608 = vrot.lane.b32.xlu0 %v4507, 8
        %v4609 = vpop.permute.xlu0 %4608
        %4610 = vrot.lane.b32.xlu0 %v4508, 8
        %v4611 = vpop.permute.xlu0 %4610
        %4612 = vrot.lane.b32.xlu0 %v4509, 8
        %v4613 = vpop.permute.xlu0 %4612
        %4614 = vrot.lane.b32.xlu0 %v4510, 8
        %v4615 = vpop.permute.xlu0 %4614
        %4616 = vrot.lane.b32.xlu0 %v4511, 8
        %v4617 = vpop.permute.xlu0 %4616
        %4634 = vrot.lane.b32.xlu0 %v4513, 12
        %v4635 = vpop.permute.xlu0 %4634
        %4636 = vrot.lane.b32.xlu0 %v4514, 12
        %v4637 = vpop.permute.xlu0 %4636
        %4638 = vrot.lane.b32.xlu0 %v4515, 12
        %v4639 = vpop.permute.xlu0 %4638
        %4640 = vrot.lane.b32.xlu0 %v4516, 12
        %v4641 = vpop.permute.xlu0 %4640
        %4642 = vrot.lane.b32.xlu0 %v4517, 12
        %v4643 = vpop.permute.xlu0 %4642
        %4644 = vrot.lane.b32.xlu0 %v4518, 12
        %v4645 = vpop.permute.xlu0 %4644
        %4646 = vrot.lane.b32.xlu0 %v4519, 12
        %v4647 = vpop.permute.xlu0 %4646
        %4648 = vrot.lane.b32.xlu0 %v4520, 12
        %v4649 = vpop.permute.xlu0 %4648
        %4666 = vrot.lane.b32.xlu0 %v4521, 16
        %v4667 = vpop.permute.xlu0 %4666
        %4668 = vrot.lane.b32.xlu0 %v4522, 16
        %v4669 = vpop.permute.xlu0 %4668
        %4670 = vrot.lane.b32.xlu0 %v4523, 16
        %v4671 = vpop.permute.xlu0 %4670
        %4672 = vrot.lane.b32.xlu0 %v4524, 16
        %v4673 = vpop.permute.xlu0 %4672
        %4674 = vrot.lane.b32.xlu0 %v4525, 16
        %v4675 = vpop.permute.xlu0 %4674
        %4676 = vrot.lane.b32.xlu0 %v4526, 16
        %v4677 = vpop.permute.xlu0 %4676
        %4678 = vrot.lane.b32.xlu0 %v4527, 16
        %v4679 = vpop.permute.xlu0 %4678
        %4680 = vrot.lane.b32.xlu0 %v4528, 16
        %v4681 = vpop.permute.xlu0 %4680
        %4698 = vrot.lane.b32.xlu0 %v4529, 20
        %v4699 = vpop.permute.xlu0 %4698
        %4700 = vrot.lane.b32.xlu0 %v4530, 20
        %v4701 = vpop.permute.xlu0 %4700
        %4702 = vrot.lane.b32.xlu0 %v4531, 20
        %v4703 = vpop.permute.xlu0 %4702
        %4704 = vrot.lane.b32.xlu0 %v4532, 20
        %v4705 = vpop.permute.xlu0 %4704
        %4706 = vrot.lane.b32.xlu0 %v4533, 20
        %v4707 = vpop.permute.xlu0 %4706
        %4708 = vrot.lane.b32.xlu0 %v4534, 20
        %v4709 = vpop.permute.xlu0 %4708
        %4710 = vrot.lane.b32.xlu0 %v4535, 20
        %v4711 = vpop.permute.xlu0 %4710
        %4712 = vrot.lane.b32.xlu0 %v4536, 20
        %v4713 = vpop.permute.xlu0 %4712
        %4730 = vrot.lane.b32.xlu0 %v4538, 24
        %v4731 = vpop.permute.xlu0 %4730
        %4732 = vrot.lane.b32.xlu0 %v4539, 24
        %v4733 = vpop.permute.xlu0 %4732
        %4734 = vrot.lane.b32.xlu0 %v4540, 24
        %v4735 = vpop.permute.xlu0 %4734
        %4736 = vrot.lane.b32.xlu0 %v4541, 24
        %v4737 = vpop.permute.xlu0 %4736
        %4738 = vrot.lane.b32.xlu0 %v4542, 24
        %v4739 = vpop.permute.xlu0 %4738
        %4740 = vrot.lane.b32.xlu0 %v4543, 24
        %v4741 = vpop.permute.xlu0 %4740
        %4742 = vrot.lane.b32.xlu0 %v4544, 24
        %v4743 = vpop.permute.xlu0 %4742
        %4744 = vrot.lane.b32.xlu0 %v4545, 24
        %v4745 = vpop.permute.xlu0 %4744
        %4762 = vrot.lane.b32.xlu0 %v4546, 28
        %v4763 = vpop.permute.xlu0 %4762
        %4764 = vrot.lane.b32.xlu0 %v4547, 28
        %v4765 = vpop.permute.xlu0 %4764
        %4766 = vrot.lane.b32.xlu0 %v4548, 28
        %v4767 = vpop.permute.xlu0 %4766
        %4768 = vrot.lane.b32.xlu0 %v4549, 28
        %v4769 = vpop.permute.xlu0 %4768
        %4770 = vrot.lane.b32.xlu0 %v4550, 28
        %v4771 = vpop.permute.xlu0 %4770
        %4772 = vrot.lane.b32.xlu0 %v4551, 28
        %v4773 = vpop.permute.xlu0 %4772
        %4774 = vrot.lane.b32.xlu0 %v4552, 28
        %v4775 = vpop.permute.xlu0 %4774
        %4776 = vrot.lane.b32.xlu0 %v4553, 28
        %v4777 = vpop.permute.xlu0 %4776
        %4794 = vrot.lane.b32.xlu0 %v4554, 32
        %v4795 = vpop.permute.xlu0 %4794
        %4796 = vrot.lane.b32.xlu0 %v4555, 32
        %v4797 = vpop.permute.xlu0 %4796
        %4798 = vrot.lane.b32.xlu0 %v4556, 32
        %v4799 = vpop.permute.xlu0 %4798
        %4800 = vrot.lane.b32.xlu0 %v4557, 32
        %v4801 = vpop.permute.xlu0 %4800
        %4802 = vrot.lane.b32.xlu0 %v4558, 32
        %v4803 = vpop.permute.xlu0 %4802
        %4804 = vrot.lane.b32.xlu0 %v4559, 32
        %v4805 = vpop.permute.xlu0 %4804
        %4806 = vrot.lane.b32.xlu0 %v4560, 32
        %v4807 = vpop.permute.xlu0 %4806
        %4808 = vrot.lane.b32.xlu0 %v4561, 32
        %v4809 = vpop.permute.xlu0 %4808
        %v4818 = vsel %vm1183, %v4488, %v4571
        %v4819 = vsel %vm1183, %v4489, %v4573
        %v4820 = vsel %vm1183, %v4490, %v4575
        %v4821 = vsel %vm1183, %v4491, %v4577
        %v4822 = vsel %vm1183, %v4492, %v4579
        %v4823 = vsel %vm1183, %v4493, %v4581
        %v4824 = vsel %vm1183, %v4494, %v4583
        %v4825 = vsel %vm1183, %v4495, %v4585
        %v4826 = vsel %vm1192, %v4818, %v4603
        %v4827 = vsel %vm1192, %v4819, %v4605
        %v4828 = vsel %vm1192, %v4820, %v4607
        %v4829 = vsel %vm1192, %v4821, %v4609
        %v4830 = vsel %vm1192, %v4822, %v4611
        %v4831 = vsel %vm1192, %v4823, %v4613
        %v4832 = vsel %vm1192, %v4824, %v4615
        %v4833 = vsel %vm1192, %v4825, %v4617
        %v4834 = vsel %vm1201, %v4826, %v4635
        %v4835 = vsel %vm1201, %v4827, %v4637
        %v4836 = vsel %vm1201, %v4828, %v4639
        %v4837 = vsel %vm1201, %v4829, %v4641
        %v4838 = vsel %vm1201, %v4830, %v4643
        %v4839 = vsel %vm1201, %v4831, %v4645
        %v4840 = vsel %vm1201, %v4832, %v4647
        %v4841 = vsel %vm1201, %v4833, %v4649
        %v4842 = vsel %vm1210, %v4834, %v4667
        %v4843 = vsel %vm1210, %v4835, %v4669
        %v4844 = vsel %vm1210, %v4836, %v4671
        %v4845 = vsel %vm1210, %v4837, %v4673
        %v4846 = vsel %vm1210, %v4838, %v4675
        %v4847 = vsel %vm1210, %v4839, %v4677
        %v4848 = vsel %vm1210, %v4840, %v4679
        %v4849 = vsel %vm1210, %v4841, %v4681
        %v4850 = vsel %vm1219, %v4842, %v4699
        %v4851 = vsel %vm1219, %v4843, %v4701
        %v4852 = vsel %vm1219, %v4844, %v4703
        %v4853 = vsel %vm1219, %v4845, %v4705
        %v4854 = vsel %vm1219, %v4846, %v4707
        %v4855 = vsel %vm1219, %v4847, %v4709
        %v4856 = vsel %vm1219, %v4848, %v4711
        %v4857 = vsel %vm1219, %v4849, %v4713
        %v4858 = vsel %vm1228, %v4850, %v4731
        %v4859 = vsel %vm1228, %v4851, %v4733
        %v4860 = vsel %vm1228, %v4852, %v4735
        %v4861 = vsel %vm1228, %v4853, %v4737
        %v4862 = vsel %vm1228, %v4854, %v4739
        %v4863 = vsel %vm1228, %v4855, %v4741
        %v4864 = vsel %vm1228, %v4856, %v4743
        %v4865 = vsel %vm1228, %v4857, %v4745
        %v4866 = vsel %vm1237, %v4858, %v4763
        %v4867 = vsel %vm1237, %v4859, %v4765
        %v4868 = vsel %vm1237, %v4860, %v4767
        %v4869 = vsel %vm1237, %v4861, %v4769
        %v4870 = vsel %vm1237, %v4862, %v4771
        %v4871 = vsel %vm1237, %v4863, %v4773
        %v4872 = vsel %vm1237, %v4864, %v4775
        %v4873 = vsel %vm1237, %v4865, %v4777
        %v4874 = vsel %vm1246, %v4866, %v4795
        %v4875 = vsel %vm1246, %v4867, %v4797
        %v4876 = vsel %vm1246, %v4868, %v4799
        %v4877 = vsel %vm1246, %v4869, %v4801
        %v4878 = vsel %vm1246, %v4870, %v4803
        %v4879 = vsel %vm1246, %v4871, %v4805
        %v4880 = vsel %vm1246, %v4872, %v4807
        %v4881 = vsel %vm1246, %v4873, %v4809
        %s4882 = scalar_lea.vmem [#allocation2], 576
        %4883 = vst.msk [vmem:[%s4882] sm:$0xff] %vm1255, %v4874
        %4884 = vst.msk [vmem:[%s4882 + $0x8] sm:$0xff] %vm1255, %v4875
        %4885 = vst.msk [vmem:[%s4882 + $0x10] sm:$0xff] %vm1255, %v4876
        %4886 = vst.msk [vmem:[%s4882 + $0x18] sm:$0xff] %vm1255, %v4877
        %4887 = vst.msk [vmem:[%s4882 + $0x20] sm:$0xff] %vm1255, %v4878
        %4888 = vst.msk [vmem:[%s4882 + $0x28] sm:$0xff] %vm1255, %v4879
        %4889 = vst.msk [vmem:[%s4882 + $0x30] sm:$0xff] %vm1255, %v4880
        %4890 = vst.msk [vmem:[%s4882 + $0x38] sm:$0xff] %vm1255, %v4881
        %v4891 = vld [vmem:[#allocation2] sm:$0xff]
        %v4892 = vld [vmem:[#allocation2 + $0x8] sm:$0xff]
        %v4893 = vld [vmem:[#allocation2 + $0x10] sm:$0xff]
        %v4894 = vld [vmem:[#allocation2 + $0x18] sm:$0xff]
        %v4895 = vld [vmem:[#allocation2 + $0x20] sm:$0xff]
        %v4896 = vld [vmem:[#allocation2 + $0x28] sm:$0xff]
        %v4897 = vld [vmem:[#allocation2 + $0x30] sm:$0xff]
        %v4898 = vld [vmem:[#allocation2 + $0x38] sm:$0xff]
        %v4899 = vld [vmem:[#allocation2 + $0x40] sm:$0xff]
        %v4900 = vld [vmem:[#allocation2 + $0x48] sm:$0xff]
        %v4901 = vld [vmem:[#allocation2 + $0x50] sm:$0xff]
        %v4902 = vld [vmem:[#allocation2 + $0x58] sm:$0xff]
        %v4903 = vld [vmem:[#allocation2 + $0x60] sm:$0xff]
        %v4904 = vld [vmem:[#allocation2 + $0x68] sm:$0xff]
        %v4905 = vld [vmem:[#allocation2 + $0x70] sm:$0xff]
        %v4906 = vld [vmem:[#allocation2 + $0x78] sm:$0xff]
        %v4907 = vld [vmem:[#allocation2 + $0x80] sm:$0xff]
        %v4908 = vld [vmem:[#allocation2 + $0x88] sm:$0xff]
        %v4909 = vld [vmem:[#allocation2 + $0x90] sm:$0xff]
        %v4910 = vld [vmem:[#allocation2 + $0x98] sm:$0xff]
        %v4911 = vld [vmem:[#allocation2 + $0xa0] sm:$0xff]
        %v4912 = vld [vmem:[#allocation2 + $0xa8] sm:$0xff]
        %v4913 = vld [vmem:[#allocation2 + $0xb0] sm:$0xff]
        %v4914 = vld [vmem:[#allocation2 + $0xb8] sm:$0xff]
        %v4915 = vld [vmem:[#allocation2 + $0xc0] sm:$0xff]
        %v4916 = vld [vmem:[#allocation2 + $0xc8] sm:$0xff]
        %v4917 = vld [vmem:[#allocation2 + $0xd0] sm:$0xff]
        %v4918 = vld [vmem:[#allocation2 + $0xd8] sm:$0xff]
        %v4919 = vld [vmem:[#allocation2 + $0xe0] sm:$0xff]
        %v4920 = vld [vmem:[#allocation2 + $0xe8] sm:$0xff]
        %v4921 = vld [vmem:[#allocation2 + $0xf0] sm:$0xff]
        %v4922 = vld [vmem:[#allocation2 + $0xf8] sm:$0xff]
        %v4923 = vld [vmem:[#allocation2 + $0x100] sm:$0xff]
        %v4924 = vld [vmem:[#allocation2 + $0x108] sm:$0xff]
        %v4925 = vld [vmem:[#allocation2 + $0x110] sm:$0xff]
        %v4926 = vld [vmem:[#allocation2 + $0x118] sm:$0xff]
        %v4927 = vld [vmem:[#allocation2 + $0x120] sm:$0xff]
        %v4928 = vld [vmem:[#allocation2 + $0x128] sm:$0xff]
        %v4929 = vld [vmem:[#allocation2 + $0x130] sm:$0xff]
        %v4930 = vld [vmem:[#allocation2 + $0x138] sm:$0xff]
        %v4931 = vld [vmem:[#allocation2 + $0x140] sm:$0xff]
        %v4932 = vld [vmem:[#allocation2 + $0x148] sm:$0xff]
        %v4933 = vld [vmem:[#allocation2 + $0x150] sm:$0xff]
        %v4934 = vld [vmem:[#allocation2 + $0x158] sm:$0xff]
        %v4935 = vld [vmem:[#allocation2 + $0x160] sm:$0xff]
        %v4936 = vld [vmem:[#allocation2 + $0x168] sm:$0xff]
        %v4937 = vld [vmem:[#allocation2 + $0x170] sm:$0xff]
        %v4938 = vld [vmem:[#allocation2 + $0x178] sm:$0xff]
        %v4939 = vld [vmem:[#allocation2 + $0x180] sm:$0xff]
        %v4940 = vld [vmem:[#allocation2 + $0x188] sm:$0xff]
        %v4941 = vld [vmem:[#allocation2 + $0x190] sm:$0xff]
        %v4942 = vld [vmem:[#allocation2 + $0x198] sm:$0xff]
        %v4943 = vld [vmem:[#allocation2 + $0x1a0] sm:$0xff]
        %v4944 = vld [vmem:[#allocation2 + $0x1a8] sm:$0xff]
        %v4945 = vld [vmem:[#allocation2 + $0x1b0] sm:$0xff]
        %v4946 = vld [vmem:[#allocation2 + $0x1b8] sm:$0xff]
        %v4947 = vld [vmem:[#allocation2 + $0x1c0] sm:$0xff]
        %v4948 = vld [vmem:[#allocation2 + $0x1c8] sm:$0xff]
        %v4949 = vld [vmem:[#allocation2 + $0x1d0] sm:$0xff]
        %v4950 = vld [vmem:[#allocation2 + $0x1d8] sm:$0xff]
        %v4951 = vld [vmem:[#allocation2 + $0x1e0] sm:$0xff]
        %v4952 = vld [vmem:[#allocation2 + $0x1e8] sm:$0xff]
        %v4953 = vld [vmem:[#allocation2 + $0x1f0] sm:$0xff]
        %v4954 = vld [vmem:[#allocation2 + $0x1f8] sm:$0xff]
        %v4955 = vld [vmem:[%s10] sm:$0xff]
        %v4956 = vld [vmem:[%s10 + $0x8] sm:$0xff]
        %v4957 = vld [vmem:[%s10 + $0x10] sm:$0xff]
        %v4958 = vld [vmem:[%s10 + $0x18] sm:$0xff]
        %v4959 = vld [vmem:[%s10 + $0x20] sm:$0xf]
        %v4960 = vld [vmem:[%s1658] sm:$0xff]
        %v4961 = vld [vmem:[%s1658 + $0x8] sm:$0xff]
        %v4962 = vld [vmem:[%s1658 + $0x10] sm:$0xff]
        %v4963 = vld [vmem:[%s1658 + $0x18] sm:$0xff]
        %v4964 = vld [vmem:[%s1658 + $0x20] sm:$0xff]
        %v4965 = vld [vmem:[%s1658 + $0x28] sm:$0xff]
        %v4966 = vld [vmem:[%s1658 + $0x30] sm:$0xff]
        %v4967 = vld [vmem:[%s1658 + $0x38] sm:$0xff]
        %v4968 = vld [vmem:[%s1658 + $0x40] sm:$0xff]
        %v4969 = vld [vmem:[%s1658 + $0x48] sm:$0xff]
        %v4970 = vld [vmem:[%s1658 + $0x50] sm:$0xff]
        %v4971 = vld [vmem:[%s1658 + $0x58] sm:$0xff]
        %v4972 = vld [vmem:[%s1658 + $0x60] sm:$0xff]
        %v4973 = vld [vmem:[%s1658 + $0x68] sm:$0xff]
        %v4974 = vld [vmem:[%s1658 + $0x70] sm:$0xff]
        %v4975 = vld [vmem:[%s1658 + $0x78] sm:$0xff]
        %v4976 = vld [vmem:[%s1658 + $0x80] sm:$0xff]
        %v4977 = vld [vmem:[%s1658 + $0x88] sm:$0xff]
        %v4978 = vld [vmem:[%s1658 + $0x90] sm:$0xff]
        %v4979 = vld [vmem:[%s1658 + $0x98] sm:$0xff]
        %v4980 = vld [vmem:[%s1658 + $0xa0] sm:$0xff]
        %v4981 = vld [vmem:[%s1658 + $0xa8] sm:$0xff]
        %v4982 = vld [vmem:[%s1658 + $0xb0] sm:$0xff]
        %v4983 = vld [vmem:[%s1658 + $0xb8] sm:$0xff]
        %v4984 = vld [vmem:[%s1658 + $0xc0] sm:$0xff]
        %v4985 = vld [vmem:[%s1658 + $0xc8] sm:$0xff]
        %v4986 = vld [vmem:[%s1658 + $0xd0] sm:$0xff]
        %v4987 = vld [vmem:[%s1658 + $0xd8] sm:$0xff]
        %v4988 = vld [vmem:[%s1658 + $0xe0] sm:$0xff]
        %v4989 = vld [vmem:[%s1658 + $0xe8] sm:$0xff]
        %v4990 = vld [vmem:[%s1658 + $0xf0] sm:$0xff]
        %v4991 = vld [vmem:[%s1658 + $0xf8] sm:$0xff]
        %v4992 = vld [vmem:[%s1658 + $0x100] sm:$0xff]
        %v4993 = vld [vmem:[%s1658 + $0x108] sm:$0xff]
        %v4994 = vld [vmem:[%s1658 + $0x110] sm:$0xff]
        %v4995 = vld [vmem:[%s1658 + $0x118] sm:$0xff]
        %v4996 = vld [vmem:[%s1658 + $0x120] sm:$0xff]
        %v4997 = vld [vmem:[%s1658 + $0x128] sm:$0xff]
        %v4998 = vld [vmem:[%s1658 + $0x130] sm:$0xff]
        %v4999 = vld [vmem:[%s1658 + $0x138] sm:$0xff]
        %v5000 = vld [vmem:[%s1658 + $0x140] sm:$0xff]
        %v5001 = vld [vmem:[%s1658 + $0x148] sm:$0xff]
        %v5002 = vld [vmem:[%s1658 + $0x150] sm:$0xff]
        %v5003 = vld [vmem:[%s1658 + $0x158] sm:$0xff]
        %v5004 = vld [vmem:[%s1658 + $0x160] sm:$0xff]
        %v5005 = vld [vmem:[%s1658 + $0x168] sm:$0xff]
        %v5006 = vld [vmem:[%s1658 + $0x170] sm:$0xff]
        %v5007 = vld [vmem:[%s1658 + $0x178] sm:$0xff]
        %v5008 = vld [vmem:[%s1658 + $0x180] sm:$0xff]
        %v5009 = vld [vmem:[%s1658 + $0x188] sm:$0xff]
        %v5010 = vld [vmem:[%s1658 + $0x190] sm:$0xff]
        %v5011 = vld [vmem:[%s1658 + $0x198] sm:$0xff]
        %v5012 = vld [vmem:[%s1658 + $0x1a0] sm:$0xff]
        %v5013 = vld [vmem:[%s1658 + $0x1a8] sm:$0xff]
        %v5014 = vld [vmem:[%s1658 + $0x1b0] sm:$0xff]
        %v5015 = vld [vmem:[%s1658 + $0x1b8] sm:$0xff]
        %v5016 = vld [vmem:[%s1658 + $0x1c0] sm:$0xff]
        %v5017 = vld [vmem:[%s1658 + $0x1c8] sm:$0xff]
        %v5018 = vld [vmem:[%s1658 + $0x1d0] sm:$0xff]
        %v5019 = vld [vmem:[%s1658 + $0x1d8] sm:$0xff]
        %v5020 = vld [vmem:[%s1658 + $0x1e0] sm:$0xff]
        %v5021 = vld [vmem:[%s1658 + $0x1e8] sm:$0xff]
        %v5022 = vld [vmem:[%s1658 + $0x1f0] sm:$0xff]
        %v5023 = vld [vmem:[%s1658 + $0x1f8] sm:$0xff]
        %s5024 = scalar_lea.vmem %s10, 40
        %v5025 = vld [vmem:[%s5024] sm:$0xff]
        %v5026 = vld [vmem:[%s5024 + $0x8] sm:$0xff]
        %v5027 = vld [vmem:[%s5024 + $0x10] sm:$0xff]
        %v5028 = vld [vmem:[%s5024 + $0x18] sm:$0xff]
        %v5029 = vld [vmem:[%s5024 + $0x20] sm:$0xf]
        %v5031 = vsel %vm1255, %v4960, 0
        %v5034 = vsel %vm1255, %v4961, 0
        %v5037 = vsel %vm1255, %v4962, 0
        %v5040 = vsel %vm1255, %v4963, 0
        %v5043 = vsel %vm1255, %v4964, 0
        %v5046 = vsel %vm1255, %v4965, 0
        %v5049 = vsel %vm1255, %v4966, 0
        %v5052 = vsel %vm1255, %v4967, 0
        %v5055 = vsel %vm1255, %v4968, 0
        %v5058 = vsel %vm1255, %v4969, 0
        %v5061 = vsel %vm1255, %v4970, 0
        %v5064 = vsel %vm1255, %v4971, 0
        %v5067 = vsel %vm1255, %v4972, 0
        %v5070 = vsel %vm1255, %v4973, 0
        %v5073 = vsel %vm1255, %v4974, 0
        %v5076 = vsel %vm1255, %v4975, 0
        %v5079 = vsel %vm1255, %v4976, 0
        %v5082 = vsel %vm1255, %v4977, 0
        %v5085 = vsel %vm1255, %v4978, 0
        %v5088 = vsel %vm1255, %v4979, 0
        %v5091 = vsel %vm1255, %v4980, 0
        %v5094 = vsel %vm1255, %v4981, 0
        %v5097 = vsel %vm1255, %v4982, 0
        %v5100 = vsel %vm1255, %v4983, 0
        %v5103 = vsel %vm1255, %v4984, 0
        %v5106 = vsel %vm1255, %v4985, 0
        %v5109 = vsel %vm1255, %v4986, 0
        %v5112 = vsel %vm1255, %v4987, 0
        %v5115 = vsel %vm1255, %v4988, 0
        %v5118 = vsel %vm1255, %v4989, 0
        %v5121 = vsel %vm1255, %v4990, 0
        %v5124 = vsel %vm1255, %v4991, 0
        %v5127 = vsel %vm1255, %v4992, 0
        %v5130 = vsel %vm1255, %v4993, 0
        %v5133 = vsel %vm1255, %v4994, 0
        %v5136 = vsel %vm1255, %v4995, 0
        %v5139 = vsel %vm1255, %v4996, 0
        %v5142 = vsel %vm1255, %v4997, 0
        %v5145 = vsel %vm1255, %v4998, 0
        %v5148 = vsel %vm1255, %v4999, 0
        %v5151 = vsel %vm1255, %v5000, 0
        %v5154 = vsel %vm1255, %v5001, 0
        %v5157 = vsel %vm1255, %v5002, 0
        %v5160 = vsel %vm1255, %v5003, 0
        %v5163 = vsel %vm1255, %v5004, 0
        %v5166 = vsel %vm1255, %v5005, 0
        %v5169 = vsel %vm1255, %v5006, 0
        %v5172 = vsel %vm1255, %v5007, 0
        %v5175 = vsel %vm1255, %v5008, 0
        %v5178 = vsel %vm1255, %v5009, 0
        %v5181 = vsel %vm1255, %v5010, 0
        %v5184 = vsel %vm1255, %v5011, 0
        %v5187 = vsel %vm1255, %v5012, 0
        %v5190 = vsel %vm1255, %v5013, 0
        %v5193 = vsel %vm1255, %v5014, 0
        %v5196 = vsel %vm1255, %v5015, 0
        %v5199 = vsel %vm1255, %v5016, 0
        %v5202 = vsel %vm1255, %v5017, 0
        %v5205 = vsel %vm1255, %v5018, 0
        %v5208 = vsel %vm1255, %v5019, 0
        %v5211 = vsel %vm1255, %v5020, 0
        %v5214 = vsel %vm1255, %v5021, 0
        %v5217 = vsel %vm1255, %v5022, 0
        %v5220 = vsel %vm1255, %v5023, 0
        %vm5222 = vcmask 1043456
        %v5224 = vsel %vm5222, %v5029, 0
        %5226 = vmatprep.subr.mxu0 0.0
        %5227 = vmatpush1.msra.mxu0 0.0
        %5228 = vmatprep.subr.mxu0 0.0
        %5229 = vmatpush1.msra.mxu0 0.0
        %5230 = vmatprep.subr.mxu0 0.0
        %5231 = vmatpush1.msra.mxu0 0.0
        %5232 = vmatprep.subr.mxu0 0.0
        %5233 = vmatpush1.msra.mxu0 0.0
        %5234 = vmatprep.subr.mxu0 0.0
        %5235 = vmatpush1.msra.mxu0 0.0
        %5236 = vmatprep.subr.mxu0 0.0
        %5237 = vmatpush1.msra.mxu0 0.0
        %5238 = vmatprep.subr.mxu0 0.0
        %5239 = vmatpush1.msra.mxu0 0.0
        %5240 = vmatprep.subr.mxu0 0.0
        %5241 = vmatpush1.msra.mxu0 0.0
        %5242 = vmatprep.subr.mxu0 0.0
        %5243 = vmatpush1.msra.mxu0 0.0
        %5244 = vmatprep.subr.mxu0 0.0
        %5245 = vmatpush1.msra.mxu0 0.0
        %5246 = vmatprep.subr.mxu0 0.0
        %5247 = vmatpush1.msra.mxu0 0.0
        %5248 = vmatprep.subr.mxu0 0.0
        %5249 = vmatpush1.msra.mxu0 %v5224
        %5250 = vmatprep.subr.mxu0 0.0
        %5251 = vmatpush1.msra.mxu0 %v5028
        %5252 = vmatprep.subr.mxu0 0.0
        %5253 = vmatpush1.msra.mxu0 %v5027
        %5254 = vmatprep.subr.mxu0 0.0
        %5255 = vmatpush1.msra.mxu0 %v5026
        %5256 = vmatprep.subr.mxu0 0.0
        %5257 = vmatpush1.msra.mxu0 %v5025
        %5258 = vmatprep.subr.mxu0 0.0
        %5259 = vmatpush2.msra.mxu0 0.0
        %5260 = vmatprep.subr.mxu0 0.0
        %5261 = vmatpush2.msra.mxu0 0.0
        %5262 = vmatprep.subr.mxu0 0.0
        %5263 = vmatpush2.msra.mxu0 0.0
        %5264 = vmatprep.subr.mxu0 0.0
        %5265 = vmatpush2.msra.mxu0 0.0
        %5266 = vmatprep.subr.mxu0 0.0
        %5267 = vmatpush2.msra.mxu0 0.0
        %5268 = vmatprep.subr.mxu0 0.0
        %5269 = vmatpush2.msra.mxu0 0.0
        %5270 = vmatprep.subr.mxu0 0.0
        %5271 = vmatpush2.msra.mxu0 0.0
        %5272 = vmatprep.subr.mxu0 0.0
        %5273 = vmatpush2.msra.mxu0 0.0
        %5274 = vmatprep.subr.mxu0 0.0
        %5275 = vmatpush2.msra.mxu0 0.0
        %5276 = vmatprep.subr.mxu0 0.0
        %5277 = vmatpush2.msra.mxu0 0.0
        %5278 = vmatprep.subr.mxu0 0.0
        %5279 = vmatpush2.msra.mxu0 0.0
        %5280 = vmatprep.subr.mxu0 0.0
        %5281 = vmatpush2.msra.mxu0 0.0
        %5282 = vmatprep.subr.mxu0 0.0
        %5283 = vmatpush2.msra.mxu0 0.0
        %5284 = vmatprep.subr.mxu0 0.0
        %5285 = vmatpush2.msra.mxu0 0.0
        %5286 = vmatprep.subr.mxu0 0.0
        %5287 = vmatpush2.msra.mxu0 0.0
        %5288 = vmatprep.subr.mxu0 0.0
        %5289 = vmatpush2.msra.mxu0 0.0
        %5290 = vmatprep.mubr.f32.mxu0 0.0
        %5291 = vmatmul.mubr.f32.gmra.mxu0 %v5031
        %v5292 = vpop.f32.mrf.mxu0
        %v5293 = vadd.f32 0.0, %v5292
        %v5294 = vpop.f32.mrf.mxu0
        %5295 = vmatprep.mubr.f32.mxu0 0.0
        %5296 = vmatmul.mubr.f32.gmra.mxu0 %v5034
        %v5297 = vpop.f32.mrf.mxu0
        %v5298 = vadd.f32 0.0, %v5297
        %v5299 = vpop.f32.mrf.mxu0
        %5300 = vmatprep.mubr.f32.mxu0 0.0
        %5301 = vmatmul.mubr.f32.gmra.mxu0 %v5037
        %v5302 = vpop.f32.mrf.mxu0
        %v5303 = vadd.f32 0.0, %v5302
        %v5304 = vpop.f32.mrf.mxu0
        %5305 = vmatprep.mubr.f32.mxu0 0.0
        %5306 = vmatmul.mubr.f32.gmra.mxu0 %v5040
        %v5307 = vpop.f32.mrf.mxu0
        %v5308 = vadd.f32 0.0, %v5307
        %v5309 = vpop.f32.mrf.mxu0
        %5310 = vmatprep.mubr.f32.mxu0 0.0
        %5311 = vmatmul.mubr.f32.gmra.mxu0 %v5043
        %v5312 = vpop.f32.mrf.mxu0
        %v5313 = vadd.f32 0.0, %v5312
        %v5314 = vpop.f32.mrf.mxu0
        %5315 = vmatprep.mubr.f32.mxu0 0.0
        %5316 = vmatmul.mubr.f32.gmra.mxu0 %v5046
        %v5317 = vpop.f32.mrf.mxu0
        %v5318 = vadd.f32 0.0, %v5317
        %v5319 = vpop.f32.mrf.mxu0
        %5320 = vmatprep.mubr.f32.mxu0 0.0
        %5321 = vmatmul.mubr.f32.gmra.mxu0 %v5049
        %v5322 = vpop.f32.mrf.mxu0
        %v5323 = vadd.f32 0.0, %v5322
        %v5324 = vpop.f32.mrf.mxu0
        %5325 = vmatprep.mubr.f32.mxu0 0.0
        %5326 = vmatmul.mubr.f32.gmra.mxu0 %v5052
        %v5327 = vpop.f32.mrf.mxu0
        %v5328 = vadd.f32 0.0, %v5327
        %v5329 = vpop.f32.mrf.mxu0
        %5330 = vmatprep.mubr.f32.mxu0 0.0
        %5331 = vmatmul.mubr.f32.gmra.mxu0 %v5055
        %v5332 = vpop.f32.mrf.mxu0
        %v5333 = vadd.f32 0.0, %v5332
        %v5334 = vpop.f32.mrf.mxu0
        %5335 = vmatprep.mubr.f32.mxu0 0.0
        %5336 = vmatmul.mubr.f32.gmra.mxu0 %v5058
        %v5337 = vpop.f32.mrf.mxu0
        %v5338 = vadd.f32 0.0, %v5337
        %v5339 = vpop.f32.mrf.mxu0
        %5340 = vmatprep.mubr.f32.mxu0 0.0
        %5341 = vmatmul.mubr.f32.gmra.mxu0 %v5061
        %v5342 = vpop.f32.mrf.mxu0
        %v5343 = vadd.f32 0.0, %v5342
        %v5344 = vpop.f32.mrf.mxu0
        %5345 = vmatprep.mubr.f32.mxu0 0.0
        %5346 = vmatmul.mubr.f32.gmra.mxu0 %v5064
        %v5347 = vpop.f32.mrf.mxu0
        %v5348 = vadd.f32 0.0, %v5347
        %v5349 = vpop.f32.mrf.mxu0
        %5350 = vmatprep.mubr.f32.mxu0 0.0
        %5351 = vmatmul.mubr.f32.gmra.mxu0 %v5067
        %v5352 = vpop.f32.mrf.mxu0
        %v5353 = vadd.f32 0.0, %v5352
        %v5354 = vpop.f32.mrf.mxu0
        %5355 = vmatprep.mubr.f32.mxu0 0.0
        %5356 = vmatmul.mubr.f32.gmra.mxu0 %v5070
        %v5357 = vpop.f32.mrf.mxu0
        %v5358 = vadd.f32 0.0, %v5357
        %v5359 = vpop.f32.mrf.mxu0
        %5360 = vmatprep.mubr.f32.mxu0 0.0
        %5361 = vmatmul.mubr.f32.gmra.mxu0 %v5073
        %v5362 = vpop.f32.mrf.mxu0
        %v5363 = vadd.f32 0.0, %v5362
        %v5364 = vpop.f32.mrf.mxu0
        %5365 = vmatprep.mubr.f32.mxu0 0.0
        %5366 = vmatmul.mubr.f32.gmra.mxu0 %v5076
        %v5367 = vpop.f32.mrf.mxu0
        %v5368 = vadd.f32 0.0, %v5367
        %v5369 = vpop.f32.mrf.mxu0
        %5370 = vmatprep.mubr.f32.mxu0 0.0
        %5371 = vmatmul.mubr.f32.gmra.mxu0 %v5079
        %v5372 = vpop.f32.mrf.mxu0
        %v5373 = vadd.f32 0.0, %v5372
        %v5374 = vpop.f32.mrf.mxu0
        %5375 = vmatprep.mubr.f32.mxu0 0.0
        %5376 = vmatmul.mubr.f32.gmra.mxu0 %v5082
        %v5377 = vpop.f32.mrf.mxu0
        %v5378 = vadd.f32 0.0, %v5377
        %v5379 = vpop.f32.mrf.mxu0
        %5380 = vmatprep.mubr.f32.mxu0 0.0
        %5381 = vmatmul.mubr.f32.gmra.mxu0 %v5085
        %v5382 = vpop.f32.mrf.mxu0
        %v5383 = vadd.f32 0.0, %v5382
        %v5384 = vpop.f32.mrf.mxu0
        %5385 = vmatprep.mubr.f32.mxu0 0.0
        %5386 = vmatmul.mubr.f32.gmra.mxu0 %v5088
        %v5387 = vpop.f32.mrf.mxu0
        %v5388 = vadd.f32 0.0, %v5387
        %v5389 = vpop.f32.mrf.mxu0
        %5390 = vmatprep.mubr.f32.mxu0 0.0
        %5391 = vmatmul.mubr.f32.gmra.mxu0 %v5091
        %v5392 = vpop.f32.mrf.mxu0
        %v5393 = vadd.f32 0.0, %v5392
        %v5394 = vpop.f32.mrf.mxu0
        %5395 = vmatprep.mubr.f32.mxu0 0.0
        %5396 = vmatmul.mubr.f32.gmra.mxu0 %v5094
        %v5397 = vpop.f32.mrf.mxu0
        %v5398 = vadd.f32 0.0, %v5397
        %v5399 = vpop.f32.mrf.mxu0
        %5400 = vmatprep.mubr.f32.mxu0 0.0
        %5401 = vmatmul.mubr.f32.gmra.mxu0 %v5097
        %v5402 = vpop.f32.mrf.mxu0
        %v5403 = vadd.f32 0.0, %v5402
        %v5404 = vpop.f32.mrf.mxu0
        %5405 = vmatprep.mubr.f32.mxu0 0.0
        %5406 = vmatmul.mubr.f32.gmra.mxu0 %v5100
        %v5407 = vpop.f32.mrf.mxu0
        %v5408 = vadd.f32 0.0, %v5407
        %v5409 = vpop.f32.mrf.mxu0
        %5410 = vmatprep.mubr.f32.mxu0 0.0
        %5411 = vmatmul.mubr.f32.gmra.mxu0 %v5103
        %v5412 = vpop.f32.mrf.mxu0
        %v5413 = vadd.f32 0.0, %v5412
        %v5414 = vpop.f32.mrf.mxu0
        %5415 = vmatprep.mubr.f32.mxu0 0.0
        %5416 = vmatmul.mubr.f32.gmra.mxu0 %v5106
        %v5417 = vpop.f32.mrf.mxu0
        %v5418 = vadd.f32 0.0, %v5417
        %v5419 = vpop.f32.mrf.mxu0
        %5420 = vmatprep.mubr.f32.mxu0 0.0
        %5421 = vmatmul.mubr.f32.gmra.mxu0 %v5109
        %v5422 = vpop.f32.mrf.mxu0
        %v5423 = vadd.f32 0.0, %v5422
        %v5424 = vpop.f32.mrf.mxu0
        %5425 = vmatprep.mubr.f32.mxu0 0.0
        %5426 = vmatmul.mubr.f32.gmra.mxu0 %v5112
        %v5427 = vpop.f32.mrf.mxu0
        %v5428 = vadd.f32 0.0, %v5427
        %v5429 = vpop.f32.mrf.mxu0
        %5430 = vmatprep.mubr.f32.mxu0 0.0
        %5431 = vmatmul.mubr.f32.gmra.mxu0 %v5115
        %v5432 = vpop.f32.mrf.mxu0
        %v5433 = vadd.f32 0.0, %v5432
        %v5434 = vpop.f32.mrf.mxu0
        %5435 = vmatprep.mubr.f32.mxu0 0.0
        %5436 = vmatmul.mubr.f32.gmra.mxu0 %v5118
        %v5437 = vpop.f32.mrf.mxu0
        %v5438 = vadd.f32 0.0, %v5437
        %v5439 = vpop.f32.mrf.mxu0
        %5440 = vmatprep.mubr.f32.mxu0 0.0
        %5441 = vmatmul.mubr.f32.gmra.mxu0 %v5121
        %v5442 = vpop.f32.mrf.mxu0
        %v5443 = vadd.f32 0.0, %v5442
        %v5444 = vpop.f32.mrf.mxu0
        %5445 = vmatprep.mubr.f32.mxu0 0.0
        %5446 = vmatmul.mubr.f32.gmra.mxu0 %v5124
        %v5447 = vpop.f32.mrf.mxu0
        %v5448 = vadd.f32 0.0, %v5447
        %v5449 = vpop.f32.mrf.mxu0
        %5450 = vmatprep.mubr.f32.mxu0 0.0
        %5451 = vmatmul.mubr.f32.gmra.mxu0 %v5127
        %v5452 = vpop.f32.mrf.mxu0
        %v5453 = vadd.f32 0.0, %v5452
        %v5454 = vpop.f32.mrf.mxu0
        %5455 = vmatprep.mubr.f32.mxu0 0.0
        %5456 = vmatmul.mubr.f32.gmra.mxu0 %v5130
        %v5457 = vpop.f32.mrf.mxu0
        %v5458 = vadd.f32 0.0, %v5457
        %v5459 = vpop.f32.mrf.mxu0
        %5460 = vmatprep.mubr.f32.mxu0 0.0
        %5461 = vmatmul.mubr.f32.gmra.mxu0 %v5133
        %v5462 = vpop.f32.mrf.mxu0
        %v5463 = vadd.f32 0.0, %v5462
        %v5464 = vpop.f32.mrf.mxu0
        %5465 = vmatprep.mubr.f32.mxu0 0.0
        %5466 = vmatmul.mubr.f32.gmra.mxu0 %v5136
        %v5467 = vpop.f32.mrf.mxu0
        %v5468 = vadd.f32 0.0, %v5467
        %v5469 = vpop.f32.mrf.mxu0
        %5470 = vmatprep.mubr.f32.mxu0 0.0
        %5471 = vmatmul.mubr.f32.gmra.mxu0 %v5139
        %v5472 = vpop.f32.mrf.mxu0
        %v5473 = vadd.f32 0.0, %v5472
        %v5474 = vpop.f32.mrf.mxu0
        %5475 = vmatprep.mubr.f32.mxu0 0.0
        %5476 = vmatmul.mubr.f32.gmra.mxu0 %v5142
        %v5477 = vpop.f32.mrf.mxu0
        %v5478 = vadd.f32 0.0, %v5477
        %v5479 = vpop.f32.mrf.mxu0
        %5480 = vmatprep.mubr.f32.mxu0 0.0
        %5481 = vmatmul.mubr.f32.gmra.mxu0 %v5145
        %v5482 = vpop.f32.mrf.mxu0
        %v5483 = vadd.f32 0.0, %v5482
        %v5484 = vpop.f32.mrf.mxu0
        %5485 = vmatprep.mubr.f32.mxu0 0.0
        %5486 = vmatmul.mubr.f32.gmra.mxu0 %v5148
        %v5487 = vpop.f32.mrf.mxu0
        %v5488 = vadd.f32 0.0, %v5487
        %v5489 = vpop.f32.mrf.mxu0
        %5490 = vmatprep.mubr.f32.mxu0 0.0
        %5491 = vmatmul.mubr.f32.gmra.mxu0 %v5151
        %v5492 = vpop.f32.mrf.mxu0
        %v5493 = vadd.f32 0.0, %v5492
        %v5494 = vpop.f32.mrf.mxu0
        %5495 = vmatprep.mubr.f32.mxu0 0.0
        %5496 = vmatmul.mubr.f32.gmra.mxu0 %v5154
        %v5497 = vpop.f32.mrf.mxu0
        %v5498 = vadd.f32 0.0, %v5497
        %v5499 = vpop.f32.mrf.mxu0
        %5500 = vmatprep.mubr.f32.mxu0 0.0
        %5501 = vmatmul.mubr.f32.gmra.mxu0 %v5157
        %v5502 = vpop.f32.mrf.mxu0
        %v5503 = vadd.f32 0.0, %v5502
        %v5504 = vpop.f32.mrf.mxu0
        %5505 = vmatprep.mubr.f32.mxu0 0.0
        %5506 = vmatmul.mubr.f32.gmra.mxu0 %v5160
        %v5507 = vpop.f32.mrf.mxu0
        %v5508 = vadd.f32 0.0, %v5507
        %v5509 = vpop.f32.mrf.mxu0
        %5510 = vmatprep.mubr.f32.mxu0 0.0
        %5511 = vmatmul.mubr.f32.gmra.mxu0 %v5163
        %v5512 = vpop.f32.mrf.mxu0
        %v5513 = vadd.f32 0.0, %v5512
        %v5514 = vpop.f32.mrf.mxu0
        %5515 = vmatprep.mubr.f32.mxu0 0.0
        %5516 = vmatmul.mubr.f32.gmra.mxu0 %v5166
        %v5517 = vpop.f32.mrf.mxu0
        %v5518 = vadd.f32 0.0, %v5517
        %v5519 = vpop.f32.mrf.mxu0
        %5520 = vmatprep.mubr.f32.mxu0 0.0
        %5521 = vmatmul.mubr.f32.gmra.mxu0 %v5169
        %v5522 = vpop.f32.mrf.mxu0
        %v5523 = vadd.f32 0.0, %v5522
        %v5524 = vpop.f32.mrf.mxu0
        %5525 = vmatprep.mubr.f32.mxu0 0.0
        %5526 = vmatmul.mubr.f32.gmra.mxu0 %v5172
        %v5527 = vpop.f32.mrf.mxu0
        %v5528 = vadd.f32 0.0, %v5527
        %v5529 = vpop.f32.mrf.mxu0
        %5530 = vmatprep.mubr.f32.mxu0 0.0
        %5531 = vmatmul.mubr.f32.gmra.mxu0 %v5175
        %v5532 = vpop.f32.mrf.mxu0
        %v5533 = vadd.f32 0.0, %v5532
        %v5534 = vpop.f32.mrf.mxu0
        %5535 = vmatprep.mubr.f32.mxu0 0.0
        %5536 = vmatmul.mubr.f32.gmra.mxu0 %v5178
        %v5537 = vpop.f32.mrf.mxu0
        %v5538 = vadd.f32 0.0, %v5537
        %v5539 = vpop.f32.mrf.mxu0
        %5540 = vmatprep.mubr.f32.mxu0 0.0
        %5541 = vmatmul.mubr.f32.gmra.mxu0 %v5181
        %v5542 = vpop.f32.mrf.mxu0
        %v5543 = vadd.f32 0.0, %v5542
        %v5544 = vpop.f32.mrf.mxu0
        %5545 = vmatprep.mubr.f32.mxu0 0.0
        %5546 = vmatmul.mubr.f32.gmra.mxu0 %v5184
        %v5547 = vpop.f32.mrf.mxu0
        %v5548 = vadd.f32 0.0, %v5547
        %v5549 = vpop.f32.mrf.mxu0
        %5550 = vmatprep.mubr.f32.mxu0 0.0
        %5551 = vmatmul.mubr.f32.gmra.mxu0 %v5187
        %v5552 = vpop.f32.mrf.mxu0
        %v5553 = vadd.f32 0.0, %v5552
        %v5554 = vpop.f32.mrf.mxu0
        %5555 = vmatprep.mubr.f32.mxu0 0.0
        %5556 = vmatmul.mubr.f32.gmra.mxu0 %v5190
        %v5557 = vpop.f32.mrf.mxu0
        %v5558 = vadd.f32 0.0, %v5557
        %v5559 = vpop.f32.mrf.mxu0
        %5560 = vmatprep.mubr.f32.mxu0 0.0
        %5561 = vmatmul.mubr.f32.gmra.mxu0 %v5193
        %v5562 = vpop.f32.mrf.mxu0
        %v5563 = vadd.f32 0.0, %v5562
        %v5564 = vpop.f32.mrf.mxu0
        %5565 = vmatprep.mubr.f32.mxu0 0.0
        %5566 = vmatmul.mubr.f32.gmra.mxu0 %v5196
        %v5567 = vpop.f32.mrf.mxu0
        %v5568 = vadd.f32 0.0, %v5567
        %v5569 = vpop.f32.mrf.mxu0
        %5570 = vmatprep.mubr.f32.mxu0 0.0
        %5571 = vmatmul.mubr.f32.gmra.mxu0 %v5199
        %v5572 = vpop.f32.mrf.mxu0
        %v5573 = vadd.f32 0.0, %v5572
        %v5574 = vpop.f32.mrf.mxu0
        %5575 = vmatprep.mubr.f32.mxu0 0.0
        %5576 = vmatmul.mubr.f32.gmra.mxu0 %v5202
        %v5577 = vpop.f32.mrf.mxu0
        %v5578 = vadd.f32 0.0, %v5577
        %v5579 = vpop.f32.mrf.mxu0
        %5580 = vmatprep.mubr.f32.mxu0 0.0
        %5581 = vmatmul.mubr.f32.gmra.mxu0 %v5205
        %v5582 = vpop.f32.mrf.mxu0
        %v5583 = vadd.f32 0.0, %v5582
        %v5584 = vpop.f32.mrf.mxu0
        %5585 = vmatprep.mubr.f32.mxu0 0.0
        %5586 = vmatmul.mubr.f32.gmra.mxu0 %v5208
        %v5587 = vpop.f32.mrf.mxu0
        %v5588 = vadd.f32 0.0, %v5587
        %v5589 = vpop.f32.mrf.mxu0
        %5590 = vmatprep.mubr.f32.mxu0 0.0
        %5591 = vmatmul.mubr.f32.gmra.mxu0 %v5211
        %v5592 = vpop.f32.mrf.mxu0
        %v5593 = vadd.f32 0.0, %v5592
        %v5594 = vpop.f32.mrf.mxu0
        %5595 = vmatprep.mubr.f32.mxu0 0.0
        %5596 = vmatmul.mubr.f32.gmra.mxu0 %v5214
        %v5597 = vpop.f32.mrf.mxu0
        %v5598 = vadd.f32 0.0, %v5597
        %v5599 = vpop.f32.mrf.mxu0
        %5600 = vmatprep.mubr.f32.mxu0 0.0
        %5601 = vmatmul.mubr.f32.gmra.mxu0 %v5217
        %v5602 = vpop.f32.mrf.mxu0
        %v5603 = vadd.f32 0.0, %v5602
        %v5604 = vpop.f32.mrf.mxu0
        %5605 = vmatprep.mubr.f32.mxu0 0.0
        %5606 = vmatmul.mubr.f32.gmra.mxu0 %v5220
        %v5607 = vpop.f32.mrf.mxu0
        %v5608 = vadd.f32 0.0, %v5607
        %v5609 = vpop.f32.mrf.mxu0
        %5610 = vdwg.mxu0
        %v5612 = vsel %vm1255, %v4891, 0
        %v5615 = vsel %vm1255, %v4892, 0
        %v5618 = vsel %vm1255, %v4893, 0
        %v5621 = vsel %vm1255, %v4894, 0
        %v5624 = vsel %vm1255, %v4895, 0
        %v5627 = vsel %vm1255, %v4896, 0
        %v5630 = vsel %vm1255, %v4897, 0
        %v5633 = vsel %vm1255, %v4898, 0
        %v5636 = vsel %vm1255, %v4899, 0
        %v5639 = vsel %vm1255, %v4900, 0
        %v5642 = vsel %vm1255, %v4901, 0
        %v5645 = vsel %vm1255, %v4902, 0
        %v5648 = vsel %vm1255, %v4903, 0
        %v5651 = vsel %vm1255, %v4904, 0
        %v5654 = vsel %vm1255, %v4905, 0
        %v5657 = vsel %vm1255, %v4906, 0
        %v5660 = vsel %vm1255, %v4907, 0
        %v5663 = vsel %vm1255, %v4908, 0
        %v5666 = vsel %vm1255, %v4909, 0
        %v5669 = vsel %vm1255, %v4910, 0
        %v5672 = vsel %vm1255, %v4911, 0
        %v5675 = vsel %vm1255, %v4912, 0
        %v5678 = vsel %vm1255, %v4913, 0
        %v5681 = vsel %vm1255, %v4914, 0
        %v5684 = vsel %vm1255, %v4915, 0
        %v5687 = vsel %vm1255, %v4916, 0
        %v5690 = vsel %vm1255, %v4917, 0
        %v5693 = vsel %vm1255, %v4918, 0
        %v5696 = vsel %vm1255, %v4919, 0
        %v5699 = vsel %vm1255, %v4920, 0
        %v5702 = vsel %vm1255, %v4921, 0
        %v5705 = vsel %vm1255, %v4922, 0
        %v5708 = vsel %vm1255, %v4923, 0
        %v5711 = vsel %vm1255, %v4924, 0
        %v5714 = vsel %vm1255, %v4925, 0
        %v5717 = vsel %vm1255, %v4926, 0
        %v5720 = vsel %vm1255, %v4927, 0
        %v5723 = vsel %vm1255, %v4928, 0
        %v5726 = vsel %vm1255, %v4929, 0
        %v5729 = vsel %vm1255, %v4930, 0
        %v5732 = vsel %vm1255, %v4931, 0
        %v5735 = vsel %vm1255, %v4932, 0
        %v5738 = vsel %vm1255, %v4933, 0
        %v5741 = vsel %vm1255, %v4934, 0
        %v5744 = vsel %vm1255, %v4935, 0
        %v5747 = vsel %vm1255, %v4936, 0
        %v5750 = vsel %vm1255, %v4937, 0
        %v5753 = vsel %vm1255, %v4938, 0
        %v5756 = vsel %vm1255, %v4939, 0
        %v5759 = vsel %vm1255, %v4940, 0
        %v5762 = vsel %vm1255, %v4941, 0
        %v5765 = vsel %vm1255, %v4942, 0
        %v5768 = vsel %vm1255, %v4943, 0
        %v5771 = vsel %vm1255, %v4944, 0
        %v5774 = vsel %vm1255, %v4945, 0
        %v5777 = vsel %vm1255, %v4946, 0
        %v5780 = vsel %vm1255, %v4947, 0
        %v5783 = vsel %vm1255, %v4948, 0
        %v5786 = vsel %vm1255, %v4949, 0
        %v5789 = vsel %vm1255, %v4950, 0
        %v5792 = vsel %vm1255, %v4951, 0
        %v5795 = vsel %vm1255, %v4952, 0
        %v5798 = vsel %vm1255, %v4953, 0
        %v5801 = vsel %vm1255, %v4954, 0
        %v5804 = vsel %vm5222, %v4959, 0
        %5806 = vmatprep.subr.mxu0 0.0
        %5807 = vmatpush1.msra.mxu0 0.0
        %5808 = vmatprep.subr.mxu0 0.0
        %5809 = vmatpush1.msra.mxu0 0.0
        %5810 = vmatprep.subr.mxu0 0.0
        %5811 = vmatpush1.msra.mxu0 0.0
        %5812 = vmatprep.subr.mxu0 0.0
        %5813 = vmatpush1.msra.mxu0 0.0
        %5814 = vmatprep.subr.mxu0 0.0
        %5815 = vmatpush1.msra.mxu0 0.0
        %5816 = vmatprep.subr.mxu0 0.0
        %5817 = vmatpush1.msra.mxu0 0.0
        %5818 = vmatprep.subr.mxu0 0.0
        %5819 = vmatpush1.msra.mxu0 0.0
        %5820 = vmatprep.subr.mxu0 0.0
        %5821 = vmatpush1.msra.mxu0 0.0
        %5822 = vmatprep.subr.mxu0 0.0
        %5823 = vmatpush1.msra.mxu0 0.0
        %5824 = vmatprep.subr.mxu0 0.0
        %5825 = vmatpush1.msra.mxu0 0.0
        %5826 = vmatprep.subr.mxu0 0.0
        %5827 = vmatpush1.msra.mxu0 0.0
        %5828 = vmatprep.subr.mxu0 0.0
        %5829 = vmatpush1.msra.mxu0 %v5804
        %5830 = vmatprep.subr.mxu0 0.0
        %5831 = vmatpush1.msra.mxu0 %v4958
        %5832 = vmatprep.subr.mxu0 0.0
        %5833 = vmatpush1.msra.mxu0 %v4957
        %5834 = vmatprep.subr.mxu0 0.0
        %5835 = vmatpush1.msra.mxu0 %v4956
        %5836 = vmatprep.subr.mxu0 0.0
        %5837 = vmatpush1.msra.mxu0 %v4955
        %5838 = vmatprep.subr.mxu0 0.0
        %5839 = vmatpush2.msra.mxu0 0.0
        %5840 = vmatprep.subr.mxu0 0.0
        %5841 = vmatpush2.msra.mxu0 0.0
        %5842 = vmatprep.subr.mxu0 0.0
        %5843 = vmatpush2.msra.mxu0 0.0
        %5844 = vmatprep.subr.mxu0 0.0
        %5845 = vmatpush2.msra.mxu0 0.0
        %5846 = vmatprep.subr.mxu0 0.0
        %5847 = vmatpush2.msra.mxu0 0.0
        %5848 = vmatprep.subr.mxu0 0.0
        %5849 = vmatpush2.msra.mxu0 0.0
        %5850 = vmatprep.subr.mxu0 0.0
        %5851 = vmatpush2.msra.mxu0 0.0
        %5852 = vmatprep.subr.mxu0 0.0
        %5853 = vmatpush2.msra.mxu0 0.0
        %5854 = vmatprep.subr.mxu0 0.0
        %5855 = vmatpush2.msra.mxu0 0.0
        %5856 = vmatprep.subr.mxu0 0.0
        %5857 = vmatpush2.msra.mxu0 0.0
        %5858 = vmatprep.subr.mxu0 0.0
        %5859 = vmatpush2.msra.mxu0 0.0
        %5860 = vmatprep.subr.mxu0 0.0
        %5861 = vmatpush2.msra.mxu0 0.0
        %5862 = vmatprep.subr.mxu0 0.0
        %5863 = vmatpush2.msra.mxu0 0.0
        %5864 = vmatprep.subr.mxu0 0.0
        %5865 = vmatpush2.msra.mxu0 0.0
        %5866 = vmatprep.subr.mxu0 0.0
        %5867 = vmatpush2.msra.mxu0 0.0
        %5868 = vmatprep.subr.mxu0 0.0
        %5869 = vmatpush2.msra.mxu0 0.0
        %5870 = vmatprep.mubr.f32.mxu0 0.0
        %5871 = vmatmul.mubr.f32.gmra.mxu0 %v5612
        %v5872 = vpop.f32.mrf.mxu0
        %v5873 = vadd.f32 %v5293, %v5872
        %v5874 = vpop.f32.mrf.mxu0
        %5875 = vmatprep.mubr.f32.mxu0 0.0
        %5876 = vmatmul.mubr.f32.gmra.mxu0 %v5615
        %v5877 = vpop.f32.mrf.mxu0
        %v5878 = vadd.f32 %v5298, %v5877
        %v5879 = vpop.f32.mrf.mxu0
        %5880 = vmatprep.mubr.f32.mxu0 0.0
        %5881 = vmatmul.mubr.f32.gmra.mxu0 %v5618
        %v5882 = vpop.f32.mrf.mxu0
        %v5883 = vadd.f32 %v5303, %v5882
        %v5884 = vpop.f32.mrf.mxu0
        %5885 = vmatprep.mubr.f32.mxu0 0.0
        %5886 = vmatmul.mubr.f32.gmra.mxu0 %v5621
        %v5887 = vpop.f32.mrf.mxu0
        %v5888 = vadd.f32 %v5308, %v5887
        %v5889 = vpop.f32.mrf.mxu0
        %5890 = vmatprep.mubr.f32.mxu0 0.0
        %5891 = vmatmul.mubr.f32.gmra.mxu0 %v5624
        %v5892 = vpop.f32.mrf.mxu0
        %v5893 = vadd.f32 %v5313, %v5892
        %v5894 = vpop.f32.mrf.mxu0
        %5895 = vmatprep.mubr.f32.mxu0 0.0
        %5896 = vmatmul.mubr.f32.gmra.mxu0 %v5627
        %v5897 = vpop.f32.mrf.mxu0
        %v5898 = vadd.f32 %v5318, %v5897
        %v5899 = vpop.f32.mrf.mxu0
        %5900 = vmatprep.mubr.f32.mxu0 0.0
        %5901 = vmatmul.mubr.f32.gmra.mxu0 %v5630
        %v5902 = vpop.f32.mrf.mxu0
        %v5903 = vadd.f32 %v5323, %v5902
        %v5904 = vpop.f32.mrf.mxu0
        %5905 = vmatprep.mubr.f32.mxu0 0.0
        %5906 = vmatmul.mubr.f32.gmra.mxu0 %v5633
        %v5907 = vpop.f32.mrf.mxu0
        %v5908 = vadd.f32 %v5328, %v5907
        %v5909 = vpop.f32.mrf.mxu0
        %5910 = vmatprep.mubr.f32.mxu0 0.0
        %5911 = vmatmul.mubr.f32.gmra.mxu0 %v5636
        %v5912 = vpop.f32.mrf.mxu0
        %v5913 = vadd.f32 %v5333, %v5912
        %v5914 = vpop.f32.mrf.mxu0
        %5915 = vmatprep.mubr.f32.mxu0 0.0
        %5916 = vmatmul.mubr.f32.gmra.mxu0 %v5639
        %v5917 = vpop.f32.mrf.mxu0
        %v5918 = vadd.f32 %v5338, %v5917
        %v5919 = vpop.f32.mrf.mxu0
        %5920 = vmatprep.mubr.f32.mxu0 0.0
        %5921 = vmatmul.mubr.f32.gmra.mxu0 %v5642
        %v5922 = vpop.f32.mrf.mxu0
        %v5923 = vadd.f32 %v5343, %v5922
        %v5924 = vpop.f32.mrf.mxu0
        %5925 = vmatprep.mubr.f32.mxu0 0.0
        %5926 = vmatmul.mubr.f32.gmra.mxu0 %v5645
        %v5927 = vpop.f32.mrf.mxu0
        %v5928 = vadd.f32 %v5348, %v5927
        %v5929 = vpop.f32.mrf.mxu0
        %5930 = vmatprep.mubr.f32.mxu0 0.0
        %5931 = vmatmul.mubr.f32.gmra.mxu0 %v5648
        %v5932 = vpop.f32.mrf.mxu0
        %v5933 = vadd.f32 %v5353, %v5932
        %v5934 = vpop.f32.mrf.mxu0
        %5935 = vmatprep.mubr.f32.mxu0 0.0
        %5936 = vmatmul.mubr.f32.gmra.mxu0 %v5651
        %v5937 = vpop.f32.mrf.mxu0
        %v5938 = vadd.f32 %v5358, %v5937
        %v5939 = vpop.f32.mrf.mxu0
        %5940 = vmatprep.mubr.f32.mxu0 0.0
        %5941 = vmatmul.mubr.f32.gmra.mxu0 %v5654
        %v5942 = vpop.f32.mrf.mxu0
        %v5943 = vadd.f32 %v5363, %v5942
        %v5944 = vpop.f32.mrf.mxu0
        %5945 = vmatprep.mubr.f32.mxu0 0.0
        %5946 = vmatmul.mubr.f32.gmra.mxu0 %v5657
        %v5947 = vpop.f32.mrf.mxu0
        %v5948 = vadd.f32 %v5368, %v5947
        %v5949 = vpop.f32.mrf.mxu0
        %5950 = vmatprep.mubr.f32.mxu0 0.0
        %5951 = vmatmul.mubr.f32.gmra.mxu0 %v5660
        %v5952 = vpop.f32.mrf.mxu0
        %v5953 = vadd.f32 %v5373, %v5952
        %v5954 = vpop.f32.mrf.mxu0
        %5955 = vmatprep.mubr.f32.mxu0 0.0
        %5956 = vmatmul.mubr.f32.gmra.mxu0 %v5663
        %v5957 = vpop.f32.mrf.mxu0
        %v5958 = vadd.f32 %v5378, %v5957
        %v5959 = vpop.f32.mrf.mxu0
        %5960 = vmatprep.mubr.f32.mxu0 0.0
        %5961 = vmatmul.mubr.f32.gmra.mxu0 %v5666
        %v5962 = vpop.f32.mrf.mxu0
        %v5963 = vadd.f32 %v5383, %v5962
        %v5964 = vpop.f32.mrf.mxu0
        %5965 = vmatprep.mubr.f32.mxu0 0.0
        %5966 = vmatmul.mubr.f32.gmra.mxu0 %v5669
        %v5967 = vpop.f32.mrf.mxu0
        %v5968 = vadd.f32 %v5388, %v5967
        %v5969 = vpop.f32.mrf.mxu0
        %5970 = vmatprep.mubr.f32.mxu0 0.0
        %5971 = vmatmul.mubr.f32.gmra.mxu0 %v5672
        %v5972 = vpop.f32.mrf.mxu0
        %v5973 = vadd.f32 %v5393, %v5972
        %v5974 = vpop.f32.mrf.mxu0
        %5975 = vmatprep.mubr.f32.mxu0 0.0
        %5976 = vmatmul.mubr.f32.gmra.mxu0 %v5675
        %v5977 = vpop.f32.mrf.mxu0
        %v5978 = vadd.f32 %v5398, %v5977
        %v5979 = vpop.f32.mrf.mxu0
        %5980 = vmatprep.mubr.f32.mxu0 0.0
        %5981 = vmatmul.mubr.f32.gmra.mxu0 %v5678
        %v5982 = vpop.f32.mrf.mxu0
        %v5983 = vadd.f32 %v5403, %v5982
        %v5984 = vpop.f32.mrf.mxu0
        %5985 = vmatprep.mubr.f32.mxu0 0.0
        %5986 = vmatmul.mubr.f32.gmra.mxu0 %v5681
        %v5987 = vpop.f32.mrf.mxu0
        %v5988 = vadd.f32 %v5408, %v5987
        %v5989 = vpop.f32.mrf.mxu0
        %5990 = vmatprep.mubr.f32.mxu0 0.0
        %5991 = vmatmul.mubr.f32.gmra.mxu0 %v5684
        %v5992 = vpop.f32.mrf.mxu0
        %v5993 = vadd.f32 %v5413, %v5992
        %v5994 = vpop.f32.mrf.mxu0
        %5995 = vmatprep.mubr.f32.mxu0 0.0
        %5996 = vmatmul.mubr.f32.gmra.mxu0 %v5687
        %v5997 = vpop.f32.mrf.mxu0
        %v5998 = vadd.f32 %v5418, %v5997
        %v5999 = vpop.f32.mrf.mxu0
        %6000 = vmatprep.mubr.f32.mxu0 0.0
        %6001 = vmatmul.mubr.f32.gmra.mxu0 %v5690
        %v6002 = vpop.f32.mrf.mxu0
        %v6003 = vadd.f32 %v5423, %v6002
        %v6004 = vpop.f32.mrf.mxu0
        %6005 = vmatprep.mubr.f32.mxu0 0.0
        %6006 = vmatmul.mubr.f32.gmra.mxu0 %v5693
        %v6007 = vpop.f32.mrf.mxu0
        %v6008 = vadd.f32 %v5428, %v6007
        %v6009 = vpop.f32.mrf.mxu0
        %6010 = vmatprep.mubr.f32.mxu0 0.0
        %6011 = vmatmul.mubr.f32.gmra.mxu0 %v5696
        %v6012 = vpop.f32.mrf.mxu0
        %v6013 = vadd.f32 %v5433, %v6012
        %v6014 = vpop.f32.mrf.mxu0
        %6015 = vmatprep.mubr.f32.mxu0 0.0
        %6016 = vmatmul.mubr.f32.gmra.mxu0 %v5699
        %v6017 = vpop.f32.mrf.mxu0
        %v6018 = vadd.f32 %v5438, %v6017
        %v6019 = vpop.f32.mrf.mxu0
        %6020 = vmatprep.mubr.f32.mxu0 0.0
        %6021 = vmatmul.mubr.f32.gmra.mxu0 %v5702
        %v6022 = vpop.f32.mrf.mxu0
        %v6023 = vadd.f32 %v5443, %v6022
        %v6024 = vpop.f32.mrf.mxu0
        %6025 = vmatprep.mubr.f32.mxu0 0.0
        %6026 = vmatmul.mubr.f32.gmra.mxu0 %v5705
        %v6027 = vpop.f32.mrf.mxu0
        %v6028 = vadd.f32 %v5448, %v6027
        %v6029 = vpop.f32.mrf.mxu0
        %6030 = vmatprep.mubr.f32.mxu0 0.0
        %6031 = vmatmul.mubr.f32.gmra.mxu0 %v5708
        %v6032 = vpop.f32.mrf.mxu0
        %v6033 = vadd.f32 %v5453, %v6032
        %v6034 = vpop.f32.mrf.mxu0
        %6035 = vmatprep.mubr.f32.mxu0 0.0
        %6036 = vmatmul.mubr.f32.gmra.mxu0 %v5711
        %v6037 = vpop.f32.mrf.mxu0
        %v6038 = vadd.f32 %v5458, %v6037
        %v6039 = vpop.f32.mrf.mxu0
        %6040 = vmatprep.mubr.f32.mxu0 0.0
        %6041 = vmatmul.mubr.f32.gmra.mxu0 %v5714
        %v6042 = vpop.f32.mrf.mxu0
        %v6043 = vadd.f32 %v5463, %v6042
        %v6044 = vpop.f32.mrf.mxu0
        %6045 = vmatprep.mubr.f32.mxu0 0.0
        %6046 = vmatmul.mubr.f32.gmra.mxu0 %v5717
        %v6047 = vpop.f32.mrf.mxu0
        %v6048 = vadd.f32 %v5468, %v6047
        %v6049 = vpop.f32.mrf.mxu0
        %6050 = vmatprep.mubr.f32.mxu0 0.0
        %6051 = vmatmul.mubr.f32.gmra.mxu0 %v5720
        %v6052 = vpop.f32.mrf.mxu0
        %v6053 = vadd.f32 %v5473, %v6052
        %v6054 = vpop.f32.mrf.mxu0
        %6055 = vmatprep.mubr.f32.mxu0 0.0
        %6056 = vmatmul.mubr.f32.gmra.mxu0 %v5723
        %v6057 = vpop.f32.mrf.mxu0
        %v6058 = vadd.f32 %v5478, %v6057
        %v6059 = vpop.f32.mrf.mxu0
        %6060 = vmatprep.mubr.f32.mxu0 0.0
        %6061 = vmatmul.mubr.f32.gmra.mxu0 %v5726
        %v6062 = vpop.f32.mrf.mxu0
        %v6063 = vadd.f32 %v5483, %v6062
        %v6064 = vpop.f32.mrf.mxu0
        %6065 = vmatprep.mubr.f32.mxu0 0.0
        %6066 = vmatmul.mubr.f32.gmra.mxu0 %v5729
        %v6067 = vpop.f32.mrf.mxu0
        %v6068 = vadd.f32 %v5488, %v6067
        %v6069 = vpop.f32.mrf.mxu0
        %6070 = vmatprep.mubr.f32.mxu0 0.0
        %6071 = vmatmul.mubr.f32.gmra.mxu0 %v5732
        %v6072 = vpop.f32.mrf.mxu0
        %v6073 = vadd.f32 %v5493, %v6072
        %v6074 = vpop.f32.mrf.mxu0
        %6075 = vmatprep.mubr.f32.mxu0 0.0
        %6076 = vmatmul.mubr.f32.gmra.mxu0 %v5735
        %v6077 = vpop.f32.mrf.mxu0
        %v6078 = vadd.f32 %v5498, %v6077
        %v6079 = vpop.f32.mrf.mxu0
        %6080 = vmatprep.mubr.f32.mxu0 0.0
        %6081 = vmatmul.mubr.f32.gmra.mxu0 %v5738
        %v6082 = vpop.f32.mrf.mxu0
        %v6083 = vadd.f32 %v5503, %v6082
        %v6084 = vpop.f32.mrf.mxu0
        %6085 = vmatprep.mubr.f32.mxu0 0.0
        %6086 = vmatmul.mubr.f32.gmra.mxu0 %v5741
        %v6087 = vpop.f32.mrf.mxu0
        %v6088 = vadd.f32 %v5508, %v6087
        %v6089 = vpop.f32.mrf.mxu0
        %6090 = vmatprep.mubr.f32.mxu0 0.0
        %6091 = vmatmul.mubr.f32.gmra.mxu0 %v5744
        %v6092 = vpop.f32.mrf.mxu0
        %v6093 = vadd.f32 %v5513, %v6092
        %v6094 = vpop.f32.mrf.mxu0
        %6095 = vmatprep.mubr.f32.mxu0 0.0
        %6096 = vmatmul.mubr.f32.gmra.mxu0 %v5747
        %v6097 = vpop.f32.mrf.mxu0
        %v6098 = vadd.f32 %v5518, %v6097
        %v6099 = vpop.f32.mrf.mxu0
        %6100 = vmatprep.mubr.f32.mxu0 0.0
        %6101 = vmatmul.mubr.f32.gmra.mxu0 %v5750
        %v6102 = vpop.f32.mrf.mxu0
        %v6103 = vadd.f32 %v5523, %v6102
        %v6104 = vpop.f32.mrf.mxu0
        %6105 = vmatprep.mubr.f32.mxu0 0.0
        %6106 = vmatmul.mubr.f32.gmra.mxu0 %v5753
        %v6107 = vpop.f32.mrf.mxu0
        %v6108 = vadd.f32 %v5528, %v6107
        %v6109 = vpop.f32.mrf.mxu0
        %6110 = vmatprep.mubr.f32.mxu0 0.0
        %6111 = vmatmul.mubr.f32.gmra.mxu0 %v5756
        %v6112 = vpop.f32.mrf.mxu0
        %v6113 = vadd.f32 %v5533, %v6112
        %v6114 = vpop.f32.mrf.mxu0
        %6115 = vmatprep.mubr.f32.mxu0 0.0
        %6116 = vmatmul.mubr.f32.gmra.mxu0 %v5759
        %v6117 = vpop.f32.mrf.mxu0
        %v6118 = vadd.f32 %v5538, %v6117
        %v6119 = vpop.f32.mrf.mxu0
        %6120 = vmatprep.mubr.f32.mxu0 0.0
        %6121 = vmatmul.mubr.f32.gmra.mxu0 %v5762
        %v6122 = vpop.f32.mrf.mxu0
        %v6123 = vadd.f32 %v5543, %v6122
        %v6124 = vpop.f32.mrf.mxu0
        %6125 = vmatprep.mubr.f32.mxu0 0.0
        %6126 = vmatmul.mubr.f32.gmra.mxu0 %v5765
        %v6127 = vpop.f32.mrf.mxu0
        %v6128 = vadd.f32 %v5548, %v6127
        %v6129 = vpop.f32.mrf.mxu0
        %6130 = vmatprep.mubr.f32.mxu0 0.0
        %6131 = vmatmul.mubr.f32.gmra.mxu0 %v5768
        %v6132 = vpop.f32.mrf.mxu0
        %v6133 = vadd.f32 %v5553, %v6132
        %v6134 = vpop.f32.mrf.mxu0
        %6135 = vmatprep.mubr.f32.mxu0 0.0
        %6136 = vmatmul.mubr.f32.gmra.mxu0 %v5771
        %v6137 = vpop.f32.mrf.mxu0
        %v6138 = vadd.f32 %v5558, %v6137
        %v6139 = vpop.f32.mrf.mxu0
        %6140 = vmatprep.mubr.f32.mxu0 0.0
        %6141 = vmatmul.mubr.f32.gmra.mxu0 %v5774
        %v6142 = vpop.f32.mrf.mxu0
        %v6143 = vadd.f32 %v5563, %v6142
        %v6144 = vpop.f32.mrf.mxu0
        %6145 = vmatprep.mubr.f32.mxu0 0.0
        %6146 = vmatmul.mubr.f32.gmra.mxu0 %v5777
        %v6147 = vpop.f32.mrf.mxu0
        %v6148 = vadd.f32 %v5568, %v6147
        %v6149 = vpop.f32.mrf.mxu0
        %6150 = vmatprep.mubr.f32.mxu0 0.0
        %6151 = vmatmul.mubr.f32.gmra.mxu0 %v5780
        %v6152 = vpop.f32.mrf.mxu0
        %v6153 = vadd.f32 %v5573, %v6152
        %v6154 = vpop.f32.mrf.mxu0
        %6155 = vmatprep.mubr.f32.mxu0 0.0
        %6156 = vmatmul.mubr.f32.gmra.mxu0 %v5783
        %v6157 = vpop.f32.mrf.mxu0
        %v6158 = vadd.f32 %v5578, %v6157
        %v6159 = vpop.f32.mrf.mxu0
        %6160 = vmatprep.mubr.f32.mxu0 0.0
        %6161 = vmatmul.mubr.f32.gmra.mxu0 %v5786
        %v6162 = vpop.f32.mrf.mxu0
        %v6163 = vadd.f32 %v5583, %v6162
        %v6164 = vpop.f32.mrf.mxu0
        %6165 = vmatprep.mubr.f32.mxu0 0.0
        %6166 = vmatmul.mubr.f32.gmra.mxu0 %v5789
        %v6167 = vpop.f32.mrf.mxu0
        %v6168 = vadd.f32 %v5588, %v6167
        %v6169 = vpop.f32.mrf.mxu0
        %6170 = vmatprep.mubr.f32.mxu0 0.0
        %6171 = vmatmul.mubr.f32.gmra.mxu0 %v5792
        %v6172 = vpop.f32.mrf.mxu0
        %v6173 = vadd.f32 %v5593, %v6172
        %v6174 = vpop.f32.mrf.mxu0
        %6175 = vmatprep.mubr.f32.mxu0 0.0
        %6176 = vmatmul.mubr.f32.gmra.mxu0 %v5795
        %v6177 = vpop.f32.mrf.mxu0
        %v6178 = vadd.f32 %v5598, %v6177
        %v6179 = vpop.f32.mrf.mxu0
        %6180 = vmatprep.mubr.f32.mxu0 0.0
        %6181 = vmatmul.mubr.f32.gmra.mxu0 %v5798
        %v6182 = vpop.f32.mrf.mxu0
        %v6183 = vadd.f32 %v5603, %v6182
        %v6184 = vpop.f32.mrf.mxu0
        %6185 = vmatprep.mubr.f32.mxu0 0.0
        %6186 = vmatmul.mubr.f32.gmra.mxu0 %v5801
        %v6187 = vpop.f32.mrf.mxu0
        %v6188 = vadd.f32 %v5608, %v6187
        %v6189 = vpop.f32.mrf.mxu0
        %6190 = vdwg.mxu0
        %v6191 = vld [vmem:[%s2061] sm:$0xff]
        %v6192 = vld [vmem:[%s2061 + $0x8] sm:$0xff]
        %v6193 = vld [vmem:[%s2061 + $0x10] sm:$0xff]
        %v6194 = vld [vmem:[%s2061 + $0x18] sm:$0xff]
        %v6195 = vld [vmem:[%s2061 + $0x20] sm:$0xff]
        %v6196 = vld [vmem:[%s2061 + $0x28] sm:$0xff]
        %v6197 = vld [vmem:[%s2061 + $0x30] sm:$0xff]
        %v6198 = vld [vmem:[%s2061 + $0x38] sm:$0xff]
        %v6199 = vld [vmem:[%s2061 + $0x40] sm:$0xff]
        %v6200 = vld [vmem:[%s2061 + $0x48] sm:$0xff]
        %v6201 = vld [vmem:[%s2061 + $0x50] sm:$0xff]
        %v6202 = vld [vmem:[%s2061 + $0x58] sm:$0xff]
        %v6203 = vld [vmem:[%s2061 + $0x60] sm:$0xff]
        %v6204 = vld [vmem:[%s2061 + $0x68] sm:$0xff]
        %v6205 = vld [vmem:[%s2061 + $0x70] sm:$0xff]
        %v6206 = vld [vmem:[%s2061 + $0x78] sm:$0xff]
        %v6207 = vld [vmem:[%s2061 + $0x80] sm:$0xff]
        %v6208 = vld [vmem:[%s2061 + $0x88] sm:$0xff]
        %v6209 = vld [vmem:[%s2061 + $0x90] sm:$0xff]
        %v6210 = vld [vmem:[%s2061 + $0x98] sm:$0xff]
        %v6211 = vld [vmem:[%s2061 + $0xa0] sm:$0xff]
        %v6212 = vld [vmem:[%s2061 + $0xa8] sm:$0xff]
        %v6213 = vld [vmem:[%s2061 + $0xb0] sm:$0xff]
        %v6214 = vld [vmem:[%s2061 + $0xb8] sm:$0xff]
        %v6215 = vld [vmem:[%s2061 + $0xc0] sm:$0xff]
        %v6216 = vld [vmem:[%s2061 + $0xc8] sm:$0xff]
        %v6217 = vld [vmem:[%s2061 + $0xd0] sm:$0xff]
        %v6218 = vld [vmem:[%s2061 + $0xd8] sm:$0xff]
        %v6219 = vld [vmem:[%s2061 + $0xe0] sm:$0xff]
        %v6220 = vld [vmem:[%s2061 + $0xe8] sm:$0xff]
        %v6221 = vld [vmem:[%s2061 + $0xf0] sm:$0xff]
        %v6222 = vld [vmem:[%s2061 + $0xf8] sm:$0xff]
        %v6223 = vld [vmem:[%s2061 + $0x100] sm:$0xff]
        %v6224 = vld [vmem:[%s2061 + $0x108] sm:$0xff]
        %v6225 = vld [vmem:[%s2061 + $0x110] sm:$0xff]
        %v6226 = vld [vmem:[%s2061 + $0x118] sm:$0xff]
        %v6227 = vld [vmem:[%s2061 + $0x120] sm:$0xff]
        %v6228 = vld [vmem:[%s2061 + $0x128] sm:$0xff]
        %v6229 = vld [vmem:[%s2061 + $0x130] sm:$0xff]
        %v6230 = vld [vmem:[%s2061 + $0x138] sm:$0xff]
        %v6231 = vld [vmem:[%s2061 + $0x140] sm:$0xff]
        %v6232 = vld [vmem:[%s2061 + $0x148] sm:$0xff]
        %v6233 = vld [vmem:[%s2061 + $0x150] sm:$0xff]
        %v6234 = vld [vmem:[%s2061 + $0x158] sm:$0xff]
        %v6235 = vld [vmem:[%s2061 + $0x160] sm:$0xff]
        %v6236 = vld [vmem:[%s2061 + $0x168] sm:$0xff]
        %v6237 = vld [vmem:[%s2061 + $0x170] sm:$0xff]
        %v6238 = vld [vmem:[%s2061 + $0x178] sm:$0xff]
        %v6239 = vld [vmem:[%s2061 + $0x180] sm:$0xff]
        %v6240 = vld [vmem:[%s2061 + $0x188] sm:$0xff]
        %v6241 = vld [vmem:[%s2061 + $0x190] sm:$0xff]
        %v6242 = vld [vmem:[%s2061 + $0x198] sm:$0xff]
        %v6243 = vld [vmem:[%s2061 + $0x1a0] sm:$0xff]
        %v6244 = vld [vmem:[%s2061 + $0x1a8] sm:$0xff]
        %v6245 = vld [vmem:[%s2061 + $0x1b0] sm:$0xff]
        %v6246 = vld [vmem:[%s2061 + $0x1b8] sm:$0xff]
        %v6247 = vld [vmem:[%s2061 + $0x1c0] sm:$0xff]
        %v6248 = vld [vmem:[%s2061 + $0x1c8] sm:$0xff]
        %v6249 = vld [vmem:[%s2061 + $0x1d0] sm:$0xff]
        %v6250 = vld [vmem:[%s2061 + $0x1d8] sm:$0xff]
        %v6251 = vld [vmem:[%s2061 + $0x1e0] sm:$0xff]
        %v6252 = vld [vmem:[%s2061 + $0x1e8] sm:$0xff]
        %v6253 = vld [vmem:[%s2061 + $0x1f0] sm:$0xff]
        %v6254 = vld [vmem:[%s2061 + $0x1f8] sm:$0xff]
        %s6255 = scalar_lea.vmem %s10, 80
        %v6256 = vld [vmem:[%s6255] sm:$0xff]
        %v6257 = vld [vmem:[%s6255 + $0x8] sm:$0xff]
        %v6258 = vld [vmem:[%s6255 + $0x10] sm:$0xff]
        %v6259 = vld [vmem:[%s6255 + $0x18] sm:$0xff]
        %v6260 = vld [vmem:[%s6255 + $0x20] sm:$0xf]
        %v6262 = vsel %vm1255, %v6191, 0
        %v6265 = vsel %vm1255, %v6192, 0
        %v6268 = vsel %vm1255, %v6193, 0
        %v6271 = vsel %vm1255, %v6194, 0
        %v6274 = vsel %vm1255, %v6195, 0
        %v6277 = vsel %vm1255, %v6196, 0
        %v6280 = vsel %vm1255, %v6197, 0
        %v6283 = vsel %vm1255, %v6198, 0
        %v6286 = vsel %vm1255, %v6199, 0
        %v6289 = vsel %vm1255, %v6200, 0
        %v6292 = vsel %vm1255, %v6201, 0
        %v6295 = vsel %vm1255, %v6202, 0
        %v6298 = vsel %vm1255, %v6203, 0
        %v6301 = vsel %vm1255, %v6204, 0
        %v6304 = vsel %vm1255, %v6205, 0
        %v6307 = vsel %vm1255, %v6206, 0
        %v6310 = vsel %vm1255, %v6207, 0
        %v6313 = vsel %vm1255, %v6208, 0
        %v6316 = vsel %vm1255, %v6209, 0
        %v6319 = vsel %vm1255, %v6210, 0
        %v6322 = vsel %vm1255, %v6211, 0
        %v6325 = vsel %vm1255, %v6212, 0
        %v6328 = vsel %vm1255, %v6213, 0
        %v6331 = vsel %vm1255, %v6214, 0
        %v6334 = vsel %vm1255, %v6215, 0
        %v6337 = vsel %vm1255, %v6216, 0
        %v6340 = vsel %vm1255, %v6217, 0
        %v6343 = vsel %vm1255, %v6218, 0
        %v6346 = vsel %vm1255, %v6219, 0
        %v6349 = vsel %vm1255, %v6220, 0
        %v6352 = vsel %vm1255, %v6221, 0
        %v6355 = vsel %vm1255, %v6222, 0
        %v6358 = vsel %vm1255, %v6223, 0
        %v6361 = vsel %vm1255, %v6224, 0
        %v6364 = vsel %vm1255, %v6225, 0
        %v6367 = vsel %vm1255, %v6226, 0
        %v6370 = vsel %vm1255, %v6227, 0
        %v6373 = vsel %vm1255, %v6228, 0
        %v6376 = vsel %vm1255, %v6229, 0
        %v6379 = vsel %vm1255, %v6230, 0
        %v6382 = vsel %vm1255, %v6231, 0
        %v6385 = vsel %vm1255, %v6232, 0
        %v6388 = vsel %vm1255, %v6233, 0
        %v6391 = vsel %vm1255, %v6234, 0
        %v6394 = vsel %vm1255, %v6235, 0
        %v6397 = vsel %vm1255, %v6236, 0
        %v6400 = vsel %vm1255, %v6237, 0
        %v6403 = vsel %vm1255, %v6238, 0
        %v6406 = vsel %vm1255, %v6239, 0
        %v6409 = vsel %vm1255, %v6240, 0
        %v6412 = vsel %vm1255, %v6241, 0
        %v6415 = vsel %vm1255, %v6242, 0
        %v6418 = vsel %vm1255, %v6243, 0
        %v6421 = vsel %vm1255, %v6244, 0
        %v6424 = vsel %vm1255, %v6245, 0
        %v6427 = vsel %vm1255, %v6246, 0
        %v6430 = vsel %vm1255, %v6247, 0
        %v6433 = vsel %vm1255, %v6248, 0
        %v6436 = vsel %vm1255, %v6249, 0
        %v6439 = vsel %vm1255, %v6250, 0
        %v6442 = vsel %vm1255, %v6251, 0
        %v6445 = vsel %vm1255, %v6252, 0
        %v6448 = vsel %vm1255, %v6253, 0
        %v6451 = vsel %vm1255, %v6254, 0
        %v6454 = vsel %vm5222, %v6260, 0
        %6456 = vmatprep.subr.mxu0 0.0
        %6457 = vmatpush1.msra.mxu0 0.0
        %6458 = vmatprep.subr.mxu0 0.0
        %6459 = vmatpush1.msra.mxu0 0.0
        %6460 = vmatprep.subr.mxu0 0.0
        %6461 = vmatpush1.msra.mxu0 0.0
        %6462 = vmatprep.subr.mxu0 0.0
        %6463 = vmatpush1.msra.mxu0 0.0
        %6464 = vmatprep.subr.mxu0 0.0
        %6465 = vmatpush1.msra.mxu0 0.0
        %6466 = vmatprep.subr.mxu0 0.0
        %6467 = vmatpush1.msra.mxu0 0.0
        %6468 = vmatprep.subr.mxu0 0.0
        %6469 = vmatpush1.msra.mxu0 0.0
        %6470 = vmatprep.subr.mxu0 0.0
        %6471 = vmatpush1.msra.mxu0 0.0
        %6472 = vmatprep.subr.mxu0 0.0
        %6473 = vmatpush1.msra.mxu0 0.0
        %6474 = vmatprep.subr.mxu0 0.0
        %6475 = vmatpush1.msra.mxu0 0.0
        %6476 = vmatprep.subr.mxu0 0.0
        %6477 = vmatpush1.msra.mxu0 0.0
        %6478 = vmatprep.subr.mxu0 0.0
        %6479 = vmatpush1.msra.mxu0 %v6454
        %6480 = vmatprep.subr.mxu0 0.0
        %6481 = vmatpush1.msra.mxu0 %v6259
        %6482 = vmatprep.subr.mxu0 0.0
        %6483 = vmatpush1.msra.mxu0 %v6258
        %6484 = vmatprep.subr.mxu0 0.0
        %6485 = vmatpush1.msra.mxu0 %v6257
        %6486 = vmatprep.subr.mxu0 0.0
        %6487 = vmatpush1.msra.mxu0 %v6256
        %6488 = vmatprep.subr.mxu0 0.0
        %6489 = vmatpush2.msra.mxu0 0.0
        %6490 = vmatprep.subr.mxu0 0.0
        %6491 = vmatpush2.msra.mxu0 0.0
        %6492 = vmatprep.subr.mxu0 0.0
        %6493 = vmatpush2.msra.mxu0 0.0
        %6494 = vmatprep.subr.mxu0 0.0
        %6495 = vmatpush2.msra.mxu0 0.0
        %6496 = vmatprep.subr.mxu0 0.0
        %6497 = vmatpush2.msra.mxu0 0.0
        %6498 = vmatprep.subr.mxu0 0.0
        %6499 = vmatpush2.msra.mxu0 0.0
        %6500 = vmatprep.subr.mxu0 0.0
        %6501 = vmatpush2.msra.mxu0 0.0
        %6502 = vmatprep.subr.mxu0 0.0
        %6503 = vmatpush2.msra.mxu0 0.0
        %6504 = vmatprep.subr.mxu0 0.0
        %6505 = vmatpush2.msra.mxu0 0.0
        %6506 = vmatprep.subr.mxu0 0.0
        %6507 = vmatpush2.msra.mxu0 0.0
        %6508 = vmatprep.subr.mxu0 0.0
        %6509 = vmatpush2.msra.mxu0 0.0
        %6510 = vmatprep.subr.mxu0 0.0
        %6511 = vmatpush2.msra.mxu0 0.0
        %6512 = vmatprep.subr.mxu0 0.0
        %6513 = vmatpush2.msra.mxu0 0.0
        %6514 = vmatprep.subr.mxu0 0.0
        %6515 = vmatpush2.msra.mxu0 0.0
        %6516 = vmatprep.subr.mxu0 0.0
        %6517 = vmatpush2.msra.mxu0 0.0
        %6518 = vmatprep.subr.mxu0 0.0
        %6519 = vmatpush2.msra.mxu0 0.0
        %6520 = vmatprep.mubr.f32.mxu0 0.0
        %6521 = vmatmul.mubr.f32.gmra.mxu0 %v6262
        %v6522 = vpop.f32.mrf.mxu0
        %v6523 = vadd.f32 0.0, %v6522
        %v6524 = vpop.f32.mrf.mxu0
        %6525 = vmatprep.mubr.f32.mxu0 0.0
        %6526 = vmatmul.mubr.f32.gmra.mxu0 %v6265
        %v6527 = vpop.f32.mrf.mxu0
        %v6528 = vadd.f32 0.0, %v6527
        %v6529 = vpop.f32.mrf.mxu0
        %6530 = vmatprep.mubr.f32.mxu0 0.0
        %6531 = vmatmul.mubr.f32.gmra.mxu0 %v6268
        %v6532 = vpop.f32.mrf.mxu0
        %v6533 = vadd.f32 0.0, %v6532
        %v6534 = vpop.f32.mrf.mxu0
        %6535 = vmatprep.mubr.f32.mxu0 0.0
        %6536 = vmatmul.mubr.f32.gmra.mxu0 %v6271
        %v6537 = vpop.f32.mrf.mxu0
        %v6538 = vadd.f32 0.0, %v6537
        %v6539 = vpop.f32.mrf.mxu0
        %6540 = vmatprep.mubr.f32.mxu0 0.0
        %6541 = vmatmul.mubr.f32.gmra.mxu0 %v6274
        %v6542 = vpop.f32.mrf.mxu0
        %v6543 = vadd.f32 0.0, %v6542
        %v6544 = vpop.f32.mrf.mxu0
        %6545 = vmatprep.mubr.f32.mxu0 0.0
        %6546 = vmatmul.mubr.f32.gmra.mxu0 %v6277
        %v6547 = vpop.f32.mrf.mxu0
        %v6548 = vadd.f32 0.0, %v6547
        %v6549 = vpop.f32.mrf.mxu0
        %6550 = vmatprep.mubr.f32.mxu0 0.0
        %6551 = vmatmul.mubr.f32.gmra.mxu0 %v6280
        %v6552 = vpop.f32.mrf.mxu0
        %v6553 = vadd.f32 0.0, %v6552
        %v6554 = vpop.f32.mrf.mxu0
        %6555 = vmatprep.mubr.f32.mxu0 0.0
        %6556 = vmatmul.mubr.f32.gmra.mxu0 %v6283
        %v6557 = vpop.f32.mrf.mxu0
        %v6558 = vadd.f32 0.0, %v6557
        %v6559 = vpop.f32.mrf.mxu0
        %6560 = vmatprep.mubr.f32.mxu0 0.0
        %6561 = vmatmul.mubr.f32.gmra.mxu0 %v6286
        %v6562 = vpop.f32.mrf.mxu0
        %v6563 = vadd.f32 0.0, %v6562
        %v6564 = vpop.f32.mrf.mxu0
        %6565 = vmatprep.mubr.f32.mxu0 0.0
        %6566 = vmatmul.mubr.f32.gmra.mxu0 %v6289
        %v6567 = vpop.f32.mrf.mxu0
        %v6568 = vadd.f32 0.0, %v6567
        %v6569 = vpop.f32.mrf.mxu0
        %6570 = vmatprep.mubr.f32.mxu0 0.0
        %6571 = vmatmul.mubr.f32.gmra.mxu0 %v6292
        %v6572 = vpop.f32.mrf.mxu0
        %v6573 = vadd.f32 0.0, %v6572
        %v6574 = vpop.f32.mrf.mxu0
        %6575 = vmatprep.mubr.f32.mxu0 0.0
        %6576 = vmatmul.mubr.f32.gmra.mxu0 %v6295
        %v6577 = vpop.f32.mrf.mxu0
        %v6578 = vadd.f32 0.0, %v6577
        %v6579 = vpop.f32.mrf.mxu0
        %6580 = vmatprep.mubr.f32.mxu0 0.0
        %6581 = vmatmul.mubr.f32.gmra.mxu0 %v6298
        %v6582 = vpop.f32.mrf.mxu0
        %v6583 = vadd.f32 0.0, %v6582
        %v6584 = vpop.f32.mrf.mxu0
        %6585 = vmatprep.mubr.f32.mxu0 0.0
        %6586 = vmatmul.mubr.f32.gmra.mxu0 %v6301
        %v6587 = vpop.f32.mrf.mxu0
        %v6588 = vadd.f32 0.0, %v6587
        %v6589 = vpop.f32.mrf.mxu0
        %6590 = vmatprep.mubr.f32.mxu0 0.0
        %6591 = vmatmul.mubr.f32.gmra.mxu0 %v6304
        %v6592 = vpop.f32.mrf.mxu0
        %v6593 = vadd.f32 0.0, %v6592
        %v6594 = vpop.f32.mrf.mxu0
        %6595 = vmatprep.mubr.f32.mxu0 0.0
        %6596 = vmatmul.mubr.f32.gmra.mxu0 %v6307
        %v6597 = vpop.f32.mrf.mxu0
        %v6598 = vadd.f32 0.0, %v6597
        %v6599 = vpop.f32.mrf.mxu0
        %6600 = vmatprep.mubr.f32.mxu0 0.0
        %6601 = vmatmul.mubr.f32.gmra.mxu0 %v6310
        %v6602 = vpop.f32.mrf.mxu0
        %v6603 = vadd.f32 0.0, %v6602
        %v6604 = vpop.f32.mrf.mxu0
        %6605 = vmatprep.mubr.f32.mxu0 0.0
        %6606 = vmatmul.mubr.f32.gmra.mxu0 %v6313
        %v6607 = vpop.f32.mrf.mxu0
        %v6608 = vadd.f32 0.0, %v6607
        %v6609 = vpop.f32.mrf.mxu0
        %6610 = vmatprep.mubr.f32.mxu0 0.0
        %6611 = vmatmul.mubr.f32.gmra.mxu0 %v6316
        %v6612 = vpop.f32.mrf.mxu0
        %v6613 = vadd.f32 0.0, %v6612
        %v6614 = vpop.f32.mrf.mxu0
        %6615 = vmatprep.mubr.f32.mxu0 0.0
        %6616 = vmatmul.mubr.f32.gmra.mxu0 %v6319
        %v6617 = vpop.f32.mrf.mxu0
        %v6618 = vadd.f32 0.0, %v6617
        %v6619 = vpop.f32.mrf.mxu0
        %6620 = vmatprep.mubr.f32.mxu0 0.0
        %6621 = vmatmul.mubr.f32.gmra.mxu0 %v6322
        %v6622 = vpop.f32.mrf.mxu0
        %v6623 = vadd.f32 0.0, %v6622
        %v6624 = vpop.f32.mrf.mxu0
        %6625 = vmatprep.mubr.f32.mxu0 0.0
        %6626 = vmatmul.mubr.f32.gmra.mxu0 %v6325
        %v6627 = vpop.f32.mrf.mxu0
        %v6628 = vadd.f32 0.0, %v6627
        %v6629 = vpop.f32.mrf.mxu0
        %6630 = vmatprep.mubr.f32.mxu0 0.0
        %6631 = vmatmul.mubr.f32.gmra.mxu0 %v6328
        %v6632 = vpop.f32.mrf.mxu0
        %v6633 = vadd.f32 0.0, %v6632
        %v6634 = vpop.f32.mrf.mxu0
        %6635 = vmatprep.mubr.f32.mxu0 0.0
        %6636 = vmatmul.mubr.f32.gmra.mxu0 %v6331
        %v6637 = vpop.f32.mrf.mxu0
        %v6638 = vadd.f32 0.0, %v6637
        %v6639 = vpop.f32.mrf.mxu0
        %6640 = vmatprep.mubr.f32.mxu0 0.0
        %6641 = vmatmul.mubr.f32.gmra.mxu0 %v6334
        %v6642 = vpop.f32.mrf.mxu0
        %v6643 = vadd.f32 0.0, %v6642
        %v6644 = vpop.f32.mrf.mxu0
        %6645 = vmatprep.mubr.f32.mxu0 0.0
        %6646 = vmatmul.mubr.f32.gmra.mxu0 %v6337
        %v6647 = vpop.f32.mrf.mxu0
        %v6648 = vadd.f32 0.0, %v6647
        %v6649 = vpop.f32.mrf.mxu0
        %6650 = vmatprep.mubr.f32.mxu0 0.0
        %6651 = vmatmul.mubr.f32.gmra.mxu0 %v6340
        %v6652 = vpop.f32.mrf.mxu0
        %v6653 = vadd.f32 0.0, %v6652
        %v6654 = vpop.f32.mrf.mxu0
        %6655 = vmatprep.mubr.f32.mxu0 0.0
        %6656 = vmatmul.mubr.f32.gmra.mxu0 %v6343
        %v6657 = vpop.f32.mrf.mxu0
        %v6658 = vadd.f32 0.0, %v6657
        %v6659 = vpop.f32.mrf.mxu0
        %6660 = vmatprep.mubr.f32.mxu0 0.0
        %6661 = vmatmul.mubr.f32.gmra.mxu0 %v6346
        %v6662 = vpop.f32.mrf.mxu0
        %v6663 = vadd.f32 0.0, %v6662
        %v6664 = vpop.f32.mrf.mxu0
        %6665 = vmatprep.mubr.f32.mxu0 0.0
        %6666 = vmatmul.mubr.f32.gmra.mxu0 %v6349
        %v6667 = vpop.f32.mrf.mxu0
        %v6668 = vadd.f32 0.0, %v6667
        %v6669 = vpop.f32.mrf.mxu0
        %6670 = vmatprep.mubr.f32.mxu0 0.0
        %6671 = vmatmul.mubr.f32.gmra.mxu0 %v6352
        %v6672 = vpop.f32.mrf.mxu0
        %v6673 = vadd.f32 0.0, %v6672
        %v6674 = vpop.f32.mrf.mxu0
        %6675 = vmatprep.mubr.f32.mxu0 0.0
        %6676 = vmatmul.mubr.f32.gmra.mxu0 %v6355
        %v6677 = vpop.f32.mrf.mxu0
        %v6678 = vadd.f32 0.0, %v6677
        %v6679 = vpop.f32.mrf.mxu0
        %6680 = vmatprep.mubr.f32.mxu0 0.0
        %6681 = vmatmul.mubr.f32.gmra.mxu0 %v6358
        %v6682 = vpop.f32.mrf.mxu0
        %v6683 = vadd.f32 0.0, %v6682
        %v6684 = vpop.f32.mrf.mxu0
        %6685 = vmatprep.mubr.f32.mxu0 0.0
        %6686 = vmatmul.mubr.f32.gmra.mxu0 %v6361
        %v6687 = vpop.f32.mrf.mxu0
        %v6688 = vadd.f32 0.0, %v6687
        %v6689 = vpop.f32.mrf.mxu0
        %6690 = vmatprep.mubr.f32.mxu0 0.0
        %6691 = vmatmul.mubr.f32.gmra.mxu0 %v6364
        %v6692 = vpop.f32.mrf.mxu0
        %v6693 = vadd.f32 0.0, %v6692
        %v6694 = vpop.f32.mrf.mxu0
        %6695 = vmatprep.mubr.f32.mxu0 0.0
        %6696 = vmatmul.mubr.f32.gmra.mxu0 %v6367
        %v6697 = vpop.f32.mrf.mxu0
        %v6698 = vadd.f32 0.0, %v6697
        %v6699 = vpop.f32.mrf.mxu0
        %6700 = vmatprep.mubr.f32.mxu0 0.0
        %6701 = vmatmul.mubr.f32.gmra.mxu0 %v6370
        %v6702 = vpop.f32.mrf.mxu0
        %v6703 = vadd.f32 0.0, %v6702
        %v6704 = vpop.f32.mrf.mxu0
        %6705 = vmatprep.mubr.f32.mxu0 0.0
        %6706 = vmatmul.mubr.f32.gmra.mxu0 %v6373
        %v6707 = vpop.f32.mrf.mxu0
        %v6708 = vadd.f32 0.0, %v6707
        %v6709 = vpop.f32.mrf.mxu0
        %6710 = vmatprep.mubr.f32.mxu0 0.0
        %6711 = vmatmul.mubr.f32.gmra.mxu0 %v6376
        %v6712 = vpop.f32.mrf.mxu0
        %v6713 = vadd.f32 0.0, %v6712
        %v6714 = vpop.f32.mrf.mxu0
        %6715 = vmatprep.mubr.f32.mxu0 0.0
        %6716 = vmatmul.mubr.f32.gmra.mxu0 %v6379
        %v6717 = vpop.f32.mrf.mxu0
        %v6718 = vadd.f32 0.0, %v6717
        %v6719 = vpop.f32.mrf.mxu0
        %6720 = vmatprep.mubr.f32.mxu0 0.0
        %6721 = vmatmul.mubr.f32.gmra.mxu0 %v6382
        %v6722 = vpop.f32.mrf.mxu0
        %v6723 = vadd.f32 0.0, %v6722
        %v6724 = vpop.f32.mrf.mxu0
        %6725 = vmatprep.mubr.f32.mxu0 0.0
        %6726 = vmatmul.mubr.f32.gmra.mxu0 %v6385
        %v6727 = vpop.f32.mrf.mxu0
        %v6728 = vadd.f32 0.0, %v6727
        %v6729 = vpop.f32.mrf.mxu0
        %6730 = vmatprep.mubr.f32.mxu0 0.0
        %6731 = vmatmul.mubr.f32.gmra.mxu0 %v6388
        %v6732 = vpop.f32.mrf.mxu0
        %v6733 = vadd.f32 0.0, %v6732
        %v6734 = vpop.f32.mrf.mxu0
        %6735 = vmatprep.mubr.f32.mxu0 0.0
        %6736 = vmatmul.mubr.f32.gmra.mxu0 %v6391
        %v6737 = vpop.f32.mrf.mxu0
        %v6738 = vadd.f32 0.0, %v6737
        %v6739 = vpop.f32.mrf.mxu0
        %6740 = vmatprep.mubr.f32.mxu0 0.0
        %6741 = vmatmul.mubr.f32.gmra.mxu0 %v6394
        %v6742 = vpop.f32.mrf.mxu0
        %v6743 = vadd.f32 0.0, %v6742
        %v6744 = vpop.f32.mrf.mxu0
        %6745 = vmatprep.mubr.f32.mxu0 0.0
        %6746 = vmatmul.mubr.f32.gmra.mxu0 %v6397
        %v6747 = vpop.f32.mrf.mxu0
        %v6748 = vadd.f32 0.0, %v6747
        %v6749 = vpop.f32.mrf.mxu0
        %6750 = vmatprep.mubr.f32.mxu0 0.0
        %6751 = vmatmul.mubr.f32.gmra.mxu0 %v6400
        %v6752 = vpop.f32.mrf.mxu0
        %v6753 = vadd.f32 0.0, %v6752
        %v6754 = vpop.f32.mrf.mxu0
        %6755 = vmatprep.mubr.f32.mxu0 0.0
        %6756 = vmatmul.mubr.f32.gmra.mxu0 %v6403
        %v6757 = vpop.f32.mrf.mxu0
        %v6758 = vadd.f32 0.0, %v6757
        %v6759 = vpop.f32.mrf.mxu0
        %6760 = vmatprep.mubr.f32.mxu0 0.0
        %6761 = vmatmul.mubr.f32.gmra.mxu0 %v6406
        %v6762 = vpop.f32.mrf.mxu0
        %v6763 = vadd.f32 0.0, %v6762
        %v6764 = vpop.f32.mrf.mxu0
        %6765 = vmatprep.mubr.f32.mxu0 0.0
        %6766 = vmatmul.mubr.f32.gmra.mxu0 %v6409
        %v6767 = vpop.f32.mrf.mxu0
        %v6768 = vadd.f32 0.0, %v6767
        %v6769 = vpop.f32.mrf.mxu0
        %6770 = vmatprep.mubr.f32.mxu0 0.0
        %6771 = vmatmul.mubr.f32.gmra.mxu0 %v6412
        %v6772 = vpop.f32.mrf.mxu0
        %v6773 = vadd.f32 0.0, %v6772
        %v6774 = vpop.f32.mrf.mxu0
        %6775 = vmatprep.mubr.f32.mxu0 0.0
        %6776 = vmatmul.mubr.f32.gmra.mxu0 %v6415
        %v6777 = vpop.f32.mrf.mxu0
        %v6778 = vadd.f32 0.0, %v6777
        %v6779 = vpop.f32.mrf.mxu0
        %6780 = vmatprep.mubr.f32.mxu0 0.0
        %6781 = vmatmul.mubr.f32.gmra.mxu0 %v6418
        %v6782 = vpop.f32.mrf.mxu0
        %v6783 = vadd.f32 0.0, %v6782
        %v6784 = vpop.f32.mrf.mxu0
        %6785 = vmatprep.mubr.f32.mxu0 0.0
        %6786 = vmatmul.mubr.f32.gmra.mxu0 %v6421
        %v6787 = vpop.f32.mrf.mxu0
        %v6788 = vadd.f32 0.0, %v6787
        %v6789 = vpop.f32.mrf.mxu0
        %6790 = vmatprep.mubr.f32.mxu0 0.0
        %6791 = vmatmul.mubr.f32.gmra.mxu0 %v6424
        %v6792 = vpop.f32.mrf.mxu0
        %v6793 = vadd.f32 0.0, %v6792
        %v6794 = vpop.f32.mrf.mxu0
        %6795 = vmatprep.mubr.f32.mxu0 0.0
        %6796 = vmatmul.mubr.f32.gmra.mxu0 %v6427
        %v6797 = vpop.f32.mrf.mxu0
        %v6798 = vadd.f32 0.0, %v6797
        %v6799 = vpop.f32.mrf.mxu0
        %6800 = vmatprep.mubr.f32.mxu0 0.0
        %6801 = vmatmul.mubr.f32.gmra.mxu0 %v6430
        %v6802 = vpop.f32.mrf.mxu0
        %v6803 = vadd.f32 0.0, %v6802
        %v6804 = vpop.f32.mrf.mxu0
        %6805 = vmatprep.mubr.f32.mxu0 0.0
        %6806 = vmatmul.mubr.f32.gmra.mxu0 %v6433
        %v6807 = vpop.f32.mrf.mxu0
        %v6808 = vadd.f32 0.0, %v6807
        %v6809 = vpop.f32.mrf.mxu0
        %6810 = vmatprep.mubr.f32.mxu0 0.0
        %6811 = vmatmul.mubr.f32.gmra.mxu0 %v6436
        %v6812 = vpop.f32.mrf.mxu0
        %v6813 = vadd.f32 0.0, %v6812
        %v6814 = vpop.f32.mrf.mxu0
        %6815 = vmatprep.mubr.f32.mxu0 0.0
        %6816 = vmatmul.mubr.f32.gmra.mxu0 %v6439
        %v6817 = vpop.f32.mrf.mxu0
        %v6818 = vadd.f32 0.0, %v6817
        %v6819 = vpop.f32.mrf.mxu0
        %6820 = vmatprep.mubr.f32.mxu0 0.0
        %6821 = vmatmul.mubr.f32.gmra.mxu0 %v6442
        %v6822 = vpop.f32.mrf.mxu0
        %v6823 = vadd.f32 0.0, %v6822
        %v6824 = vpop.f32.mrf.mxu0
        %6825 = vmatprep.mubr.f32.mxu0 0.0
        %6826 = vmatmul.mubr.f32.gmra.mxu0 %v6445
        %v6827 = vpop.f32.mrf.mxu0
        %v6828 = vadd.f32 0.0, %v6827
        %v6829 = vpop.f32.mrf.mxu0
        %6830 = vmatprep.mubr.f32.mxu0 0.0
        %6831 = vmatmul.mubr.f32.gmra.mxu0 %v6448
        %v6832 = vpop.f32.mrf.mxu0
        %v6833 = vadd.f32 0.0, %v6832
        %v6834 = vpop.f32.mrf.mxu0
        %6835 = vmatprep.mubr.f32.mxu0 0.0
        %6836 = vmatmul.mubr.f32.gmra.mxu0 %v6451
        %v6837 = vpop.f32.mrf.mxu0
        %v6838 = vadd.f32 0.0, %v6837
        %v6839 = vpop.f32.mrf.mxu0
        %6840 = vdwg.mxu0
        %v6841 = vadd.f32 %v5873, %v6523
        %v6842 = vadd.f32 %v5878, %v6528
        %v6843 = vadd.f32 %v5883, %v6533
        %v6844 = vadd.f32 %v5888, %v6538
        %v6845 = vadd.f32 %v5893, %v6543
        %v6846 = vadd.f32 %v5898, %v6548
        %v6847 = vadd.f32 %v5903, %v6553
        %v6848 = vadd.f32 %v5908, %v6558
        %v6849 = vadd.f32 %v5913, %v6563
        %v6850 = vadd.f32 %v5918, %v6568
        %v6851 = vadd.f32 %v5923, %v6573
        %v6852 = vadd.f32 %v5928, %v6578
        %v6853 = vadd.f32 %v5933, %v6583
        %v6854 = vadd.f32 %v5938, %v6588
        %v6855 = vadd.f32 %v5943, %v6593
        %v6856 = vadd.f32 %v5948, %v6598
        %v6857 = vadd.f32 %v5953, %v6603
        %v6858 = vadd.f32 %v5958, %v6608
        %v6859 = vadd.f32 %v5963, %v6613
        %v6860 = vadd.f32 %v5968, %v6618
        %v6861 = vadd.f32 %v5973, %v6623
        %v6862 = vadd.f32 %v5978, %v6628
        %v6863 = vadd.f32 %v5983, %v6633
        %v6864 = vadd.f32 %v5988, %v6638
        %v6865 = vadd.f32 %v5993, %v6643
        %v6866 = vadd.f32 %v5998, %v6648
        %v6867 = vadd.f32 %v6003, %v6653
        %v6868 = vadd.f32 %v6008, %v6658
        %v6869 = vadd.f32 %v6013, %v6663
        %v6870 = vadd.f32 %v6018, %v6668
        %v6871 = vadd.f32 %v6023, %v6673
        %v6872 = vadd.f32 %v6028, %v6678
        %v6873 = vadd.f32 %v6033, %v6683
        %v6874 = vadd.f32 %v6038, %v6688
        %v6875 = vadd.f32 %v6043, %v6693
        %v6876 = vadd.f32 %v6048, %v6698
        %v6877 = vadd.f32 %v6053, %v6703
        %v6878 = vadd.f32 %v6058, %v6708
        %v6879 = vadd.f32 %v6063, %v6713
        %v6880 = vadd.f32 %v6068, %v6718
        %v6881 = vadd.f32 %v6073, %v6723
        %v6882 = vadd.f32 %v6078, %v6728
        %v6883 = vadd.f32 %v6083, %v6733
        %v6884 = vadd.f32 %v6088, %v6738
        %v6885 = vadd.f32 %v6093, %v6743
        %v6886 = vadd.f32 %v6098, %v6748
        %v6887 = vadd.f32 %v6103, %v6753
        %v6888 = vadd.f32 %v6108, %v6758
        %v6889 = vadd.f32 %v6113, %v6763
        %v6890 = vadd.f32 %v6118, %v6768
        %v6891 = vadd.f32 %v6123, %v6773
        %v6892 = vadd.f32 %v6128, %v6778
        %v6893 = vadd.f32 %v6133, %v6783
        %v6894 = vadd.f32 %v6138, %v6788
        %v6895 = vadd.f32 %v6143, %v6793
        %v6896 = vadd.f32 %v6148, %v6798
        %v6897 = vadd.f32 %v6153, %v6803
        %v6898 = vadd.f32 %v6158, %v6808
        %v6899 = vadd.f32 %v6163, %v6813
        %v6900 = vadd.f32 %v6168, %v6818
        %v6901 = vadd.f32 %v6173, %v6823
        %v6902 = vadd.f32 %v6178, %v6828
        %v6903 = vadd.f32 %v6183, %v6833
        %v6904 = vadd.f32 %v6188, %v6838
        %6905 = vst [vmem:[%s723] sm:$0xff] %v6841
        %6906 = vst [vmem:[%s723 + $0x8] sm:$0xff] %v6842
        %6907 = vst [vmem:[%s723 + $0x10] sm:$0xff] %v6843
        %6908 = vst [vmem:[%s723 + $0x18] sm:$0xff] %v6844
        %6909 = vst [vmem:[%s723 + $0x20] sm:$0xff] %v6845
        %6910 = vst [vmem:[%s723 + $0x28] sm:$0xff] %v6846
        %6911 = vst [vmem:[%s723 + $0x30] sm:$0xff] %v6847
        %6912 = vst [vmem:[%s723 + $0x38] sm:$0xff] %v6848
        %6913 = vst [vmem:[%s723 + $0x40] sm:$0xff] %v6849
        %6914 = vst [vmem:[%s723 + $0x48] sm:$0xff] %v6850
        %6915 = vst [vmem:[%s723 + $0x50] sm:$0xff] %v6851
        %6916 = vst [vmem:[%s723 + $0x58] sm:$0xff] %v6852
        %6917 = vst [vmem:[%s723 + $0x60] sm:$0xff] %v6853
        %6918 = vst [vmem:[%s723 + $0x68] sm:$0xff] %v6854
        %6919 = vst [vmem:[%s723 + $0x70] sm:$0xff] %v6855
        %6920 = vst [vmem:[%s723 + $0x78] sm:$0xff] %v6856
        %6921 = vst [vmem:[%s723 + $0x80] sm:$0xff] %v6857
        %6922 = vst [vmem:[%s723 + $0x88] sm:$0xff] %v6858
        %6923 = vst [vmem:[%s723 + $0x90] sm:$0xff] %v6859
        %6924 = vst [vmem:[%s723 + $0x98] sm:$0xff] %v6860
        %6925 = vst [vmem:[%s723 + $0xa0] sm:$0xff] %v6861
        %6926 = vst [vmem:[%s723 + $0xa8] sm:$0xff] %v6862
        %6927 = vst [vmem:[%s723 + $0xb0] sm:$0xff] %v6863
        %6928 = vst [vmem:[%s723 + $0xb8] sm:$0xff] %v6864
        %6929 = vst [vmem:[%s723 + $0xc0] sm:$0xff] %v6865
        %6930 = vst [vmem:[%s723 + $0xc8] sm:$0xff] %v6866
        %6931 = vst [vmem:[%s723 + $0xd0] sm:$0xff] %v6867
        %6932 = vst [vmem:[%s723 + $0xd8] sm:$0xff] %v6868
        %6933 = vst [vmem:[%s723 + $0xe0] sm:$0xff] %v6869
        %6934 = vst [vmem:[%s723 + $0xe8] sm:$0xff] %v6870
        %6935 = vst [vmem:[%s723 + $0xf0] sm:$0xff] %v6871
        %6936 = vst [vmem:[%s723 + $0xf8] sm:$0xff] %v6872
        %6937 = vst [vmem:[%s723 + $0x100] sm:$0xff] %v6873
        %6938 = vst [vmem:[%s723 + $0x108] sm:$0xff] %v6874
        %6939 = vst [vmem:[%s723 + $0x110] sm:$0xff] %v6875
        %6940 = vst [vmem:[%s723 + $0x118] sm:$0xff] %v6876
        %6941 = vst [vmem:[%s723 + $0x120] sm:$0xff] %v6877
        %6942 = vst [vmem:[%s723 + $0x128] sm:$0xff] %v6878
        %6943 = vst [vmem:[%s723 + $0x130] sm:$0xff] %v6879
        %6944 = vst [vmem:[%s723 + $0x138] sm:$0xff] %v6880
        %6945 = vst [vmem:[%s723 + $0x140] sm:$0xff] %v6881
        %6946 = vst [vmem:[%s723 + $0x148] sm:$0xff] %v6882
        %6947 = vst [vmem:[%s723 + $0x150] sm:$0xff] %v6883
        %6948 = vst [vmem:[%s723 + $0x158] sm:$0xff] %v6884
        %6949 = vst [vmem:[%s723 + $0x160] sm:$0xff] %v6885
        %6950 = vst [vmem:[%s723 + $0x168] sm:$0xff] %v6886
        %6951 = vst [vmem:[%s723 + $0x170] sm:$0xff] %v6887
        %6952 = vst [vmem:[%s723 + $0x178] sm:$0xff] %v6888
        %6953 = vst [vmem:[%s723 + $0x180] sm:$0xff] %v6889
        %6954 = vst [vmem:[%s723 + $0x188] sm:$0xff] %v6890
        %6955 = vst [vmem:[%s723 + $0x190] sm:$0xff] %v6891
        %6956 = vst [vmem:[%s723 + $0x198] sm:$0xff] %v6892
        %6957 = vst [vmem:[%s723 + $0x1a0] sm:$0xff] %v6893
        %6958 = vst [vmem:[%s723 + $0x1a8] sm:$0xff] %v6894
        %6959 = vst [vmem:[%s723 + $0x1b0] sm:$0xff] %v6895
        %6960 = vst [vmem:[%s723 + $0x1b8] sm:$0xff] %v6896
        %6961 = vst [vmem:[%s723 + $0x1c0] sm:$0xff] %v6897
        %6962 = vst [vmem:[%s723 + $0x1c8] sm:$0xff] %v6898
        %6963 = vst [vmem:[%s723 + $0x1d0] sm:$0xff] %v6899
        %6964 = vst [vmem:[%s723 + $0x1d8] sm:$0xff] %v6900
        %6965 = vst [vmem:[%s723 + $0x1e0] sm:$0xff] %v6901
        %6966 = vst [vmem:[%s723 + $0x1e8] sm:$0xff] %v6902
        %6967 = vst [vmem:[%s723 + $0x1f0] sm:$0xff] %v6903
        %6968 = vst [vmem:[%s723 + $0x1f8] sm:$0xff] %v6904
        %s6969 = sand.u32 %s386, 1
        %s6970 = scalar_lea.sflag [#allocation4], %s6969
        %s6971 = sand.u32 %s386, 1
        %s6972 = smul.addr %s6971, 512
        %s6973 = scalar_lea.vmem [#allocation3], %s6972
        // Predicated region
        $region65: #{tpu_custom_call.1} parent=63 // pred_check
          %p6974 = pneg %p396
        $region66: #{tpu_custom_call.1} parent=63 // pred_check_branch
          %6976 = sbr.rel (%p6974) target = $region68
        $region67: #{tpu_custom_call.1} parent=63 // pred_region
          %s6977 = smul.u32 8, %s30
          %s6979 = ssub.s32 8192, 8192
          %6980 = vsyncadd %s6970, %s6979
          %s6981 = smul.addr %s6977, 8
          %s6982 = smul.addr %s29, 64
          %s6983 = sadd.s32 %s6981, %s6982
          %s6984 = smul.addr %s6983, 128
          %s6985 = scalar_lea.hbm %s11, %s6984
          %s6986 = sshll.u32 %s6973, 4
          %s6987 = int_to_ptr.vmem [resolvable:$true] %s6986
          %6992 = dma.vmem_to_hbm [thread:$0]  %s6987, 8192, %s6985, %s6970, 128, 128, 8
        $region68: #{tpu_custom_call.1} parent=63 // pred_fallthru
          _
      $region64: #{tpu_custom_call.1} parent=5 // pred_fallthru
        _
      %p6993 = scmp.le.s32.totalorder 2, %s20
      // Predicated region
      $region69: #{tpu_custom_call.1} parent=5 // pred_check
        %p6994 = pneg %p6993
      $region70: #{tpu_custom_call.1} parent=5 // pred_check_branch
        %6996 = sbr.rel (%p6994) target = $region72
      $region71: #{tpu_custom_call.1} parent=5 // pred_region
        %s6997 = ssub.s32 %s20, 2
        // Predicated region
        $region73: #{tpu_custom_call.1} parent=71 // pred_check
          %p6998 = pneg %p402
        $region74: #{tpu_custom_call.1} parent=71 // pred_check_branch
          %7000 = sbr.rel (%p6998) target = $region76
        $region75: #{tpu_custom_call.1} parent=71 // pred_region
          %s7001 = sand.u32 %s387, 1
          %s7002 = scalar_lea.sflag [#allocation4], %s7001
          %s7003 = sand.u32 %s387, 1
          %s7004 = smul.addr %s7003, 512
          %s7005 = scalar_lea.vmem [#allocation3], %s7004
          %7006 = dma.done %s7002, 8192
        $region76: #{tpu_custom_call.1} parent=71 // pred_fallthru
          _
      $region72: #{tpu_custom_call.1} parent=5 // pred_fallthru
        _
    $region6: #{tpu_custom_call.1} parent=1 // loop_footer
      %s24 = sadd.s32 1, %s20
    $region7: #{tpu_custom_call.1} parent=1 // loop_footer_branch
      %19 = sbr.rel target = $region3
    $region8: #{tpu_custom_call.1} parent=1 // loop_exit
      _
    %7007 = vsyncpa [#allocation4], 1
    %s7008 = scalar_lea.sflag [#allocation4], 1
    %7009 = vsyncpa %s7008, 1

</llo_original>
